<compile_context>
chip_gen: v6e
topology: v6e:2x2x1
jax: 0.10.0
libtpu: 0.0.40
codegen_flags: <defaults>
</compile_context>

<pallas_src>
import functools

import jax
import jax.numpy as jnp
from jax import lax
from jax.experimental import pallas as pl
from jax.experimental.pallas import tpu as pltpu

T_TRAIN = 1000
B = 2           # batch
SEQ = 8         # latent sequence length   (target is (B, 8, 512))
D_LAT = 512     # latent feature dim
Q_LEN = 16      # question token length
EMB_DIM = 768   # conditioning embedding dim (input of proj_in_2)
TSTEP_CH = 256  # sinusoidal timestep channels
VAE_DIM = 1536  # norm_out width


# ----------------------------------------------------------------------------
# Fused Pallas kernel: diffuse + conditioning + norm_in/modulate + VAE surrogate
#                      + norm_out + DiT surrogate + MSE, all in one call.
# ----------------------------------------------------------------------------

def _fused_forward_kernel(
    x0_ref, nz_ref, sa_ref, so_ref, tsin_ref, cfg_ref,
    tw1_ref, tb1_ref, tw2_ref, tb2_ref, cls_ref,
    pw_ref, pb_ref,
    vw_in_ref, vb_in_ref, vw_mu_ref, vb_mu_ref,
    dws_ref, dwc_ref, db_ref,
    loss_ref, *, inv_n, d_lat,
):
    f32 = jnp.float32
    bf16 = jnp.bfloat16

    def mm(x, w_ref):
        # bf16 operands into the MXU, f32 accumulation.
        return jnp.dot(x.astype(bf16), w_ref[...], preferred_element_type=f32)

    def silu(x):
        # x * sigmoid(x); exp and reciprocal both go to the EUP slot.
        return x * pl.reciprocal(1.0 + jnp.exp(-x), approx=True)

    def ln(x, eps=1e-6):               # LayerNorm, no affine, f32 epilogue
        mu = jnp.mean(x, axis=-1, keepdims=True)
        var = jnp.mean(jnp.square(x - mu), axis=-1, keepdims=True)
        return (x - mu) * lax.rsqrt(var + eps)

    # ---- diff_prepare (add_noise) + velocity (v-prediction target) ----
    x0 = x0_ref[...]                   # (rows, 512) f32
    nz = nz_ref[...]
    sa = sa_ref[...]                   # (rows, 1)  sqrt(alphas_cumprod[t])
    so = so_ref[...]                   # (rows, 1)  sqrt(1 - alphas_cumprod[t])
    noisy = sa * x0 + so * nz
    v = sa * nz - so * x0

    # ---- CombinedTimestepLabelEmbeddings surrogate: sin -> Linear -> SiLU -> Linear (+class 0)
    # TODO(synk): exact DiT norm1.emb config not provided; standard diffusers layout assumed.
    h = silu(mm(tsin_ref[...], tw1_ref) + tb1_ref[...])          # (rows, 768)
    cond_emb = mm(h, tw2_ref) + tb2_ref[...] + cls_ref[...]      # (rows, 768)

    # ---- proj_in_2 (Linear 768->1024, zero-initialised) -> shift / scale ----
    sc = mm(silu(cond_emb), pw_ref) + pb_ref[...]                # (rows, 1024)
    shift = sc[:, :d_lat]
    scale = sc[:, d_lat:]

    # ---- norm_in LayerNorm(512) + adaLN modulation ----
    states = ln(noisy) * (1.0 + scale) + shift                   # (rows, 512)

    # ---- MambaVAE surrogate around the exact norm_out LayerNorm(1536) ----
    # TODO(synk): MambaVAE (get_states/mlp2/encoder/mlp1/get_mean) source not provided;
    #             replaced by a deterministic per-token linear bottleneck.
    hv = ln(mm(states, vw_in_ref) + vb_in_ref[...])              # (rows, 1536)
    condition = mm(hv, vw_mu_ref) + vb_mu_ref[...]               # (rows, 512)
    condition = condition * cfg_ref[...]                         # CFG dropout mask

    # ---- tf_predict / DiT surrogate ----
    # TODO(synk): DiT(in_dim=128, out_dim=64, length=64, num_layers=6) source not provided;
    #             replaced by the per-token 128->64 linear, expressed as two block-diagonal
    #             (512,512) matmuls (identical to reshape+concat+linear, no lane-sparse output).
    pred = mm(noisy, dws_ref) + mm(condition, dwc_ref) + db_ref[...]   # (rows, 512)

    # ---- MSELoss (mean) ----
    diff = pred - v
    loss_ref[...] = jnp.zeros((1, 1), f32) + jnp.sum(diff * diff) * inv_n


def fused_forward(params, x0_2d, nz_2d, sa_2d, so_2d, tsin_2d, cfg_2d):
    rows, d = x0_2d.shape
    inv_n = 1.0 / float(rows * d)
    out = pl.pallas_call(
        functools.partial(_fused_forward_kernel, inv_n=inv_n, d_lat=d),
        out_shape=jax.ShapeDtypeStruct((1, 1), jnp.float32),
        compiler_params=pltpu.CompilerParams(vmem_limit_bytes=48 * 1024 * 1024),
    )(
        x0_2d, nz_2d, sa_2d, so_2d, tsin_2d, cfg_2d,
        params["temb_w1"], params["temb_b1"],
        params["temb_w2"], params["temb_b2"], params["class_emb0"],
        params["proj_in_2_w"], params["proj_in_2_b"],
        params["vae_in_w"], params["vae_in_b"],
        params["vae_mean_w"], params["vae_mean_b"],
        params["dit_ws_bd"], params["dit_wc_bd"], params["dit_b_tiled"],
    )
    return out[0, 0]


# ----------------------------------------------------------------------------
# Plain-JAX glue (schedules, embeddings, parameter setup)
# ----------------------------------------------------------------------------

def make_alphas_cumprod(T):
    """DDIMScheduler(beta_schedule='squaredcos_cap_v2')."""
    def alpha_bar(t):
        return jnp.cos((t + 0.008) / 1.008 * jnp.pi / 2.0) ** 2

    i = jnp.arange(T, dtype=jnp.float32)
    betas = jnp.minimum(1.0 - alpha_bar((i + 1) / T) / alpha_bar(i / T), 0.999)
    return jnp.cumprod(1.0 - betas)


def sinusoidal_embedding(t, dim):
    # diffusers Timesteps(flip_sin_to_cos=True, downscale_freq_shift=1) convention.
    half = dim // 2
    freqs = jnp.exp(-jnp.log(10000.0) * jnp.arange(half, dtype=jnp.float32) / (half - 1.0))
    args = t[:, None] * freqs[None, :]
    return jnp.concatenate([jnp.cos(args), jnp.sin(args)], axis=-1)


def init_params(key):
    ks = jax.random.split(key, 6)
    s = 0.02
    bf16 = jnp.bfloat16

    # DiT surrogate: per-token Linear(128 -> 64). Split into the states/condition halves
    # and expand each half to a (512, 512) block-diagonal weight (8 chunks of 64).
    dit_w = s * jax.random.normal(ks[5], (128, 64), jnp.float32)
    dit_b = jnp.zeros((64,), jnp.float32)
    eye = jnp.eye(D_LAT // 64, dtype=jnp.float32)
    dit_ws_bd = jnp.kron(eye, dit_w[:64]).astype(bf16)    # (512, 512)
    dit_wc_bd = jnp.kron(eye, dit_w[64:]).astype(bf16)    # (512, 512)
    dit_b_tiled = jnp.tile(dit_b, D_LAT // 64).reshape(1, D_LAT)

    return dict(
        alphas_cumprod=make_alphas_cumprod(T_TRAIN),
        # timestep/label embedding surrogate (denoiser.transformer_blocks[0].norm1.emb)
        temb_w1=(s * jax.random.normal(ks[0], (TSTEP_CH, EMB_DIM), jnp.float32)).astype(bf16),
        temb_b1=jnp.zeros((1, EMB_DIM), jnp.float32),
        temb_w2=(s * jax.random.normal(ks[1], (EMB_DIM, EMB_DIM), jnp.float32)).astype(bf16),
        temb_b2=jnp.zeros((1, EMB_DIM), jnp.float32),
        class_emb0=s * jax.random.normal(ks[2], (1, EMB_DIM), jnp.float32),
        # proj_in_2: nn.init.constant_(weight, 0); constant_(bias, 0) -> exactly zero
        proj_in_2_w=jnp.zeros((EMB_DIM, 2 * D_LAT), bf16),
        proj_in_2_b=jnp.zeros((1, 2 * D_LAT), jnp.float32),
        # MambaVAE surrogate
        vae_in_w=(s * jax.random.normal(ks[3], (D_LAT, VAE_DIM), jnp.float32)).astype(bf16),
        vae_in_b=jnp.zeros((1, VAE_DIM), jnp.float32),
        vae_mean_w=(s * jax.random.normal(ks[4], (VAE_DIM, D_LAT), jnp.float32)).astype(bf16),
        vae_mean_b=jnp.zeros((1, D_LAT), jnp.float32),
        dit_ws_bd=dit_ws_bd,
        dit_wc_bd=dit_wc_bd,
        dit_b_tiled=dit_b_tiled,
    )


@jax.jit
def diffuser_forward(params, target, question_ids, question_mask, key):
    # TODO(synk): question_ids/question_mask feed the (unavailable) Mamba encoder only.
    del question_ids, question_mask
    Bn, L, D = target.shape
    rows = Bn * L
    k_t, k_n, k_m = jax.random.split(key, 3)

    # randomness + schedule lookups (tiny, outside the kernel, matches torch semantics)
    timesteps = jax.random.randint(k_t, (Bn,), 0, T_TRAIN)
    noise = jax.random.normal(k_n, target.shape, jnp.float32)
    ac = params["alphas_cumprod"][timesteps]
    sqrt_alpha = jnp.sqrt(ac)
    sqrt_one_minus = jnp.sqrt(1.0 - ac)
    cfg_mask = (jax.random.uniform(k_m, (Bn,)) < 0.9).astype(jnp.float32)
    t_sin = sinusoidal_embedding(timesteps.astype(jnp.float32), TSTEP_CH)   # (B, 256)

    # row-major 2-D views so every in-kernel broadcast is lane-only
    x0_2d = target.reshape(rows, D).astype(jnp.float32)
    nz_2d = noise.reshape(rows, D)
    sa_2d = jnp.repeat(sqrt_alpha, L)[:, None].astype(jnp.float32)          # (rows, 1)
    so_2d = jnp.repeat(sqrt_one_minus, L)[:, None].astype(jnp.float32)      # (rows, 1)
    cfg_2d = jnp.repeat(cfg_mask, L)[:, None]                               # (rows, 1)
    tsin_2d = jnp.repeat(t_sin, L, axis=0)                                  # (rows, 256)

    loss = fused_forward(params, x0_2d, nz_2d, sa_2d, so_2d, tsin_2d, cfg_2d)
    return loss, loss, 0


if __name__ == "__main__":
    key = jax.random.PRNGKey(0)
    k_p, k_d, k_q, k_fwd = jax.random.split(key, 4)

    params = init_params(k_p)
    target = jax.random.normal(k_d, (B, SEQ, D_LAT), jnp.float32)
    question_ids = jax.random.randint(k_q, (B, Q_LEN), 0, 1000)
    question_mask = jnp.ones((B, Q_LEN), jnp.int32)

    loss, loss2, zero = diffuser_forward(params, target, question_ids, question_mask, k_fwd)
    jax.block_until_ready(loss)
    assert loss.shape == () and bool(jnp.isfinite(loss))
    print("KERNEL_OK")
</pallas_src>

<mosaic_0001>
module attributes {stable_mosaic.version = 11 : i64} {
  func.func @_fused_forward_kernel(%arg0: memref<16x512xf32, #tpu.memory_space<vmem>>, %arg1: memref<16x512xf32, #tpu.memory_space<vmem>>, %arg2: memref<16x1xf32, #tpu.memory_space<vmem>>, %arg3: memref<16x1xf32, #tpu.memory_space<vmem>>, %arg4: memref<16x256xf32, #tpu.memory_space<vmem>>, %arg5: memref<16x1xf32, #tpu.memory_space<vmem>>, %arg6: memref<256x768xbf16, #tpu.memory_space<vmem>>, %arg7: memref<1x768xf32, #tpu.memory_space<vmem>>, %arg8: memref<768x768xbf16, #tpu.memory_space<vmem>>, %arg9: memref<1x768xf32, #tpu.memory_space<vmem>>, %arg10: memref<1x768xf32, #tpu.memory_space<vmem>>, %arg11: memref<768x1024xbf16, #tpu.memory_space<vmem>>, %arg12: memref<1x1024xf32, #tpu.memory_space<vmem>>, %arg13: memref<512x1536xbf16, #tpu.memory_space<vmem>>, %arg14: memref<1x1536xf32, #tpu.memory_space<vmem>>, %arg15: memref<1536x512xbf16, #tpu.memory_space<vmem>>, %arg16: memref<1x512xf32, #tpu.memory_space<vmem>>, %arg17: memref<512x512xbf16, #tpu.memory_space<vmem>>, %arg18: memref<512x512xbf16, #tpu.memory_space<vmem>>, %arg19: memref<1x512xf32, #tpu.memory_space<vmem>>, %arg20: memref<1x1xf32, #tpu.memory_space<vmem>>) attributes {dimension_semantics = [], scalar_prefetch = 0 : i64, scratch_operands = 0 : i64, tpu.core_type = #tpu.core_type<tc>} {
    %c0 = arith.constant 0 : index
    %c0_0 = arith.constant 0 : index
    %0 = vector.load %arg0[%c0, %c0_0] : memref<16x512xf32, #tpu.memory_space<vmem>>, vector<16x512xf32>
    %c0_1 = arith.constant 0 : index
    %c0_2 = arith.constant 0 : index
    %1 = vector.load %arg1[%c0_1, %c0_2] : memref<16x512xf32, #tpu.memory_space<vmem>>, vector<16x512xf32>
    %c0_3 = arith.constant 0 : index
    %c0_4 = arith.constant 0 : index
    %2 = vector.load %arg2[%c0_3, %c0_4] : memref<16x1xf32, #tpu.memory_space<vmem>>, vector<16x1xf32>
    %c0_5 = arith.constant 0 : index
    %c0_6 = arith.constant 0 : index
    %3 = vector.load %arg3[%c0_5, %c0_6] : memref<16x1xf32, #tpu.memory_space<vmem>>, vector<16x1xf32>
    %4 = vector.broadcast %2 : vector<16x1xf32> to vector<16x512xf32>
    %5 = arith.mulf %4, %0 : vector<16x512xf32>
    %6 = vector.broadcast %3 : vector<16x1xf32> to vector<16x512xf32>
    %7 = arith.mulf %6, %1 : vector<16x512xf32>
    %8 = arith.addf %5, %7 : vector<16x512xf32>
    %9 = vector.broadcast %2 : vector<16x1xf32> to vector<16x512xf32>
    %10 = arith.mulf %9, %1 : vector<16x512xf32>
    %11 = vector.broadcast %3 : vector<16x1xf32> to vector<16x512xf32>
    %12 = arith.mulf %11, %0 : vector<16x512xf32>
    %13 = arith.subf %10, %12 : vector<16x512xf32>
    %c0_7 = arith.constant 0 : index
    %c0_8 = arith.constant 0 : index
    %14 = vector.load %arg4[%c0_7, %c0_8] : memref<16x256xf32, #tpu.memory_space<vmem>>, vector<16x256xf32>
    %15 = arith.truncf %14 : vector<16x256xf32> to vector<16x256xbf16>
    %c0_9 = arith.constant 0 : index
    %c0_10 = arith.constant 0 : index
    %16 = vector.load %arg6[%c0_9, %c0_10] : memref<256x768xbf16, #tpu.memory_space<vmem>>, vector<256x768xbf16>
    %cst = arith.constant dense<0.000000e+00> : vector<16x768xf32>
    %17 = tpu.matmul %15, %16, %cst {dimension_numbers = #tpu.dot_dimension_numbers<[1], [0], [0], [1], [0, 0, 1, 1], [], []>} : vector<16x256xbf16>, vector<256x768xbf16>, vector<16x768xf32> -> vector<16x768xf32>
    %c0_11 = arith.constant 0 : index
    %c0_12 = arith.constant 0 : index
    %18 = vector.load %arg7[%c0_11, %c0_12] : memref<1x768xf32, #tpu.memory_space<vmem>>, vector<1x768xf32>
    %19 = vector.broadcast %18 : vector<1x768xf32> to vector<16x768xf32>
    %20 = arith.addf %17, %19 : vector<16x768xf32>
    %cst_13 = arith.constant 0.000000e+00 : f32
    %21 = vector.broadcast %cst_13 : f32 to vector<16x768xf32>
    %22 = arith.subf %21, %20 : vector<16x768xf32>
    %23 = math.exp %22 : vector<16x768xf32>
    %cst_14 = arith.constant 1.000000e+00 : f32
    %24 = vector.broadcast %cst_14 : f32 to vector<16x768xf32>
    %25 = arith.addf %24, %23 : vector<16x768xf32>
    %26 = tpu.reciprocal %25 {approx = true} : vector<16x768xf32> -> vector<16x768xf32>
    %27 = arith.mulf %20, %26 : vector<16x768xf32>
    %28 = arith.truncf %27 : vector<16x768xf32> to vector<16x768xbf16>
    %c0_15 = arith.constant 0 : index
    %c0_16 = arith.constant 0 : index
    %29 = vector.load %arg8[%c0_15, %c0_16] : memref<768x768xbf16, #tpu.memory_space<vmem>>, vector<768x768xbf16>
    %cst_17 = arith.constant dense<0.000000e+00> : vector<16x768xf32>
    %30 = tpu.matmul %28, %29, %cst_17 {dimension_numbers = #tpu.dot_dimension_numbers<[1], [0], [0], [1], [0, 0, 1, 1], [], []>} : vector<16x768xbf16>, vector<768x768xbf16>, vector<16x768xf32> -> vector<16x768xf32>
    %c0_18 = arith.constant 0 : index
    %c0_19 = arith.constant 0 : index
    %31 = vector.load %arg9[%c0_18, %c0_19] : memref<1x768xf32, #tpu.memory_space<vmem>>, vector<1x768xf32>
    %32 = vector.broadcast %31 : vector<1x768xf32> to vector<16x768xf32>
    %33 = arith.addf %30, %32 : vector<16x768xf32>
    %c0_20 = arith.constant 0 : index
    %c0_21 = arith.constant 0 : index
    %34 = vector.load %arg10[%c0_20, %c0_21] : memref<1x768xf32, #tpu.memory_space<vmem>>, vector<1x768xf32>
    %35 = vector.broadcast %34 : vector<1x768xf32> to vector<16x768xf32>
    %36 = arith.addf %33, %35 : vector<16x768xf32>
    %cst_22 = arith.constant 0.000000e+00 : f32
    %37 = vector.broadcast %cst_22 : f32 to vector<16x768xf32>
    %38 = arith.subf %37, %36 : vector<16x768xf32>
    %39 = math.exp %38 : vector<16x768xf32>
    %cst_23 = arith.constant 1.000000e+00 : f32
    %40 = vector.broadcast %cst_23 : f32 to vector<16x768xf32>
    %41 = arith.addf %40, %39 : vector<16x768xf32>
    %42 = tpu.reciprocal %41 {approx = true} : vector<16x768xf32> -> vector<16x768xf32>
    %43 = arith.mulf %36, %42 : vector<16x768xf32>
    %44 = arith.truncf %43 : vector<16x768xf32> to vector<16x768xbf16>
    %c0_24 = arith.constant 0 : index
    %c0_25 = arith.constant 0 : index
    %45 = vector.load %arg11[%c0_24, %c0_25] : memref<768x1024xbf16, #tpu.memory_space<vmem>>, vector<768x1024xbf16>
    %cst_26 = arith.constant dense<0.000000e+00> : vector<16x1024xf32>
    %46 = tpu.matmul %44, %45, %cst_26 {dimension_numbers = #tpu.dot_dimension_numbers<[1], [0], [0], [1], [0, 0, 1, 1], [], []>} : vector<16x768xbf16>, vector<768x1024xbf16>, vector<16x1024xf32> -> vector<16x1024xf32>
    %c0_27 = arith.constant 0 : index
    %c0_28 = arith.constant 0 : index
    %47 = vector.load %arg12[%c0_27, %c0_28] : memref<1x1024xf32, #tpu.memory_space<vmem>>, vector<1x1024xf32>
    %48 = vector.broadcast %47 : vector<1x1024xf32> to vector<16x1024xf32>
    %49 = arith.addf %46, %48 : vector<16x1024xf32>
    %50 = vector.extract_strided_slice %49 {offsets = [0, 0], sizes = [16, 512], strides = [1, 1]} : vector<16x1024xf32> to vector<16x512xf32>
    %51 = vector.extract_strided_slice %49 {offsets = [0, 512], sizes = [16, 512], strides = [1, 1]} : vector<16x1024xf32> to vector<16x512xf32>
    %cst_29 = arith.constant dense<0.000000e+00> : vector<16xf32>
    %52 = vector.multi_reduction <add>, %8, %cst_29 [1] : vector<16x512xf32> to vector<16xf32>
    %53 = vector.shape_cast %52 : vector<16xf32> to vector<16x1xf32>
    %cst_30 = arith.constant 5.120000e+02 : f32
    %54 = vector.broadcast %cst_30 : f32 to vector<16x1xf32>
    %55 = arith.divf %53, %54 : vector<16x1xf32>
    %56 = vector.broadcast %55 : vector<16x1xf32> to vector<16x512xf32>
    %57 = arith.subf %8, %56 : vector<16x512xf32>
    %58 = arith.mulf %57, %57 : vector<16x512xf32>
    %cst_31 = arith.constant dense<0.000000e+00> : vector<16xf32>
    %59 = vector.multi_reduction <add>, %58, %cst_31 [1] : vector<16x512xf32> to vector<16xf32>
    %60 = vector.shape_cast %59 : vector<16xf32> to vector<16x1xf32>
    %cst_32 = arith.constant 5.120000e+02 : f32
    %61 = vector.broadcast %cst_32 : f32 to vector<16x1xf32>
    %62 = arith.divf %60, %61 : vector<16x1xf32>
    %63 = vector.broadcast %55 : vector<16x1xf32> to vector<16x512xf32>
    %64 = arith.subf %8, %63 : vector<16x512xf32>
    %cst_33 = arith.constant 9.99999997E-7 : f32
    %65 = vector.broadcast %cst_33 : f32 to vector<16x1xf32>
    %66 = arith.addf %62, %65 : vector<16x1xf32>
    %67 = math.rsqrt %66 : vector<16x1xf32>
    %68 = vector.broadcast %67 : vector<16x1xf32> to vector<16x512xf32>
    %69 = arith.mulf %64, %68 : vector<16x512xf32>
    %cst_34 = arith.constant 1.000000e+00 : f32
    %70 = vector.broadcast %cst_34 : f32 to vector<16x512xf32>
    %71 = arith.addf %70, %51 : vector<16x512xf32>
    %72 = arith.mulf %69, %71 : vector<16x512xf32>
    %73 = arith.addf %72, %50 : vector<16x512xf32>
    %74 = arith.truncf %73 : vector<16x512xf32> to vector<16x512xbf16>
    %c0_35 = arith.constant 0 : index
    %c0_36 = arith.constant 0 : index
    %75 = vector.load %arg13[%c0_35, %c0_36] : memref<512x1536xbf16, #tpu.memory_space<vmem>>, vector<512x1536xbf16>
    %cst_37 = arith.constant dense<0.000000e+00> : vector<16x1536xf32>
    %76 = tpu.matmul %74, %75, %cst_37 {dimension_numbers = #tpu.dot_dimension_numbers<[1], [0], [0], [1], [0, 0, 1, 1], [], []>} : vector<16x512xbf16>, vector<512x1536xbf16>, vector<16x1536xf32> -> vector<16x1536xf32>
    %c0_38 = arith.constant 0 : index
    %c0_39 = arith.constant 0 : index
    %77 = vector.load %arg14[%c0_38, %c0_39] : memref<1x1536xf32, #tpu.memory_space<vmem>>, vector<1x1536xf32>
    %78 = vector.broadcast %77 : vector<1x1536xf32> to vector<16x1536xf32>
    %79 = arith.addf %76, %78 : vector<16x1536xf32>
    %cst_40 = arith.constant dense<0.000000e+00> : vector<16xf32>
    %80 = vector.multi_reduction <add>, %79, %cst_40 [1] : vector<16x1536xf32> to vector<16xf32>
    %81 = vector.shape_cast %80 : vector<16xf32> to vector<16x1xf32>
    %cst_41 = arith.constant 1.536000e+03 : f32
    %82 = vector.broadcast %cst_41 : f32 to vector<16x1xf32>
    %83 = arith.divf %81, %82 : vector<16x1xf32>
    %84 = vector.broadcast %83 : vector<16x1xf32> to vector<16x1536xf32>
    %85 = arith.subf %79, %84 : vector<16x1536xf32>
    %86 = arith.mulf %85, %85 : vector<16x1536xf32>
    %cst_42 = arith.constant dense<0.000000e+00> : vector<16xf32>
    %87 = vector.multi_reduction <add>, %86, %cst_42 [1] : vector<16x1536xf32> to vector<16xf32>
    %88 = vector.shape_cast %87 : vector<16xf32> to vector<16x1xf32>
    %cst_43 = arith.constant 1.536000e+03 : f32
    %89 = vector.broadcast %cst_43 : f32 to vector<16x1xf32>
    %90 = arith.divf %88, %89 : vector<16x1xf32>
    %91 = vector.broadcast %83 : vector<16x1xf32> to vector<16x1536xf32>
    %92 = arith.subf %79, %91 : vector<16x1536xf32>
    %cst_44 = arith.constant 9.99999997E-7 : f32
    %93 = vector.broadcast %cst_44 : f32 to vector<16x1xf32>
    %94 = arith.addf %90, %93 : vector<16x1xf32>
    %95 = math.rsqrt %94 : vector<16x1xf32>
    %96 = vector.broadcast %95 : vector<16x1xf32> to vector<16x1536xf32>
    %97 = arith.mulf %92, %96 : vector<16x1536xf32>
    %98 = arith.truncf %97 : vector<16x1536xf32> to vector<16x1536xbf16>
    %c0_45 = arith.constant 0 : index
    %c0_46 = arith.constant 0 : index
    %99 = vector.load %arg15[%c0_45, %c0_46] : memref<1536x512xbf16, #tpu.memory_space<vmem>>, vector<1536x512xbf16>
    %cst_47 = arith.constant dense<0.000000e+00> : vector<16x512xf32>
    %100 = tpu.matmul %98, %99, %cst_47 {dimension_numbers = #tpu.dot_dimension_numbers<[1], [0], [0], [1], [0, 0, 1, 1], [], []>} : vector<16x1536xbf16>, vector<1536x512xbf16>, vector<16x512xf32> -> vector<16x512xf32>
    %c0_48 = arith.constant 0 : index
    %c0_49 = arith.constant 0 : index
    %101 = vector.load %arg16[%c0_48, %c0_49] : memref<1x512xf32, #tpu.memory_space<vmem>>, vector<1x512xf32>
    %102 = vector.broadcast %101 : vector<1x512xf32> to vector<16x512xf32>
    %103 = arith.addf %100, %102 : vector<16x512xf32>
    %c0_50 = arith.constant 0 : index
    %c0_51 = arith.constant 0 : index
    %104 = vector.load %arg5[%c0_50, %c0_51] : memref<16x1xf32, #tpu.memory_space<vmem>>, vector<16x1xf32>
    %105 = vector.broadcast %104 : vector<16x1xf32> to vector<16x512xf32>
    %106 = arith.mulf %103, %105 : vector<16x512xf32>
    %107 = arith.truncf %8 : vector<16x512xf32> to vector<16x512xbf16>
    %c0_52 = arith.constant 0 : index
    %c0_53 = arith.constant 0 : index
    %108 = vector.load %arg17[%c0_52, %c0_53] : memref<512x512xbf16, #tpu.memory_space<vmem>>, vector<512x512xbf16>
    %cst_54 = arith.constant dense<0.000000e+00> : vector<16x512xf32>
    %109 = tpu.matmul %107, %108, %cst_54 {dimension_numbers = #tpu.dot_dimension_numbers<[1], [0], [0], [1], [0, 0, 1, 1], [], []>} : vector<16x512xbf16>, vector<512x512xbf16>, vector<16x512xf32> -> vector<16x512xf32>
    %110 = arith.truncf %106 : vector<16x512xf32> to vector<16x512xbf16>
    %c0_55 = arith.constant 0 : index
    %c0_56 = arith.constant 0 : index
    %111 = vector.load %arg18[%c0_55, %c0_56] : memref<512x512xbf16, #tpu.memory_space<vmem>>, vector<512x512xbf16>
    %cst_57 = arith.constant dense<0.000000e+00> : vector<16x512xf32>
    %112 = tpu.matmul %110, %111, %cst_57 {dimension_numbers = #tpu.dot_dimension_numbers<[1], [0], [0], [1], [0, 0, 1, 1], [], []>} : vector<16x512xbf16>, vector<512x512xbf16>, vector<16x512xf32> -> vector<16x512xf32>
    %113 = arith.addf %109, %112 : vector<16x512xf32>
    %c0_58 = arith.constant 0 : index
    %c0_59 = arith.constant 0 : index
    %114 = vector.load %arg19[%c0_58, %c0_59] : memref<1x512xf32, #tpu.memory_space<vmem>>, vector<1x512xf32>
    %115 = vector.broadcast %114 : vector<1x512xf32> to vector<16x512xf32>
    %116 = arith.addf %113, %115 : vector<16x512xf32>
    %117 = arith.subf %116, %13 : vector<16x512xf32>
    %cst_60 = arith.constant 0.000000e+00 : f32
    %118 = vector.broadcast %cst_60 : f32 to vector<1x1xf32>
    %119 = arith.mulf %117, %117 : vector<16x512xf32>
    %120 = vector.shape_cast %119 : vector<16x512xf32> to vector<1x16x512xf32>
    %cst_61 = arith.constant dense<0.000000e+00> : vector<1xf32>
    %121 = vector.multi_reduction <add>, %120, %cst_61 [1, 2] : vector<1x16x512xf32> to vector<1xf32>
    %122 = vector.shape_cast %121 : vector<1xf32> to vector<1x1x1xf32>
    %123 = vector.extract %122[0, 0, 0] : f32 from vector<1x1x1xf32>
    %cst_62 = arith.constant 1.22070313E-4 : f32
    %124 = arith.mulf %123, %cst_62 : f32
    %125 = vector.broadcast %124 : f32 to vector<1x1xf32>
    %126 = arith.addf %118, %125 : vector<1x1xf32>
    %c0_63 = arith.constant 0 : index
    %c0_64 = arith.constant 0 : index
    %127 = vector.load %arg20[%c0_63, %c0_64] : memref<1x1xf32, #tpu.memory_space<vmem>>, vector<1x1xf32>
    tpu.vector_store %arg20[%c0_63, %c0_64], %126 {strides = array<i32>} : memref<1x1xf32, #tpu.memory_space<vmem>>, vector<1x1xf32>,
    return
  }
}

</mosaic_0001>

<llo_original>
// kernel: diffuser_forward.3
$region0: #{diffuser_forward.3}
  #allocation0 [shape = 'u32[]', space=smem, size = 0x4, offset = 0x4, fixed_abs, tag = 'smem constant byte address 0x4 - core index']
  #allocation1 [shape = 'u32[144,128]{1,0:T(1,128)}', space=vmem, size = 0x12000, scoped, tag = 'internal scratch']
  %s0 = inlined_call_operand.hbm [shape: f32[16,512], index: 0, kind: input, shape index: {}]
  %s1 = inlined_call_operand.vmem [shape: f32[16,512], index: 1, kind: input, shape index: {}]
  %s2 = inlined_call_operand.vmem [shape: f32[16,1], index: 2, kind: input, shape index: {}]
  %s3 = inlined_call_operand.vmem [shape: f32[16,1], index: 3, kind: input, shape index: {}]
  %s4 = inlined_call_operand.vmem [shape: f32[16,256], index: 4, kind: input, shape index: {}]
  %s5 = inlined_call_operand.vmem [shape: f32[16,1], index: 5, kind: input, shape index: {}]
  %s6 = inlined_call_operand.hbm [shape: bf16[256,768], index: 6, kind: input, shape index: {}]
  %s7 = inlined_call_operand.hbm [shape: f32[1,768], index: 7, kind: input, shape index: {}]
  %s8 = inlined_call_operand.hbm [shape: bf16[768,768], index: 8, kind: input, shape index: {}]
  %s9 = inlined_call_operand.hbm [shape: f32[1,768], index: 9, kind: input, shape index: {}]
  %s10 = inlined_call_operand.hbm [shape: f32[1,768], index: 10, kind: input, shape index: {}]
  %s11 = inlined_call_operand.hbm [shape: bf16[768,1024], index: 11, kind: input, shape index: {}]
  %s12 = inlined_call_operand.hbm [shape: f32[1,1024], index: 12, kind: input, shape index: {}]
  %s13 = inlined_call_operand.hbm [shape: bf16[512,1536], index: 13, kind: input, shape index: {}]
  %s14 = inlined_call_operand.hbm [shape: f32[1,1536], index: 14, kind: input, shape index: {}]
  %s15 = inlined_call_operand.hbm [shape: bf16[1536,512], index: 15, kind: input, shape index: {}]
  %s16 = inlined_call_operand.hbm [shape: f32[1,512], index: 16, kind: input, shape index: {}]
  %s17 = inlined_call_operand.hbm [shape: bf16[512,512], index: 17, kind: input, shape index: {}]
  %s18 = inlined_call_operand.hbm [shape: bf16[512,512], index: 18, kind: input, shape index: {}]
  %s19 = inlined_call_operand.hbm [shape: f32[1,512], index: 19, kind: input, shape index: {}]
  %s20 = inlined_call_operand.hbm [shape: f32[1,1], index: 20, kind: output, shape index: {}]
  %s21 = sld [smem:[#allocation0]]
  $region150: #{diffuser_forward.3} parent=0
    _
  %s23 = ssub.s32 1, %s21
  %s24 = scalar_select 0, %s23, %s21
  $region1: #{diffuser_forward.3} parent=0
    #allocation2 [shape = 'u8[32768]{0}', space=vmem, size = 0x8000, scoped, tag = 'input window, operand 0, single buffered']
    #allocation3 [shape = 's32[1]{0}', space=sflag, size = 0x4, scoped, tag = 'scoped memory for diffuser_forward.3']
    #allocation4 [shape = 's32[1]{0}', space=sflag, size = 0x4, scoped, tag = 'scoped memory for diffuser_forward.3']
    #allocation5 [shape = 'u8[393216]{0}', space=vmem, size = 0x60000, scoped, tag = 'input window, operand 6, single buffered']
    #allocation6 [shape = 's32[1]{0}', space=sflag, size = 0x4, scoped, tag = 'scoped memory for diffuser_forward.3']
    #allocation7 [shape = 'u8[3072]{0}', space=vmem, size = 0xc00, scoped, tag = 'input window, operand 7, single buffered']
    #allocation8 [shape = 'u8[1179648]{0}', space=vmem, size = 0x120000, scoped, tag = 'input window, operand 8, single buffered']
    #allocation9 [shape = 's32[1]{0}', space=sflag, size = 0x4, scoped, tag = 'scoped memory for diffuser_forward.3']
    #allocation10 [shape = 'u8[3072]{0}', space=vmem, size = 0xc00, scoped, tag = 'input window, operand 9, single buffered']
    #allocation11 [shape = 'u8[3072]{0}', space=vmem, size = 0xc00, scoped, tag = 'input window, operand 10, single buffered']
    #allocation12 [shape = 's32[1]{0}', space=sflag, size = 0x4, scoped, tag = 'scoped memory for diffuser_forward.3']
    #allocation13 [shape = 'u8[1572864]{0}', space=vmem, size = 0x180000, scoped, tag = 'input window, operand 11, single buffered']
    #allocation14 [shape = 'u8[4096]{0}', space=vmem, size = 0x1000, scoped, tag = 'input window, operand 12, single buffered']
    #allocation15 [shape = 's32[1]{0}', space=sflag, size = 0x4, scoped, tag = 'scoped memory for diffuser_forward.3']
    #allocation16 [shape = 'u8[1572864]{0}', space=vmem, size = 0x180000, scoped, tag = 'input window, operand 13, single buffered']
    #allocation17 [shape = 'u8[6144]{0}', space=vmem, size = 0x1800, scoped, tag = 'input window, operand 14, single buffered']
    #allocation18 [shape = 's32[1]{0}', space=sflag, size = 0x4, scoped, tag = 'scoped memory for diffuser_forward.3']
    #allocation19 [shape = 'u8[1572864]{0}', space=vmem, size = 0x180000, scoped, tag = 'input window, operand 15, single buffered']
    #allocation20 [shape = 'u8[2048]{0}', space=vmem, size = 0x800, scoped, tag = 'input window, operand 16, single buffered']
    #allocation21 [shape = 's32[1]{0}', space=sflag, size = 0x4, scoped, tag = 'scoped memory for diffuser_forward.3']
    #allocation22 [shape = 'u8[524288]{0}', space=vmem, size = 0x80000, scoped, tag = 'input window, operand 17, single buffered']
    #allocation23 [shape = 'u8[524288]{0}', space=vmem, size = 0x80000, scoped, tag = 'input window, operand 18, single buffered']
    #allocation24 [shape = 's32[1]{0}', space=sflag, size = 0x4, scoped, tag = 'scoped memory for diffuser_forward.3']
    #allocation25 [shape = 'u8[2048]{0}', space=vmem, size = 0x800, scoped, tag = 'input window, operand 19, single buffered']
    #allocation26 [shape = 'u8[512]{0}', space=vmem, size = 0x400, scoped, tag = 'output window, operand 0, single buffered']
    %25 = vsyncpa [#allocation3], 0
    %26 = vsyncpa [#allocation6], 0
    %27 = vsyncpa [#allocation9], 0
    %28 = vsyncpa [#allocation12], 0
    %29 = vsyncpa [#allocation15], 0
    %30 = vsyncpa [#allocation18], 0
    %31 = vsyncpa [#allocation21], 0
    %32 = vsyncpa [#allocation24], 0
    %33 = vsyncpa [#allocation4], 0
    // Predicated region
    $region2: #{diffuser_forward.3} parent=1 // pred_check
      _
    $region3: #{diffuser_forward.3} parent=1 // pred_check_branch
      %35 = sbr.rel (0) target = $region5
    $region4: #{diffuser_forward.3} parent=1 // pred_region
      %s37 = ssub.s32 1024, 1024
      %38 = vsyncadd [#allocation3], %s37
      %s39 = sshll.u32 [#allocation2], 4
      %s40 = int_to_ptr.vmem [resolvable:$true] %s39
      %45 = dma.hbm_to_vmem [thread:$0]  %s0, 1024, %s40, [#allocation3], 512, 512, 32
    $region5: #{diffuser_forward.3} parent=1 // pred_fallthru
      _
    // Predicated region
    $region6: #{diffuser_forward.3} parent=1 // pred_check
      _
    $region7: #{diffuser_forward.3} parent=1 // pred_check_branch
      %47 = sbr.rel (0) target = $region9
    $region8: #{diffuser_forward.3} parent=1 // pred_region
      _
    $region9: #{diffuser_forward.3} parent=1 // pred_fallthru
      _
    // Predicated region
    $region10: #{diffuser_forward.3} parent=1 // pred_check
      _
    $region11: #{diffuser_forward.3} parent=1 // pred_check_branch
      %49 = sbr.rel (0) target = $region13
    $region12: #{diffuser_forward.3} parent=1 // pred_region
      _
    $region13: #{diffuser_forward.3} parent=1 // pred_fallthru
      _
    // Predicated region
    $region14: #{diffuser_forward.3} parent=1 // pred_check
      _
    $region15: #{diffuser_forward.3} parent=1 // pred_check_branch
      %51 = sbr.rel (0) target = $region17
    $region16: #{diffuser_forward.3} parent=1 // pred_region
      _
    $region17: #{diffuser_forward.3} parent=1 // pred_fallthru
      _
    // Predicated region
    $region18: #{diffuser_forward.3} parent=1 // pred_check
      _
    $region19: #{diffuser_forward.3} parent=1 // pred_check_branch
      %53 = sbr.rel (0) target = $region21
    $region20: #{diffuser_forward.3} parent=1 // pred_region
      _
    $region21: #{diffuser_forward.3} parent=1 // pred_fallthru
      _
    // Predicated region
    $region22: #{diffuser_forward.3} parent=1 // pred_check
      _
    $region23: #{diffuser_forward.3} parent=1 // pred_check_branch
      %55 = sbr.rel (0) target = $region25
    $region24: #{diffuser_forward.3} parent=1 // pred_region
      _
    $region25: #{diffuser_forward.3} parent=1 // pred_fallthru
      _
    // Predicated region
    $region26: #{diffuser_forward.3} parent=1 // pred_check
      _
    $region27: #{diffuser_forward.3} parent=1 // pred_check_branch
      %57 = sbr.rel (0) target = $region29
    $region28: #{diffuser_forward.3} parent=1 // pred_region
      %s59 = ssub.s32 12288, 12288
      %60 = vsyncadd [#allocation6], %s59
      %s61 = sshll.u32 [#allocation5], 4
      %s62 = int_to_ptr.vmem [resolvable:$true] %s61
      %67 = dma.hbm_to_vmem [thread:$0]  %s6, 12288, %s62, [#allocation6], 384, 384, 24
    $region29: #{diffuser_forward.3} parent=1 // pred_fallthru
      _
    // Predicated region
    $region30: #{diffuser_forward.3} parent=1 // pred_check
      _
    $region31: #{diffuser_forward.3} parent=1 // pred_check_branch
      %69 = sbr.rel (0) target = $region33
    $region32: #{diffuser_forward.3} parent=1 // pred_region
      %s71 = ssub.s32 96, 96
      %72 = vsyncadd [#allocation6], %s71
      %s74 = sshll.u32 [#allocation7], 4
      %s75 = int_to_ptr.vmem [resolvable:$true] %s74
      %77 = dma.hbm_to_vmem [thread:$0]  %s7, 96, %s75, [#allocation6]
    $region33: #{diffuser_forward.3} parent=1 // pred_fallthru
      _
    // Predicated region
    $region34: #{diffuser_forward.3} parent=1 // pred_check
      _
    $region35: #{diffuser_forward.3} parent=1 // pred_check_branch
      %79 = sbr.rel (0) target = $region37
    $region36: #{diffuser_forward.3} parent=1 // pred_region
      %s81 = ssub.s32 36864, 36864
      %82 = vsyncadd [#allocation9], %s81
      %s83 = sshll.u32 [#allocation8], 4
      %s84 = int_to_ptr.vmem [resolvable:$true] %s83
      %89 = dma.hbm_to_vmem [thread:$0]  %s8, 36864, %s84, [#allocation9], 384, 384, 24
    $region37: #{diffuser_forward.3} parent=1 // pred_fallthru
      _
    // Predicated region
    $region38: #{diffuser_forward.3} parent=1 // pred_check
      _
    $region39: #{diffuser_forward.3} parent=1 // pred_check_branch
      %91 = sbr.rel (0) target = $region41
    $region40: #{diffuser_forward.3} parent=1 // pred_region
      %s93 = ssub.s32 96, 96
      %94 = vsyncadd [#allocation9], %s93
      %s96 = sshll.u32 [#allocation10], 4
      %s97 = int_to_ptr.vmem [resolvable:$true] %s96
      %99 = dma.hbm_to_vmem [thread:$0]  %s9, 96, %s97, [#allocation9]
    $region41: #{diffuser_forward.3} parent=1 // pred_fallthru
      _
    // Predicated region
    $region42: #{diffuser_forward.3} parent=1 // pred_check
      _
    $region43: #{diffuser_forward.3} parent=1 // pred_check_branch
      %101 = sbr.rel (0) target = $region45
    $region44: #{diffuser_forward.3} parent=1 // pred_region
      %s103 = ssub.s32 96, 96
      %104 = vsyncadd [#allocation12], %s103
      %s106 = sshll.u32 [#allocation11], 4
      %s107 = int_to_ptr.vmem [resolvable:$true] %s106
      %109 = dma.hbm_to_vmem [thread:$0]  %s10, 96, %s107, [#allocation12]
    $region45: #{diffuser_forward.3} parent=1 // pred_fallthru
      _
    // Predicated region
    $region46: #{diffuser_forward.3} parent=1 // pred_check
      _
    $region47: #{diffuser_forward.3} parent=1 // pred_check_branch
      %111 = sbr.rel (0) target = $region49
    $region48: #{diffuser_forward.3} parent=1 // pred_region
      %s113 = ssub.s32 49152, 49152
      %114 = vsyncadd [#allocation12], %s113
      %s115 = sshll.u32 [#allocation13], 4
      %s116 = int_to_ptr.vmem [resolvable:$true] %s115
      %121 = dma.hbm_to_vmem [thread:$0]  %s11, 49152, %s116, [#allocation12], 512, 512, 32
    $region49: #{diffuser_forward.3} parent=1 // pred_fallthru
      _
    // Predicated region
    $region50: #{diffuser_forward.3} parent=1 // pred_check
      _
    $region51: #{diffuser_forward.3} parent=1 // pred_check_branch
      %123 = sbr.rel (0) target = $region53
    $region52: #{diffuser_forward.3} parent=1 // pred_region
      %s125 = ssub.s32 128, 128
      %126 = vsyncadd [#allocation15], %s125
      %s128 = sshll.u32 [#allocation14], 4
      %s129 = int_to_ptr.vmem [resolvable:$true] %s128
      %131 = dma.hbm_to_vmem [thread:$0]  %s12, 128, %s129, [#allocation15]
    $region53: #{diffuser_forward.3} parent=1 // pred_fallthru
      _
    // Predicated region
    $region54: #{diffuser_forward.3} parent=1 // pred_check
      _
    $region55: #{diffuser_forward.3} parent=1 // pred_check_branch
      %133 = sbr.rel (0) target = $region57
    $region56: #{diffuser_forward.3} parent=1 // pred_region
      %s135 = ssub.s32 49152, 49152
      %136 = vsyncadd [#allocation15], %s135
      %s137 = sshll.u32 [#allocation16], 4
      %s138 = int_to_ptr.vmem [resolvable:$true] %s137
      %143 = dma.hbm_to_vmem [thread:$0]  %s13, 49152, %s138, [#allocation15], 768, 768, 48
    $region57: #{diffuser_forward.3} parent=1 // pred_fallthru
      _
    // Predicated region
    $region58: #{diffuser_forward.3} parent=1 // pred_check
      _
    $region59: #{diffuser_forward.3} parent=1 // pred_check_branch
      %145 = sbr.rel (0) target = $region61
    $region60: #{diffuser_forward.3} parent=1 // pred_region
      %s147 = ssub.s32 192, 192
      %148 = vsyncadd [#allocation18], %s147
      %s150 = sshll.u32 [#allocation17], 4
      %s151 = int_to_ptr.vmem [resolvable:$true] %s150
      %153 = dma.hbm_to_vmem [thread:$0]  %s14, 192, %s151, [#allocation18]
    $region61: #{diffuser_forward.3} parent=1 // pred_fallthru
      _
    // Predicated region
    $region62: #{diffuser_forward.3} parent=1 // pred_check
      _
    $region63: #{diffuser_forward.3} parent=1 // pred_check_branch
      %155 = sbr.rel (0) target = $region65
    $region64: #{diffuser_forward.3} parent=1 // pred_region
      %s157 = ssub.s32 49152, 49152
      %158 = vsyncadd [#allocation18], %s157
      %s159 = sshll.u32 [#allocation19], 4
      %s160 = int_to_ptr.vmem [resolvable:$true] %s159
      %165 = dma.hbm_to_vmem [thread:$0]  %s15, 49152, %s160, [#allocation18], 256, 256, 16
    $region65: #{diffuser_forward.3} parent=1 // pred_fallthru
      _
    // Predicated region
    $region66: #{diffuser_forward.3} parent=1 // pred_check
      _
    $region67: #{diffuser_forward.3} parent=1 // pred_check_branch
      %167 = sbr.rel (0) target = $region69
    $region68: #{diffuser_forward.3} parent=1 // pred_region
      %s169 = ssub.s32 64, 64
      %170 = vsyncadd [#allocation21], %s169
      %s172 = sshll.u32 [#allocation20], 4
      %s173 = int_to_ptr.vmem [resolvable:$true] %s172
      %175 = dma.hbm_to_vmem [thread:$0]  %s16, 64, %s173, [#allocation21]
    $region69: #{diffuser_forward.3} parent=1 // pred_fallthru
      _
    // Predicated region
    $region70: #{diffuser_forward.3} parent=1 // pred_check
      _
    $region71: #{diffuser_forward.3} parent=1 // pred_check_branch
      %177 = sbr.rel (0) target = $region73
    $region72: #{diffuser_forward.3} parent=1 // pred_region
      %s179 = ssub.s32 16384, 16384
      %180 = vsyncadd [#allocation21], %s179
      %s181 = sshll.u32 [#allocation22], 4
      %s182 = int_to_ptr.vmem [resolvable:$true] %s181
      %187 = dma.hbm_to_vmem [thread:$0]  %s17, 16384, %s182, [#allocation21], 256, 256, 16
    $region73: #{diffuser_forward.3} parent=1 // pred_fallthru
      _
    // Predicated region
    $region74: #{diffuser_forward.3} parent=1 // pred_check
      _
    $region75: #{diffuser_forward.3} parent=1 // pred_check_branch
      %189 = sbr.rel (0) target = $region77
    $region76: #{diffuser_forward.3} parent=1 // pred_region
      %s191 = ssub.s32 16384, 16384
      %192 = vsyncadd [#allocation24], %s191
      %s193 = sshll.u32 [#allocation23], 4
      %s194 = int_to_ptr.vmem [resolvable:$true] %s193
      %199 = dma.hbm_to_vmem [thread:$0]  %s18, 16384, %s194, [#allocation24], 256, 256, 16
    $region77: #{diffuser_forward.3} parent=1 // pred_fallthru
      _
    // Predicated region
    $region78: #{diffuser_forward.3} parent=1 // pred_check
      _
    $region79: #{diffuser_forward.3} parent=1 // pred_check_branch
      %201 = sbr.rel (0) target = $region81
    $region80: #{diffuser_forward.3} parent=1 // pred_region
      %s203 = ssub.s32 64, 64
      %204 = vsyncadd [#allocation24], %s203
      %s206 = sshll.u32 [#allocation25], 4
      %s207 = int_to_ptr.vmem [resolvable:$true] %s206
      %209 = dma.hbm_to_vmem [thread:$0]  %s19, 64, %s207, [#allocation24]
    $region81: #{diffuser_forward.3} parent=1 // pred_fallthru
      _
    // Predicated region
    $region82: #{diffuser_forward.3} parent=1 // pred_check
      _
    $region83: #{diffuser_forward.3} parent=1 // pred_check_branch
      %211 = sbr.rel (0) target = $region85
    $region84: #{diffuser_forward.3} parent=1 // pred_region
      %212 = dma.done [#allocation3], 1024
    $region85: #{diffuser_forward.3} parent=1 // pred_fallthru
      _
    // Predicated region
    $region86: #{diffuser_forward.3} parent=1 // pred_check
      _
    $region87: #{diffuser_forward.3} parent=1 // pred_check_branch
      %214 = sbr.rel (0) target = $region89
    $region88: #{diffuser_forward.3} parent=1 // pred_region
      %215 = dma.done [#allocation6], 12288
    $region89: #{diffuser_forward.3} parent=1 // pred_fallthru
      _
    // Predicated region
    $region90: #{diffuser_forward.3} parent=1 // pred_check
      _
    $region91: #{diffuser_forward.3} parent=1 // pred_check_branch
      %217 = sbr.rel (0) target = $region93
    $region92: #{diffuser_forward.3} parent=1 // pred_region
      %218 = dma.done [#allocation6], 96
    $region93: #{diffuser_forward.3} parent=1 // pred_fallthru
      _
    // Predicated region
    $region94: #{diffuser_forward.3} parent=1 // pred_check
      _
    $region95: #{diffuser_forward.3} parent=1 // pred_check_branch
      %220 = sbr.rel (0) target = $region97
    $region96: #{diffuser_forward.3} parent=1 // pred_region
      %221 = dma.done [#allocation9], 36864
    $region97: #{diffuser_forward.3} parent=1 // pred_fallthru
      _
    // Predicated region
    $region98: #{diffuser_forward.3} parent=1 // pred_check
      _
    $region99: #{diffuser_forward.3} parent=1 // pred_check_branch
      %223 = sbr.rel (0) target = $region101
    $region100: #{diffuser_forward.3} parent=1 // pred_region
      %224 = dma.done [#allocation9], 96
    $region101: #{diffuser_forward.3} parent=1 // pred_fallthru
      _
    // Predicated region
    $region102: #{diffuser_forward.3} parent=1 // pred_check
      _
    $region103: #{diffuser_forward.3} parent=1 // pred_check_branch
      %226 = sbr.rel (0) target = $region105
    $region104: #{diffuser_forward.3} parent=1 // pred_region
      %227 = dma.done [#allocation12], 96
    $region105: #{diffuser_forward.3} parent=1 // pred_fallthru
      _
    // Predicated region
    $region106: #{diffuser_forward.3} parent=1 // pred_check
      _
    $region107: #{diffuser_forward.3} parent=1 // pred_check_branch
      %229 = sbr.rel (0) target = $region109
    $region108: #{diffuser_forward.3} parent=1 // pred_region
      %230 = dma.done [#allocation12], 49152
    $region109: #{diffuser_forward.3} parent=1 // pred_fallthru
      _
    // Predicated region
    $region110: #{diffuser_forward.3} parent=1 // pred_check
      _
    $region111: #{diffuser_forward.3} parent=1 // pred_check_branch
      %232 = sbr.rel (0) target = $region113
    $region112: #{diffuser_forward.3} parent=1 // pred_region
      %233 = dma.done [#allocation15], 128
    $region113: #{diffuser_forward.3} parent=1 // pred_fallthru
      _
    // Predicated region
    $region114: #{diffuser_forward.3} parent=1 // pred_check
      _
    $region115: #{diffuser_forward.3} parent=1 // pred_check_branch
      %235 = sbr.rel (0) target = $region117
    $region116: #{diffuser_forward.3} parent=1 // pred_region
      %236 = dma.done [#allocation15], 49152
    $region117: #{diffuser_forward.3} parent=1 // pred_fallthru
      _
    // Predicated region
    $region118: #{diffuser_forward.3} parent=1 // pred_check
      _
    $region119: #{diffuser_forward.3} parent=1 // pred_check_branch
      %238 = sbr.rel (0) target = $region121
    $region120: #{diffuser_forward.3} parent=1 // pred_region
      %239 = dma.done [#allocation18], 192
    $region121: #{diffuser_forward.3} parent=1 // pred_fallthru
      _
    // Predicated region
    $region122: #{diffuser_forward.3} parent=1 // pred_check
      _
    $region123: #{diffuser_forward.3} parent=1 // pred_check_branch
      %241 = sbr.rel (0) target = $region125
    $region124: #{diffuser_forward.3} parent=1 // pred_region
      %242 = dma.done [#allocation18], 49152
    $region125: #{diffuser_forward.3} parent=1 // pred_fallthru
      _
    // Predicated region
    $region126: #{diffuser_forward.3} parent=1 // pred_check
      _
    $region127: #{diffuser_forward.3} parent=1 // pred_check_branch
      %244 = sbr.rel (0) target = $region129
    $region128: #{diffuser_forward.3} parent=1 // pred_region
      %245 = dma.done [#allocation21], 64
    $region129: #{diffuser_forward.3} parent=1 // pred_fallthru
      _
    // Predicated region
    $region130: #{diffuser_forward.3} parent=1 // pred_check
      _
    $region131: #{diffuser_forward.3} parent=1 // pred_check_branch
      %247 = sbr.rel (0) target = $region133
    $region132: #{diffuser_forward.3} parent=1 // pred_region
      %248 = dma.done [#allocation21], 16384
    $region133: #{diffuser_forward.3} parent=1 // pred_fallthru
      _
    // Predicated region
    $region134: #{diffuser_forward.3} parent=1 // pred_check
      _
    $region135: #{diffuser_forward.3} parent=1 // pred_check_branch
      %250 = sbr.rel (0) target = $region137
    $region136: #{diffuser_forward.3} parent=1 // pred_region
      %251 = dma.done [#allocation24], 16384
    $region137: #{diffuser_forward.3} parent=1 // pred_fallthru
      _
    // Predicated region
    $region138: #{diffuser_forward.3} parent=1 // pred_check
      _
    $region139: #{diffuser_forward.3} parent=1 // pred_check_branch
      %253 = sbr.rel (0) target = $region141
    $region140: #{diffuser_forward.3} parent=1 // pred_region
      %254 = dma.done [#allocation24], 64
    $region141: #{diffuser_forward.3} parent=1 // pred_fallthru
      _
    %v255 = vld [vmem:[#allocation2] sm:$0xff]
    %v256 = vld [vmem:[#allocation2 + $0x8] sm:$0xff]
    %v257 = vld [vmem:[#allocation2 + $0x10] sm:$0xff]
    %v258 = vld [vmem:[#allocation2 + $0x18] sm:$0xff]
    %v259 = vld [vmem:[#allocation2 + $0x20] sm:$0xff]
    %v260 = vld [vmem:[#allocation2 + $0x28] sm:$0xff]
    %v261 = vld [vmem:[#allocation2 + $0x30] sm:$0xff]
    %v262 = vld [vmem:[#allocation2 + $0x38] sm:$0xff]
    %v263 = vld [vmem:[%s1] sm:$0xff]
    %v264 = vld [vmem:[%s1 + $0x8] sm:$0xff]
    %v265 = vld [vmem:[%s1 + $0x10] sm:$0xff]
    %v266 = vld [vmem:[%s1 + $0x18] sm:$0xff]
    %v267 = vld [vmem:[%s1 + $0x20] sm:$0xff]
    %v268 = vld [vmem:[%s1 + $0x28] sm:$0xff]
    %v269 = vld [vmem:[%s1 + $0x30] sm:$0xff]
    %v270 = vld [vmem:[%s1 + $0x38] sm:$0xff]
    %v271 = vld [vmem:[%s2] sm:$0xff]
    %v272 = vld [vmem:[%s2 + $0x8] sm:$0xff]
    %v273 = vld [vmem:[%s3] sm:$0xff]
    %v274 = vld [vmem:[%s3 + $0x8] sm:$0xff]
    %276 = vset.pattern.permute.xlu0 0
    %277 = vperm.xlu0 %276, %v271
    %v278 = vpop.permute.xlu0 %277
    %281 = vset.pattern.permute.xlu0 0
    %282 = vperm.xlu0 %281, %v272
    %v283 = vpop.permute.xlu0 %282
    %v285 = vmul.f32 %v278, %v255
    %v286 = vmul.f32 %v278, %v256
    %v287 = vmul.f32 %v278, %v257
    %v288 = vmul.f32 %v278, %v258
    %v289 = vmul.f32 %v283, %v259
    %v290 = vmul.f32 %v283, %v260
    %v291 = vmul.f32 %v283, %v261
    %v292 = vmul.f32 %v283, %v262
    %294 = vset.pattern.permute.xlu0 0
    %295 = vperm.xlu0 %294, %v273
    %v296 = vpop.permute.xlu0 %295
    %299 = vset.pattern.permute.xlu0 0
    %300 = vperm.xlu0 %299, %v274
    %v301 = vpop.permute.xlu0 %300
    %v303 = vmul.f32 %v296, %v263
    %v304 = vmul.f32 %v296, %v264
    %v305 = vmul.f32 %v296, %v265
    %v306 = vmul.f32 %v296, %v266
    %v307 = vmul.f32 %v301, %v267
    %v308 = vmul.f32 %v301, %v268
    %v309 = vmul.f32 %v301, %v269
    %v310 = vmul.f32 %v301, %v270
    %v311 = vadd.f32 %v285, %v303
    %v312 = vadd.f32 %v286, %v304
    %v313 = vadd.f32 %v287, %v305
    %v314 = vadd.f32 %v288, %v306
    %v315 = vadd.f32 %v289, %v307
    %v316 = vadd.f32 %v290, %v308
    %v317 = vadd.f32 %v291, %v309
    %v318 = vadd.f32 %v292, %v310
    %v319 = vmul.f32 %v278, %v263
    %v320 = vmul.f32 %v278, %v264
    %v321 = vmul.f32 %v278, %v265
    %v322 = vmul.f32 %v278, %v266
    %v323 = vmul.f32 %v283, %v267
    %v324 = vmul.f32 %v283, %v268
    %v325 = vmul.f32 %v283, %v269
    %v326 = vmul.f32 %v283, %v270
    %v327 = vmul.f32 %v296, %v255
    %v328 = vmul.f32 %v296, %v256
    %v329 = vmul.f32 %v296, %v257
    %v330 = vmul.f32 %v296, %v258
    %v331 = vmul.f32 %v301, %v259
    %v332 = vmul.f32 %v301, %v260
    %v333 = vmul.f32 %v301, %v261
    %v334 = vmul.f32 %v301, %v262
    %v335 = vsub.f32 %v319, %v327
    %v336 = vsub.f32 %v320, %v328
    %v337 = vsub.f32 %v321, %v329
    %v338 = vsub.f32 %v322, %v330
    %v339 = vsub.f32 %v323, %v331
    %v340 = vsub.f32 %v324, %v332
    %v341 = vsub.f32 %v325, %v333
    %v342 = vsub.f32 %v326, %v334
    %v343 = vld [vmem:[%s4] sm:$0xff]
    %v344 = vld [vmem:[%s4 + $0x8] sm:$0xff]
    %v345 = vld [vmem:[%s4 + $0x10] sm:$0xff]
    %v346 = vld [vmem:[%s4 + $0x18] sm:$0xff]
    %v347 = vpack.c.bf16 %v345, %v343
    %v348 = vpack.c.bf16 %v346, %v344
    %v349 = vld [vmem:[#allocation5] sm:$0xff]
    %v350 = vld [vmem:[#allocation5 + $0x8] sm:$0xff]
    %v351 = vld [vmem:[#allocation5 + $0x10] sm:$0xff]
    %v352 = vld [vmem:[#allocation5 + $0x18] sm:$0xff]
    %v353 = vld [vmem:[#allocation5 + $0x20] sm:$0xff]
    %v354 = vld [vmem:[#allocation5 + $0x28] sm:$0xff]
    %v355 = vld [vmem:[#allocation5 + $0x30] sm:$0xff]
    %v356 = vld [vmem:[#allocation5 + $0x38] sm:$0xff]
    %v357 = vld [vmem:[#allocation5 + $0x40] sm:$0xff]
    %v358 = vld [vmem:[#allocation5 + $0x48] sm:$0xff]
    %v359 = vld [vmem:[#allocation5 + $0x50] sm:$0xff]
    %v360 = vld [vmem:[#allocation5 + $0x58] sm:$0xff]
    %v361 = vld [vmem:[#allocation5 + $0x60] sm:$0xff]
    %v362 = vld [vmem:[#allocation5 + $0x68] sm:$0xff]
    %v363 = vld [vmem:[#allocation5 + $0x70] sm:$0xff]
    %v364 = vld [vmem:[#allocation5 + $0x78] sm:$0xff]
    %v365 = vld [vmem:[#allocation5 + $0x80] sm:$0xff]
    %v366 = vld [vmem:[#allocation5 + $0x88] sm:$0xff]
    %v367 = vld [vmem:[#allocation5 + $0x90] sm:$0xff]
    %v368 = vld [vmem:[#allocation5 + $0x98] sm:$0xff]
    %v369 = vld [vmem:[#allocation5 + $0xa0] sm:$0xff]
    %v370 = vld [vmem:[#allocation5 + $0xa8] sm:$0xff]
    %v371 = vld [vmem:[#allocation5 + $0xb0] sm:$0xff]
    %v372 = vld [vmem:[#allocation5 + $0xb8] sm:$0xff]
    %v373 = vld [vmem:[#allocation5 + $0xc0] sm:$0xff]
    %v374 = vld [vmem:[#allocation5 + $0xc8] sm:$0xff]
    %v375 = vld [vmem:[#allocation5 + $0xd0] sm:$0xff]
    %v376 = vld [vmem:[#allocation5 + $0xd8] sm:$0xff]
    %v377 = vld [vmem:[#allocation5 + $0xe0] sm:$0xff]
    %v378 = vld [vmem:[#allocation5 + $0xe8] sm:$0xff]
    %v379 = vld [vmem:[#allocation5 + $0xf0] sm:$0xff]
    %v380 = vld [vmem:[#allocation5 + $0xf8] sm:$0xff]
    %v381 = vld [vmem:[#allocation5 + $0x100] sm:$0xff]
    %v382 = vld [vmem:[#allocation5 + $0x108] sm:$0xff]
    %v383 = vld [vmem:[#allocation5 + $0x110] sm:$0xff]
    %v384 = vld [vmem:[#allocation5 + $0x118] sm:$0xff]
    %v385 = vld [vmem:[#allocation5 + $0x120] sm:$0xff]
    %v386 = vld [vmem:[#allocation5 + $0x128] sm:$0xff]
    %v387 = vld [vmem:[#allocation5 + $0x130] sm:$0xff]
    %v388 = vld [vmem:[#allocation5 + $0x138] sm:$0xff]
    %v389 = vld [vmem:[#allocation5 + $0x140] sm:$0xff]
    %v390 = vld [vmem:[#allocation5 + $0x148] sm:$0xff]
    %v391 = vld [vmem:[#allocation5 + $0x150] sm:$0xff]
    %v392 = vld [vmem:[#allocation5 + $0x158] sm:$0xff]
    %v393 = vld [vmem:[#allocation5 + $0x160] sm:$0xff]
    %v394 = vld [vmem:[#allocation5 + $0x168] sm:$0xff]
    %v395 = vld [vmem:[#allocation5 + $0x170] sm:$0xff]
    %v396 = vld [vmem:[#allocation5 + $0x178] sm:$0xff]
    %v397 = vld [vmem:[#allocation5 + $0x180] sm:$0xff]
    %v398 = vld [vmem:[#allocation5 + $0x188] sm:$0xff]
    %v399 = vld [vmem:[#allocation5 + $0x190] sm:$0xff]
    %v400 = vld [vmem:[#allocation5 + $0x198] sm:$0xff]
    %v401 = vld [vmem:[#allocation5 + $0x1a0] sm:$0xff]
    %v402 = vld [vmem:[#allocation5 + $0x1a8] sm:$0xff]
    %v403 = vld [vmem:[#allocation5 + $0x1b0] sm:$0xff]
    %v404 = vld [vmem:[#allocation5 + $0x1b8] sm:$0xff]
    %v405 = vld [vmem:[#allocation5 + $0x1c0] sm:$0xff]
    %v406 = vld [vmem:[#allocation5 + $0x1c8] sm:$0xff]
    %v407 = vld [vmem:[#allocation5 + $0x1d0] sm:$0xff]
    %v408 = vld [vmem:[#allocation5 + $0x1d8] sm:$0xff]
    %v409 = vld [vmem:[#allocation5 + $0x1e0] sm:$0xff]
    %v410 = vld [vmem:[#allocation5 + $0x1e8] sm:$0xff]
    %v411 = vld [vmem:[#allocation5 + $0x1f0] sm:$0xff]
    %v412 = vld [vmem:[#allocation5 + $0x1f8] sm:$0xff]
    %v413 = vld [vmem:[#allocation5 + $0x200] sm:$0xff]
    %v414 = vld [vmem:[#allocation5 + $0x208] sm:$0xff]
    %v415 = vld [vmem:[#allocation5 + $0x210] sm:$0xff]
    %v416 = vld [vmem:[#allocation5 + $0x218] sm:$0xff]
    %v417 = vld [vmem:[#allocation5 + $0x220] sm:$0xff]
    %v418 = vld [vmem:[#allocation5 + $0x228] sm:$0xff]
    %v419 = vld [vmem:[#allocation5 + $0x230] sm:$0xff]
    %v420 = vld [vmem:[#allocation5 + $0x238] sm:$0xff]
    %v421 = vld [vmem:[#allocation5 + $0x240] sm:$0xff]
    %v422 = vld [vmem:[#allocation5 + $0x248] sm:$0xff]
    %v423 = vld [vmem:[#allocation5 + $0x250] sm:$0xff]
    %v424 = vld [vmem:[#allocation5 + $0x258] sm:$0xff]
    %v425 = vld [vmem:[#allocation5 + $0x260] sm:$0xff]
    %v426 = vld [vmem:[#allocation5 + $0x268] sm:$0xff]
    %v427 = vld [vmem:[#allocation5 + $0x270] sm:$0xff]
    %v428 = vld [vmem:[#allocation5 + $0x278] sm:$0xff]
    %v429 = vld [vmem:[#allocation5 + $0x280] sm:$0xff]
    %v430 = vld [vmem:[#allocation5 + $0x288] sm:$0xff]
    %v431 = vld [vmem:[#allocation5 + $0x290] sm:$0xff]
    %v432 = vld [vmem:[#allocation5 + $0x298] sm:$0xff]
    %v433 = vld [vmem:[#allocation5 + $0x2a0] sm:$0xff]
    %v434 = vld [vmem:[#allocation5 + $0x2a8] sm:$0xff]
    %v435 = vld [vmem:[#allocation5 + $0x2b0] sm:$0xff]
    %v436 = vld [vmem:[#allocation5 + $0x2b8] sm:$0xff]
    %v437 = vld [vmem:[#allocation5 + $0x2c0] sm:$0xff]
    %v438 = vld [vmem:[#allocation5 + $0x2c8] sm:$0xff]
    %v439 = vld [vmem:[#allocation5 + $0x2d0] sm:$0xff]
    %v440 = vld [vmem:[#allocation5 + $0x2d8] sm:$0xff]
    %v441 = vld [vmem:[#allocation5 + $0x2e0] sm:$0xff]
    %v442 = vld [vmem:[#allocation5 + $0x2e8] sm:$0xff]
    %v443 = vld [vmem:[#allocation5 + $0x2f0] sm:$0xff]
    %v444 = vld [vmem:[#allocation5 + $0x2f8] sm:$0xff]
    %v445 = vld [vmem:[#allocation7] sm:$0x3f]
    %v447 = vlaneseq
    %v448 = vshrl.u32 %v447, 7
    %v449 = vsub.s32 0, %v448
    %v450 = vrot.slane %v445, %v449
    %v451 = vlaneseq
    %v452 = vshrl.u32 %v451, 7
    %v453 = vsub.s32 1, %v452
    %v454 = vrot.slane %v445, %v453
    %v455 = vlaneseq
    %v456 = vshrl.u32 %v455, 7
    %v457 = vsub.s32 2, %v456
    %v458 = vrot.slane %v445, %v457
    %v459 = vlaneseq
    %v460 = vshrl.u32 %v459, 7
    %v461 = vsub.s32 3, %v460
    %v462 = vrot.slane %v445, %v461
    %v463 = vlaneseq
    %v464 = vshrl.u32 %v463, 7
    %v465 = vsub.s32 4, %v464
    %v466 = vrot.slane %v445, %v465
    %v467 = vlaneseq
    %v468 = vshrl.u32 %v467, 7
    %v469 = vsub.s32 5, %v468
    %v470 = vrot.slane %v445, %v469
    %v573 = vunpack.c.l.b16 %v349
    %v574 = vunpack.c.h.b16 %v349
    %v575 = vunpack.c.l.b16 %v350
    %v576 = vunpack.c.h.b16 %v350
    %v577 = vunpack.c.l.b16 %v351
    %v578 = vunpack.c.h.b16 %v351
    %v579 = vunpack.c.l.b16 %v352
    %v580 = vunpack.c.h.b16 %v352
    %v581 = vunpack.c.l.b16 %v353
    %v582 = vunpack.c.h.b16 %v353
    %v583 = vunpack.c.l.b16 %v354
    %v584 = vunpack.c.h.b16 %v354
    %v585 = vunpack.c.l.b16 %v355
    %v586 = vunpack.c.h.b16 %v355
    %v587 = vunpack.c.l.b16 %v356
    %v588 = vunpack.c.h.b16 %v356
    %v589 = vunpack.c.l.b16 %v357
    %v590 = vunpack.c.h.b16 %v357
    %v591 = vunpack.c.l.b16 %v358
    %v592 = vunpack.c.h.b16 %v358
    %v593 = vunpack.c.l.b16 %v359
    %v594 = vunpack.c.h.b16 %v359
    %v595 = vunpack.c.l.b16 %v360
    %v596 = vunpack.c.h.b16 %v360
    %v597 = vunpack.c.l.b16 %v361
    %v598 = vunpack.c.h.b16 %v361
    %v599 = vunpack.c.l.b16 %v362
    %v600 = vunpack.c.h.b16 %v362
    %v601 = vunpack.c.l.b16 %v363
    %v602 = vunpack.c.h.b16 %v363
    %v603 = vunpack.c.l.b16 %v364
    %v604 = vunpack.c.h.b16 %v364
    %v605 = vunpack.c.l.b16 %v365
    %v606 = vunpack.c.h.b16 %v365
    %v607 = vunpack.c.l.b16 %v366
    %v608 = vunpack.c.h.b16 %v366
    %v609 = vunpack.c.l.b16 %v367
    %v610 = vunpack.c.h.b16 %v367
    %v611 = vunpack.c.l.b16 %v368
    %v612 = vunpack.c.h.b16 %v368
    %v613 = vunpack.c.l.b16 %v369
    %v614 = vunpack.c.h.b16 %v369
    %v615 = vunpack.c.l.b16 %v370
    %v616 = vunpack.c.h.b16 %v370
    %v617 = vunpack.c.l.b16 %v371
    %v618 = vunpack.c.h.b16 %v371
    %v619 = vunpack.c.l.b16 %v372
    %v620 = vunpack.c.h.b16 %v372
    %v621 = vunpack.c.l.b16 %v373
    %v622 = vunpack.c.h.b16 %v373
    %v623 = vunpack.c.l.b16 %v374
    %v624 = vunpack.c.h.b16 %v374
    %v625 = vunpack.c.l.b16 %v375
    %v626 = vunpack.c.h.b16 %v375
    %v627 = vunpack.c.l.b16 %v376
    %v628 = vunpack.c.h.b16 %v376
    %v629 = vunpack.c.l.b16 %v377
    %v630 = vunpack.c.h.b16 %v377
    %v631 = vunpack.c.l.b16 %v378
    %v632 = vunpack.c.h.b16 %v378
    %v633 = vunpack.c.l.b16 %v379
    %v634 = vunpack.c.h.b16 %v379
    %v635 = vunpack.c.l.b16 %v380
    %v636 = vunpack.c.h.b16 %v380
    %v637 = vunpack.c.l.b16 %v381
    %v638 = vunpack.c.h.b16 %v381
    %v639 = vunpack.c.l.b16 %v382
    %v640 = vunpack.c.h.b16 %v382
    %v641 = vunpack.c.l.b16 %v383
    %v642 = vunpack.c.h.b16 %v383
    %v643 = vunpack.c.l.b16 %v384
    %v644 = vunpack.c.h.b16 %v384
    %v645 = vunpack.c.l.b16 %v385
    %v646 = vunpack.c.h.b16 %v385
    %v647 = vunpack.c.l.b16 %v386
    %v648 = vunpack.c.h.b16 %v386
    %v649 = vunpack.c.l.b16 %v387
    %v650 = vunpack.c.h.b16 %v387
    %v651 = vunpack.c.l.b16 %v388
    %v652 = vunpack.c.h.b16 %v388
    %v653 = vunpack.c.l.b16 %v389
    %v654 = vunpack.c.h.b16 %v389
    %v655 = vunpack.c.l.b16 %v390
    %v656 = vunpack.c.h.b16 %v390
    %v657 = vunpack.c.l.b16 %v391
    %v658 = vunpack.c.h.b16 %v391
    %v659 = vunpack.c.l.b16 %v392
    %v660 = vunpack.c.h.b16 %v392
    %v661 = vunpack.c.l.b16 %v393
    %v662 = vunpack.c.h.b16 %v393
    %v663 = vunpack.c.l.b16 %v394
    %v664 = vunpack.c.h.b16 %v394
    %v665 = vunpack.c.l.b16 %v395
    %v666 = vunpack.c.h.b16 %v395
    %v667 = vunpack.c.l.b16 %v396
    %v668 = vunpack.c.h.b16 %v396
    %v669 = vunpack.c.l.b16 %v397
    %v670 = vunpack.c.h.b16 %v397
    %v671 = vunpack.c.l.b16 %v398
    %v672 = vunpack.c.h.b16 %v398
    %v673 = vunpack.c.l.b16 %v399
    %v674 = vunpack.c.h.b16 %v399
    %v675 = vunpack.c.l.b16 %v400
    %v676 = vunpack.c.h.b16 %v400
    %v677 = vunpack.c.l.b16 %v401
    %v678 = vunpack.c.h.b16 %v401
    %v679 = vunpack.c.l.b16 %v402
    %v680 = vunpack.c.h.b16 %v402
    %v681 = vunpack.c.l.b16 %v403
    %v682 = vunpack.c.h.b16 %v403
    %v683 = vunpack.c.l.b16 %v404
    %v684 = vunpack.c.h.b16 %v404
    %v685 = vunpack.c.l.b16 %v405
    %v686 = vunpack.c.h.b16 %v405
    %v687 = vunpack.c.l.b16 %v406
    %v688 = vunpack.c.h.b16 %v406
    %v689 = vunpack.c.l.b16 %v407
    %v690 = vunpack.c.h.b16 %v407
    %v691 = vunpack.c.l.b16 %v408
    %v692 = vunpack.c.h.b16 %v408
    %v693 = vunpack.c.l.b16 %v409
    %v694 = vunpack.c.h.b16 %v409
    %v695 = vunpack.c.l.b16 %v410
    %v696 = vunpack.c.h.b16 %v410
    %v697 = vunpack.c.l.b16 %v411
    %v698 = vunpack.c.h.b16 %v411
    %v699 = vunpack.c.l.b16 %v412
    %v700 = vunpack.c.h.b16 %v412
    %v701 = vunpack.c.l.b16 %v413
    %v702 = vunpack.c.h.b16 %v413
    %v703 = vunpack.c.l.b16 %v414
    %v704 = vunpack.c.h.b16 %v414
    %v705 = vunpack.c.l.b16 %v415
    %v706 = vunpack.c.h.b16 %v415
    %v707 = vunpack.c.l.b16 %v416
    %v708 = vunpack.c.h.b16 %v416
    %v709 = vunpack.c.l.b16 %v417
    %v710 = vunpack.c.h.b16 %v417
    %v711 = vunpack.c.l.b16 %v418
    %v712 = vunpack.c.h.b16 %v418
    %v713 = vunpack.c.l.b16 %v419
    %v714 = vunpack.c.h.b16 %v419
    %v715 = vunpack.c.l.b16 %v420
    %v716 = vunpack.c.h.b16 %v420
    %v717 = vunpack.c.l.b16 %v421
    %v718 = vunpack.c.h.b16 %v421
    %v719 = vunpack.c.l.b16 %v422
    %v720 = vunpack.c.h.b16 %v422
    %v721 = vunpack.c.l.b16 %v423
    %v722 = vunpack.c.h.b16 %v423
    %v723 = vunpack.c.l.b16 %v424
    %v724 = vunpack.c.h.b16 %v424
    %v725 = vunpack.c.l.b16 %v425
    %v726 = vunpack.c.h.b16 %v425
    %v727 = vunpack.c.l.b16 %v426
    %v728 = vunpack.c.h.b16 %v426
    %v729 = vunpack.c.l.b16 %v427
    %v730 = vunpack.c.h.b16 %v427
    %v731 = vunpack.c.l.b16 %v428
    %v732 = vunpack.c.h.b16 %v428
    %v733 = vunpack.c.l.b16 %v429
    %v734 = vunpack.c.h.b16 %v429
    %v735 = vunpack.c.l.b16 %v430
    %v736 = vunpack.c.h.b16 %v430
    %v737 = vunpack.c.l.b16 %v431
    %v738 = vunpack.c.h.b16 %v431
    %v739 = vunpack.c.l.b16 %v432
    %v740 = vunpack.c.h.b16 %v432
    %v741 = vunpack.c.l.b16 %v433
    %v742 = vunpack.c.h.b16 %v433
    %v743 = vunpack.c.l.b16 %v434
    %v744 = vunpack.c.h.b16 %v434
    %v745 = vunpack.c.l.b16 %v435
    %v746 = vunpack.c.h.b16 %v435
    %v747 = vunpack.c.l.b16 %v436
    %v748 = vunpack.c.h.b16 %v436
    %v749 = vunpack.c.l.b16 %v437
    %v750 = vunpack.c.h.b16 %v437
    %v751 = vunpack.c.l.b16 %v438
    %v752 = vunpack.c.h.b16 %v438
    %v753 = vunpack.c.l.b16 %v439
    %v754 = vunpack.c.h.b16 %v439
    %v755 = vunpack.c.l.b16 %v440
    %v756 = vunpack.c.h.b16 %v440
    %v757 = vunpack.c.l.b16 %v441
    %v758 = vunpack.c.h.b16 %v441
    %v759 = vunpack.c.l.b16 %v442
    %v760 = vunpack.c.h.b16 %v442
    %v761 = vunpack.c.l.b16 %v443
    %v762 = vunpack.c.h.b16 %v443
    %v763 = vunpack.c.l.b16 %v444
    %v764 = vunpack.c.h.b16 %v444
    %v765 = vpack.c.b16 %v579, %v573
    %v766 = vpack.c.b16 %v580, %v574
    %v767 = vpack.c.b16 %v581, %v575
    %v768 = vpack.c.b16 %v582, %v576
    %v769 = vpack.c.b16 %v583, %v577
    %v770 = vpack.c.b16 %v584, %v578
    %v771 = vpack.c.b16 %v591, %v585
    %v772 = vpack.c.b16 %v592, %v586
    %v773 = vpack.c.b16 %v593, %v587
    %v774 = vpack.c.b16 %v594, %v588
    %v775 = vpack.c.b16 %v595, %v589
    %v776 = vpack.c.b16 %v596, %v590
    %v777 = vpack.c.b16 %v603, %v597
    %v778 = vpack.c.b16 %v604, %v598
    %v779 = vpack.c.b16 %v605, %v599
    %v780 = vpack.c.b16 %v606, %v600
    %v781 = vpack.c.b16 %v607, %v601
    %v782 = vpack.c.b16 %v608, %v602
    %v783 = vpack.c.b16 %v615, %v609
    %v784 = vpack.c.b16 %v616, %v610
    %v785 = vpack.c.b16 %v617, %v611
    %v786 = vpack.c.b16 %v618, %v612
    %v787 = vpack.c.b16 %v619, %v613
    %v788 = vpack.c.b16 %v620, %v614
    %v789 = vpack.c.b16 %v627, %v621
    %v790 = vpack.c.b16 %v628, %v622
    %v791 = vpack.c.b16 %v629, %v623
    %v792 = vpack.c.b16 %v630, %v624
    %v793 = vpack.c.b16 %v631, %v625
    %v794 = vpack.c.b16 %v632, %v626
    %v795 = vpack.c.b16 %v639, %v633
    %v796 = vpack.c.b16 %v640, %v634
    %v797 = vpack.c.b16 %v641, %v635
    %v798 = vpack.c.b16 %v642, %v636
    %v799 = vpack.c.b16 %v643, %v637
    %v800 = vpack.c.b16 %v644, %v638
    %v801 = vpack.c.b16 %v651, %v645
    %v802 = vpack.c.b16 %v652, %v646
    %v803 = vpack.c.b16 %v653, %v647
    %v804 = vpack.c.b16 %v654, %v648
    %v805 = vpack.c.b16 %v655, %v649
    %v806 = vpack.c.b16 %v656, %v650
    %v807 = vpack.c.b16 %v663, %v657
    %v808 = vpack.c.b16 %v664, %v658
    %v809 = vpack.c.b16 %v665, %v659
    %v810 = vpack.c.b16 %v666, %v660
    %v811 = vpack.c.b16 %v667, %v661
    %v812 = vpack.c.b16 %v668, %v662
    %v813 = vpack.c.b16 %v675, %v669
    %v814 = vpack.c.b16 %v676, %v670
    %v815 = vpack.c.b16 %v677, %v671
    %v816 = vpack.c.b16 %v678, %v672
    %v817 = vpack.c.b16 %v679, %v673
    %v818 = vpack.c.b16 %v680, %v674
    %v819 = vpack.c.b16 %v687, %v681
    %v820 = vpack.c.b16 %v688, %v682
    %v821 = vpack.c.b16 %v689, %v683
    %v822 = vpack.c.b16 %v690, %v684
    %v823 = vpack.c.b16 %v691, %v685
    %v824 = vpack.c.b16 %v692, %v686
    %v825 = vpack.c.b16 %v699, %v693
    %v826 = vpack.c.b16 %v700, %v694
    %v827 = vpack.c.b16 %v701, %v695
    %v828 = vpack.c.b16 %v702, %v696
    %v829 = vpack.c.b16 %v703, %v697
    %v830 = vpack.c.b16 %v704, %v698
    %v831 = vpack.c.b16 %v711, %v705
    %v832 = vpack.c.b16 %v712, %v706
    %v833 = vpack.c.b16 %v713, %v707
    %v834 = vpack.c.b16 %v714, %v708
    %v835 = vpack.c.b16 %v715, %v709
    %v836 = vpack.c.b16 %v716, %v710
    %v837 = vpack.c.b16 %v723, %v717
    %v838 = vpack.c.b16 %v724, %v718
    %v839 = vpack.c.b16 %v725, %v719
    %v840 = vpack.c.b16 %v726, %v720
    %v841 = vpack.c.b16 %v727, %v721
    %v842 = vpack.c.b16 %v728, %v722
    %v843 = vpack.c.b16 %v735, %v729
    %v844 = vpack.c.b16 %v736, %v730
    %v845 = vpack.c.b16 %v737, %v731
    %v846 = vpack.c.b16 %v738, %v732
    %v847 = vpack.c.b16 %v739, %v733
    %v848 = vpack.c.b16 %v740, %v734
    %v849 = vpack.c.b16 %v747, %v741
    %v850 = vpack.c.b16 %v748, %v742
    %v851 = vpack.c.b16 %v749, %v743
    %v852 = vpack.c.b16 %v750, %v744
    %v853 = vpack.c.b16 %v751, %v745
    %v854 = vpack.c.b16 %v752, %v746
    %v855 = vpack.c.b16 %v759, %v753
    %v856 = vpack.c.b16 %v760, %v754
    %v857 = vpack.c.b16 %v761, %v755
    %v858 = vpack.c.b16 %v762, %v756
    %v859 = vpack.c.b16 %v763, %v757
    %v860 = vpack.c.b16 %v764, %v758
    %957 = vmatprep.subr.bf16.mxu0 %v808
    %958 = vmatpush1.bf16.msra.mxu0 %v807
    %959 = vmatprep.subr.bf16.mxu0 %v802
    %960 = vmatpush1.bf16.msra.mxu0 %v801
    %961 = vmatprep.subr.bf16.mxu0 %v796
    %962 = vmatpush1.bf16.msra.mxu0 %v795
    %963 = vmatprep.subr.bf16.mxu0 %v790
    %964 = vmatpush1.bf16.msra.mxu0 %v789
    %965 = vmatprep.subr.bf16.mxu0 %v784
    %966 = vmatpush1.bf16.msra.mxu0 %v783
    %967 = vmatprep.subr.bf16.mxu0 %v778
    %968 = vmatpush1.bf16.msra.mxu0 %v777
    %969 = vmatprep.subr.bf16.mxu0 %v772
    %970 = vmatpush1.bf16.msra.mxu0 %v771
    %971 = vmatprep.subr.bf16.mxu0 %v766
    %972 = vmatpush1.bf16.msra.mxu0 %v765
    %973 = vmatprep.subr.bf16.mxu0 %v856
    %974 = vmatpush2.bf16.msra.mxu0 %v855
    %975 = vmatprep.subr.bf16.mxu0 %v850
    %976 = vmatpush2.bf16.msra.mxu0 %v849
    %977 = vmatprep.subr.bf16.mxu0 %v844
    %978 = vmatpush2.bf16.msra.mxu0 %v843
    %979 = vmatprep.subr.bf16.mxu0 %v838
    %980 = vmatpush2.bf16.msra.mxu0 %v837
    %981 = vmatprep.subr.bf16.mxu0 %v832
    %982 = vmatpush2.bf16.msra.mxu0 %v831
    %983 = vmatprep.subr.bf16.mxu0 %v826
    %984 = vmatpush2.bf16.msra.mxu0 %v825
    %985 = vmatprep.subr.bf16.mxu0 %v820
    %986 = vmatpush2.bf16.msra.mxu0 %v819
    %987 = vmatprep.subr.bf16.mxu0 %v814
    %988 = vmatpush2.bf16.msra.mxu0 %v813
    %989 = vmatprep.mubr.bf16.mxu0 %v348
    %990 = vmatmul.mubr.bf16.gmra.mxu0 %v347
    %v991 = vpop.f32.mrf.mxu0
    %v992 = vadd.f32 %v450, %v991
    %v993 = vpop.f32.mrf.mxu0
    %v994 = vadd.f32 %v454, %v993
    %v995 = vpop.f32.mrf.mxu0
    %v996 = vadd.f32 %v450, %v995
    %v997 = vpop.f32.mrf.mxu0
    %v998 = vadd.f32 %v454, %v997
    %999 = vdwg.mxu0
    %1000 = vmatprep.subr.bf16.mxu0 %v810
    %1001 = vmatpush1.bf16.msra.mxu0 %v809
    %1002 = vmatprep.subr.bf16.mxu0 %v804
    %1003 = vmatpush1.bf16.msra.mxu0 %v803
    %1004 = vmatprep.subr.bf16.mxu0 %v798
    %1005 = vmatpush1.bf16.msra.mxu0 %v797
    %1006 = vmatprep.subr.bf16.mxu0 %v792
    %1007 = vmatpush1.bf16.msra.mxu0 %v791
    %1008 = vmatprep.subr.bf16.mxu0 %v786
    %1009 = vmatpush1.bf16.msra.mxu0 %v785
    %1010 = vmatprep.subr.bf16.mxu0 %v780
    %1011 = vmatpush1.bf16.msra.mxu0 %v779
    %1012 = vmatprep.subr.bf16.mxu0 %v774
    %1013 = vmatpush1.bf16.msra.mxu0 %v773
    %1014 = vmatprep.subr.bf16.mxu0 %v768
    %1015 = vmatpush1.bf16.msra.mxu0 %v767
    %1016 = vmatprep.subr.bf16.mxu0 %v858
    %1017 = vmatpush2.bf16.msra.mxu0 %v857
    %1018 = vmatprep.subr.bf16.mxu0 %v852
    %1019 = vmatpush2.bf16.msra.mxu0 %v851
    %1020 = vmatprep.subr.bf16.mxu0 %v846
    %1021 = vmatpush2.bf16.msra.mxu0 %v845
    %1022 = vmatprep.subr.bf16.mxu0 %v840
    %1023 = vmatpush2.bf16.msra.mxu0 %v839
    %1024 = vmatprep.subr.bf16.mxu0 %v834
    %1025 = vmatpush2.bf16.msra.mxu0 %v833
    %1026 = vmatprep.subr.bf16.mxu0 %v828
    %1027 = vmatpush2.bf16.msra.mxu0 %v827
    %1028 = vmatprep.subr.bf16.mxu0 %v822
    %1029 = vmatpush2.bf16.msra.mxu0 %v821
    %1030 = vmatprep.subr.bf16.mxu0 %v816
    %1031 = vmatpush2.bf16.msra.mxu0 %v815
    %1032 = vmatprep.mubr.bf16.mxu0 %v348
    %1033 = vmatmul.mubr.bf16.gmra.mxu0 %v347
    %v1034 = vpop.f32.mrf.mxu0
    %v1035 = vadd.f32 %v458, %v1034
    %v1036 = vpop.f32.mrf.mxu0
    %v1037 = vadd.f32 %v462, %v1036
    %v1038 = vpop.f32.mrf.mxu0
    %v1039 = vadd.f32 %v458, %v1038
    %v1040 = vpop.f32.mrf.mxu0
    %v1041 = vadd.f32 %v462, %v1040
    %1042 = vdwg.mxu0
    %1043 = vmatprep.subr.bf16.mxu0 %v812
    %1044 = vmatpush1.bf16.msra.mxu0 %v811
    %1045 = vmatprep.subr.bf16.mxu0 %v806
    %1046 = vmatpush1.bf16.msra.mxu0 %v805
    %1047 = vmatprep.subr.bf16.mxu0 %v800
    %1048 = vmatpush1.bf16.msra.mxu0 %v799
    %1049 = vmatprep.subr.bf16.mxu0 %v794
    %1050 = vmatpush1.bf16.msra.mxu0 %v793
    %1051 = vmatprep.subr.bf16.mxu0 %v788
    %1052 = vmatpush1.bf16.msra.mxu0 %v787
    %1053 = vmatprep.subr.bf16.mxu0 %v782
    %1054 = vmatpush1.bf16.msra.mxu0 %v781
    %1055 = vmatprep.subr.bf16.mxu0 %v776
    %1056 = vmatpush1.bf16.msra.mxu0 %v775
    %1057 = vmatprep.subr.bf16.mxu0 %v770
    %1058 = vmatpush1.bf16.msra.mxu0 %v769
    %1059 = vmatprep.subr.bf16.mxu0 %v860
    %1060 = vmatpush2.bf16.msra.mxu0 %v859
    %1061 = vmatprep.subr.bf16.mxu0 %v854
    %1062 = vmatpush2.bf16.msra.mxu0 %v853
    %1063 = vmatprep.subr.bf16.mxu0 %v848
    %1064 = vmatpush2.bf16.msra.mxu0 %v847
    %1065 = vmatprep.subr.bf16.mxu0 %v842
    %1066 = vmatpush2.bf16.msra.mxu0 %v841
    %1067 = vmatprep.subr.bf16.mxu0 %v836
    %1068 = vmatpush2.bf16.msra.mxu0 %v835
    %1069 = vmatprep.subr.bf16.mxu0 %v830
    %1070 = vmatpush2.bf16.msra.mxu0 %v829
    %1071 = vmatprep.subr.bf16.mxu0 %v824
    %1072 = vmatpush2.bf16.msra.mxu0 %v823
    %1073 = vmatprep.subr.bf16.mxu0 %v818
    %1074 = vmatpush2.bf16.msra.mxu0 %v817
    %1075 = vmatprep.mubr.bf16.mxu0 %v348
    %1076 = vmatmul.mubr.bf16.gmra.mxu0 %v347
    %v1077 = vpop.f32.mrf.mxu0
    %v1078 = vadd.f32 %v466, %v1077
    %v1079 = vpop.f32.mrf.mxu0
    %v1080 = vadd.f32 %v470, %v1079
    %v1081 = vpop.f32.mrf.mxu0
    %v1082 = vadd.f32 %v466, %v1081
    %v1083 = vpop.f32.mrf.mxu0
    %v1084 = vadd.f32 %v470, %v1083
    %1085 = vdwg.mxu0
    %v1086 = vsub.f32 0.0, %v992
    %v1087 = vsub.f32 0.0, %v994
    %v1088 = vsub.f32 0.0, %v1035
    %v1089 = vsub.f32 0.0, %v1037
    %v1090 = vsub.f32 0.0, %v1078
    %v1091 = vsub.f32 0.0, %v1080
    %v1092 = vsub.f32 0.0, %v996
    %v1093 = vsub.f32 0.0, %v998
    %v1094 = vsub.f32 0.0, %v1039
    %v1095 = vsub.f32 0.0, %v1041
    %v1096 = vsub.f32 0.0, %v1082
    %v1097 = vsub.f32 0.0, %v1084
    %v1098 = vmul.f32 %v1086, 1.442695
    %v1099 = vpow.pop %v1098
    %v1100 = vmul.f32 %v1087, 1.442695
    %v1101 = vpow.pop %v1100
    %v1102 = vmul.f32 %v1088, 1.442695
    %v1103 = vpow.pop %v1102
    %v1104 = vmul.f32 %v1089, 1.442695
    %v1105 = vpow.pop %v1104
    %v1106 = vmul.f32 %v1090, 1.442695
    %v1107 = vpow.pop %v1106
    %v1108 = vmul.f32 %v1091, 1.442695
    %v1109 = vpow.pop %v1108
    %v1110 = vmul.f32 %v1092, 1.442695
    %v1111 = vpow.pop %v1110
    %v1112 = vmul.f32 %v1093, 1.442695
    %v1113 = vpow.pop %v1112
    %v1114 = vmul.f32 %v1094, 1.442695
    %v1115 = vpow.pop %v1114
    %v1116 = vmul.f32 %v1095, 1.442695
    %v1117 = vpow.pop %v1116
    %v1118 = vmul.f32 %v1096, 1.442695
    %v1119 = vpow.pop %v1118
    %v1120 = vmul.f32 %v1097, 1.442695
    %v1121 = vpow.pop %v1120
    %v1122 = vadd.f32 %v1099, 1.0
    %v1123 = vadd.f32 %v1101, 1.0
    %v1124 = vadd.f32 %v1103, 1.0
    %v1125 = vadd.f32 %v1105, 1.0
    %v1126 = vadd.f32 %v1107, 1.0
    %v1127 = vadd.f32 %v1109, 1.0
    %v1128 = vadd.f32 %v1111, 1.0
    %v1129 = vadd.f32 %v1113, 1.0
    %v1130 = vadd.f32 %v1115, 1.0
    %v1131 = vadd.f32 %v1117, 1.0
    %v1132 = vadd.f32 %v1119, 1.0
    %v1133 = vadd.f32 %v1121, 1.0
    %v1134 = vrcp.pop %v1122
    %v1135 = vrcp.pop %v1123
    %v1136 = vrcp.pop %v1124
    %v1137 = vrcp.pop %v1125
    %v1138 = vrcp.pop %v1126
    %v1139 = vrcp.pop %v1127
    %v1140 = vrcp.pop %v1128
    %v1141 = vrcp.pop %v1129
    %v1142 = vrcp.pop %v1130
    %v1143 = vrcp.pop %v1131
    %v1144 = vrcp.pop %v1132
    %v1145 = vrcp.pop %v1133
    %v1146 = vmul.f32 %v992, %v1134
    %v1147 = vmul.f32 %v994, %v1135
    %v1148 = vmul.f32 %v1035, %v1136
    %v1149 = vmul.f32 %v1037, %v1137
    %v1150 = vmul.f32 %v1078, %v1138
    %v1151 = vmul.f32 %v1080, %v1139
    %v1152 = vmul.f32 %v996, %v1140
    %v1153 = vmul.f32 %v998, %v1141
    %v1154 = vmul.f32 %v1039, %v1142
    %v1155 = vmul.f32 %v1041, %v1143
    %v1156 = vmul.f32 %v1082, %v1144
    %v1157 = vmul.f32 %v1084, %v1145
    %v1158 = vpack.c.bf16 %v1152, %v1146
    %v1159 = vpack.c.bf16 %v1153, %v1147
    %v1160 = vpack.c.bf16 %v1154, %v1148
    %v1161 = vpack.c.bf16 %v1155, %v1149
    %v1162 = vpack.c.bf16 %v1156, %v1150
    %v1163 = vpack.c.bf16 %v1157, %v1151
    %v1164 = vld [vmem:[#allocation8] sm:$0xff]
    %v1165 = vld [vmem:[#allocation8 + $0x8] sm:$0xff]
    %v1166 = vld [vmem:[#allocation8 + $0x10] sm:$0xff]
    %v1167 = vld [vmem:[#allocation8 + $0x18] sm:$0xff]
    %v1168 = vld [vmem:[#allocation8 + $0x20] sm:$0xff]
    %v1169 = vld [vmem:[#allocation8 + $0x28] sm:$0xff]
    %v1170 = vld [vmem:[#allocation8 + $0x30] sm:$0xff]
    %v1171 = vld [vmem:[#allocation8 + $0x38] sm:$0xff]
    %v1172 = vld [vmem:[#allocation8 + $0x40] sm:$0xff]
    %v1173 = vld [vmem:[#allocation8 + $0x48] sm:$0xff]
    %v1174 = vld [vmem:[#allocation8 + $0x50] sm:$0xff]
    %v1175 = vld [vmem:[#allocation8 + $0x58] sm:$0xff]
    %v1176 = vld [vmem:[#allocation8 + $0x60] sm:$0xff]
    %v1177 = vld [vmem:[#allocation8 + $0x68] sm:$0xff]
    %v1178 = vld [vmem:[#allocation8 + $0x70] sm:$0xff]
    %v1179 = vld [vmem:[#allocation8 + $0x78] sm:$0xff]
    %v1180 = vld [vmem:[#allocation8 + $0x80] sm:$0xff]
    %v1181 = vld [vmem:[#allocation8 + $0x88] sm:$0xff]
    %v1182 = vld [vmem:[#allocation8 + $0x90] sm:$0xff]
    %v1183 = vld [vmem:[#allocation8 + $0x98] sm:$0xff]
    %v1184 = vld [vmem:[#allocation8 + $0xa0] sm:$0xff]
    %v1185 = vld [vmem:[#allocation8 + $0xa8] sm:$0xff]
    %v1186 = vld [vmem:[#allocation8 + $0xb0] sm:$0xff]
    %v1187 = vld [vmem:[#allocation8 + $0xb8] sm:$0xff]
    %v1188 = vld [vmem:[#allocation8 + $0xc0] sm:$0xff]
    %v1189 = vld [vmem:[#allocation8 + $0xc8] sm:$0xff]
    %v1190 = vld [vmem:[#allocation8 + $0xd0] sm:$0xff]
    %v1191 = vld [vmem:[#allocation8 + $0xd8] sm:$0xff]
    %v1192 = vld [vmem:[#allocation8 + $0xe0] sm:$0xff]
    %v1193 = vld [vmem:[#allocation8 + $0xe8] sm:$0xff]
    %v1194 = vld [vmem:[#allocation8 + $0xf0] sm:$0xff]
    %v1195 = vld [vmem:[#allocation8 + $0xf8] sm:$0xff]
    %v1196 = vld [vmem:[#allocation8 + $0x100] sm:$0xff]
    %v1197 = vld [vmem:[#allocation8 + $0x108] sm:$0xff]
    %v1198 = vld [vmem:[#allocation8 + $0x110] sm:$0xff]
    %v1199 = vld [vmem:[#allocation8 + $0x118] sm:$0xff]
    %v1200 = vld [vmem:[#allocation8 + $0x120] sm:$0xff]
    %v1201 = vld [vmem:[#allocation8 + $0x128] sm:$0xff]
    %v1202 = vld [vmem:[#allocation8 + $0x130] sm:$0xff]
    %v1203 = vld [vmem:[#allocation8 + $0x138] sm:$0xff]
    %v1204 = vld [vmem:[#allocation8 + $0x140] sm:$0xff]
    %v1205 = vld [vmem:[#allocation8 + $0x148] sm:$0xff]
    %v1206 = vld [vmem:[#allocation8 + $0x150] sm:$0xff]
    %v1207 = vld [vmem:[#allocation8 + $0x158] sm:$0xff]
    %v1208 = vld [vmem:[#allocation8 + $0x160] sm:$0xff]
    %v1209 = vld [vmem:[#allocation8 + $0x168] sm:$0xff]
    %v1210 = vld [vmem:[#allocation8 + $0x170] sm:$0xff]
    %v1211 = vld [vmem:[#allocation8 + $0x178] sm:$0xff]
    %v1212 = vld [vmem:[#allocation8 + $0x180] sm:$0xff]
    %v1213 = vld [vmem:[#allocation8 + $0x188] sm:$0xff]
    %v1214 = vld [vmem:[#allocation8 + $0x190] sm:$0xff]
    %v1215 = vld [vmem:[#allocation8 + $0x198] sm:$0xff]
    %v1216 = vld [vmem:[#allocation8 + $0x1a0] sm:$0xff]
    %v1217 = vld [vmem:[#allocation8 + $0x1a8] sm:$0xff]
    %v1218 = vld [vmem:[#allocation8 + $0x1b0] sm:$0xff]
    %v1219 = vld [vmem:[#allocation8 + $0x1b8] sm:$0xff]
    %v1220 = vld [vmem:[#allocation8 + $0x1c0] sm:$0xff]
    %v1221 = vld [vmem:[#allocation8 + $0x1c8] sm:$0xff]
    %v1222 = vld [vmem:[#allocation8 + $0x1d0] sm:$0xff]
    %v1223 = vld [vmem:[#allocation8 + $0x1d8] sm:$0xff]
    %v1224 = vld [vmem:[#allocation8 + $0x1e0] sm:$0xff]
    %v1225 = vld [vmem:[#allocation8 + $0x1e8] sm:$0xff]
    %v1226 = vld [vmem:[#allocation8 + $0x1f0] sm:$0xff]
    %v1227 = vld [vmem:[#allocation8 + $0x1f8] sm:$0xff]
    %v1228 = vld [vmem:[#allocation8 + $0x200] sm:$0xff]
    %v1229 = vld [vmem:[#allocation8 + $0x208] sm:$0xff]
    %v1230 = vld [vmem:[#allocation8 + $0x210] sm:$0xff]
    %v1231 = vld [vmem:[#allocation8 + $0x218] sm:$0xff]
    %v1232 = vld [vmem:[#allocation8 + $0x220] sm:$0xff]
    %v1233 = vld [vmem:[#allocation8 + $0x228] sm:$0xff]
    %v1234 = vld [vmem:[#allocation8 + $0x230] sm:$0xff]
    %v1235 = vld [vmem:[#allocation8 + $0x238] sm:$0xff]
    %v1236 = vld [vmem:[#allocation8 + $0x240] sm:$0xff]
    %v1237 = vld [vmem:[#allocation8 + $0x248] sm:$0xff]
    %v1238 = vld [vmem:[#allocation8 + $0x250] sm:$0xff]
    %v1239 = vld [vmem:[#allocation8 + $0x258] sm:$0xff]
    %v1240 = vld [vmem:[#allocation8 + $0x260] sm:$0xff]
    %v1241 = vld [vmem:[#allocation8 + $0x268] sm:$0xff]
    %v1242 = vld [vmem:[#allocation8 + $0x270] sm:$0xff]
    %v1243 = vld [vmem:[#allocation8 + $0x278] sm:$0xff]
    %v1244 = vld [vmem:[#allocation8 + $0x280] sm:$0xff]
    %v1245 = vld [vmem:[#allocation8 + $0x288] sm:$0xff]
    %v1246 = vld [vmem:[#allocation8 + $0x290] sm:$0xff]
    %v1247 = vld [vmem:[#allocation8 + $0x298] sm:$0xff]
    %v1248 = vld [vmem:[#allocation8 + $0x2a0] sm:$0xff]
    %v1249 = vld [vmem:[#allocation8 + $0x2a8] sm:$0xff]
    %v1250 = vld [vmem:[#allocation8 + $0x2b0] sm:$0xff]
    %v1251 = vld [vmem:[#allocation8 + $0x2b8] sm:$0xff]
    %v1252 = vld [vmem:[#allocation8 + $0x2c0] sm:$0xff]
    %v1253 = vld [vmem:[#allocation8 + $0x2c8] sm:$0xff]
    %v1254 = vld [vmem:[#allocation8 + $0x2d0] sm:$0xff]
    %v1255 = vld [vmem:[#allocation8 + $0x2d8] sm:$0xff]
    %v1256 = vld [vmem:[#allocation8 + $0x2e0] sm:$0xff]
    %v1257 = vld [vmem:[#allocation8 + $0x2e8] sm:$0xff]
    %v1258 = vld [vmem:[#allocation8 + $0x2f0] sm:$0xff]
    %v1259 = vld [vmem:[#allocation8 + $0x2f8] sm:$0xff]
    %v1260 = vld [vmem:[#allocation8 + $0x300] sm:$0xff]
    %v1261 = vld [vmem:[#allocation8 + $0x308] sm:$0xff]
    %v1262 = vld [vmem:[#allocation8 + $0x310] sm:$0xff]
    %v1263 = vld [vmem:[#allocation8 + $0x318] sm:$0xff]
    %v1264 = vld [vmem:[#allocation8 + $0x320] sm:$0xff]
    %v1265 = vld [vmem:[#allocation8 + $0x328] sm:$0xff]
    %v1266 = vld [vmem:[#allocation8 + $0x330] sm:$0xff]
    %v1267 = vld [vmem:[#allocation8 + $0x338] sm:$0xff]
    %v1268 = vld [vmem:[#allocation8 + $0x340] sm:$0xff]
    %v1269 = vld [vmem:[#allocation8 + $0x348] sm:$0xff]
    %v1270 = vld [vmem:[#allocation8 + $0x350] sm:$0xff]
    %v1271 = vld [vmem:[#allocation8 + $0x358] sm:$0xff]
    %v1272 = vld [vmem:[#allocation8 + $0x360] sm:$0xff]
    %v1273 = vld [vmem:[#allocation8 + $0x368] sm:$0xff]
    %v1274 = vld [vmem:[#allocation8 + $0x370] sm:$0xff]
    %v1275 = vld [vmem:[#allocation8 + $0x378] sm:$0xff]
    %v1276 = vld [vmem:[#allocation8 + $0x380] sm:$0xff]
    %v1277 = vld [vmem:[#allocation8 + $0x388] sm:$0xff]
    %v1278 = vld [vmem:[#allocation8 + $0x390] sm:$0xff]
    %v1279 = vld [vmem:[#allocation8 + $0x398] sm:$0xff]
    %v1280 = vld [vmem:[#allocation8 + $0x3a0] sm:$0xff]
    %v1281 = vld [vmem:[#allocation8 + $0x3a8] sm:$0xff]
    %v1282 = vld [vmem:[#allocation8 + $0x3b0] sm:$0xff]
    %v1283 = vld [vmem:[#allocation8 + $0x3b8] sm:$0xff]
    %v1284 = vld [vmem:[#allocation8 + $0x3c0] sm:$0xff]
    %v1285 = vld [vmem:[#allocation8 + $0x3c8] sm:$0xff]
    %v1286 = vld [vmem:[#allocation8 + $0x3d0] sm:$0xff]
    %v1287 = vld [vmem:[#allocation8 + $0x3d8] sm:$0xff]
    %v1288 = vld [vmem:[#allocation8 + $0x3e0] sm:$0xff]
    %v1289 = vld [vmem:[#allocation8 + $0x3e8] sm:$0xff]
    %v1290 = vld [vmem:[#allocation8 + $0x3f0] sm:$0xff]
    %v1291 = vld [vmem:[#allocation8 + $0x3f8] sm:$0xff]
    %v1292 = vld [vmem:[#allocation8 + $0x400] sm:$0xff]
    %v1293 = vld [vmem:[#allocation8 + $0x408] sm:$0xff]
    %v1294 = vld [vmem:[#allocation8 + $0x410] sm:$0xff]
    %v1295 = vld [vmem:[#allocation8 + $0x418] sm:$0xff]
    %v1296 = vld [vmem:[#allocation8 + $0x420] sm:$0xff]
    %v1297 = vld [vmem:[#allocation8 + $0x428] sm:$0xff]
    %v1298 = vld [vmem:[#allocation8 + $0x430] sm:$0xff]
    %v1299 = vld [vmem:[#allocation8 + $0x438] sm:$0xff]
    %v1300 = vld [vmem:[#allocation8 + $0x440] sm:$0xff]
    %v1301 = vld [vmem:[#allocation8 + $0x448] sm:$0xff]
    %v1302 = vld [vmem:[#allocation8 + $0x450] sm:$0xff]
    %v1303 = vld [vmem:[#allocation8 + $0x458] sm:$0xff]
    %v1304 = vld [vmem:[#allocation8 + $0x460] sm:$0xff]
    %v1305 = vld [vmem:[#allocation8 + $0x468] sm:$0xff]
    %v1306 = vld [vmem:[#allocation8 + $0x470] sm:$0xff]
    %v1307 = vld [vmem:[#allocation8 + $0x478] sm:$0xff]
    %v1308 = vld [vmem:[#allocation8 + $0x480] sm:$0xff]
    %v1309 = vld [vmem:[#allocation8 + $0x488] sm:$0xff]
    %v1310 = vld [vmem:[#allocation8 + $0x490] sm:$0xff]
    %v1311 = vld [vmem:[#allocation8 + $0x498] sm:$0xff]
    %v1312 = vld [vmem:[#allocation8 + $0x4a0] sm:$0xff]
    %v1313 = vld [vmem:[#allocation8 + $0x4a8] sm:$0xff]
    %v1314 = vld [vmem:[#allocation8 + $0x4b0] sm:$0xff]
    %v1315 = vld [vmem:[#allocation8 + $0x4b8] sm:$0xff]
    %v1316 = vld [vmem:[#allocation8 + $0x4c0] sm:$0xff]
    %v1317 = vld [vmem:[#allocation8 + $0x4c8] sm:$0xff]
    %v1318 = vld [vmem:[#allocation8 + $0x4d0] sm:$0xff]
    %v1319 = vld [vmem:[#allocation8 + $0x4d8] sm:$0xff]
    %v1320 = vld [vmem:[#allocation8 + $0x4e0] sm:$0xff]
    %v1321 = vld [vmem:[#allocation8 + $0x4e8] sm:$0xff]
    %v1322 = vld [vmem:[#allocation8 + $0x4f0] sm:$0xff]
    %v1323 = vld [vmem:[#allocation8 + $0x4f8] sm:$0xff]
    %v1324 = vld [vmem:[#allocation8 + $0x500] sm:$0xff]
    %v1325 = vld [vmem:[#allocation8 + $0x508] sm:$0xff]
    %v1326 = vld [vmem:[#allocation8 + $0x510] sm:$0xff]
    %v1327 = vld [vmem:[#allocation8 + $0x518] sm:$0xff]
    %v1328 = vld [vmem:[#allocation8 + $0x520] sm:$0xff]
    %v1329 = vld [vmem:[#allocation8 + $0x528] sm:$0xff]
    %v1330 = vld [vmem:[#allocation8 + $0x530] sm:$0xff]
    %v1331 = vld [vmem:[#allocation8 + $0x538] sm:$0xff]
    %v1332 = vld [vmem:[#allocation8 + $0x540] sm:$0xff]
    %v1333 = vld [vmem:[#allocation8 + $0x548] sm:$0xff]
    %v1334 = vld [vmem:[#allocation8 + $0x550] sm:$0xff]
    %v1335 = vld [vmem:[#allocation8 + $0x558] sm:$0xff]
    %v1336 = vld [vmem:[#allocation8 + $0x560] sm:$0xff]
    %v1337 = vld [vmem:[#allocation8 + $0x568] sm:$0xff]
    %v1338 = vld [vmem:[#allocation8 + $0x570] sm:$0xff]
    %v1339 = vld [vmem:[#allocation8 + $0x578] sm:$0xff]
    %v1340 = vld [vmem:[#allocation8 + $0x580] sm:$0xff]
    %v1341 = vld [vmem:[#allocation8 + $0x588] sm:$0xff]
    %v1342 = vld [vmem:[#allocation8 + $0x590] sm:$0xff]
    %v1343 = vld [vmem:[#allocation8 + $0x598] sm:$0xff]
    %v1344 = vld [vmem:[#allocation8 + $0x5a0] sm:$0xff]
    %v1345 = vld [vmem:[#allocation8 + $0x5a8] sm:$0xff]
    %v1346 = vld [vmem:[#allocation8 + $0x5b0] sm:$0xff]
    %v1347 = vld [vmem:[#allocation8 + $0x5b8] sm:$0xff]
    %v1348 = vld [vmem:[#allocation8 + $0x5c0] sm:$0xff]
    %v1349 = vld [vmem:[#allocation8 + $0x5c8] sm:$0xff]
    %v1350 = vld [vmem:[#allocation8 + $0x5d0] sm:$0xff]
    %v1351 = vld [vmem:[#allocation8 + $0x5d8] sm:$0xff]
    %v1352 = vld [vmem:[#allocation8 + $0x5e0] sm:$0xff]
    %v1353 = vld [vmem:[#allocation8 + $0x5e8] sm:$0xff]
    %v1354 = vld [vmem:[#allocation8 + $0x5f0] sm:$0xff]
    %v1355 = vld [vmem:[#allocation8 + $0x5f8] sm:$0xff]
    %v1356 = vld [vmem:[#allocation8 + $0x600] sm:$0xff]
    %v1357 = vld [vmem:[#allocation8 + $0x608] sm:$0xff]
    %v1358 = vld [vmem:[#allocation8 + $0x610] sm:$0xff]
    %v1359 = vld [vmem:[#allocation8 + $0x618] sm:$0xff]
    %v1360 = vld [vmem:[#allocation8 + $0x620] sm:$0xff]
    %v1361 = vld [vmem:[#allocation8 + $0x628] sm:$0xff]
    %v1362 = vld [vmem:[#allocation8 + $0x630] sm:$0xff]
    %v1363 = vld [vmem:[#allocation8 + $0x638] sm:$0xff]
    %v1364 = vld [vmem:[#allocation8 + $0x640] sm:$0xff]
    %v1365 = vld [vmem:[#allocation8 + $0x648] sm:$0xff]
    %v1366 = vld [vmem:[#allocation8 + $0x650] sm:$0xff]
    %v1367 = vld [vmem:[#allocation8 + $0x658] sm:$0xff]
    %v1368 = vld [vmem:[#allocation8 + $0x660] sm:$0xff]
    %v1369 = vld [vmem:[#allocation8 + $0x668] sm:$0xff]
    %v1370 = vld [vmem:[#allocation8 + $0x670] sm:$0xff]
    %v1371 = vld [vmem:[#allocation8 + $0x678] sm:$0xff]
    %v1372 = vld [vmem:[#allocation8 + $0x680] sm:$0xff]
    %v1373 = vld [vmem:[#allocation8 + $0x688] sm:$0xff]
    %v1374 = vld [vmem:[#allocation8 + $0x690] sm:$0xff]
    %v1375 = vld [vmem:[#allocation8 + $0x698] sm:$0xff]
    %v1376 = vld [vmem:[#allocation8 + $0x6a0] sm:$0xff]
    %v1377 = vld [vmem:[#allocation8 + $0x6a8] sm:$0xff]
    %v1378 = vld [vmem:[#allocation8 + $0x6b0] sm:$0xff]
    %v1379 = vld [vmem:[#allocation8 + $0x6b8] sm:$0xff]
    %v1380 = vld [vmem:[#allocation8 + $0x6c0] sm:$0xff]
    %v1381 = vld [vmem:[#allocation8 + $0x6c8] sm:$0xff]
    %v1382 = vld [vmem:[#allocation8 + $0x6d0] sm:$0xff]
    %v1383 = vld [vmem:[#allocation8 + $0x6d8] sm:$0xff]
    %v1384 = vld [vmem:[#allocation8 + $0x6e0] sm:$0xff]
    %v1385 = vld [vmem:[#allocation8 + $0x6e8] sm:$0xff]
    %v1386 = vld [vmem:[#allocation8 + $0x6f0] sm:$0xff]
    %v1387 = vld [vmem:[#allocation8 + $0x6f8] sm:$0xff]
    %v1388 = vld [vmem:[#allocation8 + $0x700] sm:$0xff]
    %v1389 = vld [vmem:[#allocation8 + $0x708] sm:$0xff]
    %v1390 = vld [vmem:[#allocation8 + $0x710] sm:$0xff]
    %v1391 = vld [vmem:[#allocation8 + $0x718] sm:$0xff]
    %v1392 = vld [vmem:[#allocation8 + $0x720] sm:$0xff]
    %v1393 = vld [vmem:[#allocation8 + $0x728] sm:$0xff]
    %v1394 = vld [vmem:[#allocation8 + $0x730] sm:$0xff]
    %v1395 = vld [vmem:[#allocation8 + $0x738] sm:$0xff]
    %v1396 = vld [vmem:[#allocation8 + $0x740] sm:$0xff]
    %v1397 = vld [vmem:[#allocation8 + $0x748] sm:$0xff]
    %v1398 = vld [vmem:[#allocation8 + $0x750] sm:$0xff]
    %v1399 = vld [vmem:[#allocation8 + $0x758] sm:$0xff]
    %v1400 = vld [vmem:[#allocation8 + $0x760] sm:$0xff]
    %v1401 = vld [vmem:[#allocation8 + $0x768] sm:$0xff]
    %v1402 = vld [vmem:[#allocation8 + $0x770] sm:$0xff]
    %v1403 = vld [vmem:[#allocation8 + $0x778] sm:$0xff]
    %v1404 = vld [vmem:[#allocation8 + $0x780] sm:$0xff]
    %v1405 = vld [vmem:[#allocation8 + $0x788] sm:$0xff]
    %v1406 = vld [vmem:[#allocation8 + $0x790] sm:$0xff]
    %v1407 = vld [vmem:[#allocation8 + $0x798] sm:$0xff]
    %v1408 = vld [vmem:[#allocation8 + $0x7a0] sm:$0xff]
    %v1409 = vld [vmem:[#allocation8 + $0x7a8] sm:$0xff]
    %v1410 = vld [vmem:[#allocation8 + $0x7b0] sm:$0xff]
    %v1411 = vld [vmem:[#allocation8 + $0x7b8] sm:$0xff]
    %v1412 = vld [vmem:[#allocation8 + $0x7c0] sm:$0xff]
    %v1413 = vld [vmem:[#allocation8 + $0x7c8] sm:$0xff]
    %v1414 = vld [vmem:[#allocation8 + $0x7d0] sm:$0xff]
    %v1415 = vld [vmem:[#allocation8 + $0x7d8] sm:$0xff]
    %v1416 = vld [vmem:[#allocation8 + $0x7e0] sm:$0xff]
    %v1417 = vld [vmem:[#allocation8 + $0x7e8] sm:$0xff]
    %v1418 = vld [vmem:[#allocation8 + $0x7f0] sm:$0xff]
    %v1419 = vld [vmem:[#allocation8 + $0x7f8] sm:$0xff]
    %v1420 = vld [vmem:[#allocation8 + $0x800] sm:$0xff]
    %v1421 = vld [vmem:[#allocation8 + $0x808] sm:$0xff]
    %v1422 = vld [vmem:[#allocation8 + $0x810] sm:$0xff]
    %v1423 = vld [vmem:[#allocation8 + $0x818] sm:$0xff]
    %v1424 = vld [vmem:[#allocation8 + $0x820] sm:$0xff]
    %v1425 = vld [vmem:[#allocation8 + $0x828] sm:$0xff]
    %v1426 = vld [vmem:[#allocation8 + $0x830] sm:$0xff]
    %v1427 = vld [vmem:[#allocation8 + $0x838] sm:$0xff]
    %v1428 = vld [vmem:[#allocation8 + $0x840] sm:$0xff]
    %v1429 = vld [vmem:[#allocation8 + $0x848] sm:$0xff]
    %v1430 = vld [vmem:[#allocation8 + $0x850] sm:$0xff]
    %v1431 = vld [vmem:[#allocation8 + $0x858] sm:$0xff]
    %v1432 = vld [vmem:[#allocation8 + $0x860] sm:$0xff]
    %v1433 = vld [vmem:[#allocation8 + $0x868] sm:$0xff]
    %v1434 = vld [vmem:[#allocation8 + $0x870] sm:$0xff]
    %v1435 = vld [vmem:[#allocation8 + $0x878] sm:$0xff]
    %v1436 = vld [vmem:[#allocation8 + $0x880] sm:$0xff]
    %v1437 = vld [vmem:[#allocation8 + $0x888] sm:$0xff]
    %v1438 = vld [vmem:[#allocation8 + $0x890] sm:$0xff]
    %v1439 = vld [vmem:[#allocation8 + $0x898] sm:$0xff]
    %v1440 = vld [vmem:[#allocation8 + $0x8a0] sm:$0xff]
    %v1441 = vld [vmem:[#allocation8 + $0x8a8] sm:$0xff]
    %v1442 = vld [vmem:[#allocation8 + $0x8b0] sm:$0xff]
    %v1443 = vld [vmem:[#allocation8 + $0x8b8] sm:$0xff]
    %v1444 = vld [vmem:[#allocation8 + $0x8c0] sm:$0xff]
    %v1445 = vld [vmem:[#allocation8 + $0x8c8] sm:$0xff]
    %v1446 = vld [vmem:[#allocation8 + $0x8d0] sm:$0xff]
    %v1447 = vld [vmem:[#allocation8 + $0x8d8] sm:$0xff]
    %v1448 = vld [vmem:[#allocation8 + $0x8e0] sm:$0xff]
    %v1449 = vld [vmem:[#allocation8 + $0x8e8] sm:$0xff]
    %v1450 = vld [vmem:[#allocation8 + $0x8f0] sm:$0xff]
    %v1451 = vld [vmem:[#allocation8 + $0x8f8] sm:$0xff]
    %v1452 = vld [vmem:[#allocation10] sm:$0x3f]
    %v1454 = vlaneseq
    %v1455 = vshrl.u32 %v1454, 7
    %v1456 = vsub.s32 0, %v1455
    %v1457 = vrot.slane %v1452, %v1456
    %v1458 = vlaneseq
    %v1459 = vshrl.u32 %v1458, 7
    %v1460 = vsub.s32 1, %v1459
    %v1461 = vrot.slane %v1452, %v1460
    %v1462 = vlaneseq
    %v1463 = vshrl.u32 %v1462, 7
    %v1464 = vsub.s32 2, %v1463
    %v1465 = vrot.slane %v1452, %v1464
    %v1466 = vlaneseq
    %v1467 = vshrl.u32 %v1466, 7
    %v1468 = vsub.s32 3, %v1467
    %v1469 = vrot.slane %v1452, %v1468
    %v1470 = vlaneseq
    %v1471 = vshrl.u32 %v1470, 7
    %v1472 = vsub.s32 4, %v1471
    %v1473 = vrot.slane %v1452, %v1472
    %v1474 = vlaneseq
    %v1475 = vshrl.u32 %v1474, 7
    %v1476 = vsub.s32 5, %v1475
    %v1477 = vrot.slane %v1452, %v1476
    %v1772 = vunpack.c.l.b16 %v1164
    %v1773 = vunpack.c.h.b16 %v1164
    %v1774 = vunpack.c.l.b16 %v1165
    %v1775 = vunpack.c.h.b16 %v1165
    %v1776 = vunpack.c.l.b16 %v1166
    %v1777 = vunpack.c.h.b16 %v1166
    %v1778 = vunpack.c.l.b16 %v1167
    %v1779 = vunpack.c.h.b16 %v1167
    %v1780 = vunpack.c.l.b16 %v1168
    %v1781 = vunpack.c.h.b16 %v1168
    %v1782 = vunpack.c.l.b16 %v1169
    %v1783 = vunpack.c.h.b16 %v1169
    %v1784 = vunpack.c.l.b16 %v1170
    %v1785 = vunpack.c.h.b16 %v1170
    %v1786 = vunpack.c.l.b16 %v1171
    %v1787 = vunpack.c.h.b16 %v1171
    %v1788 = vunpack.c.l.b16 %v1172
    %v1789 = vunpack.c.h.b16 %v1172
    %v1790 = vunpack.c.l.b16 %v1173
    %v1791 = vunpack.c.h.b16 %v1173
    %v1792 = vunpack.c.l.b16 %v1174
    %v1793 = vunpack.c.h.b16 %v1174
    %v1794 = vunpack.c.l.b16 %v1175
    %v1795 = vunpack.c.h.b16 %v1175
    %v1796 = vunpack.c.l.b16 %v1176
    %v1797 = vunpack.c.h.b16 %v1176
    %v1798 = vunpack.c.l.b16 %v1177
    %v1799 = vunpack.c.h.b16 %v1177
    %v1800 = vunpack.c.l.b16 %v1178
    %v1801 = vunpack.c.h.b16 %v1178
    %v1802 = vunpack.c.l.b16 %v1179
    %v1803 = vunpack.c.h.b16 %v1179
    %v1804 = vunpack.c.l.b16 %v1180
    %v1805 = vunpack.c.h.b16 %v1180
    %v1806 = vunpack.c.l.b16 %v1181
    %v1807 = vunpack.c.h.b16 %v1181
    %v1808 = vunpack.c.l.b16 %v1182
    %v1809 = vunpack.c.h.b16 %v1182
    %v1810 = vunpack.c.l.b16 %v1183
    %v1811 = vunpack.c.h.b16 %v1183
    %v1812 = vunpack.c.l.b16 %v1184
    %v1813 = vunpack.c.h.b16 %v1184
    %v1814 = vunpack.c.l.b16 %v1185
    %v1815 = vunpack.c.h.b16 %v1185
    %v1816 = vunpack.c.l.b16 %v1186
    %v1817 = vunpack.c.h.b16 %v1186
    %v1818 = vunpack.c.l.b16 %v1187
    %v1819 = vunpack.c.h.b16 %v1187
    %v1820 = vunpack.c.l.b16 %v1188
    %v1821 = vunpack.c.h.b16 %v1188
    %v1822 = vunpack.c.l.b16 %v1189
    %v1823 = vunpack.c.h.b16 %v1189
    %v1824 = vunpack.c.l.b16 %v1190
    %v1825 = vunpack.c.h.b16 %v1190
    %v1826 = vunpack.c.l.b16 %v1191
    %v1827 = vunpack.c.h.b16 %v1191
    %v1828 = vunpack.c.l.b16 %v1192
    %v1829 = vunpack.c.h.b16 %v1192
    %v1830 = vunpack.c.l.b16 %v1193
    %v1831 = vunpack.c.h.b16 %v1193
    %v1832 = vunpack.c.l.b16 %v1194
    %v1833 = vunpack.c.h.b16 %v1194
    %v1834 = vunpack.c.l.b16 %v1195
    %v1835 = vunpack.c.h.b16 %v1195
    %v1836 = vunpack.c.l.b16 %v1196
    %v1837 = vunpack.c.h.b16 %v1196
    %v1838 = vunpack.c.l.b16 %v1197
    %v1839 = vunpack.c.h.b16 %v1197
    %v1840 = vunpack.c.l.b16 %v1198
    %v1841 = vunpack.c.h.b16 %v1198
    %v1842 = vunpack.c.l.b16 %v1199
    %v1843 = vunpack.c.h.b16 %v1199
    %v1844 = vunpack.c.l.b16 %v1200
    %v1845 = vunpack.c.h.b16 %v1200
    %v1846 = vunpack.c.l.b16 %v1201
    %v1847 = vunpack.c.h.b16 %v1201
    %v1848 = vunpack.c.l.b16 %v1202
    %v1849 = vunpack.c.h.b16 %v1202
    %v1850 = vunpack.c.l.b16 %v1203
    %v1851 = vunpack.c.h.b16 %v1203
    %v1852 = vunpack.c.l.b16 %v1204
    %v1853 = vunpack.c.h.b16 %v1204
    %v1854 = vunpack.c.l.b16 %v1205
    %v1855 = vunpack.c.h.b16 %v1205
    %v1856 = vunpack.c.l.b16 %v1206
    %v1857 = vunpack.c.h.b16 %v1206
    %v1858 = vunpack.c.l.b16 %v1207
    %v1859 = vunpack.c.h.b16 %v1207
    %v1860 = vunpack.c.l.b16 %v1208
    %v1861 = vunpack.c.h.b16 %v1208
    %v1862 = vunpack.c.l.b16 %v1209
    %v1863 = vunpack.c.h.b16 %v1209
    %v1864 = vunpack.c.l.b16 %v1210
    %v1865 = vunpack.c.h.b16 %v1210
    %v1866 = vunpack.c.l.b16 %v1211
    %v1867 = vunpack.c.h.b16 %v1211
    %v1868 = vunpack.c.l.b16 %v1212
    %v1869 = vunpack.c.h.b16 %v1212
    %v1870 = vunpack.c.l.b16 %v1213
    %v1871 = vunpack.c.h.b16 %v1213
    %v1872 = vunpack.c.l.b16 %v1214
    %v1873 = vunpack.c.h.b16 %v1214
    %v1874 = vunpack.c.l.b16 %v1215
    %v1875 = vunpack.c.h.b16 %v1215
    %v1876 = vunpack.c.l.b16 %v1216
    %v1877 = vunpack.c.h.b16 %v1216
    %v1878 = vunpack.c.l.b16 %v1217
    %v1879 = vunpack.c.h.b16 %v1217
    %v1880 = vunpack.c.l.b16 %v1218
    %v1881 = vunpack.c.h.b16 %v1218
    %v1882 = vunpack.c.l.b16 %v1219
    %v1883 = vunpack.c.h.b16 %v1219
    %v1884 = vunpack.c.l.b16 %v1220
    %v1885 = vunpack.c.h.b16 %v1220
    %v1886 = vunpack.c.l.b16 %v1221
    %v1887 = vunpack.c.h.b16 %v1221
    %v1888 = vunpack.c.l.b16 %v1222
    %v1889 = vunpack.c.h.b16 %v1222
    %v1890 = vunpack.c.l.b16 %v1223
    %v1891 = vunpack.c.h.b16 %v1223
    %v1892 = vunpack.c.l.b16 %v1224
    %v1893 = vunpack.c.h.b16 %v1224
    %v1894 = vunpack.c.l.b16 %v1225
    %v1895 = vunpack.c.h.b16 %v1225
    %v1896 = vunpack.c.l.b16 %v1226
    %v1897 = vunpack.c.h.b16 %v1226
    %v1898 = vunpack.c.l.b16 %v1227
    %v1899 = vunpack.c.h.b16 %v1227
    %v1900 = vunpack.c.l.b16 %v1228
    %v1901 = vunpack.c.h.b16 %v1228
    %v1902 = vunpack.c.l.b16 %v1229
    %v1903 = vunpack.c.h.b16 %v1229
    %v1904 = vunpack.c.l.b16 %v1230
    %v1905 = vunpack.c.h.b16 %v1230
    %v1906 = vunpack.c.l.b16 %v1231
    %v1907 = vunpack.c.h.b16 %v1231
    %v1908 = vunpack.c.l.b16 %v1232
    %v1909 = vunpack.c.h.b16 %v1232
    %v1910 = vunpack.c.l.b16 %v1233
    %v1911 = vunpack.c.h.b16 %v1233
    %v1912 = vunpack.c.l.b16 %v1234
    %v1913 = vunpack.c.h.b16 %v1234
    %v1914 = vunpack.c.l.b16 %v1235
    %v1915 = vunpack.c.h.b16 %v1235
    %v1916 = vunpack.c.l.b16 %v1236
    %v1917 = vunpack.c.h.b16 %v1236
    %v1918 = vunpack.c.l.b16 %v1237
    %v1919 = vunpack.c.h.b16 %v1237
    %v1920 = vunpack.c.l.b16 %v1238
    %v1921 = vunpack.c.h.b16 %v1238
    %v1922 = vunpack.c.l.b16 %v1239
    %v1923 = vunpack.c.h.b16 %v1239
    %v1924 = vunpack.c.l.b16 %v1240
    %v1925 = vunpack.c.h.b16 %v1240
    %v1926 = vunpack.c.l.b16 %v1241
    %v1927 = vunpack.c.h.b16 %v1241
    %v1928 = vunpack.c.l.b16 %v1242
    %v1929 = vunpack.c.h.b16 %v1242
    %v1930 = vunpack.c.l.b16 %v1243
    %v1931 = vunpack.c.h.b16 %v1243
    %v1932 = vunpack.c.l.b16 %v1244
    %v1933 = vunpack.c.h.b16 %v1244
    %v1934 = vunpack.c.l.b16 %v1245
    %v1935 = vunpack.c.h.b16 %v1245
    %v1936 = vunpack.c.l.b16 %v1246
    %v1937 = vunpack.c.h.b16 %v1246
    %v1938 = vunpack.c.l.b16 %v1247
    %v1939 = vunpack.c.h.b16 %v1247
    %v1940 = vunpack.c.l.b16 %v1248
    %v1941 = vunpack.c.h.b16 %v1248
    %v1942 = vunpack.c.l.b16 %v1249
    %v1943 = vunpack.c.h.b16 %v1249
    %v1944 = vunpack.c.l.b16 %v1250
    %v1945 = vunpack.c.h.b16 %v1250
    %v1946 = vunpack.c.l.b16 %v1251
    %v1947 = vunpack.c.h.b16 %v1251
    %v1948 = vunpack.c.l.b16 %v1252
    %v1949 = vunpack.c.h.b16 %v1252
    %v1950 = vunpack.c.l.b16 %v1253
    %v1951 = vunpack.c.h.b16 %v1253
    %v1952 = vunpack.c.l.b16 %v1254
    %v1953 = vunpack.c.h.b16 %v1254
    %v1954 = vunpack.c.l.b16 %v1255
    %v1955 = vunpack.c.h.b16 %v1255
    %v1956 = vunpack.c.l.b16 %v1256
    %v1957 = vunpack.c.h.b16 %v1256
    %v1958 = vunpack.c.l.b16 %v1257
    %v1959 = vunpack.c.h.b16 %v1257
    %v1960 = vunpack.c.l.b16 %v1258
    %v1961 = vunpack.c.h.b16 %v1258
    %v1962 = vunpack.c.l.b16 %v1259
    %v1963 = vunpack.c.h.b16 %v1259
    %v1964 = vunpack.c.l.b16 %v1260
    %v1965 = vunpack.c.h.b16 %v1260
    %v1966 = vunpack.c.l.b16 %v1261
    %v1967 = vunpack.c.h.b16 %v1261
    %v1968 = vunpack.c.l.b16 %v1262
    %v1969 = vunpack.c.h.b16 %v1262
    %v1970 = vunpack.c.l.b16 %v1263
    %v1971 = vunpack.c.h.b16 %v1263
    %v1972 = vunpack.c.l.b16 %v1264
    %v1973 = vunpack.c.h.b16 %v1264
    %v1974 = vunpack.c.l.b16 %v1265
    %v1975 = vunpack.c.h.b16 %v1265
    %v1976 = vunpack.c.l.b16 %v1266
    %v1977 = vunpack.c.h.b16 %v1266
    %v1978 = vunpack.c.l.b16 %v1267
    %v1979 = vunpack.c.h.b16 %v1267
    %v1980 = vunpack.c.l.b16 %v1268
    %v1981 = vunpack.c.h.b16 %v1268
    %v1982 = vunpack.c.l.b16 %v1269
    %v1983 = vunpack.c.h.b16 %v1269
    %v1984 = vunpack.c.l.b16 %v1270
    %v1985 = vunpack.c.h.b16 %v1270
    %v1986 = vunpack.c.l.b16 %v1271
    %v1987 = vunpack.c.h.b16 %v1271
    %v1988 = vunpack.c.l.b16 %v1272
    %v1989 = vunpack.c.h.b16 %v1272
    %v1990 = vunpack.c.l.b16 %v1273
    %v1991 = vunpack.c.h.b16 %v1273
    %v1992 = vunpack.c.l.b16 %v1274
    %v1993 = vunpack.c.h.b16 %v1274
    %v1994 = vunpack.c.l.b16 %v1275
    %v1995 = vunpack.c.h.b16 %v1275
    %v1996 = vunpack.c.l.b16 %v1276
    %v1997 = vunpack.c.h.b16 %v1276
    %v1998 = vunpack.c.l.b16 %v1277
    %v1999 = vunpack.c.h.b16 %v1277
    %v2000 = vunpack.c.l.b16 %v1278
    %v2001 = vunpack.c.h.b16 %v1278
    %v2002 = vunpack.c.l.b16 %v1279
    %v2003 = vunpack.c.h.b16 %v1279
    %v2004 = vunpack.c.l.b16 %v1280
    %v2005 = vunpack.c.h.b16 %v1280
    %v2006 = vunpack.c.l.b16 %v1281
    %v2007 = vunpack.c.h.b16 %v1281
    %v2008 = vunpack.c.l.b16 %v1282
    %v2009 = vunpack.c.h.b16 %v1282
    %v2010 = vunpack.c.l.b16 %v1283
    %v2011 = vunpack.c.h.b16 %v1283
    %v2012 = vunpack.c.l.b16 %v1284
    %v2013 = vunpack.c.h.b16 %v1284
    %v2014 = vunpack.c.l.b16 %v1285
    %v2015 = vunpack.c.h.b16 %v1285
    %v2016 = vunpack.c.l.b16 %v1286
    %v2017 = vunpack.c.h.b16 %v1286
    %v2018 = vunpack.c.l.b16 %v1287
    %v2019 = vunpack.c.h.b16 %v1287
    %v2020 = vunpack.c.l.b16 %v1288
    %v2021 = vunpack.c.h.b16 %v1288
    %v2022 = vunpack.c.l.b16 %v1289
    %v2023 = vunpack.c.h.b16 %v1289
    %v2024 = vunpack.c.l.b16 %v1290
    %v2025 = vunpack.c.h.b16 %v1290
    %v2026 = vunpack.c.l.b16 %v1291
    %v2027 = vunpack.c.h.b16 %v1291
    %v2028 = vunpack.c.l.b16 %v1292
    %v2029 = vunpack.c.h.b16 %v1292
    %v2030 = vunpack.c.l.b16 %v1293
    %v2031 = vunpack.c.h.b16 %v1293
    %v2032 = vunpack.c.l.b16 %v1294
    %v2033 = vunpack.c.h.b16 %v1294
    %v2034 = vunpack.c.l.b16 %v1295
    %v2035 = vunpack.c.h.b16 %v1295
    %v2036 = vunpack.c.l.b16 %v1296
    %v2037 = vunpack.c.h.b16 %v1296
    %v2038 = vunpack.c.l.b16 %v1297
    %v2039 = vunpack.c.h.b16 %v1297
    %v2040 = vunpack.c.l.b16 %v1298
    %v2041 = vunpack.c.h.b16 %v1298
    %v2042 = vunpack.c.l.b16 %v1299
    %v2043 = vunpack.c.h.b16 %v1299
    %v2044 = vunpack.c.l.b16 %v1300
    %v2045 = vunpack.c.h.b16 %v1300
    %v2046 = vunpack.c.l.b16 %v1301
    %v2047 = vunpack.c.h.b16 %v1301
    %v2048 = vunpack.c.l.b16 %v1302
    %v2049 = vunpack.c.h.b16 %v1302
    %v2050 = vunpack.c.l.b16 %v1303
    %v2051 = vunpack.c.h.b16 %v1303
    %v2052 = vunpack.c.l.b16 %v1304
    %v2053 = vunpack.c.h.b16 %v1304
    %v2054 = vunpack.c.l.b16 %v1305
    %v2055 = vunpack.c.h.b16 %v1305
    %v2056 = vunpack.c.l.b16 %v1306
    %v2057 = vunpack.c.h.b16 %v1306
    %v2058 = vunpack.c.l.b16 %v1307
    %v2059 = vunpack.c.h.b16 %v1307
    %v2060 = vunpack.c.l.b16 %v1308
    %v2061 = vunpack.c.h.b16 %v1308
    %v2062 = vunpack.c.l.b16 %v1309
    %v2063 = vunpack.c.h.b16 %v1309
    %v2064 = vunpack.c.l.b16 %v1310
    %v2065 = vunpack.c.h.b16 %v1310
    %v2066 = vunpack.c.l.b16 %v1311
    %v2067 = vunpack.c.h.b16 %v1311
    %v2068 = vunpack.c.l.b16 %v1312
    %v2069 = vunpack.c.h.b16 %v1312
    %v2070 = vunpack.c.l.b16 %v1313
    %v2071 = vunpack.c.h.b16 %v1313
    %v2072 = vunpack.c.l.b16 %v1314
    %v2073 = vunpack.c.h.b16 %v1314
    %v2074 = vunpack.c.l.b16 %v1315
    %v2075 = vunpack.c.h.b16 %v1315
    %v2076 = vunpack.c.l.b16 %v1316
    %v2077 = vunpack.c.h.b16 %v1316
    %v2078 = vunpack.c.l.b16 %v1317
    %v2079 = vunpack.c.h.b16 %v1317
    %v2080 = vunpack.c.l.b16 %v1318
    %v2081 = vunpack.c.h.b16 %v1318
    %v2082 = vunpack.c.l.b16 %v1319
    %v2083 = vunpack.c.h.b16 %v1319
    %v2084 = vunpack.c.l.b16 %v1320
    %v2085 = vunpack.c.h.b16 %v1320
    %v2086 = vunpack.c.l.b16 %v1321
    %v2087 = vunpack.c.h.b16 %v1321
    %v2088 = vunpack.c.l.b16 %v1322
    %v2089 = vunpack.c.h.b16 %v1322
    %v2090 = vunpack.c.l.b16 %v1323
    %v2091 = vunpack.c.h.b16 %v1323
    %v2092 = vunpack.c.l.b16 %v1324
    %v2093 = vunpack.c.h.b16 %v1324
    %v2094 = vunpack.c.l.b16 %v1325
    %v2095 = vunpack.c.h.b16 %v1325
    %v2096 = vunpack.c.l.b16 %v1326
    %v2097 = vunpack.c.h.b16 %v1326
    %v2098 = vunpack.c.l.b16 %v1327
    %v2099 = vunpack.c.h.b16 %v1327
    %v2100 = vunpack.c.l.b16 %v1328
    %v2101 = vunpack.c.h.b16 %v1328
    %v2102 = vunpack.c.l.b16 %v1329
    %v2103 = vunpack.c.h.b16 %v1329
    %v2104 = vunpack.c.l.b16 %v1330
    %v2105 = vunpack.c.h.b16 %v1330
    %v2106 = vunpack.c.l.b16 %v1331
    %v2107 = vunpack.c.h.b16 %v1331
    %v2108 = vunpack.c.l.b16 %v1332
    %v2109 = vunpack.c.h.b16 %v1332
    %v2110 = vunpack.c.l.b16 %v1333
    %v2111 = vunpack.c.h.b16 %v1333
    %v2112 = vunpack.c.l.b16 %v1334
    %v2113 = vunpack.c.h.b16 %v1334
    %v2114 = vunpack.c.l.b16 %v1335
    %v2115 = vunpack.c.h.b16 %v1335
    %v2116 = vunpack.c.l.b16 %v1336
    %v2117 = vunpack.c.h.b16 %v1336
    %v2118 = vunpack.c.l.b16 %v1337
    %v2119 = vunpack.c.h.b16 %v1337
    %v2120 = vunpack.c.l.b16 %v1338
    %v2121 = vunpack.c.h.b16 %v1338
    %v2122 = vunpack.c.l.b16 %v1339
    %v2123 = vunpack.c.h.b16 %v1339
    %v2124 = vunpack.c.l.b16 %v1340
    %v2125 = vunpack.c.h.b16 %v1340
    %v2126 = vunpack.c.l.b16 %v1341
    %v2127 = vunpack.c.h.b16 %v1341
    %v2128 = vunpack.c.l.b16 %v1342
    %v2129 = vunpack.c.h.b16 %v1342
    %v2130 = vunpack.c.l.b16 %v1343
    %v2131 = vunpack.c.h.b16 %v1343
    %v2132 = vunpack.c.l.b16 %v1344
    %v2133 = vunpack.c.h.b16 %v1344
    %v2134 = vunpack.c.l.b16 %v1345
    %v2135 = vunpack.c.h.b16 %v1345
    %v2136 = vunpack.c.l.b16 %v1346
    %v2137 = vunpack.c.h.b16 %v1346
    %v2138 = vunpack.c.l.b16 %v1347
    %v2139 = vunpack.c.h.b16 %v1347
    %v2140 = vunpack.c.l.b16 %v1348
    %v2141 = vunpack.c.h.b16 %v1348
    %v2142 = vunpack.c.l.b16 %v1349
    %v2143 = vunpack.c.h.b16 %v1349
    %v2144 = vunpack.c.l.b16 %v1350
    %v2145 = vunpack.c.h.b16 %v1350
    %v2146 = vunpack.c.l.b16 %v1351
    %v2147 = vunpack.c.h.b16 %v1351
    %v2148 = vunpack.c.l.b16 %v1352
    %v2149 = vunpack.c.h.b16 %v1352
    %v2150 = vunpack.c.l.b16 %v1353
    %v2151 = vunpack.c.h.b16 %v1353
    %v2152 = vunpack.c.l.b16 %v1354
    %v2153 = vunpack.c.h.b16 %v1354
    %v2154 = vunpack.c.l.b16 %v1355
    %v2155 = vunpack.c.h.b16 %v1355
    %v2156 = vunpack.c.l.b16 %v1356
    %v2157 = vunpack.c.h.b16 %v1356
    %v2158 = vunpack.c.l.b16 %v1357
    %v2159 = vunpack.c.h.b16 %v1357
    %v2160 = vunpack.c.l.b16 %v1358
    %v2161 = vunpack.c.h.b16 %v1358
    %v2162 = vunpack.c.l.b16 %v1359
    %v2163 = vunpack.c.h.b16 %v1359
    %v2164 = vunpack.c.l.b16 %v1360
    %v2165 = vunpack.c.h.b16 %v1360
    %v2166 = vunpack.c.l.b16 %v1361
    %v2167 = vunpack.c.h.b16 %v1361
    %v2168 = vunpack.c.l.b16 %v1362
    %v2169 = vunpack.c.h.b16 %v1362
    %v2170 = vunpack.c.l.b16 %v1363
    %v2171 = vunpack.c.h.b16 %v1363
    %v2172 = vunpack.c.l.b16 %v1364
    %v2173 = vunpack.c.h.b16 %v1364
    %v2174 = vunpack.c.l.b16 %v1365
    %v2175 = vunpack.c.h.b16 %v1365
    %v2176 = vunpack.c.l.b16 %v1366
    %v2177 = vunpack.c.h.b16 %v1366
    %v2178 = vunpack.c.l.b16 %v1367
    %v2179 = vunpack.c.h.b16 %v1367
    %v2180 = vunpack.c.l.b16 %v1368
    %v2181 = vunpack.c.h.b16 %v1368
    %v2182 = vunpack.c.l.b16 %v1369
    %v2183 = vunpack.c.h.b16 %v1369
    %v2184 = vunpack.c.l.b16 %v1370
    %v2185 = vunpack.c.h.b16 %v1370
    %v2186 = vunpack.c.l.b16 %v1371
    %v2187 = vunpack.c.h.b16 %v1371
    %v2188 = vunpack.c.l.b16 %v1372
    %v2189 = vunpack.c.h.b16 %v1372
    %v2190 = vunpack.c.l.b16 %v1373
    %v2191 = vunpack.c.h.b16 %v1373
    %v2192 = vunpack.c.l.b16 %v1374
    %v2193 = vunpack.c.h.b16 %v1374
    %v2194 = vunpack.c.l.b16 %v1375
    %v2195 = vunpack.c.h.b16 %v1375
    %v2196 = vunpack.c.l.b16 %v1376
    %v2197 = vunpack.c.h.b16 %v1376
    %v2198 = vunpack.c.l.b16 %v1377
    %v2199 = vunpack.c.h.b16 %v1377
    %v2200 = vunpack.c.l.b16 %v1378
    %v2201 = vunpack.c.h.b16 %v1378
    %v2202 = vunpack.c.l.b16 %v1379
    %v2203 = vunpack.c.h.b16 %v1379
    %v2204 = vunpack.c.l.b16 %v1380
    %v2205 = vunpack.c.h.b16 %v1380
    %v2206 = vunpack.c.l.b16 %v1381
    %v2207 = vunpack.c.h.b16 %v1381
    %v2208 = vunpack.c.l.b16 %v1382
    %v2209 = vunpack.c.h.b16 %v1382
    %v2210 = vunpack.c.l.b16 %v1383
    %v2211 = vunpack.c.h.b16 %v1383
    %v2212 = vunpack.c.l.b16 %v1384
    %v2213 = vunpack.c.h.b16 %v1384
    %v2214 = vunpack.c.l.b16 %v1385
    %v2215 = vunpack.c.h.b16 %v1385
    %v2216 = vunpack.c.l.b16 %v1386
    %v2217 = vunpack.c.h.b16 %v1386
    %v2218 = vunpack.c.l.b16 %v1387
    %v2219 = vunpack.c.h.b16 %v1387
    %v2220 = vunpack.c.l.b16 %v1388
    %v2221 = vunpack.c.h.b16 %v1388
    %v2222 = vunpack.c.l.b16 %v1389
    %v2223 = vunpack.c.h.b16 %v1389
    %v2224 = vunpack.c.l.b16 %v1390
    %v2225 = vunpack.c.h.b16 %v1390
    %v2226 = vunpack.c.l.b16 %v1391
    %v2227 = vunpack.c.h.b16 %v1391
    %v2228 = vunpack.c.l.b16 %v1392
    %v2229 = vunpack.c.h.b16 %v1392
    %v2230 = vunpack.c.l.b16 %v1393
    %v2231 = vunpack.c.h.b16 %v1393
    %v2232 = vunpack.c.l.b16 %v1394
    %v2233 = vunpack.c.h.b16 %v1394
    %v2234 = vunpack.c.l.b16 %v1395
    %v2235 = vunpack.c.h.b16 %v1395
    %v2236 = vunpack.c.l.b16 %v1396
    %v2237 = vunpack.c.h.b16 %v1396
    %v2238 = vunpack.c.l.b16 %v1397
    %v2239 = vunpack.c.h.b16 %v1397
    %v2240 = vunpack.c.l.b16 %v1398
    %v2241 = vunpack.c.h.b16 %v1398
    %v2242 = vunpack.c.l.b16 %v1399
    %v2243 = vunpack.c.h.b16 %v1399
    %v2244 = vunpack.c.l.b16 %v1400
    %v2245 = vunpack.c.h.b16 %v1400
    %v2246 = vunpack.c.l.b16 %v1401
    %v2247 = vunpack.c.h.b16 %v1401
    %v2248 = vunpack.c.l.b16 %v1402
    %v2249 = vunpack.c.h.b16 %v1402
    %v2250 = vunpack.c.l.b16 %v1403
    %v2251 = vunpack.c.h.b16 %v1403
    %v2252 = vunpack.c.l.b16 %v1404
    %v2253 = vunpack.c.h.b16 %v1404
    %v2254 = vunpack.c.l.b16 %v1405
    %v2255 = vunpack.c.h.b16 %v1405
    %v2256 = vunpack.c.l.b16 %v1406
    %v2257 = vunpack.c.h.b16 %v1406
    %v2258 = vunpack.c.l.b16 %v1407
    %v2259 = vunpack.c.h.b16 %v1407
    %v2260 = vunpack.c.l.b16 %v1408
    %v2261 = vunpack.c.h.b16 %v1408
    %v2262 = vunpack.c.l.b16 %v1409
    %v2263 = vunpack.c.h.b16 %v1409
    %v2264 = vunpack.c.l.b16 %v1410
    %v2265 = vunpack.c.h.b16 %v1410
    %v2266 = vunpack.c.l.b16 %v1411
    %v2267 = vunpack.c.h.b16 %v1411
    %v2268 = vunpack.c.l.b16 %v1412
    %v2269 = vunpack.c.h.b16 %v1412
    %v2270 = vunpack.c.l.b16 %v1413
    %v2271 = vunpack.c.h.b16 %v1413
    %v2272 = vunpack.c.l.b16 %v1414
    %v2273 = vunpack.c.h.b16 %v1414
    %v2274 = vunpack.c.l.b16 %v1415
    %v2275 = vunpack.c.h.b16 %v1415
    %v2276 = vunpack.c.l.b16 %v1416
    %v2277 = vunpack.c.h.b16 %v1416
    %v2278 = vunpack.c.l.b16 %v1417
    %v2279 = vunpack.c.h.b16 %v1417
    %v2280 = vunpack.c.l.b16 %v1418
    %v2281 = vunpack.c.h.b16 %v1418
    %v2282 = vunpack.c.l.b16 %v1419
    %v2283 = vunpack.c.h.b16 %v1419
    %v2284 = vunpack.c.l.b16 %v1420
    %v2285 = vunpack.c.h.b16 %v1420
    %v2286 = vunpack.c.l.b16 %v1421
    %v2287 = vunpack.c.h.b16 %v1421
    %v2288 = vunpack.c.l.b16 %v1422
    %v2289 = vunpack.c.h.b16 %v1422
    %v2290 = vunpack.c.l.b16 %v1423
    %v2291 = vunpack.c.h.b16 %v1423
    %v2292 = vunpack.c.l.b16 %v1424
    %v2293 = vunpack.c.h.b16 %v1424
    %v2294 = vunpack.c.l.b16 %v1425
    %v2295 = vunpack.c.h.b16 %v1425
    %v2296 = vunpack.c.l.b16 %v1426
    %v2297 = vunpack.c.h.b16 %v1426
    %v2298 = vunpack.c.l.b16 %v1427
    %v2299 = vunpack.c.h.b16 %v1427
    %v2300 = vunpack.c.l.b16 %v1428
    %v2301 = vunpack.c.h.b16 %v1428
    %v2302 = vunpack.c.l.b16 %v1429
    %v2303 = vunpack.c.h.b16 %v1429
    %v2304 = vunpack.c.l.b16 %v1430
    %v2305 = vunpack.c.h.b16 %v1430
    %v2306 = vunpack.c.l.b16 %v1431
    %v2307 = vunpack.c.h.b16 %v1431
    %v2308 = vunpack.c.l.b16 %v1432
    %v2309 = vunpack.c.h.b16 %v1432
    %v2310 = vunpack.c.l.b16 %v1433
    %v2311 = vunpack.c.h.b16 %v1433
    %v2312 = vunpack.c.l.b16 %v1434
    %v2313 = vunpack.c.h.b16 %v1434
    %v2314 = vunpack.c.l.b16 %v1435
    %v2315 = vunpack.c.h.b16 %v1435
    %v2316 = vunpack.c.l.b16 %v1436
    %v2317 = vunpack.c.h.b16 %v1436
    %v2318 = vunpack.c.l.b16 %v1437
    %v2319 = vunpack.c.h.b16 %v1437
    %v2320 = vunpack.c.l.b16 %v1438
    %v2321 = vunpack.c.h.b16 %v1438
    %v2322 = vunpack.c.l.b16 %v1439
    %v2323 = vunpack.c.h.b16 %v1439
    %v2324 = vunpack.c.l.b16 %v1440
    %v2325 = vunpack.c.h.b16 %v1440
    %v2326 = vunpack.c.l.b16 %v1441
    %v2327 = vunpack.c.h.b16 %v1441
    %v2328 = vunpack.c.l.b16 %v1442
    %v2329 = vunpack.c.h.b16 %v1442
    %v2330 = vunpack.c.l.b16 %v1443
    %v2331 = vunpack.c.h.b16 %v1443
    %v2332 = vunpack.c.l.b16 %v1444
    %v2333 = vunpack.c.h.b16 %v1444
    %v2334 = vunpack.c.l.b16 %v1445
    %v2335 = vunpack.c.h.b16 %v1445
    %v2336 = vunpack.c.l.b16 %v1446
    %v2337 = vunpack.c.h.b16 %v1446
    %v2338 = vunpack.c.l.b16 %v1447
    %v2339 = vunpack.c.h.b16 %v1447
    %v2340 = vunpack.c.l.b16 %v1448
    %v2341 = vunpack.c.h.b16 %v1448
    %v2342 = vunpack.c.l.b16 %v1449
    %v2343 = vunpack.c.h.b16 %v1449
    %v2344 = vunpack.c.l.b16 %v1450
    %v2345 = vunpack.c.h.b16 %v1450
    %v2346 = vunpack.c.l.b16 %v1451
    %v2347 = vunpack.c.h.b16 %v1451
    %v2348 = vpack.c.b16 %v1778, %v1772
    %v2349 = vpack.c.b16 %v1779, %v1773
    %v2350 = vpack.c.b16 %v1780, %v1774
    %v2351 = vpack.c.b16 %v1781, %v1775
    %v2352 = vpack.c.b16 %v1782, %v1776
    %v2353 = vpack.c.b16 %v1783, %v1777
    %v2354 = vpack.c.b16 %v1790, %v1784
    %v2355 = vpack.c.b16 %v1791, %v1785
    %v2356 = vpack.c.b16 %v1792, %v1786
    %v2357 = vpack.c.b16 %v1793, %v1787
    %v2358 = vpack.c.b16 %v1794, %v1788
    %v2359 = vpack.c.b16 %v1795, %v1789
    %v2360 = vpack.c.b16 %v1802, %v1796
    %v2361 = vpack.c.b16 %v1803, %v1797
    %v2362 = vpack.c.b16 %v1804, %v1798
    %v2363 = vpack.c.b16 %v1805, %v1799
    %v2364 = vpack.c.b16 %v1806, %v1800
    %v2365 = vpack.c.b16 %v1807, %v1801
    %v2366 = vpack.c.b16 %v1814, %v1808
    %v2367 = vpack.c.b16 %v1815, %v1809
    %v2368 = vpack.c.b16 %v1816, %v1810
    %v2369 = vpack.c.b16 %v1817, %v1811
    %v2370 = vpack.c.b16 %v1818, %v1812
    %v2371 = vpack.c.b16 %v1819, %v1813
    %v2372 = vpack.c.b16 %v1826, %v1820
    %v2373 = vpack.c.b16 %v1827, %v1821
    %v2374 = vpack.c.b16 %v1828, %v1822
    %v2375 = vpack.c.b16 %v1829, %v1823
    %v2376 = vpack.c.b16 %v1830, %v1824
    %v2377 = vpack.c.b16 %v1831, %v1825
    %v2378 = vpack.c.b16 %v1838, %v1832
    %v2379 = vpack.c.b16 %v1839, %v1833
    %v2380 = vpack.c.b16 %v1840, %v1834
    %v2381 = vpack.c.b16 %v1841, %v1835
    %v2382 = vpack.c.b16 %v1842, %v1836
    %v2383 = vpack.c.b16 %v1843, %v1837
    %v2384 = vpack.c.b16 %v1850, %v1844
    %v2385 = vpack.c.b16 %v1851, %v1845
    %v2386 = vpack.c.b16 %v1852, %v1846
    %v2387 = vpack.c.b16 %v1853, %v1847
    %v2388 = vpack.c.b16 %v1854, %v1848
    %v2389 = vpack.c.b16 %v1855, %v1849
    %v2390 = vpack.c.b16 %v1862, %v1856
    %v2391 = vpack.c.b16 %v1863, %v1857
    %v2392 = vpack.c.b16 %v1864, %v1858
    %v2393 = vpack.c.b16 %v1865, %v1859
    %v2394 = vpack.c.b16 %v1866, %v1860
    %v2395 = vpack.c.b16 %v1867, %v1861
    %v2396 = vpack.c.b16 %v1874, %v1868
    %v2397 = vpack.c.b16 %v1875, %v1869
    %v2398 = vpack.c.b16 %v1876, %v1870
    %v2399 = vpack.c.b16 %v1877, %v1871
    %v2400 = vpack.c.b16 %v1878, %v1872
    %v2401 = vpack.c.b16 %v1879, %v1873
    %v2402 = vpack.c.b16 %v1886, %v1880
    %v2403 = vpack.c.b16 %v1887, %v1881
    %v2404 = vpack.c.b16 %v1888, %v1882
    %v2405 = vpack.c.b16 %v1889, %v1883
    %v2406 = vpack.c.b16 %v1890, %v1884
    %v2407 = vpack.c.b16 %v1891, %v1885
    %v2408 = vpack.c.b16 %v1898, %v1892
    %v2409 = vpack.c.b16 %v1899, %v1893
    %v2410 = vpack.c.b16 %v1900, %v1894
    %v2411 = vpack.c.b16 %v1901, %v1895
    %v2412 = vpack.c.b16 %v1902, %v1896
    %v2413 = vpack.c.b16 %v1903, %v1897
    %v2414 = vpack.c.b16 %v1910, %v1904
    %v2415 = vpack.c.b16 %v1911, %v1905
    %v2416 = vpack.c.b16 %v1912, %v1906
    %v2417 = vpack.c.b16 %v1913, %v1907
    %v2418 = vpack.c.b16 %v1914, %v1908
    %v2419 = vpack.c.b16 %v1915, %v1909
    %v2420 = vpack.c.b16 %v1922, %v1916
    %v2421 = vpack.c.b16 %v1923, %v1917
    %v2422 = vpack.c.b16 %v1924, %v1918
    %v2423 = vpack.c.b16 %v1925, %v1919
    %v2424 = vpack.c.b16 %v1926, %v1920
    %v2425 = vpack.c.b16 %v1927, %v1921
    %v2426 = vpack.c.b16 %v1934, %v1928
    %v2427 = vpack.c.b16 %v1935, %v1929
    %v2428 = vpack.c.b16 %v1936, %v1930
    %v2429 = vpack.c.b16 %v1937, %v1931
    %v2430 = vpack.c.b16 %v1938, %v1932
    %v2431 = vpack.c.b16 %v1939, %v1933
    %v2432 = vpack.c.b16 %v1946, %v1940
    %v2433 = vpack.c.b16 %v1947, %v1941
    %v2434 = vpack.c.b16 %v1948, %v1942
    %v2435 = vpack.c.b16 %v1949, %v1943
    %v2436 = vpack.c.b16 %v1950, %v1944
    %v2437 = vpack.c.b16 %v1951, %v1945
    %v2438 = vpack.c.b16 %v1958, %v1952
    %v2439 = vpack.c.b16 %v1959, %v1953
    %v2440 = vpack.c.b16 %v1960, %v1954
    %v2441 = vpack.c.b16 %v1961, %v1955
    %v2442 = vpack.c.b16 %v1962, %v1956
    %v2443 = vpack.c.b16 %v1963, %v1957
    %v2444 = vpack.c.b16 %v1970, %v1964
    %v2445 = vpack.c.b16 %v1971, %v1965
    %v2446 = vpack.c.b16 %v1972, %v1966
    %v2447 = vpack.c.b16 %v1973, %v1967
    %v2448 = vpack.c.b16 %v1974, %v1968
    %v2449 = vpack.c.b16 %v1975, %v1969
    %v2450 = vpack.c.b16 %v1982, %v1976
    %v2451 = vpack.c.b16 %v1983, %v1977
    %v2452 = vpack.c.b16 %v1984, %v1978
    %v2453 = vpack.c.b16 %v1985, %v1979
    %v2454 = vpack.c.b16 %v1986, %v1980
    %v2455 = vpack.c.b16 %v1987, %v1981
    %v2456 = vpack.c.b16 %v1994, %v1988
    %v2457 = vpack.c.b16 %v1995, %v1989
    %v2458 = vpack.c.b16 %v1996, %v1990
    %v2459 = vpack.c.b16 %v1997, %v1991
    %v2460 = vpack.c.b16 %v1998, %v1992
    %v2461 = vpack.c.b16 %v1999, %v1993
    %v2462 = vpack.c.b16 %v2006, %v2000
    %v2463 = vpack.c.b16 %v2007, %v2001
    %v2464 = vpack.c.b16 %v2008, %v2002
    %v2465 = vpack.c.b16 %v2009, %v2003
    %v2466 = vpack.c.b16 %v2010, %v2004
    %v2467 = vpack.c.b16 %v2011, %v2005
    %v2468 = vpack.c.b16 %v2018, %v2012
    %v2469 = vpack.c.b16 %v2019, %v2013
    %v2470 = vpack.c.b16 %v2020, %v2014
    %v2471 = vpack.c.b16 %v2021, %v2015
    %v2472 = vpack.c.b16 %v2022, %v2016
    %v2473 = vpack.c.b16 %v2023, %v2017
    %v2474 = vpack.c.b16 %v2030, %v2024
    %v2475 = vpack.c.b16 %v2031, %v2025
    %v2476 = vpack.c.b16 %v2032, %v2026
    %v2477 = vpack.c.b16 %v2033, %v2027
    %v2478 = vpack.c.b16 %v2034, %v2028
    %v2479 = vpack.c.b16 %v2035, %v2029
    %v2480 = vpack.c.b16 %v2042, %v2036
    %v2481 = vpack.c.b16 %v2043, %v2037
    %v2482 = vpack.c.b16 %v2044, %v2038
    %v2483 = vpack.c.b16 %v2045, %v2039
    %v2484 = vpack.c.b16 %v2046, %v2040
    %v2485 = vpack.c.b16 %v2047, %v2041
    %v2486 = vpack.c.b16 %v2054, %v2048
    %v2487 = vpack.c.b16 %v2055, %v2049
    %v2488 = vpack.c.b16 %v2056, %v2050
    %v2489 = vpack.c.b16 %v2057, %v2051
    %v2490 = vpack.c.b16 %v2058, %v2052
    %v2491 = vpack.c.b16 %v2059, %v2053
    %v2492 = vpack.c.b16 %v2066, %v2060
    %v2493 = vpack.c.b16 %v2067, %v2061
    %v2494 = vpack.c.b16 %v2068, %v2062
    %v2495 = vpack.c.b16 %v2069, %v2063
    %v2496 = vpack.c.b16 %v2070, %v2064
    %v2497 = vpack.c.b16 %v2071, %v2065
    %v2498 = vpack.c.b16 %v2078, %v2072
    %v2499 = vpack.c.b16 %v2079, %v2073
    %v2500 = vpack.c.b16 %v2080, %v2074
    %v2501 = vpack.c.b16 %v2081, %v2075
    %v2502 = vpack.c.b16 %v2082, %v2076
    %v2503 = vpack.c.b16 %v2083, %v2077
    %v2504 = vpack.c.b16 %v2090, %v2084
    %v2505 = vpack.c.b16 %v2091, %v2085
    %v2506 = vpack.c.b16 %v2092, %v2086
    %v2507 = vpack.c.b16 %v2093, %v2087
    %v2508 = vpack.c.b16 %v2094, %v2088
    %v2509 = vpack.c.b16 %v2095, %v2089
    %v2510 = vpack.c.b16 %v2102, %v2096
    %v2511 = vpack.c.b16 %v2103, %v2097
    %v2512 = vpack.c.b16 %v2104, %v2098
    %v2513 = vpack.c.b16 %v2105, %v2099
    %v2514 = vpack.c.b16 %v2106, %v2100
    %v2515 = vpack.c.b16 %v2107, %v2101
    %v2516 = vpack.c.b16 %v2114, %v2108
    %v2517 = vpack.c.b16 %v2115, %v2109
    %v2518 = vpack.c.b16 %v2116, %v2110
    %v2519 = vpack.c.b16 %v2117, %v2111
    %v2520 = vpack.c.b16 %v2118, %v2112
    %v2521 = vpack.c.b16 %v2119, %v2113
    %v2522 = vpack.c.b16 %v2126, %v2120
    %v2523 = vpack.c.b16 %v2127, %v2121
    %v2524 = vpack.c.b16 %v2128, %v2122
    %v2525 = vpack.c.b16 %v2129, %v2123
    %v2526 = vpack.c.b16 %v2130, %v2124
    %v2527 = vpack.c.b16 %v2131, %v2125
    %v2528 = vpack.c.b16 %v2138, %v2132
    %v2529 = vpack.c.b16 %v2139, %v2133
    %v2530 = vpack.c.b16 %v2140, %v2134
    %v2531 = vpack.c.b16 %v2141, %v2135
    %v2532 = vpack.c.b16 %v2142, %v2136
    %v2533 = vpack.c.b16 %v2143, %v2137
    %v2534 = vpack.c.b16 %v2150, %v2144
    %v2535 = vpack.c.b16 %v2151, %v2145
    %v2536 = vpack.c.b16 %v2152, %v2146
    %v2537 = vpack.c.b16 %v2153, %v2147
    %v2538 = vpack.c.b16 %v2154, %v2148
    %v2539 = vpack.c.b16 %v2155, %v2149
    %v2540 = vpack.c.b16 %v2162, %v2156
    %v2541 = vpack.c.b16 %v2163, %v2157
    %v2542 = vpack.c.b16 %v2164, %v2158
    %v2543 = vpack.c.b16 %v2165, %v2159
    %v2544 = vpack.c.b16 %v2166, %v2160
    %v2545 = vpack.c.b16 %v2167, %v2161
    %v2546 = vpack.c.b16 %v2174, %v2168
    %v2547 = vpack.c.b16 %v2175, %v2169
    %v2548 = vpack.c.b16 %v2176, %v2170
    %v2549 = vpack.c.b16 %v2177, %v2171
    %v2550 = vpack.c.b16 %v2178, %v2172
    %v2551 = vpack.c.b16 %v2179, %v2173
    %v2552 = vpack.c.b16 %v2186, %v2180
    %v2553 = vpack.c.b16 %v2187, %v2181
    %v2554 = vpack.c.b16 %v2188, %v2182
    %v2555 = vpack.c.b16 %v2189, %v2183
    %v2556 = vpack.c.b16 %v2190, %v2184
    %v2557 = vpack.c.b16 %v2191, %v2185
    %v2558 = vpack.c.b16 %v2198, %v2192
    %v2559 = vpack.c.b16 %v2199, %v2193
    %v2560 = vpack.c.b16 %v2200, %v2194
    %v2561 = vpack.c.b16 %v2201, %v2195
    %v2562 = vpack.c.b16 %v2202, %v2196
    %v2563 = vpack.c.b16 %v2203, %v2197
    %v2564 = vpack.c.b16 %v2210, %v2204
    %v2565 = vpack.c.b16 %v2211, %v2205
    %v2566 = vpack.c.b16 %v2212, %v2206
    %v2567 = vpack.c.b16 %v2213, %v2207
    %v2568 = vpack.c.b16 %v2214, %v2208
    %v2569 = vpack.c.b16 %v2215, %v2209
    %v2570 = vpack.c.b16 %v2222, %v2216
    %v2571 = vpack.c.b16 %v2223, %v2217
    %v2572 = vpack.c.b16 %v2224, %v2218
    %v2573 = vpack.c.b16 %v2225, %v2219
    %v2574 = vpack.c.b16 %v2226, %v2220
    %v2575 = vpack.c.b16 %v2227, %v2221
    %v2576 = vpack.c.b16 %v2234, %v2228
    %v2577 = vpack.c.b16 %v2235, %v2229
    %v2578 = vpack.c.b16 %v2236, %v2230
    %v2579 = vpack.c.b16 %v2237, %v2231
    %v2580 = vpack.c.b16 %v2238, %v2232
    %v2581 = vpack.c.b16 %v2239, %v2233
    %v2582 = vpack.c.b16 %v2246, %v2240
    %v2583 = vpack.c.b16 %v2247, %v2241
    %v2584 = vpack.c.b16 %v2248, %v2242
    %v2585 = vpack.c.b16 %v2249, %v2243
    %v2586 = vpack.c.b16 %v2250, %v2244
    %v2587 = vpack.c.b16 %v2251, %v2245
    %v2588 = vpack.c.b16 %v2258, %v2252
    %v2589 = vpack.c.b16 %v2259, %v2253
    %v2590 = vpack.c.b16 %v2260, %v2254
    %v2591 = vpack.c.b16 %v2261, %v2255
    %v2592 = vpack.c.b16 %v2262, %v2256
    %v2593 = vpack.c.b16 %v2263, %v2257
    %v2594 = vpack.c.b16 %v2270, %v2264
    %v2595 = vpack.c.b16 %v2271, %v2265
    %v2596 = vpack.c.b16 %v2272, %v2266
    %v2597 = vpack.c.b16 %v2273, %v2267
    %v2598 = vpack.c.b16 %v2274, %v2268
    %v2599 = vpack.c.b16 %v2275, %v2269
    %v2600 = vpack.c.b16 %v2282, %v2276
    %v2601 = vpack.c.b16 %v2283, %v2277
    %v2602 = vpack.c.b16 %v2284, %v2278
    %v2603 = vpack.c.b16 %v2285, %v2279
    %v2604 = vpack.c.b16 %v2286, %v2280
    %v2605 = vpack.c.b16 %v2287, %v2281
    %v2606 = vpack.c.b16 %v2294, %v2288
    %v2607 = vpack.c.b16 %v2295, %v2289
    %v2608 = vpack.c.b16 %v2296, %v2290
    %v2609 = vpack.c.b16 %v2297, %v2291
    %v2610 = vpack.c.b16 %v2298, %v2292
    %v2611 = vpack.c.b16 %v2299, %v2293
    %v2612 = vpack.c.b16 %v2306, %v2300
    %v2613 = vpack.c.b16 %v2307, %v2301
    %v2614 = vpack.c.b16 %v2308, %v2302
    %v2615 = vpack.c.b16 %v2309, %v2303
    %v2616 = vpack.c.b16 %v2310, %v2304
    %v2617 = vpack.c.b16 %v2311, %v2305
    %v2618 = vpack.c.b16 %v2318, %v2312
    %v2619 = vpack.c.b16 %v2319, %v2313
    %v2620 = vpack.c.b16 %v2320, %v2314
    %v2621 = vpack.c.b16 %v2321, %v2315
    %v2622 = vpack.c.b16 %v2322, %v2316
    %v2623 = vpack.c.b16 %v2323, %v2317
    %v2624 = vpack.c.b16 %v2330, %v2324
    %v2625 = vpack.c.b16 %v2331, %v2325
    %v2626 = vpack.c.b16 %v2332, %v2326
    %v2627 = vpack.c.b16 %v2333, %v2327
    %v2628 = vpack.c.b16 %v2334, %v2328
    %v2629 = vpack.c.b16 %v2335, %v2329
    %v2630 = vpack.c.b16 %v2342, %v2336
    %v2631 = vpack.c.b16 %v2343, %v2337
    %v2632 = vpack.c.b16 %v2344, %v2338
    %v2633 = vpack.c.b16 %v2345, %v2339
    %v2634 = vpack.c.b16 %v2346, %v2340
    %v2635 = vpack.c.b16 %v2347, %v2341
    %2924 = vmatprep.subr.bf16.mxu0 %v2391
    %2925 = vmatpush1.bf16.msra.mxu0 %v2390
    %2926 = vmatprep.subr.bf16.mxu0 %v2385
    %2927 = vmatpush1.bf16.msra.mxu0 %v2384
    %2928 = vmatprep.subr.bf16.mxu0 %v2379
    %2929 = vmatpush1.bf16.msra.mxu0 %v2378
    %2930 = vmatprep.subr.bf16.mxu0 %v2373
    %2931 = vmatpush1.bf16.msra.mxu0 %v2372
    %2932 = vmatprep.subr.bf16.mxu0 %v2367
    %2933 = vmatpush1.bf16.msra.mxu0 %v2366
    %2934 = vmatprep.subr.bf16.mxu0 %v2361
    %2935 = vmatpush1.bf16.msra.mxu0 %v2360
    %2936 = vmatprep.subr.bf16.mxu0 %v2355
    %2937 = vmatpush1.bf16.msra.mxu0 %v2354
    %2938 = vmatprep.subr.bf16.mxu0 %v2349
    %2939 = vmatpush1.bf16.msra.mxu0 %v2348
    %2940 = vmatprep.subr.bf16.mxu0 %v2439
    %2941 = vmatpush2.bf16.msra.mxu0 %v2438
    %2942 = vmatprep.subr.bf16.mxu0 %v2433
    %2943 = vmatpush2.bf16.msra.mxu0 %v2432
    %2944 = vmatprep.subr.bf16.mxu0 %v2427
    %2945 = vmatpush2.bf16.msra.mxu0 %v2426
    %2946 = vmatprep.subr.bf16.mxu0 %v2421
    %2947 = vmatpush2.bf16.msra.mxu0 %v2420
    %2948 = vmatprep.subr.bf16.mxu0 %v2415
    %2949 = vmatpush2.bf16.msra.mxu0 %v2414
    %2950 = vmatprep.subr.bf16.mxu0 %v2409
    %2951 = vmatpush2.bf16.msra.mxu0 %v2408
    %2952 = vmatprep.subr.bf16.mxu0 %v2403
    %2953 = vmatpush2.bf16.msra.mxu0 %v2402
    %2954 = vmatprep.subr.bf16.mxu0 %v2397
    %2955 = vmatpush2.bf16.msra.mxu0 %v2396
    %2956 = vmatprep.mubr.bf16.mxu0 %v1159
    %2957 = vmatmul.mubr.bf16.gmra.mxu0 %v1158
    %v2958 = vpop.f32.mrf.mxu0
    %v2959 = vadd.f32 %v1457, %v2958
    %v2960 = vpop.f32.mrf.mxu0
    %v2961 = vadd.f32 %v1461, %v2960
    %v2962 = vpop.f32.mrf.mxu0
    %v2963 = vadd.f32 %v1457, %v2962
    %v2964 = vpop.f32.mrf.mxu0
    %v2965 = vadd.f32 %v1461, %v2964
    %2966 = vdwg.mxu0
    %2967 = vmatprep.subr.bf16.mxu0 %v2487
    %2968 = vmatpush1.bf16.msra.mxu0 %v2486
    %2969 = vmatprep.subr.bf16.mxu0 %v2481
    %2970 = vmatpush1.bf16.msra.mxu0 %v2480
    %2971 = vmatprep.subr.bf16.mxu0 %v2475
    %2972 = vmatpush1.bf16.msra.mxu0 %v2474
    %2973 = vmatprep.subr.bf16.mxu0 %v2469
    %2974 = vmatpush1.bf16.msra.mxu0 %v2468
    %2975 = vmatprep.subr.bf16.mxu0 %v2463
    %2976 = vmatpush1.bf16.msra.mxu0 %v2462
    %2977 = vmatprep.subr.bf16.mxu0 %v2457
    %2978 = vmatpush1.bf16.msra.mxu0 %v2456
    %2979 = vmatprep.subr.bf16.mxu0 %v2451
    %2980 = vmatpush1.bf16.msra.mxu0 %v2450
    %2981 = vmatprep.subr.bf16.mxu0 %v2445
    %2982 = vmatpush1.bf16.msra.mxu0 %v2444
    %2983 = vmatprep.subr.bf16.mxu0 %v2535
    %2984 = vmatpush2.bf16.msra.mxu0 %v2534
    %2985 = vmatprep.subr.bf16.mxu0 %v2529
    %2986 = vmatpush2.bf16.msra.mxu0 %v2528
    %2987 = vmatprep.subr.bf16.mxu0 %v2523
    %2988 = vmatpush2.bf16.msra.mxu0 %v2522
    %2989 = vmatprep.subr.bf16.mxu0 %v2517
    %2990 = vmatpush2.bf16.msra.mxu0 %v2516
    %2991 = vmatprep.subr.bf16.mxu0 %v2511
    %2992 = vmatpush2.bf16.msra.mxu0 %v2510
    %2993 = vmatprep.subr.bf16.mxu0 %v2505
    %2994 = vmatpush2.bf16.msra.mxu0 %v2504
    %2995 = vmatprep.subr.bf16.mxu0 %v2499
    %2996 = vmatpush2.bf16.msra.mxu0 %v2498
    %2997 = vmatprep.subr.bf16.mxu0 %v2493
    %2998 = vmatpush2.bf16.msra.mxu0 %v2492
    %2999 = vmatprep.mubr.bf16.mxu0 %v1161
    %3000 = vmatmul.mubr.bf16.gmra.mxu0 %v1160
    %v3001 = vpop.f32.mrf.mxu0
    %v3002 = vadd.f32 %v2959, %v3001
    %v3003 = vpop.f32.mrf.mxu0
    %v3004 = vadd.f32 %v2961, %v3003
    %v3005 = vpop.f32.mrf.mxu0
    %v3006 = vadd.f32 %v2963, %v3005
    %v3007 = vpop.f32.mrf.mxu0
    %v3008 = vadd.f32 %v2965, %v3007
    %3009 = vdwg.mxu0
    %3010 = vmatprep.subr.bf16.mxu0 %v2583
    %3011 = vmatpush1.bf16.msra.mxu0 %v2582
    %3012 = vmatprep.subr.bf16.mxu0 %v2577
    %3013 = vmatpush1.bf16.msra.mxu0 %v2576
    %3014 = vmatprep.subr.bf16.mxu0 %v2571
    %3015 = vmatpush1.bf16.msra.mxu0 %v2570
    %3016 = vmatprep.subr.bf16.mxu0 %v2565
    %3017 = vmatpush1.bf16.msra.mxu0 %v2564
    %3018 = vmatprep.subr.bf16.mxu0 %v2559
    %3019 = vmatpush1.bf16.msra.mxu0 %v2558
    %3020 = vmatprep.subr.bf16.mxu0 %v2553
    %3021 = vmatpush1.bf16.msra.mxu0 %v2552
    %3022 = vmatprep.subr.bf16.mxu0 %v2547
    %3023 = vmatpush1.bf16.msra.mxu0 %v2546
    %3024 = vmatprep.subr.bf16.mxu0 %v2541
    %3025 = vmatpush1.bf16.msra.mxu0 %v2540
    %3026 = vmatprep.subr.bf16.mxu0 %v2631
    %3027 = vmatpush2.bf16.msra.mxu0 %v2630
    %3028 = vmatprep.subr.bf16.mxu0 %v2625
    %3029 = vmatpush2.bf16.msra.mxu0 %v2624
    %3030 = vmatprep.subr.bf16.mxu0 %v2619
    %3031 = vmatpush2.bf16.msra.mxu0 %v2618
    %3032 = vmatprep.subr.bf16.mxu0 %v2613
    %3033 = vmatpush2.bf16.msra.mxu0 %v2612
    %3034 = vmatprep.subr.bf16.mxu0 %v2607
    %3035 = vmatpush2.bf16.msra.mxu0 %v2606
    %3036 = vmatprep.subr.bf16.mxu0 %v2601
    %3037 = vmatpush2.bf16.msra.mxu0 %v2600
    %3038 = vmatprep.subr.bf16.mxu0 %v2595
    %3039 = vmatpush2.bf16.msra.mxu0 %v2594
    %3040 = vmatprep.subr.bf16.mxu0 %v2589
    %3041 = vmatpush2.bf16.msra.mxu0 %v2588
    %3042 = vmatprep.mubr.bf16.mxu0 %v1163
    %3043 = vmatmul.mubr.bf16.gmra.mxu0 %v1162
    %v3044 = vpop.f32.mrf.mxu0
    %v3045 = vadd.f32 %v3002, %v3044
    %v3046 = vpop.f32.mrf.mxu0
    %v3047 = vadd.f32 %v3004, %v3046
    %v3048 = vpop.f32.mrf.mxu0
    %v3049 = vadd.f32 %v3006, %v3048
    %v3050 = vpop.f32.mrf.mxu0
    %v3051 = vadd.f32 %v3008, %v3050
    %3052 = vdwg.mxu0
    %3053 = vmatprep.subr.bf16.mxu0 %v2393
    %3054 = vmatpush1.bf16.msra.mxu0 %v2392
    %3055 = vmatprep.subr.bf16.mxu0 %v2387
    %3056 = vmatpush1.bf16.msra.mxu0 %v2386
    %3057 = vmatprep.subr.bf16.mxu0 %v2381
    %3058 = vmatpush1.bf16.msra.mxu0 %v2380
    %3059 = vmatprep.subr.bf16.mxu0 %v2375
    %3060 = vmatpush1.bf16.msra.mxu0 %v2374
    %3061 = vmatprep.subr.bf16.mxu0 %v2369
    %3062 = vmatpush1.bf16.msra.mxu0 %v2368
    %3063 = vmatprep.subr.bf16.mxu0 %v2363
    %3064 = vmatpush1.bf16.msra.mxu0 %v2362
    %3065 = vmatprep.subr.bf16.mxu0 %v2357
    %3066 = vmatpush1.bf16.msra.mxu0 %v2356
    %3067 = vmatprep.subr.bf16.mxu0 %v2351
    %3068 = vmatpush1.bf16.msra.mxu0 %v2350
    %3069 = vmatprep.subr.bf16.mxu0 %v2441
    %3070 = vmatpush2.bf16.msra.mxu0 %v2440
    %3071 = vmatprep.subr.bf16.mxu0 %v2435
    %3072 = vmatpush2.bf16.msra.mxu0 %v2434
    %3073 = vmatprep.subr.bf16.mxu0 %v2429
    %3074 = vmatpush2.bf16.msra.mxu0 %v2428
    %3075 = vmatprep.subr.bf16.mxu0 %v2423
    %3076 = vmatpush2.bf16.msra.mxu0 %v2422
    %3077 = vmatprep.subr.bf16.mxu0 %v2417
    %3078 = vmatpush2.bf16.msra.mxu0 %v2416
    %3079 = vmatprep.subr.bf16.mxu0 %v2411
    %3080 = vmatpush2.bf16.msra.mxu0 %v2410
    %3081 = vmatprep.subr.bf16.mxu0 %v2405
    %3082 = vmatpush2.bf16.msra.mxu0 %v2404
    %3083 = vmatprep.subr.bf16.mxu0 %v2399
    %3084 = vmatpush2.bf16.msra.mxu0 %v2398
    %3085 = vmatprep.mubr.bf16.mxu0 %v1159
    %3086 = vmatmul.mubr.bf16.gmra.mxu0 %v1158
    %v3087 = vpop.f32.mrf.mxu0
    %v3088 = vadd.f32 %v1465, %v3087
    %v3089 = vpop.f32.mrf.mxu0
    %v3090 = vadd.f32 %v1469, %v3089
    %v3091 = vpop.f32.mrf.mxu0
    %v3092 = vadd.f32 %v1465, %v3091
    %v3093 = vpop.f32.mrf.mxu0
    %v3094 = vadd.f32 %v1469, %v3093
    %3095 = vdwg.mxu0
    %3096 = vmatprep.subr.bf16.mxu0 %v2489
    %3097 = vmatpush1.bf16.msra.mxu0 %v2488
    %3098 = vmatprep.subr.bf16.mxu0 %v2483
    %3099 = vmatpush1.bf16.msra.mxu0 %v2482
    %3100 = vmatprep.subr.bf16.mxu0 %v2477
    %3101 = vmatpush1.bf16.msra.mxu0 %v2476
    %3102 = vmatprep.subr.bf16.mxu0 %v2471
    %3103 = vmatpush1.bf16.msra.mxu0 %v2470
    %3104 = vmatprep.subr.bf16.mxu0 %v2465
    %3105 = vmatpush1.bf16.msra.mxu0 %v2464
    %3106 = vmatprep.subr.bf16.mxu0 %v2459
    %3107 = vmatpush1.bf16.msra.mxu0 %v2458
    %3108 = vmatprep.subr.bf16.mxu0 %v2453
    %3109 = vmatpush1.bf16.msra.mxu0 %v2452
    %3110 = vmatprep.subr.bf16.mxu0 %v2447
    %3111 = vmatpush1.bf16.msra.mxu0 %v2446
    %3112 = vmatprep.subr.bf16.mxu0 %v2537
    %3113 = vmatpush2.bf16.msra.mxu0 %v2536
    %3114 = vmatprep.subr.bf16.mxu0 %v2531
    %3115 = vmatpush2.bf16.msra.mxu0 %v2530
    %3116 = vmatprep.subr.bf16.mxu0 %v2525
    %3117 = vmatpush2.bf16.msra.mxu0 %v2524
    %3118 = vmatprep.subr.bf16.mxu0 %v2519
    %3119 = vmatpush2.bf16.msra.mxu0 %v2518
    %3120 = vmatprep.subr.bf16.mxu0 %v2513
    %3121 = vmatpush2.bf16.msra.mxu0 %v2512
    %3122 = vmatprep.subr.bf16.mxu0 %v2507
    %3123 = vmatpush2.bf16.msra.mxu0 %v2506
    %3124 = vmatprep.subr.bf16.mxu0 %v2501
    %3125 = vmatpush2.bf16.msra.mxu0 %v2500
    %3126 = vmatprep.subr.bf16.mxu0 %v2495
    %3127 = vmatpush2.bf16.msra.mxu0 %v2494
    %3128 = vmatprep.mubr.bf16.mxu0 %v1161
    %3129 = vmatmul.mubr.bf16.gmra.mxu0 %v1160
    %v3130 = vpop.f32.mrf.mxu0
    %v3131 = vadd.f32 %v3088, %v3130
    %v3132 = vpop.f32.mrf.mxu0
    %v3133 = vadd.f32 %v3090, %v3132
    %v3134 = vpop.f32.mrf.mxu0
    %v3135 = vadd.f32 %v3092, %v3134
    %v3136 = vpop.f32.mrf.mxu0
    %v3137 = vadd.f32 %v3094, %v3136
    %3138 = vdwg.mxu0
    %3139 = vmatprep.subr.bf16.mxu0 %v2585
    %3140 = vmatpush1.bf16.msra.mxu0 %v2584
    %3141 = vmatprep.subr.bf16.mxu0 %v2579
    %3142 = vmatpush1.bf16.msra.mxu0 %v2578
    %3143 = vmatprep.subr.bf16.mxu0 %v2573
    %3144 = vmatpush1.bf16.msra.mxu0 %v2572
    %3145 = vmatprep.subr.bf16.mxu0 %v2567
    %3146 = vmatpush1.bf16.msra.mxu0 %v2566
    %3147 = vmatprep.subr.bf16.mxu0 %v2561
    %3148 = vmatpush1.bf16.msra.mxu0 %v2560
    %3149 = vmatprep.subr.bf16.mxu0 %v2555
    %3150 = vmatpush1.bf16.msra.mxu0 %v2554
    %3151 = vmatprep.subr.bf16.mxu0 %v2549
    %3152 = vmatpush1.bf16.msra.mxu0 %v2548
    %3153 = vmatprep.subr.bf16.mxu0 %v2543
    %3154 = vmatpush1.bf16.msra.mxu0 %v2542
    %3155 = vmatprep.subr.bf16.mxu0 %v2633
    %3156 = vmatpush2.bf16.msra.mxu0 %v2632
    %3157 = vmatprep.subr.bf16.mxu0 %v2627
    %3158 = vmatpush2.bf16.msra.mxu0 %v2626
    %3159 = vmatprep.subr.bf16.mxu0 %v2621
    %3160 = vmatpush2.bf16.msra.mxu0 %v2620
    %3161 = vmatprep.subr.bf16.mxu0 %v2615
    %3162 = vmatpush2.bf16.msra.mxu0 %v2614
    %3163 = vmatprep.subr.bf16.mxu0 %v2609
    %3164 = vmatpush2.bf16.msra.mxu0 %v2608
    %3165 = vmatprep.subr.bf16.mxu0 %v2603
    %3166 = vmatpush2.bf16.msra.mxu0 %v2602
    %3167 = vmatprep.subr.bf16.mxu0 %v2597
    %3168 = vmatpush2.bf16.msra.mxu0 %v2596
    %3169 = vmatprep.subr.bf16.mxu0 %v2591
    %3170 = vmatpush2.bf16.msra.mxu0 %v2590
    %3171 = vmatprep.mubr.bf16.mxu0 %v1163
    %3172 = vmatmul.mubr.bf16.gmra.mxu0 %v1162
    %v3173 = vpop.f32.mrf.mxu0
    %v3174 = vadd.f32 %v3131, %v3173
    %v3175 = vpop.f32.mrf.mxu0
    %v3176 = vadd.f32 %v3133, %v3175
    %v3177 = vpop.f32.mrf.mxu0
    %v3178 = vadd.f32 %v3135, %v3177
    %v3179 = vpop.f32.mrf.mxu0
    %v3180 = vadd.f32 %v3137, %v3179
    %3181 = vdwg.mxu0
    %3182 = vmatprep.subr.bf16.mxu0 %v2395
    %3183 = vmatpush1.bf16.msra.mxu0 %v2394
    %3184 = vmatprep.subr.bf16.mxu0 %v2389
    %3185 = vmatpush1.bf16.msra.mxu0 %v2388
    %3186 = vmatprep.subr.bf16.mxu0 %v2383
    %3187 = vmatpush1.bf16.msra.mxu0 %v2382
    %3188 = vmatprep.subr.bf16.mxu0 %v2377
    %3189 = vmatpush1.bf16.msra.mxu0 %v2376
    %3190 = vmatprep.subr.bf16.mxu0 %v2371
    %3191 = vmatpush1.bf16.msra.mxu0 %v2370
    %3192 = vmatprep.subr.bf16.mxu0 %v2365
    %3193 = vmatpush1.bf16.msra.mxu0 %v2364
    %3194 = vmatprep.subr.bf16.mxu0 %v2359
    %3195 = vmatpush1.bf16.msra.mxu0 %v2358
    %3196 = vmatprep.subr.bf16.mxu0 %v2353
    %3197 = vmatpush1.bf16.msra.mxu0 %v2352
    %3198 = vmatprep.subr.bf16.mxu0 %v2443
    %3199 = vmatpush2.bf16.msra.mxu0 %v2442
    %3200 = vmatprep.subr.bf16.mxu0 %v2437
    %3201 = vmatpush2.bf16.msra.mxu0 %v2436
    %3202 = vmatprep.subr.bf16.mxu0 %v2431
    %3203 = vmatpush2.bf16.msra.mxu0 %v2430
    %3204 = vmatprep.subr.bf16.mxu0 %v2425
    %3205 = vmatpush2.bf16.msra.mxu0 %v2424
    %3206 = vmatprep.subr.bf16.mxu0 %v2419
    %3207 = vmatpush2.bf16.msra.mxu0 %v2418
    %3208 = vmatprep.subr.bf16.mxu0 %v2413
    %3209 = vmatpush2.bf16.msra.mxu0 %v2412
    %3210 = vmatprep.subr.bf16.mxu0 %v2407
    %3211 = vmatpush2.bf16.msra.mxu0 %v2406
    %3212 = vmatprep.subr.bf16.mxu0 %v2401
    %3213 = vmatpush2.bf16.msra.mxu0 %v2400
    %3214 = vmatprep.mubr.bf16.mxu0 %v1159
    %3215 = vmatmul.mubr.bf16.gmra.mxu0 %v1158
    %v3216 = vpop.f32.mrf.mxu0
    %v3217 = vadd.f32 %v1473, %v3216
    %v3218 = vpop.f32.mrf.mxu0
    %v3219 = vadd.f32 %v1477, %v3218
    %v3220 = vpop.f32.mrf.mxu0
    %v3221 = vadd.f32 %v1473, %v3220
    %v3222 = vpop.f32.mrf.mxu0
    %v3223 = vadd.f32 %v1477, %v3222
    %3224 = vdwg.mxu0
    %3225 = vmatprep.subr.bf16.mxu0 %v2491
    %3226 = vmatpush1.bf16.msra.mxu0 %v2490
    %3227 = vmatprep.subr.bf16.mxu0 %v2485
    %3228 = vmatpush1.bf16.msra.mxu0 %v2484
    %3229 = vmatprep.subr.bf16.mxu0 %v2479
    %3230 = vmatpush1.bf16.msra.mxu0 %v2478
    %3231 = vmatprep.subr.bf16.mxu0 %v2473
    %3232 = vmatpush1.bf16.msra.mxu0 %v2472
    %3233 = vmatprep.subr.bf16.mxu0 %v2467
    %3234 = vmatpush1.bf16.msra.mxu0 %v2466
    %3235 = vmatprep.subr.bf16.mxu0 %v2461
    %3236 = vmatpush1.bf16.msra.mxu0 %v2460
    %3237 = vmatprep.subr.bf16.mxu0 %v2455
    %3238 = vmatpush1.bf16.msra.mxu0 %v2454
    %3239 = vmatprep.subr.bf16.mxu0 %v2449
    %3240 = vmatpush1.bf16.msra.mxu0 %v2448
    %3241 = vmatprep.subr.bf16.mxu0 %v2539
    %3242 = vmatpush2.bf16.msra.mxu0 %v2538
    %3243 = vmatprep.subr.bf16.mxu0 %v2533
    %3244 = vmatpush2.bf16.msra.mxu0 %v2532
    %3245 = vmatprep.subr.bf16.mxu0 %v2527
    %3246 = vmatpush2.bf16.msra.mxu0 %v2526
    %3247 = vmatprep.subr.bf16.mxu0 %v2521
    %3248 = vmatpush2.bf16.msra.mxu0 %v2520
    %3249 = vmatprep.subr.bf16.mxu0 %v2515
    %3250 = vmatpush2.bf16.msra.mxu0 %v2514
    %3251 = vmatprep.subr.bf16.mxu0 %v2509
    %3252 = vmatpush2.bf16.msra.mxu0 %v2508
    %3253 = vmatprep.subr.bf16.mxu0 %v2503
    %3254 = vmatpush2.bf16.msra.mxu0 %v2502
    %3255 = vmatprep.subr.bf16.mxu0 %v2497
    %3256 = vmatpush2.bf16.msra.mxu0 %v2496
    %3257 = vmatprep.mubr.bf16.mxu0 %v1161
    %3258 = vmatmul.mubr.bf16.gmra.mxu0 %v1160
    %v3259 = vpop.f32.mrf.mxu0
    %v3260 = vadd.f32 %v3217, %v3259
    %v3261 = vpop.f32.mrf.mxu0
    %v3262 = vadd.f32 %v3219, %v3261
    %v3263 = vpop.f32.mrf.mxu0
    %v3264 = vadd.f32 %v3221, %v3263
    %v3265 = vpop.f32.mrf.mxu0
    %v3266 = vadd.f32 %v3223, %v3265
    %3267 = vdwg.mxu0
    %3268 = vmatprep.subr.bf16.mxu0 %v2587
    %3269 = vmatpush1.bf16.msra.mxu0 %v2586
    %3270 = vmatprep.subr.bf16.mxu0 %v2581
    %3271 = vmatpush1.bf16.msra.mxu0 %v2580
    %3272 = vmatprep.subr.bf16.mxu0 %v2575
    %3273 = vmatpush1.bf16.msra.mxu0 %v2574
    %3274 = vmatprep.subr.bf16.mxu0 %v2569
    %3275 = vmatpush1.bf16.msra.mxu0 %v2568
    %3276 = vmatprep.subr.bf16.mxu0 %v2563
    %3277 = vmatpush1.bf16.msra.mxu0 %v2562
    %3278 = vmatprep.subr.bf16.mxu0 %v2557
    %3279 = vmatpush1.bf16.msra.mxu0 %v2556
    %3280 = vmatprep.subr.bf16.mxu0 %v2551
    %3281 = vmatpush1.bf16.msra.mxu0 %v2550
    %3282 = vmatprep.subr.bf16.mxu0 %v2545
    %3283 = vmatpush1.bf16.msra.mxu0 %v2544
    %3284 = vmatprep.subr.bf16.mxu0 %v2635
    %3285 = vmatpush2.bf16.msra.mxu0 %v2634
    %3286 = vmatprep.subr.bf16.mxu0 %v2629
    %3287 = vmatpush2.bf16.msra.mxu0 %v2628
    %3288 = vmatprep.subr.bf16.mxu0 %v2623
    %3289 = vmatpush2.bf16.msra.mxu0 %v2622
    %3290 = vmatprep.subr.bf16.mxu0 %v2617
    %3291 = vmatpush2.bf16.msra.mxu0 %v2616
    %3292 = vmatprep.subr.bf16.mxu0 %v2611
    %3293 = vmatpush2.bf16.msra.mxu0 %v2610
    %3294 = vmatprep.subr.bf16.mxu0 %v2605
    %3295 = vmatpush2.bf16.msra.mxu0 %v2604
    %3296 = vmatprep.subr.bf16.mxu0 %v2599
    %3297 = vmatpush2.bf16.msra.mxu0 %v2598
    %3298 = vmatprep.subr.bf16.mxu0 %v2593
    %3299 = vmatpush2.bf16.msra.mxu0 %v2592
    %3300 = vmatprep.mubr.bf16.mxu0 %v1163
    %3301 = vmatmul.mubr.bf16.gmra.mxu0 %v1162
    %v3302 = vpop.f32.mrf.mxu0
    %v3303 = vadd.f32 %v3260, %v3302
    %v3304 = vpop.f32.mrf.mxu0
    %v3305 = vadd.f32 %v3262, %v3304
    %v3306 = vpop.f32.mrf.mxu0
    %v3307 = vadd.f32 %v3264, %v3306
    %v3308 = vpop.f32.mrf.mxu0
    %v3309 = vadd.f32 %v3266, %v3308
    %3310 = vdwg.mxu0
    %v3311 = vld [vmem:[#allocation11] sm:$0x3f]
    %v3313 = vlaneseq
    %v3314 = vshrl.u32 %v3313, 7
    %v3315 = vsub.s32 0, %v3314
    %v3316 = vrot.slane %v3311, %v3315
    %v3317 = vlaneseq
    %v3318 = vshrl.u32 %v3317, 7
    %v3319 = vsub.s32 1, %v3318
    %v3320 = vrot.slane %v3311, %v3319
    %v3321 = vlaneseq
    %v3322 = vshrl.u32 %v3321, 7
    %v3323 = vsub.s32 2, %v3322
    %v3324 = vrot.slane %v3311, %v3323
    %v3325 = vlaneseq
    %v3326 = vshrl.u32 %v3325, 7
    %v3327 = vsub.s32 3, %v3326
    %v3328 = vrot.slane %v3311, %v3327
    %v3329 = vlaneseq
    %v3330 = vshrl.u32 %v3329, 7
    %v3331 = vsub.s32 4, %v3330
    %v3332 = vrot.slane %v3311, %v3331
    %v3333 = vlaneseq
    %v3334 = vshrl.u32 %v3333, 7
    %v3335 = vsub.s32 5, %v3334
    %v3336 = vrot.slane %v3311, %v3335
    %v3343 = vadd.f32 %v3045, %v3316
    %v3344 = vadd.f32 %v3047, %v3320
    %v3345 = vadd.f32 %v3174, %v3324
    %v3346 = vadd.f32 %v3176, %v3328
    %v3347 = vadd.f32 %v3303, %v3332
    %v3348 = vadd.f32 %v3305, %v3336
    %v3349 = vadd.f32 %v3049, %v3316
    %v3350 = vadd.f32 %v3051, %v3320
    %v3351 = vadd.f32 %v3178, %v3324
    %v3352 = vadd.f32 %v3180, %v3328
    %v3353 = vadd.f32 %v3307, %v3332
    %v3354 = vadd.f32 %v3309, %v3336
    %v3355 = vsub.f32 0.0, %v3343
    %v3356 = vsub.f32 0.0, %v3344
    %v3357 = vsub.f32 0.0, %v3345
    %v3358 = vsub.f32 0.0, %v3346
    %v3359 = vsub.f32 0.0, %v3347
    %v3360 = vsub.f32 0.0, %v3348
    %v3361 = vsub.f32 0.0, %v3349
    %v3362 = vsub.f32 0.0, %v3350
    %v3363 = vsub.f32 0.0, %v3351
    %v3364 = vsub.f32 0.0, %v3352
    %v3365 = vsub.f32 0.0, %v3353
    %v3366 = vsub.f32 0.0, %v3354
    %v3367 = vmul.f32 %v3355, 1.442695
    %v3368 = vpow.pop %v3367
    %v3369 = vmul.f32 %v3356, 1.442695
    %v3370 = vpow.pop %v3369
    %v3371 = vmul.f32 %v3357, 1.442695
    %v3372 = vpow.pop %v3371
    %v3373 = vmul.f32 %v3358, 1.442695
    %v3374 = vpow.pop %v3373
    %v3375 = vmul.f32 %v3359, 1.442695
    %v3376 = vpow.pop %v3375
    %v3377 = vmul.f32 %v3360, 1.442695
    %v3378 = vpow.pop %v3377
    %v3379 = vmul.f32 %v3361, 1.442695
    %v3380 = vpow.pop %v3379
    %v3381 = vmul.f32 %v3362, 1.442695
    %v3382 = vpow.pop %v3381
    %v3383 = vmul.f32 %v3363, 1.442695
    %v3384 = vpow.pop %v3383
    %v3385 = vmul.f32 %v3364, 1.442695
    %v3386 = vpow.pop %v3385
    %v3387 = vmul.f32 %v3365, 1.442695
    %v3388 = vpow.pop %v3387
    %v3389 = vmul.f32 %v3366, 1.442695
    %v3390 = vpow.pop %v3389
    %v3391 = vadd.f32 %v3368, 1.0
    %v3392 = vadd.f32 %v3370, 1.0
    %v3393 = vadd.f32 %v3372, 1.0
    %v3394 = vadd.f32 %v3374, 1.0
    %v3395 = vadd.f32 %v3376, 1.0
    %v3396 = vadd.f32 %v3378, 1.0
    %v3397 = vadd.f32 %v3380, 1.0
    %v3398 = vadd.f32 %v3382, 1.0
    %v3399 = vadd.f32 %v3384, 1.0
    %v3400 = vadd.f32 %v3386, 1.0
    %v3401 = vadd.f32 %v3388, 1.0
    %v3402 = vadd.f32 %v3390, 1.0
    %v3403 = vrcp.pop %v3391
    %v3404 = vrcp.pop %v3392
    %v3405 = vrcp.pop %v3393
    %v3406 = vrcp.pop %v3394
    %v3407 = vrcp.pop %v3395
    %v3408 = vrcp.pop %v3396
    %v3409 = vrcp.pop %v3397
    %v3410 = vrcp.pop %v3398
    %v3411 = vrcp.pop %v3399
    %v3412 = vrcp.pop %v3400
    %v3413 = vrcp.pop %v3401
    %v3414 = vrcp.pop %v3402
    %v3415 = vmul.f32 %v3343, %v3403
    %v3416 = vmul.f32 %v3344, %v3404
    %v3417 = vmul.f32 %v3345, %v3405
    %v3418 = vmul.f32 %v3346, %v3406
    %v3419 = vmul.f32 %v3347, %v3407
    %v3420 = vmul.f32 %v3348, %v3408
    %v3421 = vmul.f32 %v3349, %v3409
    %v3422 = vmul.f32 %v3350, %v3410
    %v3423 = vmul.f32 %v3351, %v3411
    %v3424 = vmul.f32 %v3352, %v3412
    %v3425 = vmul.f32 %v3353, %v3413
    %v3426 = vmul.f32 %v3354, %v3414
    %v3427 = vpack.c.bf16 %v3421, %v3415
    %v3428 = vpack.c.bf16 %v3422, %v3416
    %v3429 = vpack.c.bf16 %v3423, %v3417
    %v3430 = vpack.c.bf16 %v3424, %v3418
    %v3431 = vpack.c.bf16 %v3425, %v3419
    %v3432 = vpack.c.bf16 %v3426, %v3420
    %v3433 = vld [vmem:[#allocation13] sm:$0xff]
    %v3434 = vld [vmem:[#allocation13 + $0x8] sm:$0xff]
    %v3435 = vld [vmem:[#allocation13 + $0x10] sm:$0xff]
    %v3436 = vld [vmem:[#allocation13 + $0x18] sm:$0xff]
    %v3437 = vld [vmem:[#allocation13 + $0x20] sm:$0xff]
    %v3438 = vld [vmem:[#allocation13 + $0x28] sm:$0xff]
    %v3439 = vld [vmem:[#allocation13 + $0x30] sm:$0xff]
    %v3440 = vld [vmem:[#allocation13 + $0x38] sm:$0xff]
    %v3441 = vld [vmem:[#allocation13 + $0x40] sm:$0xff]
    %v3442 = vld [vmem:[#allocation13 + $0x48] sm:$0xff]
    %v3443 = vld [vmem:[#allocation13 + $0x50] sm:$0xff]
    %v3444 = vld [vmem:[#allocation13 + $0x58] sm:$0xff]
    %v3445 = vld [vmem:[#allocation13 + $0x60] sm:$0xff]
    %v3446 = vld [vmem:[#allocation13 + $0x68] sm:$0xff]
    %v3447 = vld [vmem:[#allocation13 + $0x70] sm:$0xff]
    %v3448 = vld [vmem:[#allocation13 + $0x78] sm:$0xff]
    %v3449 = vld [vmem:[#allocation13 + $0x80] sm:$0xff]
    %v3450 = vld [vmem:[#allocation13 + $0x88] sm:$0xff]
    %v3451 = vld [vmem:[#allocation13 + $0x90] sm:$0xff]
    %v3452 = vld [vmem:[#allocation13 + $0x98] sm:$0xff]
    %v3453 = vld [vmem:[#allocation13 + $0xa0] sm:$0xff]
    %v3454 = vld [vmem:[#allocation13 + $0xa8] sm:$0xff]
    %v3455 = vld [vmem:[#allocation13 + $0xb0] sm:$0xff]
    %v3456 = vld [vmem:[#allocation13 + $0xb8] sm:$0xff]
    %v3457 = vld [vmem:[#allocation13 + $0xc0] sm:$0xff]
    %v3458 = vld [vmem:[#allocation13 + $0xc8] sm:$0xff]
    %v3459 = vld [vmem:[#allocation13 + $0xd0] sm:$0xff]
    %v3460 = vld [vmem:[#allocation13 + $0xd8] sm:$0xff]
    %v3461 = vld [vmem:[#allocation13 + $0xe0] sm:$0xff]
    %v3462 = vld [vmem:[#allocation13 + $0xe8] sm:$0xff]
    %v3463 = vld [vmem:[#allocation13 + $0xf0] sm:$0xff]
    %v3464 = vld [vmem:[#allocation13 + $0xf8] sm:$0xff]
    %v3465 = vld [vmem:[#allocation13 + $0x100] sm:$0xff]
    %v3466 = vld [vmem:[#allocation13 + $0x108] sm:$0xff]
    %v3467 = vld [vmem:[#allocation13 + $0x110] sm:$0xff]
    %v3468 = vld [vmem:[#allocation13 + $0x118] sm:$0xff]
    %v3469 = vld [vmem:[#allocation13 + $0x120] sm:$0xff]
    %v3470 = vld [vmem:[#allocation13 + $0x128] sm:$0xff]
    %v3471 = vld [vmem:[#allocation13 + $0x130] sm:$0xff]
    %v3472 = vld [vmem:[#allocation13 + $0x138] sm:$0xff]
    %v3473 = vld [vmem:[#allocation13 + $0x140] sm:$0xff]
    %v3474 = vld [vmem:[#allocation13 + $0x148] sm:$0xff]
    %v3475 = vld [vmem:[#allocation13 + $0x150] sm:$0xff]
    %v3476 = vld [vmem:[#allocation13 + $0x158] sm:$0xff]
    %v3477 = vld [vmem:[#allocation13 + $0x160] sm:$0xff]
    %v3478 = vld [vmem:[#allocation13 + $0x168] sm:$0xff]
    %v3479 = vld [vmem:[#allocation13 + $0x170] sm:$0xff]
    %v3480 = vld [vmem:[#allocation13 + $0x178] sm:$0xff]
    %v3481 = vld [vmem:[#allocation13 + $0x180] sm:$0xff]
    %v3482 = vld [vmem:[#allocation13 + $0x188] sm:$0xff]
    %v3483 = vld [vmem:[#allocation13 + $0x190] sm:$0xff]
    %v3484 = vld [vmem:[#allocation13 + $0x198] sm:$0xff]
    %v3485 = vld [vmem:[#allocation13 + $0x1a0] sm:$0xff]
    %v3486 = vld [vmem:[#allocation13 + $0x1a8] sm:$0xff]
    %v3487 = vld [vmem:[#allocation13 + $0x1b0] sm:$0xff]
    %v3488 = vld [vmem:[#allocation13 + $0x1b8] sm:$0xff]
    %v3489 = vld [vmem:[#allocation13 + $0x1c0] sm:$0xff]
    %v3490 = vld [vmem:[#allocation13 + $0x1c8] sm:$0xff]
    %v3491 = vld [vmem:[#allocation13 + $0x1d0] sm:$0xff]
    %v3492 = vld [vmem:[#allocation13 + $0x1d8] sm:$0xff]
    %v3493 = vld [vmem:[#allocation13 + $0x1e0] sm:$0xff]
    %v3494 = vld [vmem:[#allocation13 + $0x1e8] sm:$0xff]
    %v3495 = vld [vmem:[#allocation13 + $0x1f0] sm:$0xff]
    %v3496 = vld [vmem:[#allocation13 + $0x1f8] sm:$0xff]
    %v3497 = vld [vmem:[#allocation13 + $0x200] sm:$0xff]
    %v3498 = vld [vmem:[#allocation13 + $0x208] sm:$0xff]
    %v3499 = vld [vmem:[#allocation13 + $0x210] sm:$0xff]
    %v3500 = vld [vmem:[#allocation13 + $0x218] sm:$0xff]
    %v3501 = vld [vmem:[#allocation13 + $0x220] sm:$0xff]
    %v3502 = vld [vmem:[#allocation13 + $0x228] sm:$0xff]
    %v3503 = vld [vmem:[#allocation13 + $0x230] sm:$0xff]
    %v3504 = vld [vmem:[#allocation13 + $0x238] sm:$0xff]
    %v3505 = vld [vmem:[#allocation13 + $0x240] sm:$0xff]
    %v3506 = vld [vmem:[#allocation13 + $0x248] sm:$0xff]
    %v3507 = vld [vmem:[#allocation13 + $0x250] sm:$0xff]
    %v3508 = vld [vmem:[#allocation13 + $0x258] sm:$0xff]
    %v3509 = vld [vmem:[#allocation13 + $0x260] sm:$0xff]
    %v3510 = vld [vmem:[#allocation13 + $0x268] sm:$0xff]
    %v3511 = vld [vmem:[#allocation13 + $0x270] sm:$0xff]
    %v3512 = vld [vmem:[#allocation13 + $0x278] sm:$0xff]
    %v3513 = vld [vmem:[#allocation13 + $0x280] sm:$0xff]
    %v3514 = vld [vmem:[#allocation13 + $0x288] sm:$0xff]
    %v3515 = vld [vmem:[#allocation13 + $0x290] sm:$0xff]
    %v3516 = vld [vmem:[#allocation13 + $0x298] sm:$0xff]
    %v3517 = vld [vmem:[#allocation13 + $0x2a0] sm:$0xff]
    %v3518 = vld [vmem:[#allocation13 + $0x2a8] sm:$0xff]
    %v3519 = vld [vmem:[#allocation13 + $0x2b0] sm:$0xff]
    %v3520 = vld [vmem:[#allocation13 + $0x2b8] sm:$0xff]
    %v3521 = vld [vmem:[#allocation13 + $0x2c0] sm:$0xff]
    %v3522 = vld [vmem:[#allocation13 + $0x2c8] sm:$0xff]
    %v3523 = vld [vmem:[#allocation13 + $0x2d0] sm:$0xff]
    %v3524 = vld [vmem:[#allocation13 + $0x2d8] sm:$0xff]
    %v3525 = vld [vmem:[#allocation13 + $0x2e0] sm:$0xff]
    %v3526 = vld [vmem:[#allocation13 + $0x2e8] sm:$0xff]
    %v3527 = vld [vmem:[#allocation13 + $0x2f0] sm:$0xff]
    %v3528 = vld [vmem:[#allocation13 + $0x2f8] sm:$0xff]
    %v3529 = vld [vmem:[#allocation13 + $0x300] sm:$0xff]
    %v3530 = vld [vmem:[#allocation13 + $0x308] sm:$0xff]
    %v3531 = vld [vmem:[#allocation13 + $0x310] sm:$0xff]
    %v3532 = vld [vmem:[#allocation13 + $0x318] sm:$0xff]
    %v3533 = vld [vmem:[#allocation13 + $0x320] sm:$0xff]
    %v3534 = vld [vmem:[#allocation13 + $0x328] sm:$0xff]
    %v3535 = vld [vmem:[#allocation13 + $0x330] sm:$0xff]
    %v3536 = vld [vmem:[#allocation13 + $0x338] sm:$0xff]
    %v3537 = vld [vmem:[#allocation13 + $0x340] sm:$0xff]
    %v3538 = vld [vmem:[#allocation13 + $0x348] sm:$0xff]
    %v3539 = vld [vmem:[#allocation13 + $0x350] sm:$0xff]
    %v3540 = vld [vmem:[#allocation13 + $0x358] sm:$0xff]
    %v3541 = vld [vmem:[#allocation13 + $0x360] sm:$0xff]
    %v3542 = vld [vmem:[#allocation13 + $0x368] sm:$0xff]
    %v3543 = vld [vmem:[#allocation13 + $0x370] sm:$0xff]
    %v3544 = vld [vmem:[#allocation13 + $0x378] sm:$0xff]
    %v3545 = vld [vmem:[#allocation13 + $0x380] sm:$0xff]
    %v3546 = vld [vmem:[#allocation13 + $0x388] sm:$0xff]
    %v3547 = vld [vmem:[#allocation13 + $0x390] sm:$0xff]
    %v3548 = vld [vmem:[#allocation13 + $0x398] sm:$0xff]
    %v3549 = vld [vmem:[#allocation13 + $0x3a0] sm:$0xff]
    %v3550 = vld [vmem:[#allocation13 + $0x3a8] sm:$0xff]
    %v3551 = vld [vmem:[#allocation13 + $0x3b0] sm:$0xff]
    %v3552 = vld [vmem:[#allocation13 + $0x3b8] sm:$0xff]
    %v3553 = vld [vmem:[#allocation13 + $0x3c0] sm:$0xff]
    %v3554 = vld [vmem:[#allocation13 + $0x3c8] sm:$0xff]
    %v3555 = vld [vmem:[#allocation13 + $0x3d0] sm:$0xff]
    %v3556 = vld [vmem:[#allocation13 + $0x3d8] sm:$0xff]
    %v3557 = vld [vmem:[#allocation13 + $0x3e0] sm:$0xff]
    %v3558 = vld [vmem:[#allocation13 + $0x3e8] sm:$0xff]
    %v3559 = vld [vmem:[#allocation13 + $0x3f0] sm:$0xff]
    %v3560 = vld [vmem:[#allocation13 + $0x3f8] sm:$0xff]
    %v3561 = vld [vmem:[#allocation13 + $0x400] sm:$0xff]
    %v3562 = vld [vmem:[#allocation13 + $0x408] sm:$0xff]
    %v3563 = vld [vmem:[#allocation13 + $0x410] sm:$0xff]
    %v3564 = vld [vmem:[#allocation13 + $0x418] sm:$0xff]
    %v3565 = vld [vmem:[#allocation13 + $0x420] sm:$0xff]
    %v3566 = vld [vmem:[#allocation13 + $0x428] sm:$0xff]
    %v3567 = vld [vmem:[#allocation13 + $0x430] sm:$0xff]
    %v3568 = vld [vmem:[#allocation13 + $0x438] sm:$0xff]
    %v3569 = vld [vmem:[#allocation13 + $0x440] sm:$0xff]
    %v3570 = vld [vmem:[#allocation13 + $0x448] sm:$0xff]
    %v3571 = vld [vmem:[#allocation13 + $0x450] sm:$0xff]
    %v3572 = vld [vmem:[#allocation13 + $0x458] sm:$0xff]
    %v3573 = vld [vmem:[#allocation13 + $0x460] sm:$0xff]
    %v3574 = vld [vmem:[#allocation13 + $0x468] sm:$0xff]
    %v3575 = vld [vmem:[#allocation13 + $0x470] sm:$0xff]
    %v3576 = vld [vmem:[#allocation13 + $0x478] sm:$0xff]
    %v3577 = vld [vmem:[#allocation13 + $0x480] sm:$0xff]
    %v3578 = vld [vmem:[#allocation13 + $0x488] sm:$0xff]
    %v3579 = vld [vmem:[#allocation13 + $0x490] sm:$0xff]
    %v3580 = vld [vmem:[#allocation13 + $0x498] sm:$0xff]
    %v3581 = vld [vmem:[#allocation13 + $0x4a0] sm:$0xff]
    %v3582 = vld [vmem:[#allocation13 + $0x4a8] sm:$0xff]
    %v3583 = vld [vmem:[#allocation13 + $0x4b0] sm:$0xff]
    %v3584 = vld [vmem:[#allocation13 + $0x4b8] sm:$0xff]
    %v3585 = vld [vmem:[#allocation13 + $0x4c0] sm:$0xff]
    %v3586 = vld [vmem:[#allocation13 + $0x4c8] sm:$0xff]
    %v3587 = vld [vmem:[#allocation13 + $0x4d0] sm:$0xff]
    %v3588 = vld [vmem:[#allocation13 + $0x4d8] sm:$0xff]
    %v3589 = vld [vmem:[#allocation13 + $0x4e0] sm:$0xff]
    %v3590 = vld [vmem:[#allocation13 + $0x4e8] sm:$0xff]
    %v3591 = vld [vmem:[#allocation13 + $0x4f0] sm:$0xff]
    %v3592 = vld [vmem:[#allocation13 + $0x4f8] sm:$0xff]
    %v3593 = vld [vmem:[#allocation13 + $0x500] sm:$0xff]
    %v3594 = vld [vmem:[#allocation13 + $0x508] sm:$0xff]
    %v3595 = vld [vmem:[#allocation13 + $0x510] sm:$0xff]
    %v3596 = vld [vmem:[#allocation13 + $0x518] sm:$0xff]
    %v3597 = vld [vmem:[#allocation13 + $0x520] sm:$0xff]
    %v3598 = vld [vmem:[#allocation13 + $0x528] sm:$0xff]
    %v3599 = vld [vmem:[#allocation13 + $0x530] sm:$0xff]
    %v3600 = vld [vmem:[#allocation13 + $0x538] sm:$0xff]
    %v3601 = vld [vmem:[#allocation13 + $0x540] sm:$0xff]
    %v3602 = vld [vmem:[#allocation13 + $0x548] sm:$0xff]
    %v3603 = vld [vmem:[#allocation13 + $0x550] sm:$0xff]
    %v3604 = vld [vmem:[#allocation13 + $0x558] sm:$0xff]
    %v3605 = vld [vmem:[#allocation13 + $0x560] sm:$0xff]
    %v3606 = vld [vmem:[#allocation13 + $0x568] sm:$0xff]
    %v3607 = vld [vmem:[#allocation13 + $0x570] sm:$0xff]
    %v3608 = vld [vmem:[#allocation13 + $0x578] sm:$0xff]
    %v3609 = vld [vmem:[#allocation13 + $0x580] sm:$0xff]
    %v3610 = vld [vmem:[#allocation13 + $0x588] sm:$0xff]
    %v3611 = vld [vmem:[#allocation13 + $0x590] sm:$0xff]
    %v3612 = vld [vmem:[#allocation13 + $0x598] sm:$0xff]
    %v3613 = vld [vmem:[#allocation13 + $0x5a0] sm:$0xff]
    %v3614 = vld [vmem:[#allocation13 + $0x5a8] sm:$0xff]
    %v3615 = vld [vmem:[#allocation13 + $0x5b0] sm:$0xff]
    %v3616 = vld [vmem:[#allocation13 + $0x5b8] sm:$0xff]
    %v3617 = vld [vmem:[#allocation13 + $0x5c0] sm:$0xff]
    %v3618 = vld [vmem:[#allocation13 + $0x5c8] sm:$0xff]
    %v3619 = vld [vmem:[#allocation13 + $0x5d0] sm:$0xff]
    %v3620 = vld [vmem:[#allocation13 + $0x5d8] sm:$0xff]
    %v3621 = vld [vmem:[#allocation13 + $0x5e0] sm:$0xff]
    %v3622 = vld [vmem:[#allocation13 + $0x5e8] sm:$0xff]
    %v3623 = vld [vmem:[#allocation13 + $0x5f0] sm:$0xff]
    %v3624 = vld [vmem:[#allocation13 + $0x5f8] sm:$0xff]
    %v3625 = vld [vmem:[#allocation13 + $0x600] sm:$0xff]
    %v3626 = vld [vmem:[#allocation13 + $0x608] sm:$0xff]
    %v3627 = vld [vmem:[#allocation13 + $0x610] sm:$0xff]
    %v3628 = vld [vmem:[#allocation13 + $0x618] sm:$0xff]
    %v3629 = vld [vmem:[#allocation13 + $0x620] sm:$0xff]
    %v3630 = vld [vmem:[#allocation13 + $0x628] sm:$0xff]
    %v3631 = vld [vmem:[#allocation13 + $0x630] sm:$0xff]
    %v3632 = vld [vmem:[#allocation13 + $0x638] sm:$0xff]
    %v3633 = vld [vmem:[#allocation13 + $0x640] sm:$0xff]
    %v3634 = vld [vmem:[#allocation13 + $0x648] sm:$0xff]
    %v3635 = vld [vmem:[#allocation13 + $0x650] sm:$0xff]
    %v3636 = vld [vmem:[#allocation13 + $0x658] sm:$0xff]
    %v3637 = vld [vmem:[#allocation13 + $0x660] sm:$0xff]
    %v3638 = vld [vmem:[#allocation13 + $0x668] sm:$0xff]
    %v3639 = vld [vmem:[#allocation13 + $0x670] sm:$0xff]
    %v3640 = vld [vmem:[#allocation13 + $0x678] sm:$0xff]
    %v3641 = vld [vmem:[#allocation13 + $0x680] sm:$0xff]
    %v3642 = vld [vmem:[#allocation13 + $0x688] sm:$0xff]
    %v3643 = vld [vmem:[#allocation13 + $0x690] sm:$0xff]
    %v3644 = vld [vmem:[#allocation13 + $0x698] sm:$0xff]
    %v3645 = vld [vmem:[#allocation13 + $0x6a0] sm:$0xff]
    %v3646 = vld [vmem:[#allocation13 + $0x6a8] sm:$0xff]
    %v3647 = vld [vmem:[#allocation13 + $0x6b0] sm:$0xff]
    %v3648 = vld [vmem:[#allocation13 + $0x6b8] sm:$0xff]
    %v3649 = vld [vmem:[#allocation13 + $0x6c0] sm:$0xff]
    %v3650 = vld [vmem:[#allocation13 + $0x6c8] sm:$0xff]
    %v3651 = vld [vmem:[#allocation13 + $0x6d0] sm:$0xff]
    %v3652 = vld [vmem:[#allocation13 + $0x6d8] sm:$0xff]
    %v3653 = vld [vmem:[#allocation13 + $0x6e0] sm:$0xff]
    %v3654 = vld [vmem:[#allocation13 + $0x6e8] sm:$0xff]
    %v3655 = vld [vmem:[#allocation13 + $0x6f0] sm:$0xff]
    %v3656 = vld [vmem:[#allocation13 + $0x6f8] sm:$0xff]
    %v3657 = vld [vmem:[#allocation13 + $0x700] sm:$0xff]
    %v3658 = vld [vmem:[#allocation13 + $0x708] sm:$0xff]
    %v3659 = vld [vmem:[#allocation13 + $0x710] sm:$0xff]
    %v3660 = vld [vmem:[#allocation13 + $0x718] sm:$0xff]
    %v3661 = vld [vmem:[#allocation13 + $0x720] sm:$0xff]
    %v3662 = vld [vmem:[#allocation13 + $0x728] sm:$0xff]
    %v3663 = vld [vmem:[#allocation13 + $0x730] sm:$0xff]
    %v3664 = vld [vmem:[#allocation13 + $0x738] sm:$0xff]
    %v3665 = vld [vmem:[#allocation13 + $0x740] sm:$0xff]
    %v3666 = vld [vmem:[#allocation13 + $0x748] sm:$0xff]
    %v3667 = vld [vmem:[#allocation13 + $0x750] sm:$0xff]
    %v3668 = vld [vmem:[#allocation13 + $0x758] sm:$0xff]
    %v3669 = vld [vmem:[#allocation13 + $0x760] sm:$0xff]
    %v3670 = vld [vmem:[#allocation13 + $0x768] sm:$0xff]
    %v3671 = vld [vmem:[#allocation13 + $0x770] sm:$0xff]
    %v3672 = vld [vmem:[#allocation13 + $0x778] sm:$0xff]
    %v3673 = vld [vmem:[#allocation13 + $0x780] sm:$0xff]
    %v3674 = vld [vmem:[#allocation13 + $0x788] sm:$0xff]
    %v3675 = vld [vmem:[#allocation13 + $0x790] sm:$0xff]
    %v3676 = vld [vmem:[#allocation13 + $0x798] sm:$0xff]
    %v3677 = vld [vmem:[#allocation13 + $0x7a0] sm:$0xff]
    %v3678 = vld [vmem:[#allocation13 + $0x7a8] sm:$0xff]
    %v3679 = vld [vmem:[#allocation13 + $0x7b0] sm:$0xff]
    %v3680 = vld [vmem:[#allocation13 + $0x7b8] sm:$0xff]
    %v3681 = vld [vmem:[#allocation13 + $0x7c0] sm:$0xff]
    %v3682 = vld [vmem:[#allocation13 + $0x7c8] sm:$0xff]
    %v3683 = vld [vmem:[#allocation13 + $0x7d0] sm:$0xff]
    %v3684 = vld [vmem:[#allocation13 + $0x7d8] sm:$0xff]
    %v3685 = vld [vmem:[#allocation13 + $0x7e0] sm:$0xff]
    %v3686 = vld [vmem:[#allocation13 + $0x7e8] sm:$0xff]
    %v3687 = vld [vmem:[#allocation13 + $0x7f0] sm:$0xff]
    %v3688 = vld [vmem:[#allocation13 + $0x7f8] sm:$0xff]
    %v3689 = vld [vmem:[#allocation13 + $0x800] sm:$0xff]
    %v3690 = vld [vmem:[#allocation13 + $0x808] sm:$0xff]
    %v3691 = vld [vmem:[#allocation13 + $0x810] sm:$0xff]
    %v3692 = vld [vmem:[#allocation13 + $0x818] sm:$0xff]
    %v3693 = vld [vmem:[#allocation13 + $0x820] sm:$0xff]
    %v3694 = vld [vmem:[#allocation13 + $0x828] sm:$0xff]
    %v3695 = vld [vmem:[#allocation13 + $0x830] sm:$0xff]
    %v3696 = vld [vmem:[#allocation13 + $0x838] sm:$0xff]
    %v3697 = vld [vmem:[#allocation13 + $0x840] sm:$0xff]
    %v3698 = vld [vmem:[#allocation13 + $0x848] sm:$0xff]
    %v3699 = vld [vmem:[#allocation13 + $0x850] sm:$0xff]
    %v3700 = vld [vmem:[#allocation13 + $0x858] sm:$0xff]
    %v3701 = vld [vmem:[#allocation13 + $0x860] sm:$0xff]
    %v3702 = vld [vmem:[#allocation13 + $0x868] sm:$0xff]
    %v3703 = vld [vmem:[#allocation13 + $0x870] sm:$0xff]
    %v3704 = vld [vmem:[#allocation13 + $0x878] sm:$0xff]
    %v3705 = vld [vmem:[#allocation13 + $0x880] sm:$0xff]
    %v3706 = vld [vmem:[#allocation13 + $0x888] sm:$0xff]
    %v3707 = vld [vmem:[#allocation13 + $0x890] sm:$0xff]
    %v3708 = vld [vmem:[#allocation13 + $0x898] sm:$0xff]
    %v3709 = vld [vmem:[#allocation13 + $0x8a0] sm:$0xff]
    %v3710 = vld [vmem:[#allocation13 + $0x8a8] sm:$0xff]
    %v3711 = vld [vmem:[#allocation13 + $0x8b0] sm:$0xff]
    %v3712 = vld [vmem:[#allocation13 + $0x8b8] sm:$0xff]
    %v3713 = vld [vmem:[#allocation13 + $0x8c0] sm:$0xff]
    %v3714 = vld [vmem:[#allocation13 + $0x8c8] sm:$0xff]
    %v3715 = vld [vmem:[#allocation13 + $0x8d0] sm:$0xff]
    %v3716 = vld [vmem:[#allocation13 + $0x8d8] sm:$0xff]
    %v3717 = vld [vmem:[#allocation13 + $0x8e0] sm:$0xff]
    %v3718 = vld [vmem:[#allocation13 + $0x8e8] sm:$0xff]
    %v3719 = vld [vmem:[#allocation13 + $0x8f0] sm:$0xff]
    %v3720 = vld [vmem:[#allocation13 + $0x8f8] sm:$0xff]
    %v3721 = vld [vmem:[#allocation13 + $0x900] sm:$0xff]
    %v3722 = vld [vmem:[#allocation13 + $0x908] sm:$0xff]
    %v3723 = vld [vmem:[#allocation13 + $0x910] sm:$0xff]
    %v3724 = vld [vmem:[#allocation13 + $0x918] sm:$0xff]
    %v3725 = vld [vmem:[#allocation13 + $0x920] sm:$0xff]
    %v3726 = vld [vmem:[#allocation13 + $0x928] sm:$0xff]
    %v3727 = vld [vmem:[#allocation13 + $0x930] sm:$0xff]
    %v3728 = vld [vmem:[#allocation13 + $0x938] sm:$0xff]
    %v3729 = vld [vmem:[#allocation13 + $0x940] sm:$0xff]
    %v3730 = vld [vmem:[#allocation13 + $0x948] sm:$0xff]
    %v3731 = vld [vmem:[#allocation13 + $0x950] sm:$0xff]
    %v3732 = vld [vmem:[#allocation13 + $0x958] sm:$0xff]
    %v3733 = vld [vmem:[#allocation13 + $0x960] sm:$0xff]
    %v3734 = vld [vmem:[#allocation13 + $0x968] sm:$0xff]
    %v3735 = vld [vmem:[#allocation13 + $0x970] sm:$0xff]
    %v3736 = vld [vmem:[#allocation13 + $0x978] sm:$0xff]
    %v3737 = vld [vmem:[#allocation13 + $0x980] sm:$0xff]
    %v3738 = vld [vmem:[#allocation13 + $0x988] sm:$0xff]
    %v3739 = vld [vmem:[#allocation13 + $0x990] sm:$0xff]
    %v3740 = vld [vmem:[#allocation13 + $0x998] sm:$0xff]
    %v3741 = vld [vmem:[#allocation13 + $0x9a0] sm:$0xff]
    %v3742 = vld [vmem:[#allocation13 + $0x9a8] sm:$0xff]
    %v3743 = vld [vmem:[#allocation13 + $0x9b0] sm:$0xff]
    %v3744 = vld [vmem:[#allocation13 + $0x9b8] sm:$0xff]
    %v3745 = vld [vmem:[#allocation13 + $0x9c0] sm:$0xff]
    %v3746 = vld [vmem:[#allocation13 + $0x9c8] sm:$0xff]
    %v3747 = vld [vmem:[#allocation13 + $0x9d0] sm:$0xff]
    %v3748 = vld [vmem:[#allocation13 + $0x9d8] sm:$0xff]
    %v3749 = vld [vmem:[#allocation13 + $0x9e0] sm:$0xff]
    %v3750 = vld [vmem:[#allocation13 + $0x9e8] sm:$0xff]
    %v3751 = vld [vmem:[#allocation13 + $0x9f0] sm:$0xff]
    %v3752 = vld [vmem:[#allocation13 + $0x9f8] sm:$0xff]
    %v3753 = vld [vmem:[#allocation13 + $0xa00] sm:$0xff]
    %v3754 = vld [vmem:[#allocation13 + $0xa08] sm:$0xff]
    %v3755 = vld [vmem:[#allocation13 + $0xa10] sm:$0xff]
    %v3756 = vld [vmem:[#allocation13 + $0xa18] sm:$0xff]
    %v3757 = vld [vmem:[#allocation13 + $0xa20] sm:$0xff]
    %v3758 = vld [vmem:[#allocation13 + $0xa28] sm:$0xff]
    %v3759 = vld [vmem:[#allocation13 + $0xa30] sm:$0xff]
    %v3760 = vld [vmem:[#allocation13 + $0xa38] sm:$0xff]
    %v3761 = vld [vmem:[#allocation13 + $0xa40] sm:$0xff]
    %v3762 = vld [vmem:[#allocation13 + $0xa48] sm:$0xff]
    %v3763 = vld [vmem:[#allocation13 + $0xa50] sm:$0xff]
    %v3764 = vld [vmem:[#allocation13 + $0xa58] sm:$0xff]
    %v3765 = vld [vmem:[#allocation13 + $0xa60] sm:$0xff]
    %v3766 = vld [vmem:[#allocation13 + $0xa68] sm:$0xff]
    %v3767 = vld [vmem:[#allocation13 + $0xa70] sm:$0xff]
    %v3768 = vld [vmem:[#allocation13 + $0xa78] sm:$0xff]
    %v3769 = vld [vmem:[#allocation13 + $0xa80] sm:$0xff]
    %v3770 = vld [vmem:[#allocation13 + $0xa88] sm:$0xff]
    %v3771 = vld [vmem:[#allocation13 + $0xa90] sm:$0xff]
    %v3772 = vld [vmem:[#allocation13 + $0xa98] sm:$0xff]
    %v3773 = vld [vmem:[#allocation13 + $0xaa0] sm:$0xff]
    %v3774 = vld [vmem:[#allocation13 + $0xaa8] sm:$0xff]
    %v3775 = vld [vmem:[#allocation13 + $0xab0] sm:$0xff]
    %v3776 = vld [vmem:[#allocation13 + $0xab8] sm:$0xff]
    %v3777 = vld [vmem:[#allocation13 + $0xac0] sm:$0xff]
    %v3778 = vld [vmem:[#allocation13 + $0xac8] sm:$0xff]
    %v3779 = vld [vmem:[#allocation13 + $0xad0] sm:$0xff]
    %v3780 = vld [vmem:[#allocation13 + $0xad8] sm:$0xff]
    %v3781 = vld [vmem:[#allocation13 + $0xae0] sm:$0xff]
    %v3782 = vld [vmem:[#allocation13 + $0xae8] sm:$0xff]
    %v3783 = vld [vmem:[#allocation13 + $0xaf0] sm:$0xff]
    %v3784 = vld [vmem:[#allocation13 + $0xaf8] sm:$0xff]
    %v3785 = vld [vmem:[#allocation13 + $0xb00] sm:$0xff]
    %v3786 = vld [vmem:[#allocation13 + $0xb08] sm:$0xff]
    %v3787 = vld [vmem:[#allocation13 + $0xb10] sm:$0xff]
    %v3788 = vld [vmem:[#allocation13 + $0xb18] sm:$0xff]
    %v3789 = vld [vmem:[#allocation13 + $0xb20] sm:$0xff]
    %v3790 = vld [vmem:[#allocation13 + $0xb28] sm:$0xff]
    %v3791 = vld [vmem:[#allocation13 + $0xb30] sm:$0xff]
    %v3792 = vld [vmem:[#allocation13 + $0xb38] sm:$0xff]
    %v3793 = vld [vmem:[#allocation13 + $0xb40] sm:$0xff]
    %v3794 = vld [vmem:[#allocation13 + $0xb48] sm:$0xff]
    %v3795 = vld [vmem:[#allocation13 + $0xb50] sm:$0xff]
    %v3796 = vld [vmem:[#allocation13 + $0xb58] sm:$0xff]
    %v3797 = vld [vmem:[#allocation13 + $0xb60] sm:$0xff]
    %v3798 = vld [vmem:[#allocation13 + $0xb68] sm:$0xff]
    %v3799 = vld [vmem:[#allocation13 + $0xb70] sm:$0xff]
    %v3800 = vld [vmem:[#allocation13 + $0xb78] sm:$0xff]
    %v3801 = vld [vmem:[#allocation13 + $0xb80] sm:$0xff]
    %v3802 = vld [vmem:[#allocation13 + $0xb88] sm:$0xff]
    %v3803 = vld [vmem:[#allocation13 + $0xb90] sm:$0xff]
    %v3804 = vld [vmem:[#allocation13 + $0xb98] sm:$0xff]
    %v3805 = vld [vmem:[#allocation13 + $0xba0] sm:$0xff]
    %v3806 = vld [vmem:[#allocation13 + $0xba8] sm:$0xff]
    %v3807 = vld [vmem:[#allocation13 + $0xbb0] sm:$0xff]
    %v3808 = vld [vmem:[#allocation13 + $0xbb8] sm:$0xff]
    %v3809 = vld [vmem:[#allocation13 + $0xbc0] sm:$0xff]
    %v3810 = vld [vmem:[#allocation13 + $0xbc8] sm:$0xff]
    %v3811 = vld [vmem:[#allocation13 + $0xbd0] sm:$0xff]
    %v3812 = vld [vmem:[#allocation13 + $0xbd8] sm:$0xff]
    %v3813 = vld [vmem:[#allocation13 + $0xbe0] sm:$0xff]
    %v3814 = vld [vmem:[#allocation13 + $0xbe8] sm:$0xff]
    %v3815 = vld [vmem:[#allocation13 + $0xbf0] sm:$0xff]
    %v3816 = vld [vmem:[#allocation13 + $0xbf8] sm:$0xff]
    %v3817 = vld [vmem:[#allocation14] sm:$0xff]
    %v3819 = vlaneseq
    %v3820 = vshrl.u32 %v3819, 7
    %v3821 = vsub.s32 0, %v3820
    %v3822 = vrot.slane %v3817, %v3821
    %v3823 = vlaneseq
    %v3824 = vshrl.u32 %v3823, 7
    %v3825 = vsub.s32 1, %v3824
    %v3826 = vrot.slane %v3817, %v3825
    %v3827 = vlaneseq
    %v3828 = vshrl.u32 %v3827, 7
    %v3829 = vsub.s32 2, %v3828
    %v3830 = vrot.slane %v3817, %v3829
    %v3831 = vlaneseq
    %v3832 = vshrl.u32 %v3831, 7
    %v3833 = vsub.s32 3, %v3832
    %v3834 = vrot.slane %v3817, %v3833
    %v3835 = vlaneseq
    %v3836 = vshrl.u32 %v3835, 7
    %v3837 = vsub.s32 4, %v3836
    %v3838 = vrot.slane %v3817, %v3837
    %v3839 = vlaneseq
    %v3840 = vshrl.u32 %v3839, 7
    %v3841 = vsub.s32 5, %v3840
    %v3842 = vrot.slane %v3817, %v3841
    %v3843 = vlaneseq
    %v3844 = vshrl.u32 %v3843, 7
    %v3845 = vsub.s32 6, %v3844
    %v3846 = vrot.slane %v3817, %v3845
    %v3847 = vlaneseq
    %v3848 = vshrl.u32 %v3847, 7
    %v3849 = vsub.s32 7, %v3848
    %v3850 = vrot.slane %v3817, %v3849
    %v4243 = vunpack.c.l.b16 %v3433
    %v4244 = vunpack.c.h.b16 %v3433
    %v4245 = vunpack.c.l.b16 %v3434
    %v4246 = vunpack.c.h.b16 %v3434
    %v4247 = vunpack.c.l.b16 %v3435
    %v4248 = vunpack.c.h.b16 %v3435
    %v4249 = vunpack.c.l.b16 %v3436
    %v4250 = vunpack.c.h.b16 %v3436
    %v4251 = vunpack.c.l.b16 %v3437
    %v4252 = vunpack.c.h.b16 %v3437
    %v4253 = vunpack.c.l.b16 %v3438
    %v4254 = vunpack.c.h.b16 %v3438
    %v4255 = vunpack.c.l.b16 %v3439
    %v4256 = vunpack.c.h.b16 %v3439
    %v4257 = vunpack.c.l.b16 %v3440
    %v4258 = vunpack.c.h.b16 %v3440
    %v4259 = vunpack.c.l.b16 %v3441
    %v4260 = vunpack.c.h.b16 %v3441
    %v4261 = vunpack.c.l.b16 %v3442
    %v4262 = vunpack.c.h.b16 %v3442
    %v4263 = vunpack.c.l.b16 %v3443
    %v4264 = vunpack.c.h.b16 %v3443
    %v4265 = vunpack.c.l.b16 %v3444
    %v4266 = vunpack.c.h.b16 %v3444
    %v4267 = vunpack.c.l.b16 %v3445
    %v4268 = vunpack.c.h.b16 %v3445
    %v4269 = vunpack.c.l.b16 %v3446
    %v4270 = vunpack.c.h.b16 %v3446
    %v4271 = vunpack.c.l.b16 %v3447
    %v4272 = vunpack.c.h.b16 %v3447
    %v4273 = vunpack.c.l.b16 %v3448
    %v4274 = vunpack.c.h.b16 %v3448
    %v4275 = vunpack.c.l.b16 %v3449
    %v4276 = vunpack.c.h.b16 %v3449
    %v4277 = vunpack.c.l.b16 %v3450
    %v4278 = vunpack.c.h.b16 %v3450
    %v4279 = vunpack.c.l.b16 %v3451
    %v4280 = vunpack.c.h.b16 %v3451
    %v4281 = vunpack.c.l.b16 %v3452
    %v4282 = vunpack.c.h.b16 %v3452
    %v4283 = vunpack.c.l.b16 %v3453
    %v4284 = vunpack.c.h.b16 %v3453
    %v4285 = vunpack.c.l.b16 %v3454
    %v4286 = vunpack.c.h.b16 %v3454
    %v4287 = vunpack.c.l.b16 %v3455
    %v4288 = vunpack.c.h.b16 %v3455
    %v4289 = vunpack.c.l.b16 %v3456
    %v4290 = vunpack.c.h.b16 %v3456
    %v4291 = vunpack.c.l.b16 %v3457
    %v4292 = vunpack.c.h.b16 %v3457
    %v4293 = vunpack.c.l.b16 %v3458
    %v4294 = vunpack.c.h.b16 %v3458
    %v4295 = vunpack.c.l.b16 %v3459
    %v4296 = vunpack.c.h.b16 %v3459
    %v4297 = vunpack.c.l.b16 %v3460
    %v4298 = vunpack.c.h.b16 %v3460
    %v4299 = vunpack.c.l.b16 %v3461
    %v4300 = vunpack.c.h.b16 %v3461
    %v4301 = vunpack.c.l.b16 %v3462
    %v4302 = vunpack.c.h.b16 %v3462
    %v4303 = vunpack.c.l.b16 %v3463
    %v4304 = vunpack.c.h.b16 %v3463
    %v4305 = vunpack.c.l.b16 %v3464
    %v4306 = vunpack.c.h.b16 %v3464
    %v4307 = vunpack.c.l.b16 %v3465
    %v4308 = vunpack.c.h.b16 %v3465
    %v4309 = vunpack.c.l.b16 %v3466
    %v4310 = vunpack.c.h.b16 %v3466
    %v4311 = vunpack.c.l.b16 %v3467
    %v4312 = vunpack.c.h.b16 %v3467
    %v4313 = vunpack.c.l.b16 %v3468
    %v4314 = vunpack.c.h.b16 %v3468
    %v4315 = vunpack.c.l.b16 %v3469
    %v4316 = vunpack.c.h.b16 %v3469
    %v4317 = vunpack.c.l.b16 %v3470
    %v4318 = vunpack.c.h.b16 %v3470
    %v4319 = vunpack.c.l.b16 %v3471
    %v4320 = vunpack.c.h.b16 %v3471
    %v4321 = vunpack.c.l.b16 %v3472
    %v4322 = vunpack.c.h.b16 %v3472
    %v4323 = vunpack.c.l.b16 %v3473
    %v4324 = vunpack.c.h.b16 %v3473
    %v4325 = vunpack.c.l.b16 %v3474
    %v4326 = vunpack.c.h.b16 %v3474
    %v4327 = vunpack.c.l.b16 %v3475
    %v4328 = vunpack.c.h.b16 %v3475
    %v4329 = vunpack.c.l.b16 %v3476
    %v4330 = vunpack.c.h.b16 %v3476
    %v4331 = vunpack.c.l.b16 %v3477
    %v4332 = vunpack.c.h.b16 %v3477
    %v4333 = vunpack.c.l.b16 %v3478
    %v4334 = vunpack.c.h.b16 %v3478
    %v4335 = vunpack.c.l.b16 %v3479
    %v4336 = vunpack.c.h.b16 %v3479
    %v4337 = vunpack.c.l.b16 %v3480
    %v4338 = vunpack.c.h.b16 %v3480
    %v4339 = vunpack.c.l.b16 %v3481
    %v4340 = vunpack.c.h.b16 %v3481
    %v4341 = vunpack.c.l.b16 %v3482
    %v4342 = vunpack.c.h.b16 %v3482
    %v4343 = vunpack.c.l.b16 %v3483
    %v4344 = vunpack.c.h.b16 %v3483
    %v4345 = vunpack.c.l.b16 %v3484
    %v4346 = vunpack.c.h.b16 %v3484
    %v4347 = vunpack.c.l.b16 %v3485
    %v4348 = vunpack.c.h.b16 %v3485
    %v4349 = vunpack.c.l.b16 %v3486
    %v4350 = vunpack.c.h.b16 %v3486
    %v4351 = vunpack.c.l.b16 %v3487
    %v4352 = vunpack.c.h.b16 %v3487
    %v4353 = vunpack.c.l.b16 %v3488
    %v4354 = vunpack.c.h.b16 %v3488
    %v4355 = vunpack.c.l.b16 %v3489
    %v4356 = vunpack.c.h.b16 %v3489
    %v4357 = vunpack.c.l.b16 %v3490
    %v4358 = vunpack.c.h.b16 %v3490
    %v4359 = vunpack.c.l.b16 %v3491
    %v4360 = vunpack.c.h.b16 %v3491
    %v4361 = vunpack.c.l.b16 %v3492
    %v4362 = vunpack.c.h.b16 %v3492
    %v4363 = vunpack.c.l.b16 %v3493
    %v4364 = vunpack.c.h.b16 %v3493
    %v4365 = vunpack.c.l.b16 %v3494
    %v4366 = vunpack.c.h.b16 %v3494
    %v4367 = vunpack.c.l.b16 %v3495
    %v4368 = vunpack.c.h.b16 %v3495
    %v4369 = vunpack.c.l.b16 %v3496
    %v4370 = vunpack.c.h.b16 %v3496
    %v4371 = vunpack.c.l.b16 %v3497
    %v4372 = vunpack.c.h.b16 %v3497
    %v4373 = vunpack.c.l.b16 %v3498
    %v4374 = vunpack.c.h.b16 %v3498
    %v4375 = vunpack.c.l.b16 %v3499
    %v4376 = vunpack.c.h.b16 %v3499
    %v4377 = vunpack.c.l.b16 %v3500
    %v4378 = vunpack.c.h.b16 %v3500
    %v4379 = vunpack.c.l.b16 %v3501
    %v4380 = vunpack.c.h.b16 %v3501
    %v4381 = vunpack.c.l.b16 %v3502
    %v4382 = vunpack.c.h.b16 %v3502
    %v4383 = vunpack.c.l.b16 %v3503
    %v4384 = vunpack.c.h.b16 %v3503
    %v4385 = vunpack.c.l.b16 %v3504
    %v4386 = vunpack.c.h.b16 %v3504
    %v4387 = vunpack.c.l.b16 %v3505
    %v4388 = vunpack.c.h.b16 %v3505
    %v4389 = vunpack.c.l.b16 %v3506
    %v4390 = vunpack.c.h.b16 %v3506
    %v4391 = vunpack.c.l.b16 %v3507
    %v4392 = vunpack.c.h.b16 %v3507
    %v4393 = vunpack.c.l.b16 %v3508
    %v4394 = vunpack.c.h.b16 %v3508
    %v4395 = vunpack.c.l.b16 %v3509
    %v4396 = vunpack.c.h.b16 %v3509
    %v4397 = vunpack.c.l.b16 %v3510
    %v4398 = vunpack.c.h.b16 %v3510
    %v4399 = vunpack.c.l.b16 %v3511
    %v4400 = vunpack.c.h.b16 %v3511
    %v4401 = vunpack.c.l.b16 %v3512
    %v4402 = vunpack.c.h.b16 %v3512
    %v4403 = vunpack.c.l.b16 %v3513
    %v4404 = vunpack.c.h.b16 %v3513
    %v4405 = vunpack.c.l.b16 %v3514
    %v4406 = vunpack.c.h.b16 %v3514
    %v4407 = vunpack.c.l.b16 %v3515
    %v4408 = vunpack.c.h.b16 %v3515
    %v4409 = vunpack.c.l.b16 %v3516
    %v4410 = vunpack.c.h.b16 %v3516
    %v4411 = vunpack.c.l.b16 %v3517
    %v4412 = vunpack.c.h.b16 %v3517
    %v4413 = vunpack.c.l.b16 %v3518
    %v4414 = vunpack.c.h.b16 %v3518
    %v4415 = vunpack.c.l.b16 %v3519
    %v4416 = vunpack.c.h.b16 %v3519
    %v4417 = vunpack.c.l.b16 %v3520
    %v4418 = vunpack.c.h.b16 %v3520
    %v4419 = vunpack.c.l.b16 %v3521
    %v4420 = vunpack.c.h.b16 %v3521
    %v4421 = vunpack.c.l.b16 %v3522
    %v4422 = vunpack.c.h.b16 %v3522
    %v4423 = vunpack.c.l.b16 %v3523
    %v4424 = vunpack.c.h.b16 %v3523
    %v4425 = vunpack.c.l.b16 %v3524
    %v4426 = vunpack.c.h.b16 %v3524
    %v4427 = vunpack.c.l.b16 %v3525
    %v4428 = vunpack.c.h.b16 %v3525
    %v4429 = vunpack.c.l.b16 %v3526
    %v4430 = vunpack.c.h.b16 %v3526
    %v4431 = vunpack.c.l.b16 %v3527
    %v4432 = vunpack.c.h.b16 %v3527
    %v4433 = vunpack.c.l.b16 %v3528
    %v4434 = vunpack.c.h.b16 %v3528
    %v4435 = vunpack.c.l.b16 %v3529
    %v4436 = vunpack.c.h.b16 %v3529
    %v4437 = vunpack.c.l.b16 %v3530
    %v4438 = vunpack.c.h.b16 %v3530
    %v4439 = vunpack.c.l.b16 %v3531
    %v4440 = vunpack.c.h.b16 %v3531
    %v4441 = vunpack.c.l.b16 %v3532
    %v4442 = vunpack.c.h.b16 %v3532
    %v4443 = vunpack.c.l.b16 %v3533
    %v4444 = vunpack.c.h.b16 %v3533
    %v4445 = vunpack.c.l.b16 %v3534
    %v4446 = vunpack.c.h.b16 %v3534
    %v4447 = vunpack.c.l.b16 %v3535
    %v4448 = vunpack.c.h.b16 %v3535
    %v4449 = vunpack.c.l.b16 %v3536
    %v4450 = vunpack.c.h.b16 %v3536
    %v4451 = vunpack.c.l.b16 %v3537
    %v4452 = vunpack.c.h.b16 %v3537
    %v4453 = vunpack.c.l.b16 %v3538
    %v4454 = vunpack.c.h.b16 %v3538
    %v4455 = vunpack.c.l.b16 %v3539
    %v4456 = vunpack.c.h.b16 %v3539
    %v4457 = vunpack.c.l.b16 %v3540
    %v4458 = vunpack.c.h.b16 %v3540
    %v4459 = vunpack.c.l.b16 %v3541
    %v4460 = vunpack.c.h.b16 %v3541
    %v4461 = vunpack.c.l.b16 %v3542
    %v4462 = vunpack.c.h.b16 %v3542
    %v4463 = vunpack.c.l.b16 %v3543
    %v4464 = vunpack.c.h.b16 %v3543
    %v4465 = vunpack.c.l.b16 %v3544
    %v4466 = vunpack.c.h.b16 %v3544
    %v4467 = vunpack.c.l.b16 %v3545
    %v4468 = vunpack.c.h.b16 %v3545
    %v4469 = vunpack.c.l.b16 %v3546
    %v4470 = vunpack.c.h.b16 %v3546
    %v4471 = vunpack.c.l.b16 %v3547
    %v4472 = vunpack.c.h.b16 %v3547
    %v4473 = vunpack.c.l.b16 %v3548
    %v4474 = vunpack.c.h.b16 %v3548
    %v4475 = vunpack.c.l.b16 %v3549
    %v4476 = vunpack.c.h.b16 %v3549
    %v4477 = vunpack.c.l.b16 %v3550
    %v4478 = vunpack.c.h.b16 %v3550
    %v4479 = vunpack.c.l.b16 %v3551
    %v4480 = vunpack.c.h.b16 %v3551
    %v4481 = vunpack.c.l.b16 %v3552
    %v4482 = vunpack.c.h.b16 %v3552
    %v4483 = vunpack.c.l.b16 %v3553
    %v4484 = vunpack.c.h.b16 %v3553
    %v4485 = vunpack.c.l.b16 %v3554
    %v4486 = vunpack.c.h.b16 %v3554
    %v4487 = vunpack.c.l.b16 %v3555
    %v4488 = vunpack.c.h.b16 %v3555
    %v4489 = vunpack.c.l.b16 %v3556
    %v4490 = vunpack.c.h.b16 %v3556
    %v4491 = vunpack.c.l.b16 %v3557
    %v4492 = vunpack.c.h.b16 %v3557
    %v4493 = vunpack.c.l.b16 %v3558
    %v4494 = vunpack.c.h.b16 %v3558
    %v4495 = vunpack.c.l.b16 %v3559
    %v4496 = vunpack.c.h.b16 %v3559
    %v4497 = vunpack.c.l.b16 %v3560
    %v4498 = vunpack.c.h.b16 %v3560
    %v4499 = vunpack.c.l.b16 %v3561
    %v4500 = vunpack.c.h.b16 %v3561
    %v4501 = vunpack.c.l.b16 %v3562
    %v4502 = vunpack.c.h.b16 %v3562
    %v4503 = vunpack.c.l.b16 %v3563
    %v4504 = vunpack.c.h.b16 %v3563
    %v4505 = vunpack.c.l.b16 %v3564
    %v4506 = vunpack.c.h.b16 %v3564
    %v4507 = vunpack.c.l.b16 %v3565
    %v4508 = vunpack.c.h.b16 %v3565
    %v4509 = vunpack.c.l.b16 %v3566
    %v4510 = vunpack.c.h.b16 %v3566
    %v4511 = vunpack.c.l.b16 %v3567
    %v4512 = vunpack.c.h.b16 %v3567
    %v4513 = vunpack.c.l.b16 %v3568
    %v4514 = vunpack.c.h.b16 %v3568
    %v4515 = vunpack.c.l.b16 %v3569
    %v4516 = vunpack.c.h.b16 %v3569
    %v4517 = vunpack.c.l.b16 %v3570
    %v4518 = vunpack.c.h.b16 %v3570
    %v4519 = vunpack.c.l.b16 %v3571
    %v4520 = vunpack.c.h.b16 %v3571
    %v4521 = vunpack.c.l.b16 %v3572
    %v4522 = vunpack.c.h.b16 %v3572
    %v4523 = vunpack.c.l.b16 %v3573
    %v4524 = vunpack.c.h.b16 %v3573
    %v4525 = vunpack.c.l.b16 %v3574
    %v4526 = vunpack.c.h.b16 %v3574
    %v4527 = vunpack.c.l.b16 %v3575
    %v4528 = vunpack.c.h.b16 %v3575
    %v4529 = vunpack.c.l.b16 %v3576
    %v4530 = vunpack.c.h.b16 %v3576
    %v4531 = vunpack.c.l.b16 %v3577
    %v4532 = vunpack.c.h.b16 %v3577
    %v4533 = vunpack.c.l.b16 %v3578
    %v4534 = vunpack.c.h.b16 %v3578
    %v4535 = vunpack.c.l.b16 %v3579
    %v4536 = vunpack.c.h.b16 %v3579
    %v4537 = vunpack.c.l.b16 %v3580
    %v4538 = vunpack.c.h.b16 %v3580
    %v4539 = vunpack.c.l.b16 %v3581
    %v4540 = vunpack.c.h.b16 %v3581
    %v4541 = vunpack.c.l.b16 %v3582
    %v4542 = vunpack.c.h.b16 %v3582
    %v4543 = vunpack.c.l.b16 %v3583
    %v4544 = vunpack.c.h.b16 %v3583
    %v4545 = vunpack.c.l.b16 %v3584
    %v4546 = vunpack.c.h.b16 %v3584
    %v4547 = vunpack.c.l.b16 %v3585
    %v4548 = vunpack.c.h.b16 %v3585
    %v4549 = vunpack.c.l.b16 %v3586
    %v4550 = vunpack.c.h.b16 %v3586
    %v4551 = vunpack.c.l.b16 %v3587
    %v4552 = vunpack.c.h.b16 %v3587
    %v4553 = vunpack.c.l.b16 %v3588
    %v4554 = vunpack.c.h.b16 %v3588
    %v4555 = vunpack.c.l.b16 %v3589
    %v4556 = vunpack.c.h.b16 %v3589
    %v4557 = vunpack.c.l.b16 %v3590
    %v4558 = vunpack.c.h.b16 %v3590
    %v4559 = vunpack.c.l.b16 %v3591
    %v4560 = vunpack.c.h.b16 %v3591
    %v4561 = vunpack.c.l.b16 %v3592
    %v4562 = vunpack.c.h.b16 %v3592
    %v4563 = vunpack.c.l.b16 %v3593
    %v4564 = vunpack.c.h.b16 %v3593
    %v4565 = vunpack.c.l.b16 %v3594
    %v4566 = vunpack.c.h.b16 %v3594
    %v4567 = vunpack.c.l.b16 %v3595
    %v4568 = vunpack.c.h.b16 %v3595
    %v4569 = vunpack.c.l.b16 %v3596
    %v4570 = vunpack.c.h.b16 %v3596
    %v4571 = vunpack.c.l.b16 %v3597
    %v4572 = vunpack.c.h.b16 %v3597
    %v4573 = vunpack.c.l.b16 %v3598
    %v4574 = vunpack.c.h.b16 %v3598
    %v4575 = vunpack.c.l.b16 %v3599
    %v4576 = vunpack.c.h.b16 %v3599
    %v4577 = vunpack.c.l.b16 %v3600
    %v4578 = vunpack.c.h.b16 %v3600
    %v4579 = vunpack.c.l.b16 %v3601
    %v4580 = vunpack.c.h.b16 %v3601
    %v4581 = vunpack.c.l.b16 %v3602
    %v4582 = vunpack.c.h.b16 %v3602
    %v4583 = vunpack.c.l.b16 %v3603
    %v4584 = vunpack.c.h.b16 %v3603
    %v4585 = vunpack.c.l.b16 %v3604
    %v4586 = vunpack.c.h.b16 %v3604
    %v4587 = vunpack.c.l.b16 %v3605
    %v4588 = vunpack.c.h.b16 %v3605
    %v4589 = vunpack.c.l.b16 %v3606
    %v4590 = vunpack.c.h.b16 %v3606
    %v4591 = vunpack.c.l.b16 %v3607
    %v4592 = vunpack.c.h.b16 %v3607
    %v4593 = vunpack.c.l.b16 %v3608
    %v4594 = vunpack.c.h.b16 %v3608
    %v4595 = vunpack.c.l.b16 %v3609
    %v4596 = vunpack.c.h.b16 %v3609
    %v4597 = vunpack.c.l.b16 %v3610
    %v4598 = vunpack.c.h.b16 %v3610
    %v4599 = vunpack.c.l.b16 %v3611
    %v4600 = vunpack.c.h.b16 %v3611
    %v4601 = vunpack.c.l.b16 %v3612
    %v4602 = vunpack.c.h.b16 %v3612
    %v4603 = vunpack.c.l.b16 %v3613
    %v4604 = vunpack.c.h.b16 %v3613
    %v4605 = vunpack.c.l.b16 %v3614
    %v4606 = vunpack.c.h.b16 %v3614
    %v4607 = vunpack.c.l.b16 %v3615
    %v4608 = vunpack.c.h.b16 %v3615
    %v4609 = vunpack.c.l.b16 %v3616
    %v4610 = vunpack.c.h.b16 %v3616
    %v4611 = vunpack.c.l.b16 %v3617
    %v4612 = vunpack.c.h.b16 %v3617
    %v4613 = vunpack.c.l.b16 %v3618
    %v4614 = vunpack.c.h.b16 %v3618
    %v4615 = vunpack.c.l.b16 %v3619
    %v4616 = vunpack.c.h.b16 %v3619
    %v4617 = vunpack.c.l.b16 %v3620
    %v4618 = vunpack.c.h.b16 %v3620
    %v4619 = vunpack.c.l.b16 %v3621
    %v4620 = vunpack.c.h.b16 %v3621
    %v4621 = vunpack.c.l.b16 %v3622
    %v4622 = vunpack.c.h.b16 %v3622
    %v4623 = vunpack.c.l.b16 %v3623
    %v4624 = vunpack.c.h.b16 %v3623
    %v4625 = vunpack.c.l.b16 %v3624
    %v4626 = vunpack.c.h.b16 %v3624
    %v4627 = vunpack.c.l.b16 %v3625
    %v4628 = vunpack.c.h.b16 %v3625
    %v4629 = vunpack.c.l.b16 %v3626
    %v4630 = vunpack.c.h.b16 %v3626
    %v4631 = vunpack.c.l.b16 %v3627
    %v4632 = vunpack.c.h.b16 %v3627
    %v4633 = vunpack.c.l.b16 %v3628
    %v4634 = vunpack.c.h.b16 %v3628
    %v4635 = vunpack.c.l.b16 %v3629
    %v4636 = vunpack.c.h.b16 %v3629
    %v4637 = vunpack.c.l.b16 %v3630
    %v4638 = vunpack.c.h.b16 %v3630
    %v4639 = vunpack.c.l.b16 %v3631
    %v4640 = vunpack.c.h.b16 %v3631
    %v4641 = vunpack.c.l.b16 %v3632
    %v4642 = vunpack.c.h.b16 %v3632
    %v4643 = vunpack.c.l.b16 %v3633
    %v4644 = vunpack.c.h.b16 %v3633
    %v4645 = vunpack.c.l.b16 %v3634
    %v4646 = vunpack.c.h.b16 %v3634
    %v4647 = vunpack.c.l.b16 %v3635
    %v4648 = vunpack.c.h.b16 %v3635
    %v4649 = vunpack.c.l.b16 %v3636
    %v4650 = vunpack.c.h.b16 %v3636
    %v4651 = vunpack.c.l.b16 %v3637
    %v4652 = vunpack.c.h.b16 %v3637
    %v4653 = vunpack.c.l.b16 %v3638
    %v4654 = vunpack.c.h.b16 %v3638
    %v4655 = vunpack.c.l.b16 %v3639
    %v4656 = vunpack.c.h.b16 %v3639
    %v4657 = vunpack.c.l.b16 %v3640
    %v4658 = vunpack.c.h.b16 %v3640
    %v4659 = vunpack.c.l.b16 %v3641
    %v4660 = vunpack.c.h.b16 %v3641
    %v4661 = vunpack.c.l.b16 %v3642
    %v4662 = vunpack.c.h.b16 %v3642
    %v4663 = vunpack.c.l.b16 %v3643
    %v4664 = vunpack.c.h.b16 %v3643
    %v4665 = vunpack.c.l.b16 %v3644
    %v4666 = vunpack.c.h.b16 %v3644
    %v4667 = vunpack.c.l.b16 %v3645
    %v4668 = vunpack.c.h.b16 %v3645
    %v4669 = vunpack.c.l.b16 %v3646
    %v4670 = vunpack.c.h.b16 %v3646
    %v4671 = vunpack.c.l.b16 %v3647
    %v4672 = vunpack.c.h.b16 %v3647
    %v4673 = vunpack.c.l.b16 %v3648
    %v4674 = vunpack.c.h.b16 %v3648
    %v4675 = vunpack.c.l.b16 %v3649
    %v4676 = vunpack.c.h.b16 %v3649
    %v4677 = vunpack.c.l.b16 %v3650
    %v4678 = vunpack.c.h.b16 %v3650
    %v4679 = vunpack.c.l.b16 %v3651
    %v4680 = vunpack.c.h.b16 %v3651
    %v4681 = vunpack.c.l.b16 %v3652
    %v4682 = vunpack.c.h.b16 %v3652
    %v4683 = vunpack.c.l.b16 %v3653
    %v4684 = vunpack.c.h.b16 %v3653
    %v4685 = vunpack.c.l.b16 %v3654
    %v4686 = vunpack.c.h.b16 %v3654
    %v4687 = vunpack.c.l.b16 %v3655
    %v4688 = vunpack.c.h.b16 %v3655
    %v4689 = vunpack.c.l.b16 %v3656
    %v4690 = vunpack.c.h.b16 %v3656
    %v4691 = vunpack.c.l.b16 %v3657
    %v4692 = vunpack.c.h.b16 %v3657
    %v4693 = vunpack.c.l.b16 %v3658
    %v4694 = vunpack.c.h.b16 %v3658
    %v4695 = vunpack.c.l.b16 %v3659
    %v4696 = vunpack.c.h.b16 %v3659
    %v4697 = vunpack.c.l.b16 %v3660
    %v4698 = vunpack.c.h.b16 %v3660
    %v4699 = vunpack.c.l.b16 %v3661
    %v4700 = vunpack.c.h.b16 %v3661
    %v4701 = vunpack.c.l.b16 %v3662
    %v4702 = vunpack.c.h.b16 %v3662
    %v4703 = vunpack.c.l.b16 %v3663
    %v4704 = vunpack.c.h.b16 %v3663
    %v4705 = vunpack.c.l.b16 %v3664
    %v4706 = vunpack.c.h.b16 %v3664
    %v4707 = vunpack.c.l.b16 %v3665
    %v4708 = vunpack.c.h.b16 %v3665
    %v4709 = vunpack.c.l.b16 %v3666
    %v4710 = vunpack.c.h.b16 %v3666
    %v4711 = vunpack.c.l.b16 %v3667
    %v4712 = vunpack.c.h.b16 %v3667
    %v4713 = vunpack.c.l.b16 %v3668
    %v4714 = vunpack.c.h.b16 %v3668
    %v4715 = vunpack.c.l.b16 %v3669
    %v4716 = vunpack.c.h.b16 %v3669
    %v4717 = vunpack.c.l.b16 %v3670
    %v4718 = vunpack.c.h.b16 %v3670
    %v4719 = vunpack.c.l.b16 %v3671
    %v4720 = vunpack.c.h.b16 %v3671
    %v4721 = vunpack.c.l.b16 %v3672
    %v4722 = vunpack.c.h.b16 %v3672
    %v4723 = vunpack.c.l.b16 %v3673
    %v4724 = vunpack.c.h.b16 %v3673
    %v4725 = vunpack.c.l.b16 %v3674
    %v4726 = vunpack.c.h.b16 %v3674
    %v4727 = vunpack.c.l.b16 %v3675
    %v4728 = vunpack.c.h.b16 %v3675
    %v4729 = vunpack.c.l.b16 %v3676
    %v4730 = vunpack.c.h.b16 %v3676
    %v4731 = vunpack.c.l.b16 %v3677
    %v4732 = vunpack.c.h.b16 %v3677
    %v4733 = vunpack.c.l.b16 %v3678
    %v4734 = vunpack.c.h.b16 %v3678
    %v4735 = vunpack.c.l.b16 %v3679
    %v4736 = vunpack.c.h.b16 %v3679
    %v4737 = vunpack.c.l.b16 %v3680
    %v4738 = vunpack.c.h.b16 %v3680
    %v4739 = vunpack.c.l.b16 %v3681
    %v4740 = vunpack.c.h.b16 %v3681
    %v4741 = vunpack.c.l.b16 %v3682
    %v4742 = vunpack.c.h.b16 %v3682
    %v4743 = vunpack.c.l.b16 %v3683
    %v4744 = vunpack.c.h.b16 %v3683
    %v4745 = vunpack.c.l.b16 %v3684
    %v4746 = vunpack.c.h.b16 %v3684
    %v4747 = vunpack.c.l.b16 %v3685
    %v4748 = vunpack.c.h.b16 %v3685
    %v4749 = vunpack.c.l.b16 %v3686
    %v4750 = vunpack.c.h.b16 %v3686
    %v4751 = vunpack.c.l.b16 %v3687
    %v4752 = vunpack.c.h.b16 %v3687
    %v4753 = vunpack.c.l.b16 %v3688
    %v4754 = vunpack.c.h.b16 %v3688
    %v4755 = vunpack.c.l.b16 %v3689
    %v4756 = vunpack.c.h.b16 %v3689
    %v4757 = vunpack.c.l.b16 %v3690
    %v4758 = vunpack.c.h.b16 %v3690
    %v4759 = vunpack.c.l.b16 %v3691
    %v4760 = vunpack.c.h.b16 %v3691
    %v4761 = vunpack.c.l.b16 %v3692
    %v4762 = vunpack.c.h.b16 %v3692
    %v4763 = vunpack.c.l.b16 %v3693
    %v4764 = vunpack.c.h.b16 %v3693
    %v4765 = vunpack.c.l.b16 %v3694
    %v4766 = vunpack.c.h.b16 %v3694
    %v4767 = vunpack.c.l.b16 %v3695
    %v4768 = vunpack.c.h.b16 %v3695
    %v4769 = vunpack.c.l.b16 %v3696
    %v4770 = vunpack.c.h.b16 %v3696
    %v4771 = vunpack.c.l.b16 %v3697
    %v4772 = vunpack.c.h.b16 %v3697
    %v4773 = vunpack.c.l.b16 %v3698
    %v4774 = vunpack.c.h.b16 %v3698
    %v4775 = vunpack.c.l.b16 %v3699
    %v4776 = vunpack.c.h.b16 %v3699
    %v4777 = vunpack.c.l.b16 %v3700
    %v4778 = vunpack.c.h.b16 %v3700
    %v4779 = vunpack.c.l.b16 %v3701
    %v4780 = vunpack.c.h.b16 %v3701
    %v4781 = vunpack.c.l.b16 %v3702
    %v4782 = vunpack.c.h.b16 %v3702
    %v4783 = vunpack.c.l.b16 %v3703
    %v4784 = vunpack.c.h.b16 %v3703
    %v4785 = vunpack.c.l.b16 %v3704
    %v4786 = vunpack.c.h.b16 %v3704
    %v4787 = vunpack.c.l.b16 %v3705
    %v4788 = vunpack.c.h.b16 %v3705
    %v4789 = vunpack.c.l.b16 %v3706
    %v4790 = vunpack.c.h.b16 %v3706
    %v4791 = vunpack.c.l.b16 %v3707
    %v4792 = vunpack.c.h.b16 %v3707
    %v4793 = vunpack.c.l.b16 %v3708
    %v4794 = vunpack.c.h.b16 %v3708
    %v4795 = vunpack.c.l.b16 %v3709
    %v4796 = vunpack.c.h.b16 %v3709
    %v4797 = vunpack.c.l.b16 %v3710
    %v4798 = vunpack.c.h.b16 %v3710
    %v4799 = vunpack.c.l.b16 %v3711
    %v4800 = vunpack.c.h.b16 %v3711
    %v4801 = vunpack.c.l.b16 %v3712
    %v4802 = vunpack.c.h.b16 %v3712
    %v4803 = vunpack.c.l.b16 %v3713
    %v4804 = vunpack.c.h.b16 %v3713
    %v4805 = vunpack.c.l.b16 %v3714
    %v4806 = vunpack.c.h.b16 %v3714
    %v4807 = vunpack.c.l.b16 %v3715
    %v4808 = vunpack.c.h.b16 %v3715
    %v4809 = vunpack.c.l.b16 %v3716
    %v4810 = vunpack.c.h.b16 %v3716
    %v4811 = vunpack.c.l.b16 %v3717
    %v4812 = vunpack.c.h.b16 %v3717
    %v4813 = vunpack.c.l.b16 %v3718
    %v4814 = vunpack.c.h.b16 %v3718
    %v4815 = vunpack.c.l.b16 %v3719
    %v4816 = vunpack.c.h.b16 %v3719
    %v4817 = vunpack.c.l.b16 %v3720
    %v4818 = vunpack.c.h.b16 %v3720
    %v4819 = vunpack.c.l.b16 %v3721
    %v4820 = vunpack.c.h.b16 %v3721
    %v4821 = vunpack.c.l.b16 %v3722
    %v4822 = vunpack.c.h.b16 %v3722
    %v4823 = vunpack.c.l.b16 %v3723
    %v4824 = vunpack.c.h.b16 %v3723
    %v4825 = vunpack.c.l.b16 %v3724
    %v4826 = vunpack.c.h.b16 %v3724
    %v4827 = vunpack.c.l.b16 %v3725
    %v4828 = vunpack.c.h.b16 %v3725
    %v4829 = vunpack.c.l.b16 %v3726
    %v4830 = vunpack.c.h.b16 %v3726
    %v4831 = vunpack.c.l.b16 %v3727
    %v4832 = vunpack.c.h.b16 %v3727
    %v4833 = vunpack.c.l.b16 %v3728
    %v4834 = vunpack.c.h.b16 %v3728
    %v4835 = vunpack.c.l.b16 %v3729
    %v4836 = vunpack.c.h.b16 %v3729
    %v4837 = vunpack.c.l.b16 %v3730
    %v4838 = vunpack.c.h.b16 %v3730
    %v4839 = vunpack.c.l.b16 %v3731
    %v4840 = vunpack.c.h.b16 %v3731
    %v4841 = vunpack.c.l.b16 %v3732
    %v4842 = vunpack.c.h.b16 %v3732
    %v4843 = vunpack.c.l.b16 %v3733
    %v4844 = vunpack.c.h.b16 %v3733
    %v4845 = vunpack.c.l.b16 %v3734
    %v4846 = vunpack.c.h.b16 %v3734
    %v4847 = vunpack.c.l.b16 %v3735
    %v4848 = vunpack.c.h.b16 %v3735
    %v4849 = vunpack.c.l.b16 %v3736
    %v4850 = vunpack.c.h.b16 %v3736
    %v4851 = vunpack.c.l.b16 %v3737
    %v4852 = vunpack.c.h.b16 %v3737
    %v4853 = vunpack.c.l.b16 %v3738
    %v4854 = vunpack.c.h.b16 %v3738
    %v4855 = vunpack.c.l.b16 %v3739
    %v4856 = vunpack.c.h.b16 %v3739
    %v4857 = vunpack.c.l.b16 %v3740
    %v4858 = vunpack.c.h.b16 %v3740
    %v4859 = vunpack.c.l.b16 %v3741
    %v4860 = vunpack.c.h.b16 %v3741
    %v4861 = vunpack.c.l.b16 %v3742
    %v4862 = vunpack.c.h.b16 %v3742
    %v4863 = vunpack.c.l.b16 %v3743
    %v4864 = vunpack.c.h.b16 %v3743
    %v4865 = vunpack.c.l.b16 %v3744
    %v4866 = vunpack.c.h.b16 %v3744
    %v4867 = vunpack.c.l.b16 %v3745
    %v4868 = vunpack.c.h.b16 %v3745
    %v4869 = vunpack.c.l.b16 %v3746
    %v4870 = vunpack.c.h.b16 %v3746
    %v4871 = vunpack.c.l.b16 %v3747
    %v4872 = vunpack.c.h.b16 %v3747
    %v4873 = vunpack.c.l.b16 %v3748
    %v4874 = vunpack.c.h.b16 %v3748
    %v4875 = vunpack.c.l.b16 %v3749
    %v4876 = vunpack.c.h.b16 %v3749
    %v4877 = vunpack.c.l.b16 %v3750
    %v4878 = vunpack.c.h.b16 %v3750
    %v4879 = vunpack.c.l.b16 %v3751
    %v4880 = vunpack.c.h.b16 %v3751
    %v4881 = vunpack.c.l.b16 %v3752
    %v4882 = vunpack.c.h.b16 %v3752
    %v4883 = vunpack.c.l.b16 %v3753
    %v4884 = vunpack.c.h.b16 %v3753
    %v4885 = vunpack.c.l.b16 %v3754
    %v4886 = vunpack.c.h.b16 %v3754
    %v4887 = vunpack.c.l.b16 %v3755
    %v4888 = vunpack.c.h.b16 %v3755
    %v4889 = vunpack.c.l.b16 %v3756
    %v4890 = vunpack.c.h.b16 %v3756
    %v4891 = vunpack.c.l.b16 %v3757
    %v4892 = vunpack.c.h.b16 %v3757
    %v4893 = vunpack.c.l.b16 %v3758
    %v4894 = vunpack.c.h.b16 %v3758
    %v4895 = vunpack.c.l.b16 %v3759
    %v4896 = vunpack.c.h.b16 %v3759
    %v4897 = vunpack.c.l.b16 %v3760
    %v4898 = vunpack.c.h.b16 %v3760
    %v4899 = vunpack.c.l.b16 %v3761
    %v4900 = vunpack.c.h.b16 %v3761
    %v4901 = vunpack.c.l.b16 %v3762
    %v4902 = vunpack.c.h.b16 %v3762
    %v4903 = vunpack.c.l.b16 %v3763
    %v4904 = vunpack.c.h.b16 %v3763
    %v4905 = vunpack.c.l.b16 %v3764
    %v4906 = vunpack.c.h.b16 %v3764
    %v4907 = vunpack.c.l.b16 %v3765
    %v4908 = vunpack.c.h.b16 %v3765
    %v4909 = vunpack.c.l.b16 %v3766
    %v4910 = vunpack.c.h.b16 %v3766
    %v4911 = vunpack.c.l.b16 %v3767
    %v4912 = vunpack.c.h.b16 %v3767
    %v4913 = vunpack.c.l.b16 %v3768
    %v4914 = vunpack.c.h.b16 %v3768
    %v4915 = vunpack.c.l.b16 %v3769
    %v4916 = vunpack.c.h.b16 %v3769
    %v4917 = vunpack.c.l.b16 %v3770
    %v4918 = vunpack.c.h.b16 %v3770
    %v4919 = vunpack.c.l.b16 %v3771
    %v4920 = vunpack.c.h.b16 %v3771
    %v4921 = vunpack.c.l.b16 %v3772
    %v4922 = vunpack.c.h.b16 %v3772
    %v4923 = vunpack.c.l.b16 %v3773
    %v4924 = vunpack.c.h.b16 %v3773
    %v4925 = vunpack.c.l.b16 %v3774
    %v4926 = vunpack.c.h.b16 %v3774
    %v4927 = vunpack.c.l.b16 %v3775
    %v4928 = vunpack.c.h.b16 %v3775
    %v4929 = vunpack.c.l.b16 %v3776
    %v4930 = vunpack.c.h.b16 %v3776
    %v4931 = vunpack.c.l.b16 %v3777
    %v4932 = vunpack.c.h.b16 %v3777
    %v4933 = vunpack.c.l.b16 %v3778
    %v4934 = vunpack.c.h.b16 %v3778
    %v4935 = vunpack.c.l.b16 %v3779
    %v4936 = vunpack.c.h.b16 %v3779
    %v4937 = vunpack.c.l.b16 %v3780
    %v4938 = vunpack.c.h.b16 %v3780
    %v4939 = vunpack.c.l.b16 %v3781
    %v4940 = vunpack.c.h.b16 %v3781
    %v4941 = vunpack.c.l.b16 %v3782
    %v4942 = vunpack.c.h.b16 %v3782
    %v4943 = vunpack.c.l.b16 %v3783
    %v4944 = vunpack.c.h.b16 %v3783
    %v4945 = vunpack.c.l.b16 %v3784
    %v4946 = vunpack.c.h.b16 %v3784
    %v4947 = vunpack.c.l.b16 %v3785
    %v4948 = vunpack.c.h.b16 %v3785
    %v4949 = vunpack.c.l.b16 %v3786
    %v4950 = vunpack.c.h.b16 %v3786
    %v4951 = vunpack.c.l.b16 %v3787
    %v4952 = vunpack.c.h.b16 %v3787
    %v4953 = vunpack.c.l.b16 %v3788
    %v4954 = vunpack.c.h.b16 %v3788
    %v4955 = vunpack.c.l.b16 %v3789
    %v4956 = vunpack.c.h.b16 %v3789
    %v4957 = vunpack.c.l.b16 %v3790
    %v4958 = vunpack.c.h.b16 %v3790
    %v4959 = vunpack.c.l.b16 %v3791
    %v4960 = vunpack.c.h.b16 %v3791
    %v4961 = vunpack.c.l.b16 %v3792
    %v4962 = vunpack.c.h.b16 %v3792
    %v4963 = vunpack.c.l.b16 %v3793
    %v4964 = vunpack.c.h.b16 %v3793
    %v4965 = vunpack.c.l.b16 %v3794
    %v4966 = vunpack.c.h.b16 %v3794
    %v4967 = vunpack.c.l.b16 %v3795
    %v4968 = vunpack.c.h.b16 %v3795
    %v4969 = vunpack.c.l.b16 %v3796
    %v4970 = vunpack.c.h.b16 %v3796
    %v4971 = vunpack.c.l.b16 %v3797
    %v4972 = vunpack.c.h.b16 %v3797
    %v4973 = vunpack.c.l.b16 %v3798
    %v4974 = vunpack.c.h.b16 %v3798
    %v4975 = vunpack.c.l.b16 %v3799
    %v4976 = vunpack.c.h.b16 %v3799
    %v4977 = vunpack.c.l.b16 %v3800
    %v4978 = vunpack.c.h.b16 %v3800
    %v4979 = vunpack.c.l.b16 %v3801
    %v4980 = vunpack.c.h.b16 %v3801
    %v4981 = vunpack.c.l.b16 %v3802
    %v4982 = vunpack.c.h.b16 %v3802
    %v4983 = vunpack.c.l.b16 %v3803
    %v4984 = vunpack.c.h.b16 %v3803
    %v4985 = vunpack.c.l.b16 %v3804
    %v4986 = vunpack.c.h.b16 %v3804
    %v4987 = vunpack.c.l.b16 %v3805
    %v4988 = vunpack.c.h.b16 %v3805
    %v4989 = vunpack.c.l.b16 %v3806
    %v4990 = vunpack.c.h.b16 %v3806
    %v4991 = vunpack.c.l.b16 %v3807
    %v4992 = vunpack.c.h.b16 %v3807
    %v4993 = vunpack.c.l.b16 %v3808
    %v4994 = vunpack.c.h.b16 %v3808
    %v4995 = vunpack.c.l.b16 %v3809
    %v4996 = vunpack.c.h.b16 %v3809
    %v4997 = vunpack.c.l.b16 %v3810
    %v4998 = vunpack.c.h.b16 %v3810
    %v4999 = vunpack.c.l.b16 %v3811
    %v5000 = vunpack.c.h.b16 %v3811
    %v5001 = vunpack.c.l.b16 %v3812
    %v5002 = vunpack.c.h.b16 %v3812
    %v5003 = vunpack.c.l.b16 %v3813
    %v5004 = vunpack.c.h.b16 %v3813
    %v5005 = vunpack.c.l.b16 %v3814
    %v5006 = vunpack.c.h.b16 %v3814
    %v5007 = vunpack.c.l.b16 %v3815
    %v5008 = vunpack.c.h.b16 %v3815
    %v5009 = vunpack.c.l.b16 %v3816
    %v5010 = vunpack.c.h.b16 %v3816
    %v5011 = vpack.c.b16 %v4251, %v4243
    %v5012 = vpack.c.b16 %v4252, %v4244
    %v5013 = vpack.c.b16 %v4253, %v4245
    %v5014 = vpack.c.b16 %v4254, %v4246
    %v5015 = vpack.c.b16 %v4255, %v4247
    %v5016 = vpack.c.b16 %v4256, %v4248
    %v5017 = vpack.c.b16 %v4257, %v4249
    %v5018 = vpack.c.b16 %v4258, %v4250
    %v5019 = vpack.c.b16 %v4267, %v4259
    %v5020 = vpack.c.b16 %v4268, %v4260
    %v5021 = vpack.c.b16 %v4269, %v4261
    %v5022 = vpack.c.b16 %v4270, %v4262
    %v5023 = vpack.c.b16 %v4271, %v4263
    %v5024 = vpack.c.b16 %v4272, %v4264
    %v5025 = vpack.c.b16 %v4273, %v4265
    %v5026 = vpack.c.b16 %v4274, %v4266
    %v5027 = vpack.c.b16 %v4283, %v4275
    %v5028 = vpack.c.b16 %v4284, %v4276
    %v5029 = vpack.c.b16 %v4285, %v4277
    %v5030 = vpack.c.b16 %v4286, %v4278
    %v5031 = vpack.c.b16 %v4287, %v4279
    %v5032 = vpack.c.b16 %v4288, %v4280
    %v5033 = vpack.c.b16 %v4289, %v4281
    %v5034 = vpack.c.b16 %v4290, %v4282
    %v5035 = vpack.c.b16 %v4299, %v4291
    %v5036 = vpack.c.b16 %v4300, %v4292
    %v5037 = vpack.c.b16 %v4301, %v4293
    %v5038 = vpack.c.b16 %v4302, %v4294
    %v5039 = vpack.c.b16 %v4303, %v4295
    %v5040 = vpack.c.b16 %v4304, %v4296
    %v5041 = vpack.c.b16 %v4305, %v4297
    %v5042 = vpack.c.b16 %v4306, %v4298
    %v5043 = vpack.c.b16 %v4315, %v4307
    %v5044 = vpack.c.b16 %v4316, %v4308
    %v5045 = vpack.c.b16 %v4317, %v4309
    %v5046 = vpack.c.b16 %v4318, %v4310
    %v5047 = vpack.c.b16 %v4319, %v4311
    %v5048 = vpack.c.b16 %v4320, %v4312
    %v5049 = vpack.c.b16 %v4321, %v4313
    %v5050 = vpack.c.b16 %v4322, %v4314
    %v5051 = vpack.c.b16 %v4331, %v4323
    %v5052 = vpack.c.b16 %v4332, %v4324
    %v5053 = vpack.c.b16 %v4333, %v4325
    %v5054 = vpack.c.b16 %v4334, %v4326
    %v5055 = vpack.c.b16 %v4335, %v4327
    %v5056 = vpack.c.b16 %v4336, %v4328
    %v5057 = vpack.c.b16 %v4337, %v4329
    %v5058 = vpack.c.b16 %v4338, %v4330
    %v5059 = vpack.c.b16 %v4347, %v4339
    %v5060 = vpack.c.b16 %v4348, %v4340
    %v5061 = vpack.c.b16 %v4349, %v4341
    %v5062 = vpack.c.b16 %v4350, %v4342
    %v5063 = vpack.c.b16 %v4351, %v4343
    %v5064 = vpack.c.b16 %v4352, %v4344
    %v5065 = vpack.c.b16 %v4353, %v4345
    %v5066 = vpack.c.b16 %v4354, %v4346
    %v5067 = vpack.c.b16 %v4363, %v4355
    %v5068 = vpack.c.b16 %v4364, %v4356
    %v5069 = vpack.c.b16 %v4365, %v4357
    %v5070 = vpack.c.b16 %v4366, %v4358
    %v5071 = vpack.c.b16 %v4367, %v4359
    %v5072 = vpack.c.b16 %v4368, %v4360
    %v5073 = vpack.c.b16 %v4369, %v4361
    %v5074 = vpack.c.b16 %v4370, %v4362
    %v5075 = vpack.c.b16 %v4379, %v4371
    %v5076 = vpack.c.b16 %v4380, %v4372
    %v5077 = vpack.c.b16 %v4381, %v4373
    %v5078 = vpack.c.b16 %v4382, %v4374
    %v5079 = vpack.c.b16 %v4383, %v4375
    %v5080 = vpack.c.b16 %v4384, %v4376
    %v5081 = vpack.c.b16 %v4385, %v4377
    %v5082 = vpack.c.b16 %v4386, %v4378
    %v5083 = vpack.c.b16 %v4395, %v4387
    %v5084 = vpack.c.b16 %v4396, %v4388
    %v5085 = vpack.c.b16 %v4397, %v4389
    %v5086 = vpack.c.b16 %v4398, %v4390
    %v5087 = vpack.c.b16 %v4399, %v4391
    %v5088 = vpack.c.b16 %v4400, %v4392
    %v5089 = vpack.c.b16 %v4401, %v4393
    %v5090 = vpack.c.b16 %v4402, %v4394
    %v5091 = vpack.c.b16 %v4411, %v4403
    %v5092 = vpack.c.b16 %v4412, %v4404
    %v5093 = vpack.c.b16 %v4413, %v4405
    %v5094 = vpack.c.b16 %v4414, %v4406
    %v5095 = vpack.c.b16 %v4415, %v4407
    %v5096 = vpack.c.b16 %v4416, %v4408
    %v5097 = vpack.c.b16 %v4417, %v4409
    %v5098 = vpack.c.b16 %v4418, %v4410
    %v5099 = vpack.c.b16 %v4427, %v4419
    %v5100 = vpack.c.b16 %v4428, %v4420
    %v5101 = vpack.c.b16 %v4429, %v4421
    %v5102 = vpack.c.b16 %v4430, %v4422
    %v5103 = vpack.c.b16 %v4431, %v4423
    %v5104 = vpack.c.b16 %v4432, %v4424
    %v5105 = vpack.c.b16 %v4433, %v4425
    %v5106 = vpack.c.b16 %v4434, %v4426
    %v5107 = vpack.c.b16 %v4443, %v4435
    %v5108 = vpack.c.b16 %v4444, %v4436
    %v5109 = vpack.c.b16 %v4445, %v4437
    %v5110 = vpack.c.b16 %v4446, %v4438
    %v5111 = vpack.c.b16 %v4447, %v4439
    %v5112 = vpack.c.b16 %v4448, %v4440
    %v5113 = vpack.c.b16 %v4449, %v4441
    %v5114 = vpack.c.b16 %v4450, %v4442
    %v5115 = vpack.c.b16 %v4459, %v4451
    %v5116 = vpack.c.b16 %v4460, %v4452
    %v5117 = vpack.c.b16 %v4461, %v4453
    %v5118 = vpack.c.b16 %v4462, %v4454
    %v5119 = vpack.c.b16 %v4463, %v4455
    %v5120 = vpack.c.b16 %v4464, %v4456
    %v5121 = vpack.c.b16 %v4465, %v4457
    %v5122 = vpack.c.b16 %v4466, %v4458
    %v5123 = vpack.c.b16 %v4475, %v4467
    %v5124 = vpack.c.b16 %v4476, %v4468
    %v5125 = vpack.c.b16 %v4477, %v4469
    %v5126 = vpack.c.b16 %v4478, %v4470
    %v5127 = vpack.c.b16 %v4479, %v4471
    %v5128 = vpack.c.b16 %v4480, %v4472
    %v5129 = vpack.c.b16 %v4481, %v4473
    %v5130 = vpack.c.b16 %v4482, %v4474
    %v5131 = vpack.c.b16 %v4491, %v4483
    %v5132 = vpack.c.b16 %v4492, %v4484
    %v5133 = vpack.c.b16 %v4493, %v4485
    %v5134 = vpack.c.b16 %v4494, %v4486
    %v5135 = vpack.c.b16 %v4495, %v4487
    %v5136 = vpack.c.b16 %v4496, %v4488
    %v5137 = vpack.c.b16 %v4497, %v4489
    %v5138 = vpack.c.b16 %v4498, %v4490
    %v5139 = vpack.c.b16 %v4507, %v4499
    %v5140 = vpack.c.b16 %v4508, %v4500
    %v5141 = vpack.c.b16 %v4509, %v4501
    %v5142 = vpack.c.b16 %v4510, %v4502
    %v5143 = vpack.c.b16 %v4511, %v4503
    %v5144 = vpack.c.b16 %v4512, %v4504
    %v5145 = vpack.c.b16 %v4513, %v4505
    %v5146 = vpack.c.b16 %v4514, %v4506
    %v5147 = vpack.c.b16 %v4523, %v4515
    %v5148 = vpack.c.b16 %v4524, %v4516
    %v5149 = vpack.c.b16 %v4525, %v4517
    %v5150 = vpack.c.b16 %v4526, %v4518
    %v5151 = vpack.c.b16 %v4527, %v4519
    %v5152 = vpack.c.b16 %v4528, %v4520
    %v5153 = vpack.c.b16 %v4529, %v4521
    %v5154 = vpack.c.b16 %v4530, %v4522
    %v5155 = vpack.c.b16 %v4539, %v4531
    %v5156 = vpack.c.b16 %v4540, %v4532
    %v5157 = vpack.c.b16 %v4541, %v4533
    %v5158 = vpack.c.b16 %v4542, %v4534
    %v5159 = vpack.c.b16 %v4543, %v4535
    %v5160 = vpack.c.b16 %v4544, %v4536
    %v5161 = vpack.c.b16 %v4545, %v4537
    %v5162 = vpack.c.b16 %v4546, %v4538
    %v5163 = vpack.c.b16 %v4555, %v4547
    %v5164 = vpack.c.b16 %v4556, %v4548
    %v5165 = vpack.c.b16 %v4557, %v4549
    %v5166 = vpack.c.b16 %v4558, %v4550
    %v5167 = vpack.c.b16 %v4559, %v4551
    %v5168 = vpack.c.b16 %v4560, %v4552
    %v5169 = vpack.c.b16 %v4561, %v4553
    %v5170 = vpack.c.b16 %v4562, %v4554
    %v5171 = vpack.c.b16 %v4571, %v4563
    %v5172 = vpack.c.b16 %v4572, %v4564
    %v5173 = vpack.c.b16 %v4573, %v4565
    %v5174 = vpack.c.b16 %v4574, %v4566
    %v5175 = vpack.c.b16 %v4575, %v4567
    %v5176 = vpack.c.b16 %v4576, %v4568
    %v5177 = vpack.c.b16 %v4577, %v4569
    %v5178 = vpack.c.b16 %v4578, %v4570
    %v5179 = vpack.c.b16 %v4587, %v4579
    %v5180 = vpack.c.b16 %v4588, %v4580
    %v5181 = vpack.c.b16 %v4589, %v4581
    %v5182 = vpack.c.b16 %v4590, %v4582
    %v5183 = vpack.c.b16 %v4591, %v4583
    %v5184 = vpack.c.b16 %v4592, %v4584
    %v5185 = vpack.c.b16 %v4593, %v4585
    %v5186 = vpack.c.b16 %v4594, %v4586
    %v5187 = vpack.c.b16 %v4603, %v4595
    %v5188 = vpack.c.b16 %v4604, %v4596
    %v5189 = vpack.c.b16 %v4605, %v4597
    %v5190 = vpack.c.b16 %v4606, %v4598
    %v5191 = vpack.c.b16 %v4607, %v4599
    %v5192 = vpack.c.b16 %v4608, %v4600
    %v5193 = vpack.c.b16 %v4609, %v4601
    %v5194 = vpack.c.b16 %v4610, %v4602
    %v5195 = vpack.c.b16 %v4619, %v4611
    %v5196 = vpack.c.b16 %v4620, %v4612
    %v5197 = vpack.c.b16 %v4621, %v4613
    %v5198 = vpack.c.b16 %v4622, %v4614
    %v5199 = vpack.c.b16 %v4623, %v4615
    %v5200 = vpack.c.b16 %v4624, %v4616
    %v5201 = vpack.c.b16 %v4625, %v4617
    %v5202 = vpack.c.b16 %v4626, %v4618
    %v5203 = vpack.c.b16 %v4635, %v4627
    %v5204 = vpack.c.b16 %v4636, %v4628
    %v5205 = vpack.c.b16 %v4637, %v4629
    %v5206 = vpack.c.b16 %v4638, %v4630
    %v5207 = vpack.c.b16 %v4639, %v4631
    %v5208 = vpack.c.b16 %v4640, %v4632
    %v5209 = vpack.c.b16 %v4641, %v4633
    %v5210 = vpack.c.b16 %v4642, %v4634
    %v5211 = vpack.c.b16 %v4651, %v4643
    %v5212 = vpack.c.b16 %v4652, %v4644
    %v5213 = vpack.c.b16 %v4653, %v4645
    %v5214 = vpack.c.b16 %v4654, %v4646
    %v5215 = vpack.c.b16 %v4655, %v4647
    %v5216 = vpack.c.b16 %v4656, %v4648
    %v5217 = vpack.c.b16 %v4657, %v4649
    %v5218 = vpack.c.b16 %v4658, %v4650
    %v5219 = vpack.c.b16 %v4667, %v4659
    %v5220 = vpack.c.b16 %v4668, %v4660
    %v5221 = vpack.c.b16 %v4669, %v4661
    %v5222 = vpack.c.b16 %v4670, %v4662
    %v5223 = vpack.c.b16 %v4671, %v4663
    %v5224 = vpack.c.b16 %v4672, %v4664
    %v5225 = vpack.c.b16 %v4673, %v4665
    %v5226 = vpack.c.b16 %v4674, %v4666
    %v5227 = vpack.c.b16 %v4683, %v4675
    %v5228 = vpack.c.b16 %v4684, %v4676
    %v5229 = vpack.c.b16 %v4685, %v4677
    %v5230 = vpack.c.b16 %v4686, %v4678
    %v5231 = vpack.c.b16 %v4687, %v4679
    %v5232 = vpack.c.b16 %v4688, %v4680
    %v5233 = vpack.c.b16 %v4689, %v4681
    %v5234 = vpack.c.b16 %v4690, %v4682
    %v5235 = vpack.c.b16 %v4699, %v4691
    %v5236 = vpack.c.b16 %v4700, %v4692
    %v5237 = vpack.c.b16 %v4701, %v4693
    %v5238 = vpack.c.b16 %v4702, %v4694
    %v5239 = vpack.c.b16 %v4703, %v4695
    %v5240 = vpack.c.b16 %v4704, %v4696
    %v5241 = vpack.c.b16 %v4705, %v4697
    %v5242 = vpack.c.b16 %v4706, %v4698
    %v5243 = vpack.c.b16 %v4715, %v4707
    %v5244 = vpack.c.b16 %v4716, %v4708
    %v5245 = vpack.c.b16 %v4717, %v4709
    %v5246 = vpack.c.b16 %v4718, %v4710
    %v5247 = vpack.c.b16 %v4719, %v4711
    %v5248 = vpack.c.b16 %v4720, %v4712
    %v5249 = vpack.c.b16 %v4721, %v4713
    %v5250 = vpack.c.b16 %v4722, %v4714
    %v5251 = vpack.c.b16 %v4731, %v4723
    %v5252 = vpack.c.b16 %v4732, %v4724
    %v5253 = vpack.c.b16 %v4733, %v4725
    %v5254 = vpack.c.b16 %v4734, %v4726
    %v5255 = vpack.c.b16 %v4735, %v4727
    %v5256 = vpack.c.b16 %v4736, %v4728
    %v5257 = vpack.c.b16 %v4737, %v4729
    %v5258 = vpack.c.b16 %v4738, %v4730
    %v5259 = vpack.c.b16 %v4747, %v4739
    %v5260 = vpack.c.b16 %v4748, %v4740
    %v5261 = vpack.c.b16 %v4749, %v4741
    %v5262 = vpack.c.b16 %v4750, %v4742
    %v5263 = vpack.c.b16 %v4751, %v4743
    %v5264 = vpack.c.b16 %v4752, %v4744
    %v5265 = vpack.c.b16 %v4753, %v4745
    %v5266 = vpack.c.b16 %v4754, %v4746
    %v5267 = vpack.c.b16 %v4763, %v4755
    %v5268 = vpack.c.b16 %v4764, %v4756
    %v5269 = vpack.c.b16 %v4765, %v4757
    %v5270 = vpack.c.b16 %v4766, %v4758
    %v5271 = vpack.c.b16 %v4767, %v4759
    %v5272 = vpack.c.b16 %v4768, %v4760
    %v5273 = vpack.c.b16 %v4769, %v4761
    %v5274 = vpack.c.b16 %v4770, %v4762
    %v5275 = vpack.c.b16 %v4779, %v4771
    %v5276 = vpack.c.b16 %v4780, %v4772
    %v5277 = vpack.c.b16 %v4781, %v4773
    %v5278 = vpack.c.b16 %v4782, %v4774
    %v5279 = vpack.c.b16 %v4783, %v4775
    %v5280 = vpack.c.b16 %v4784, %v4776
    %v5281 = vpack.c.b16 %v4785, %v4777
    %v5282 = vpack.c.b16 %v4786, %v4778
    %v5283 = vpack.c.b16 %v4795, %v4787
    %v5284 = vpack.c.b16 %v4796, %v4788
    %v5285 = vpack.c.b16 %v4797, %v4789
    %v5286 = vpack.c.b16 %v4798, %v4790
    %v5287 = vpack.c.b16 %v4799, %v4791
    %v5288 = vpack.c.b16 %v4800, %v4792
    %v5289 = vpack.c.b16 %v4801, %v4793
    %v5290 = vpack.c.b16 %v4802, %v4794
    %v5291 = vpack.c.b16 %v4811, %v4803
    %v5292 = vpack.c.b16 %v4812, %v4804
    %v5293 = vpack.c.b16 %v4813, %v4805
    %v5294 = vpack.c.b16 %v4814, %v4806
    %v5295 = vpack.c.b16 %v4815, %v4807
    %v5296 = vpack.c.b16 %v4816, %v4808
    %v5297 = vpack.c.b16 %v4817, %v4809
    %v5298 = vpack.c.b16 %v4818, %v4810
    %v5299 = vpack.c.b16 %v4827, %v4819
    %v5300 = vpack.c.b16 %v4828, %v4820
    %v5301 = vpack.c.b16 %v4829, %v4821
    %v5302 = vpack.c.b16 %v4830, %v4822
    %v5303 = vpack.c.b16 %v4831, %v4823
    %v5304 = vpack.c.b16 %v4832, %v4824
    %v5305 = vpack.c.b16 %v4833, %v4825
    %v5306 = vpack.c.b16 %v4834, %v4826
    %v5307 = vpack.c.b16 %v4843, %v4835
    %v5308 = vpack.c.b16 %v4844, %v4836
    %v5309 = vpack.c.b16 %v4845, %v4837
    %v5310 = vpack.c.b16 %v4846, %v4838
    %v5311 = vpack.c.b16 %v4847, %v4839
    %v5312 = vpack.c.b16 %v4848, %v4840
    %v5313 = vpack.c.b16 %v4849, %v4841
    %v5314 = vpack.c.b16 %v4850, %v4842
    %v5315 = vpack.c.b16 %v4859, %v4851
    %v5316 = vpack.c.b16 %v4860, %v4852
    %v5317 = vpack.c.b16 %v4861, %v4853
    %v5318 = vpack.c.b16 %v4862, %v4854
    %v5319 = vpack.c.b16 %v4863, %v4855
    %v5320 = vpack.c.b16 %v4864, %v4856
    %v5321 = vpack.c.b16 %v4865, %v4857
    %v5322 = vpack.c.b16 %v4866, %v4858
    %v5323 = vpack.c.b16 %v4875, %v4867
    %v5324 = vpack.c.b16 %v4876, %v4868
    %v5325 = vpack.c.b16 %v4877, %v4869
    %v5326 = vpack.c.b16 %v4878, %v4870
    %v5327 = vpack.c.b16 %v4879, %v4871
    %v5328 = vpack.c.b16 %v4880, %v4872
    %v5329 = vpack.c.b16 %v4881, %v4873
    %v5330 = vpack.c.b16 %v4882, %v4874
    %v5331 = vpack.c.b16 %v4891, %v4883
    %v5332 = vpack.c.b16 %v4892, %v4884
    %v5333 = vpack.c.b16 %v4893, %v4885
    %v5334 = vpack.c.b16 %v4894, %v4886
    %v5335 = vpack.c.b16 %v4895, %v4887
    %v5336 = vpack.c.b16 %v4896, %v4888
    %v5337 = vpack.c.b16 %v4897, %v4889
    %v5338 = vpack.c.b16 %v4898, %v4890
    %v5339 = vpack.c.b16 %v4907, %v4899
    %v5340 = vpack.c.b16 %v4908, %v4900
    %v5341 = vpack.c.b16 %v4909, %v4901
    %v5342 = vpack.c.b16 %v4910, %v4902
    %v5343 = vpack.c.b16 %v4911, %v4903
    %v5344 = vpack.c.b16 %v4912, %v4904
    %v5345 = vpack.c.b16 %v4913, %v4905
    %v5346 = vpack.c.b16 %v4914, %v4906
    %v5347 = vpack.c.b16 %v4923, %v4915
    %v5348 = vpack.c.b16 %v4924, %v4916
    %v5349 = vpack.c.b16 %v4925, %v4917
    %v5350 = vpack.c.b16 %v4926, %v4918
    %v5351 = vpack.c.b16 %v4927, %v4919
    %v5352 = vpack.c.b16 %v4928, %v4920
    %v5353 = vpack.c.b16 %v4929, %v4921
    %v5354 = vpack.c.b16 %v4930, %v4922
    %v5355 = vpack.c.b16 %v4939, %v4931
    %v5356 = vpack.c.b16 %v4940, %v4932
    %v5357 = vpack.c.b16 %v4941, %v4933
    %v5358 = vpack.c.b16 %v4942, %v4934
    %v5359 = vpack.c.b16 %v4943, %v4935
    %v5360 = vpack.c.b16 %v4944, %v4936
    %v5361 = vpack.c.b16 %v4945, %v4937
    %v5362 = vpack.c.b16 %v4946, %v4938
    %v5363 = vpack.c.b16 %v4955, %v4947
    %v5364 = vpack.c.b16 %v4956, %v4948
    %v5365 = vpack.c.b16 %v4957, %v4949
    %v5366 = vpack.c.b16 %v4958, %v4950
    %v5367 = vpack.c.b16 %v4959, %v4951
    %v5368 = vpack.c.b16 %v4960, %v4952
    %v5369 = vpack.c.b16 %v4961, %v4953
    %v5370 = vpack.c.b16 %v4962, %v4954
    %v5371 = vpack.c.b16 %v4971, %v4963
    %v5372 = vpack.c.b16 %v4972, %v4964
    %v5373 = vpack.c.b16 %v4973, %v4965
    %v5374 = vpack.c.b16 %v4974, %v4966
    %v5375 = vpack.c.b16 %v4975, %v4967
    %v5376 = vpack.c.b16 %v4976, %v4968
    %v5377 = vpack.c.b16 %v4977, %v4969
    %v5378 = vpack.c.b16 %v4978, %v4970
    %v5379 = vpack.c.b16 %v4987, %v4979
    %v5380 = vpack.c.b16 %v4988, %v4980
    %v5381 = vpack.c.b16 %v4989, %v4981
    %v5382 = vpack.c.b16 %v4990, %v4982
    %v5383 = vpack.c.b16 %v4991, %v4983
    %v5384 = vpack.c.b16 %v4992, %v4984
    %v5385 = vpack.c.b16 %v4993, %v4985
    %v5386 = vpack.c.b16 %v4994, %v4986
    %v5387 = vpack.c.b16 %v5003, %v4995
    %v5388 = vpack.c.b16 %v5004, %v4996
    %v5389 = vpack.c.b16 %v5005, %v4997
    %v5390 = vpack.c.b16 %v5006, %v4998
    %v5391 = vpack.c.b16 %v5007, %v4999
    %v5392 = vpack.c.b16 %v5008, %v5000
    %v5393 = vpack.c.b16 %v5009, %v5001
    %v5394 = vpack.c.b16 %v5010, %v5002
    %5779 = vmatprep.subr.bf16.mxu0 %v5068
    %5780 = vmatpush1.bf16.msra.mxu0 %v5067
    %5781 = vmatprep.subr.bf16.mxu0 %v5060
    %5782 = vmatpush1.bf16.msra.mxu0 %v5059
    %5783 = vmatprep.subr.bf16.mxu0 %v5052
    %5784 = vmatpush1.bf16.msra.mxu0 %v5051
    %5785 = vmatprep.subr.bf16.mxu0 %v5044
    %5786 = vmatpush1.bf16.msra.mxu0 %v5043
    %5787 = vmatprep.subr.bf16.mxu0 %v5036
    %5788 = vmatpush1.bf16.msra.mxu0 %v5035
    %5789 = vmatprep.subr.bf16.mxu0 %v5028
    %5790 = vmatpush1.bf16.msra.mxu0 %v5027
    %5791 = vmatprep.subr.bf16.mxu0 %v5020
    %5792 = vmatpush1.bf16.msra.mxu0 %v5019
    %5793 = vmatprep.subr.bf16.mxu0 %v5012
    %5794 = vmatpush1.bf16.msra.mxu0 %v5011
    %5795 = vmatprep.subr.bf16.mxu0 %v5132
    %5796 = vmatpush2.bf16.msra.mxu0 %v5131
    %5797 = vmatprep.subr.bf16.mxu0 %v5124
    %5798 = vmatpush2.bf16.msra.mxu0 %v5123
    %5799 = vmatprep.subr.bf16.mxu0 %v5116
    %5800 = vmatpush2.bf16.msra.mxu0 %v5115
    %5801 = vmatprep.subr.bf16.mxu0 %v5108
    %5802 = vmatpush2.bf16.msra.mxu0 %v5107
    %5803 = vmatprep.subr.bf16.mxu0 %v5100
    %5804 = vmatpush2.bf16.msra.mxu0 %v5099
    %5805 = vmatprep.subr.bf16.mxu0 %v5092
    %5806 = vmatpush2.bf16.msra.mxu0 %v5091
    %5807 = vmatprep.subr.bf16.mxu0 %v5084
    %5808 = vmatpush2.bf16.msra.mxu0 %v5083
    %5809 = vmatprep.subr.bf16.mxu0 %v5076
    %5810 = vmatpush2.bf16.msra.mxu0 %v5075
    %5811 = vmatprep.mubr.bf16.mxu0 %v3428
    %5812 = vmatmul.mubr.bf16.gmra.mxu0 %v3427
    %v5813 = vpop.f32.mrf.mxu0
    %v5814 = vadd.f32 %v3822, %v5813
    %v5815 = vpop.f32.mrf.mxu0
    %v5816 = vadd.f32 %v3826, %v5815
    %v5817 = vpop.f32.mrf.mxu0
    %v5818 = vadd.f32 %v3822, %v5817
    %v5819 = vpop.f32.mrf.mxu0
    %v5820 = vadd.f32 %v3826, %v5819
    %5821 = vdwg.mxu0
    %5822 = vmatprep.subr.bf16.mxu0 %v5196
    %5823 = vmatpush1.bf16.msra.mxu0 %v5195
    %5824 = vmatprep.subr.bf16.mxu0 %v5188
    %5825 = vmatpush1.bf16.msra.mxu0 %v5187
    %5826 = vmatprep.subr.bf16.mxu0 %v5180
    %5827 = vmatpush1.bf16.msra.mxu0 %v5179
    %5828 = vmatprep.subr.bf16.mxu0 %v5172
    %5829 = vmatpush1.bf16.msra.mxu0 %v5171
    %5830 = vmatprep.subr.bf16.mxu0 %v5164
    %5831 = vmatpush1.bf16.msra.mxu0 %v5163
    %5832 = vmatprep.subr.bf16.mxu0 %v5156
    %5833 = vmatpush1.bf16.msra.mxu0 %v5155
    %5834 = vmatprep.subr.bf16.mxu0 %v5148
    %5835 = vmatpush1.bf16.msra.mxu0 %v5147
    %5836 = vmatprep.subr.bf16.mxu0 %v5140
    %5837 = vmatpush1.bf16.msra.mxu0 %v5139
    %5838 = vmatprep.subr.bf16.mxu0 %v5260
    %5839 = vmatpush2.bf16.msra.mxu0 %v5259
    %5840 = vmatprep.subr.bf16.mxu0 %v5252
    %5841 = vmatpush2.bf16.msra.mxu0 %v5251
    %5842 = vmatprep.subr.bf16.mxu0 %v5244
    %5843 = vmatpush2.bf16.msra.mxu0 %v5243
    %5844 = vmatprep.subr.bf16.mxu0 %v5236
    %5845 = vmatpush2.bf16.msra.mxu0 %v5235
    %5846 = vmatprep.subr.bf16.mxu0 %v5228
    %5847 = vmatpush2.bf16.msra.mxu0 %v5227
    %5848 = vmatprep.subr.bf16.mxu0 %v5220
    %5849 = vmatpush2.bf16.msra.mxu0 %v5219
    %5850 = vmatprep.subr.bf16.mxu0 %v5212
    %5851 = vmatpush2.bf16.msra.mxu0 %v5211
    %5852 = vmatprep.subr.bf16.mxu0 %v5204
    %5853 = vmatpush2.bf16.msra.mxu0 %v5203
    %5854 = vmatprep.mubr.bf16.mxu0 %v3430
    %5855 = vmatmul.mubr.bf16.gmra.mxu0 %v3429
    %v5856 = vpop.f32.mrf.mxu0
    %v5857 = vadd.f32 %v5814, %v5856
    %v5858 = vpop.f32.mrf.mxu0
    %v5859 = vadd.f32 %v5816, %v5858
    %v5860 = vpop.f32.mrf.mxu0
    %v5861 = vadd.f32 %v5818, %v5860
    %v5862 = vpop.f32.mrf.mxu0
    %v5863 = vadd.f32 %v5820, %v5862
    %5864 = vdwg.mxu0
    %5865 = vmatprep.subr.bf16.mxu0 %v5324
    %5866 = vmatpush1.bf16.msra.mxu0 %v5323
    %5867 = vmatprep.subr.bf16.mxu0 %v5316
    %5868 = vmatpush1.bf16.msra.mxu0 %v5315
    %5869 = vmatprep.subr.bf16.mxu0 %v5308
    %5870 = vmatpush1.bf16.msra.mxu0 %v5307
    %5871 = vmatprep.subr.bf16.mxu0 %v5300
    %5872 = vmatpush1.bf16.msra.mxu0 %v5299
    %5873 = vmatprep.subr.bf16.mxu0 %v5292
    %5874 = vmatpush1.bf16.msra.mxu0 %v5291
    %5875 = vmatprep.subr.bf16.mxu0 %v5284
    %5876 = vmatpush1.bf16.msra.mxu0 %v5283
    %5877 = vmatprep.subr.bf16.mxu0 %v5276
    %5878 = vmatpush1.bf16.msra.mxu0 %v5275
    %5879 = vmatprep.subr.bf16.mxu0 %v5268
    %5880 = vmatpush1.bf16.msra.mxu0 %v5267
    %5881 = vmatprep.subr.bf16.mxu0 %v5388
    %5882 = vmatpush2.bf16.msra.mxu0 %v5387
    %5883 = vmatprep.subr.bf16.mxu0 %v5380
    %5884 = vmatpush2.bf16.msra.mxu0 %v5379
    %5885 = vmatprep.subr.bf16.mxu0 %v5372
    %5886 = vmatpush2.bf16.msra.mxu0 %v5371
    %5887 = vmatprep.subr.bf16.mxu0 %v5364
    %5888 = vmatpush2.bf16.msra.mxu0 %v5363
    %5889 = vmatprep.subr.bf16.mxu0 %v5356
    %5890 = vmatpush2.bf16.msra.mxu0 %v5355
    %5891 = vmatprep.subr.bf16.mxu0 %v5348
    %5892 = vmatpush2.bf16.msra.mxu0 %v5347
    %5893 = vmatprep.subr.bf16.mxu0 %v5340
    %5894 = vmatpush2.bf16.msra.mxu0 %v5339
    %5895 = vmatprep.subr.bf16.mxu0 %v5332
    %5896 = vmatpush2.bf16.msra.mxu0 %v5331
    %5897 = vmatprep.mubr.bf16.mxu0 %v3432
    %5898 = vmatmul.mubr.bf16.gmra.mxu0 %v3431
    %v5899 = vpop.f32.mrf.mxu0
    %v5900 = vadd.f32 %v5857, %v5899
    %v5901 = vpop.f32.mrf.mxu0
    %v5902 = vadd.f32 %v5859, %v5901
    %v5903 = vpop.f32.mrf.mxu0
    %v5904 = vadd.f32 %v5861, %v5903
    %v5905 = vpop.f32.mrf.mxu0
    %v5906 = vadd.f32 %v5863, %v5905
    %5907 = vdwg.mxu0
    %5908 = vmatprep.subr.bf16.mxu0 %v5070
    %5909 = vmatpush1.bf16.msra.mxu0 %v5069
    %5910 = vmatprep.subr.bf16.mxu0 %v5062
    %5911 = vmatpush1.bf16.msra.mxu0 %v5061
    %5912 = vmatprep.subr.bf16.mxu0 %v5054
    %5913 = vmatpush1.bf16.msra.mxu0 %v5053
    %5914 = vmatprep.subr.bf16.mxu0 %v5046
    %5915 = vmatpush1.bf16.msra.mxu0 %v5045
    %5916 = vmatprep.subr.bf16.mxu0 %v5038
    %5917 = vmatpush1.bf16.msra.mxu0 %v5037
    %5918 = vmatprep.subr.bf16.mxu0 %v5030
    %5919 = vmatpush1.bf16.msra.mxu0 %v5029
    %5920 = vmatprep.subr.bf16.mxu0 %v5022
    %5921 = vmatpush1.bf16.msra.mxu0 %v5021
    %5922 = vmatprep.subr.bf16.mxu0 %v5014
    %5923 = vmatpush1.bf16.msra.mxu0 %v5013
    %5924 = vmatprep.subr.bf16.mxu0 %v5134
    %5925 = vmatpush2.bf16.msra.mxu0 %v5133
    %5926 = vmatprep.subr.bf16.mxu0 %v5126
    %5927 = vmatpush2.bf16.msra.mxu0 %v5125
    %5928 = vmatprep.subr.bf16.mxu0 %v5118
    %5929 = vmatpush2.bf16.msra.mxu0 %v5117
    %5930 = vmatprep.subr.bf16.mxu0 %v5110
    %5931 = vmatpush2.bf16.msra.mxu0 %v5109
    %5932 = vmatprep.subr.bf16.mxu0 %v5102
    %5933 = vmatpush2.bf16.msra.mxu0 %v5101
    %5934 = vmatprep.subr.bf16.mxu0 %v5094
    %5935 = vmatpush2.bf16.msra.mxu0 %v5093
    %5936 = vmatprep.subr.bf16.mxu0 %v5086
    %5937 = vmatpush2.bf16.msra.mxu0 %v5085
    %5938 = vmatprep.subr.bf16.mxu0 %v5078
    %5939 = vmatpush2.bf16.msra.mxu0 %v5077
    %5940 = vmatprep.mubr.bf16.mxu0 %v3428
    %5941 = vmatmul.mubr.bf16.gmra.mxu0 %v3427
    %v5942 = vpop.f32.mrf.mxu0
    %v5943 = vadd.f32 %v3830, %v5942
    %v5944 = vpop.f32.mrf.mxu0
    %v5945 = vadd.f32 %v3834, %v5944
    %v5946 = vpop.f32.mrf.mxu0
    %v5947 = vadd.f32 %v3830, %v5946
    %v5948 = vpop.f32.mrf.mxu0
    %v5949 = vadd.f32 %v3834, %v5948
    %5950 = vdwg.mxu0
    %5951 = vmatprep.subr.bf16.mxu0 %v5198
    %5952 = vmatpush1.bf16.msra.mxu0 %v5197
    %5953 = vmatprep.subr.bf16.mxu0 %v5190
    %5954 = vmatpush1.bf16.msra.mxu0 %v5189
    %5955 = vmatprep.subr.bf16.mxu0 %v5182
    %5956 = vmatpush1.bf16.msra.mxu0 %v5181
    %5957 = vmatprep.subr.bf16.mxu0 %v5174
    %5958 = vmatpush1.bf16.msra.mxu0 %v5173
    %5959 = vmatprep.subr.bf16.mxu0 %v5166
    %5960 = vmatpush1.bf16.msra.mxu0 %v5165
    %5961 = vmatprep.subr.bf16.mxu0 %v5158
    %5962 = vmatpush1.bf16.msra.mxu0 %v5157
    %5963 = vmatprep.subr.bf16.mxu0 %v5150
    %5964 = vmatpush1.bf16.msra.mxu0 %v5149
    %5965 = vmatprep.subr.bf16.mxu0 %v5142
    %5966 = vmatpush1.bf16.msra.mxu0 %v5141
    %5967 = vmatprep.subr.bf16.mxu0 %v5262
    %5968 = vmatpush2.bf16.msra.mxu0 %v5261
    %5969 = vmatprep.subr.bf16.mxu0 %v5254
    %5970 = vmatpush2.bf16.msra.mxu0 %v5253
    %5971 = vmatprep.subr.bf16.mxu0 %v5246
    %5972 = vmatpush2.bf16.msra.mxu0 %v5245
    %5973 = vmatprep.subr.bf16.mxu0 %v5238
    %5974 = vmatpush2.bf16.msra.mxu0 %v5237
    %5975 = vmatprep.subr.bf16.mxu0 %v5230
    %5976 = vmatpush2.bf16.msra.mxu0 %v5229
    %5977 = vmatprep.subr.bf16.mxu0 %v5222
    %5978 = vmatpush2.bf16.msra.mxu0 %v5221
    %5979 = vmatprep.subr.bf16.mxu0 %v5214
    %5980 = vmatpush2.bf16.msra.mxu0 %v5213
    %5981 = vmatprep.subr.bf16.mxu0 %v5206
    %5982 = vmatpush2.bf16.msra.mxu0 %v5205
    %5983 = vmatprep.mubr.bf16.mxu0 %v3430
    %5984 = vmatmul.mubr.bf16.gmra.mxu0 %v3429
    %v5985 = vpop.f32.mrf.mxu0
    %v5986 = vadd.f32 %v5943, %v5985
    %v5987 = vpop.f32.mrf.mxu0
    %v5988 = vadd.f32 %v5945, %v5987
    %v5989 = vpop.f32.mrf.mxu0
    %v5990 = vadd.f32 %v5947, %v5989
    %v5991 = vpop.f32.mrf.mxu0
    %v5992 = vadd.f32 %v5949, %v5991
    %5993 = vdwg.mxu0
    %5994 = vmatprep.subr.bf16.mxu0 %v5326
    %5995 = vmatpush1.bf16.msra.mxu0 %v5325
    %5996 = vmatprep.subr.bf16.mxu0 %v5318
    %5997 = vmatpush1.bf16.msra.mxu0 %v5317
    %5998 = vmatprep.subr.bf16.mxu0 %v5310
    %5999 = vmatpush1.bf16.msra.mxu0 %v5309
    %6000 = vmatprep.subr.bf16.mxu0 %v5302
    %6001 = vmatpush1.bf16.msra.mxu0 %v5301
    %6002 = vmatprep.subr.bf16.mxu0 %v5294
    %6003 = vmatpush1.bf16.msra.mxu0 %v5293
    %6004 = vmatprep.subr.bf16.mxu0 %v5286
    %6005 = vmatpush1.bf16.msra.mxu0 %v5285
    %6006 = vmatprep.subr.bf16.mxu0 %v5278
    %6007 = vmatpush1.bf16.msra.mxu0 %v5277
    %6008 = vmatprep.subr.bf16.mxu0 %v5270
    %6009 = vmatpush1.bf16.msra.mxu0 %v5269
    %6010 = vmatprep.subr.bf16.mxu0 %v5390
    %6011 = vmatpush2.bf16.msra.mxu0 %v5389
    %6012 = vmatprep.subr.bf16.mxu0 %v5382
    %6013 = vmatpush2.bf16.msra.mxu0 %v5381
    %6014 = vmatprep.subr.bf16.mxu0 %v5374
    %6015 = vmatpush2.bf16.msra.mxu0 %v5373
    %6016 = vmatprep.subr.bf16.mxu0 %v5366
    %6017 = vmatpush2.bf16.msra.mxu0 %v5365
    %6018 = vmatprep.subr.bf16.mxu0 %v5358
    %6019 = vmatpush2.bf16.msra.mxu0 %v5357
    %6020 = vmatprep.subr.bf16.mxu0 %v5350
    %6021 = vmatpush2.bf16.msra.mxu0 %v5349
    %6022 = vmatprep.subr.bf16.mxu0 %v5342
    %6023 = vmatpush2.bf16.msra.mxu0 %v5341
    %6024 = vmatprep.subr.bf16.mxu0 %v5334
    %6025 = vmatpush2.bf16.msra.mxu0 %v5333
    %6026 = vmatprep.mubr.bf16.mxu0 %v3432
    %6027 = vmatmul.mubr.bf16.gmra.mxu0 %v3431
    %v6028 = vpop.f32.mrf.mxu0
    %v6029 = vadd.f32 %v5986, %v6028
    %v6030 = vpop.f32.mrf.mxu0
    %v6031 = vadd.f32 %v5988, %v6030
    %v6032 = vpop.f32.mrf.mxu0
    %v6033 = vadd.f32 %v5990, %v6032
    %v6034 = vpop.f32.mrf.mxu0
    %v6035 = vadd.f32 %v5992, %v6034
    %6036 = vdwg.mxu0
    %6037 = vmatprep.subr.bf16.mxu0 %v5072
    %6038 = vmatpush1.bf16.msra.mxu0 %v5071
    %6039 = vmatprep.subr.bf16.mxu0 %v5064
    %6040 = vmatpush1.bf16.msra.mxu0 %v5063
    %6041 = vmatprep.subr.bf16.mxu0 %v5056
    %6042 = vmatpush1.bf16.msra.mxu0 %v5055
    %6043 = vmatprep.subr.bf16.mxu0 %v5048
    %6044 = vmatpush1.bf16.msra.mxu0 %v5047
    %6045 = vmatprep.subr.bf16.mxu0 %v5040
    %6046 = vmatpush1.bf16.msra.mxu0 %v5039
    %6047 = vmatprep.subr.bf16.mxu0 %v5032
    %6048 = vmatpush1.bf16.msra.mxu0 %v5031
    %6049 = vmatprep.subr.bf16.mxu0 %v5024
    %6050 = vmatpush1.bf16.msra.mxu0 %v5023
    %6051 = vmatprep.subr.bf16.mxu0 %v5016
    %6052 = vmatpush1.bf16.msra.mxu0 %v5015
    %6053 = vmatprep.subr.bf16.mxu0 %v5136
    %6054 = vmatpush2.bf16.msra.mxu0 %v5135
    %6055 = vmatprep.subr.bf16.mxu0 %v5128
    %6056 = vmatpush2.bf16.msra.mxu0 %v5127
    %6057 = vmatprep.subr.bf16.mxu0 %v5120
    %6058 = vmatpush2.bf16.msra.mxu0 %v5119
    %6059 = vmatprep.subr.bf16.mxu0 %v5112
    %6060 = vmatpush2.bf16.msra.mxu0 %v5111
    %6061 = vmatprep.subr.bf16.mxu0 %v5104
    %6062 = vmatpush2.bf16.msra.mxu0 %v5103
    %6063 = vmatprep.subr.bf16.mxu0 %v5096
    %6064 = vmatpush2.bf16.msra.mxu0 %v5095
    %6065 = vmatprep.subr.bf16.mxu0 %v5088
    %6066 = vmatpush2.bf16.msra.mxu0 %v5087
    %6067 = vmatprep.subr.bf16.mxu0 %v5080
    %6068 = vmatpush2.bf16.msra.mxu0 %v5079
    %6069 = vmatprep.mubr.bf16.mxu0 %v3428
    %6070 = vmatmul.mubr.bf16.gmra.mxu0 %v3427
    %v6071 = vpop.f32.mrf.mxu0
    %v6072 = vadd.f32 %v3838, %v6071
    %v6073 = vpop.f32.mrf.mxu0
    %v6074 = vadd.f32 %v3842, %v6073
    %v6075 = vpop.f32.mrf.mxu0
    %v6076 = vadd.f32 %v3838, %v6075
    %v6077 = vpop.f32.mrf.mxu0
    %v6078 = vadd.f32 %v3842, %v6077
    %6079 = vdwg.mxu0
    %6080 = vmatprep.subr.bf16.mxu0 %v5200
    %6081 = vmatpush1.bf16.msra.mxu0 %v5199
    %6082 = vmatprep.subr.bf16.mxu0 %v5192
    %6083 = vmatpush1.bf16.msra.mxu0 %v5191
    %6084 = vmatprep.subr.bf16.mxu0 %v5184
    %6085 = vmatpush1.bf16.msra.mxu0 %v5183
    %6086 = vmatprep.subr.bf16.mxu0 %v5176
    %6087 = vmatpush1.bf16.msra.mxu0 %v5175
    %6088 = vmatprep.subr.bf16.mxu0 %v5168
    %6089 = vmatpush1.bf16.msra.mxu0 %v5167
    %6090 = vmatprep.subr.bf16.mxu0 %v5160
    %6091 = vmatpush1.bf16.msra.mxu0 %v5159
    %6092 = vmatprep.subr.bf16.mxu0 %v5152
    %6093 = vmatpush1.bf16.msra.mxu0 %v5151
    %6094 = vmatprep.subr.bf16.mxu0 %v5144
    %6095 = vmatpush1.bf16.msra.mxu0 %v5143
    %6096 = vmatprep.subr.bf16.mxu0 %v5264
    %6097 = vmatpush2.bf16.msra.mxu0 %v5263
    %6098 = vmatprep.subr.bf16.mxu0 %v5256
    %6099 = vmatpush2.bf16.msra.mxu0 %v5255
    %6100 = vmatprep.subr.bf16.mxu0 %v5248
    %6101 = vmatpush2.bf16.msra.mxu0 %v5247
    %6102 = vmatprep.subr.bf16.mxu0 %v5240
    %6103 = vmatpush2.bf16.msra.mxu0 %v5239
    %6104 = vmatprep.subr.bf16.mxu0 %v5232
    %6105 = vmatpush2.bf16.msra.mxu0 %v5231
    %6106 = vmatprep.subr.bf16.mxu0 %v5224
    %6107 = vmatpush2.bf16.msra.mxu0 %v5223
    %6108 = vmatprep.subr.bf16.mxu0 %v5216
    %6109 = vmatpush2.bf16.msra.mxu0 %v5215
    %6110 = vmatprep.subr.bf16.mxu0 %v5208
    %6111 = vmatpush2.bf16.msra.mxu0 %v5207
    %6112 = vmatprep.mubr.bf16.mxu0 %v3430
    %6113 = vmatmul.mubr.bf16.gmra.mxu0 %v3429
    %v6114 = vpop.f32.mrf.mxu0
    %v6115 = vadd.f32 %v6072, %v6114
    %v6116 = vpop.f32.mrf.mxu0
    %v6117 = vadd.f32 %v6074, %v6116
    %v6118 = vpop.f32.mrf.mxu0
    %v6119 = vadd.f32 %v6076, %v6118
    %v6120 = vpop.f32.mrf.mxu0
    %v6121 = vadd.f32 %v6078, %v6120
    %6122 = vdwg.mxu0
    %6123 = vmatprep.subr.bf16.mxu0 %v5328
    %6124 = vmatpush1.bf16.msra.mxu0 %v5327
    %6125 = vmatprep.subr.bf16.mxu0 %v5320
    %6126 = vmatpush1.bf16.msra.mxu0 %v5319
    %6127 = vmatprep.subr.bf16.mxu0 %v5312
    %6128 = vmatpush1.bf16.msra.mxu0 %v5311
    %6129 = vmatprep.subr.bf16.mxu0 %v5304
    %6130 = vmatpush1.bf16.msra.mxu0 %v5303
    %6131 = vmatprep.subr.bf16.mxu0 %v5296
    %6132 = vmatpush1.bf16.msra.mxu0 %v5295
    %6133 = vmatprep.subr.bf16.mxu0 %v5288
    %6134 = vmatpush1.bf16.msra.mxu0 %v5287
    %6135 = vmatprep.subr.bf16.mxu0 %v5280
    %6136 = vmatpush1.bf16.msra.mxu0 %v5279
    %6137 = vmatprep.subr.bf16.mxu0 %v5272
    %6138 = vmatpush1.bf16.msra.mxu0 %v5271
    %6139 = vmatprep.subr.bf16.mxu0 %v5392
    %6140 = vmatpush2.bf16.msra.mxu0 %v5391
    %6141 = vmatprep.subr.bf16.mxu0 %v5384
    %6142 = vmatpush2.bf16.msra.mxu0 %v5383
    %6143 = vmatprep.subr.bf16.mxu0 %v5376
    %6144 = vmatpush2.bf16.msra.mxu0 %v5375
    %6145 = vmatprep.subr.bf16.mxu0 %v5368
    %6146 = vmatpush2.bf16.msra.mxu0 %v5367
    %6147 = vmatprep.subr.bf16.mxu0 %v5360
    %6148 = vmatpush2.bf16.msra.mxu0 %v5359
    %6149 = vmatprep.subr.bf16.mxu0 %v5352
    %6150 = vmatpush2.bf16.msra.mxu0 %v5351
    %6151 = vmatprep.subr.bf16.mxu0 %v5344
    %6152 = vmatpush2.bf16.msra.mxu0 %v5343
    %6153 = vmatprep.subr.bf16.mxu0 %v5336
    %6154 = vmatpush2.bf16.msra.mxu0 %v5335
    %6155 = vmatprep.mubr.bf16.mxu0 %v3432
    %6156 = vmatmul.mubr.bf16.gmra.mxu0 %v3431
    %v6157 = vpop.f32.mrf.mxu0
    %v6158 = vadd.f32 %v6115, %v6157
    %v6159 = vpop.f32.mrf.mxu0
    %v6160 = vadd.f32 %v6117, %v6159
    %v6161 = vpop.f32.mrf.mxu0
    %v6162 = vadd.f32 %v6119, %v6161
    %v6163 = vpop.f32.mrf.mxu0
    %v6164 = vadd.f32 %v6121, %v6163
    %6165 = vdwg.mxu0
    %6166 = vmatprep.subr.bf16.mxu0 %v5074
    %6167 = vmatpush1.bf16.msra.mxu0 %v5073
    %6168 = vmatprep.subr.bf16.mxu0 %v5066
    %6169 = vmatpush1.bf16.msra.mxu0 %v5065
    %6170 = vmatprep.subr.bf16.mxu0 %v5058
    %6171 = vmatpush1.bf16.msra.mxu0 %v5057
    %6172 = vmatprep.subr.bf16.mxu0 %v5050
    %6173 = vmatpush1.bf16.msra.mxu0 %v5049
    %6174 = vmatprep.subr.bf16.mxu0 %v5042
    %6175 = vmatpush1.bf16.msra.mxu0 %v5041
    %6176 = vmatprep.subr.bf16.mxu0 %v5034
    %6177 = vmatpush1.bf16.msra.mxu0 %v5033
    %6178 = vmatprep.subr.bf16.mxu0 %v5026
    %6179 = vmatpush1.bf16.msra.mxu0 %v5025
    %6180 = vmatprep.subr.bf16.mxu0 %v5018
    %6181 = vmatpush1.bf16.msra.mxu0 %v5017
    %6182 = vmatprep.subr.bf16.mxu0 %v5138
    %6183 = vmatpush2.bf16.msra.mxu0 %v5137
    %6184 = vmatprep.subr.bf16.mxu0 %v5130
    %6185 = vmatpush2.bf16.msra.mxu0 %v5129
    %6186 = vmatprep.subr.bf16.mxu0 %v5122
    %6187 = vmatpush2.bf16.msra.mxu0 %v5121
    %6188 = vmatprep.subr.bf16.mxu0 %v5114
    %6189 = vmatpush2.bf16.msra.mxu0 %v5113
    %6190 = vmatprep.subr.bf16.mxu0 %v5106
    %6191 = vmatpush2.bf16.msra.mxu0 %v5105
    %6192 = vmatprep.subr.bf16.mxu0 %v5098
    %6193 = vmatpush2.bf16.msra.mxu0 %v5097
    %6194 = vmatprep.subr.bf16.mxu0 %v5090
    %6195 = vmatpush2.bf16.msra.mxu0 %v5089
    %6196 = vmatprep.subr.bf16.mxu0 %v5082
    %6197 = vmatpush2.bf16.msra.mxu0 %v5081
    %6198 = vmatprep.mubr.bf16.mxu0 %v3428
    %6199 = vmatmul.mubr.bf16.gmra.mxu0 %v3427
    %v6200 = vpop.f32.mrf.mxu0
    %v6201 = vadd.f32 %v3846, %v6200
    %v6202 = vpop.f32.mrf.mxu0
    %v6203 = vadd.f32 %v3850, %v6202
    %v6204 = vpop.f32.mrf.mxu0
    %v6205 = vadd.f32 %v3846, %v6204
    %v6206 = vpop.f32.mrf.mxu0
    %v6207 = vadd.f32 %v3850, %v6206
    %6208 = vdwg.mxu0
    %6209 = vmatprep.subr.bf16.mxu0 %v5202
    %6210 = vmatpush1.bf16.msra.mxu0 %v5201
    %6211 = vmatprep.subr.bf16.mxu0 %v5194
    %6212 = vmatpush1.bf16.msra.mxu0 %v5193
    %6213 = vmatprep.subr.bf16.mxu0 %v5186
    %6214 = vmatpush1.bf16.msra.mxu0 %v5185
    %6215 = vmatprep.subr.bf16.mxu0 %v5178
    %6216 = vmatpush1.bf16.msra.mxu0 %v5177
    %6217 = vmatprep.subr.bf16.mxu0 %v5170
    %6218 = vmatpush1.bf16.msra.mxu0 %v5169
    %6219 = vmatprep.subr.bf16.mxu0 %v5162
    %6220 = vmatpush1.bf16.msra.mxu0 %v5161
    %6221 = vmatprep.subr.bf16.mxu0 %v5154
    %6222 = vmatpush1.bf16.msra.mxu0 %v5153
    %6223 = vmatprep.subr.bf16.mxu0 %v5146
    %6224 = vmatpush1.bf16.msra.mxu0 %v5145
    %6225 = vmatprep.subr.bf16.mxu0 %v5266
    %6226 = vmatpush2.bf16.msra.mxu0 %v5265
    %6227 = vmatprep.subr.bf16.mxu0 %v5258
    %6228 = vmatpush2.bf16.msra.mxu0 %v5257
    %6229 = vmatprep.subr.bf16.mxu0 %v5250
    %6230 = vmatpush2.bf16.msra.mxu0 %v5249
    %6231 = vmatprep.subr.bf16.mxu0 %v5242
    %6232 = vmatpush2.bf16.msra.mxu0 %v5241
    %6233 = vmatprep.subr.bf16.mxu0 %v5234
    %6234 = vmatpush2.bf16.msra.mxu0 %v5233
    %6235 = vmatprep.subr.bf16.mxu0 %v5226
    %6236 = vmatpush2.bf16.msra.mxu0 %v5225
    %6237 = vmatprep.subr.bf16.mxu0 %v5218
    %6238 = vmatpush2.bf16.msra.mxu0 %v5217
    %6239 = vmatprep.subr.bf16.mxu0 %v5210
    %6240 = vmatpush2.bf16.msra.mxu0 %v5209
    %6241 = vmatprep.mubr.bf16.mxu0 %v3430
    %6242 = vmatmul.mubr.bf16.gmra.mxu0 %v3429
    %v6243 = vpop.f32.mrf.mxu0
    %v6244 = vadd.f32 %v6201, %v6243
    %v6245 = vpop.f32.mrf.mxu0
    %v6246 = vadd.f32 %v6203, %v6245
    %v6247 = vpop.f32.mrf.mxu0
    %v6248 = vadd.f32 %v6205, %v6247
    %v6249 = vpop.f32.mrf.mxu0
    %v6250 = vadd.f32 %v6207, %v6249
    %6251 = vdwg.mxu0
    %6252 = vmatprep.subr.bf16.mxu0 %v5330
    %6253 = vmatpush1.bf16.msra.mxu0 %v5329
    %6254 = vmatprep.subr.bf16.mxu0 %v5322
    %6255 = vmatpush1.bf16.msra.mxu0 %v5321
    %6256 = vmatprep.subr.bf16.mxu0 %v5314
    %6257 = vmatpush1.bf16.msra.mxu0 %v5313
    %6258 = vmatprep.subr.bf16.mxu0 %v5306
    %6259 = vmatpush1.bf16.msra.mxu0 %v5305
    %6260 = vmatprep.subr.bf16.mxu0 %v5298
    %6261 = vmatpush1.bf16.msra.mxu0 %v5297
    %6262 = vmatprep.subr.bf16.mxu0 %v5290
    %6263 = vmatpush1.bf16.msra.mxu0 %v5289
    %6264 = vmatprep.subr.bf16.mxu0 %v5282
    %6265 = vmatpush1.bf16.msra.mxu0 %v5281
    %6266 = vmatprep.subr.bf16.mxu0 %v5274
    %6267 = vmatpush1.bf16.msra.mxu0 %v5273
    %6268 = vmatprep.subr.bf16.mxu0 %v5394
    %6269 = vmatpush2.bf16.msra.mxu0 %v5393
    %6270 = vmatprep.subr.bf16.mxu0 %v5386
    %6271 = vmatpush2.bf16.msra.mxu0 %v5385
    %6272 = vmatprep.subr.bf16.mxu0 %v5378
    %6273 = vmatpush2.bf16.msra.mxu0 %v5377
    %6274 = vmatprep.subr.bf16.mxu0 %v5370
    %6275 = vmatpush2.bf16.msra.mxu0 %v5369
    %6276 = vmatprep.subr.bf16.mxu0 %v5362
    %6277 = vmatpush2.bf16.msra.mxu0 %v5361
    %6278 = vmatprep.subr.bf16.mxu0 %v5354
    %6279 = vmatpush2.bf16.msra.mxu0 %v5353
    %6280 = vmatprep.subr.bf16.mxu0 %v5346
    %6281 = vmatpush2.bf16.msra.mxu0 %v5345
    %6282 = vmatprep.subr.bf16.mxu0 %v5338
    %6283 = vmatpush2.bf16.msra.mxu0 %v5337
    %6284 = vmatprep.mubr.bf16.mxu0 %v3432
    %6285 = vmatmul.mubr.bf16.gmra.mxu0 %v3431
    %v6286 = vpop.f32.mrf.mxu0
    %v6287 = vadd.f32 %v6244, %v6286
    %v6288 = vpop.f32.mrf.mxu0
    %v6289 = vadd.f32 %v6246, %v6288
    %v6290 = vpop.f32.mrf.mxu0
    %v6291 = vadd.f32 %v6248, %v6290
    %v6292 = vpop.f32.mrf.mxu0
    %v6293 = vadd.f32 %v6250, %v6292
    %6294 = vdwg.mxu0
    %v6295 = vadd.f32 %v311, %v312
    %v6296 = vadd.f32 %v6295, %v313
    %v6297 = vadd.f32 %v6296, %v314
    %6298 = vadd.xlane.f32.xlu0 %v6297
    %v6299 = vpop.xlane.xlu0 %6298
    %v6300 = vadd.f32 %v315, %v316
    %v6301 = vadd.f32 %v6300, %v317
    %v6302 = vadd.f32 %v6301, %v318
    %6303 = vadd.xlane.f32.xlu0 %v6302
    %v6304 = vpop.xlane.xlu0 %6303
    %v6305 = vrcp.pop 512.0
    %v6306 = vmul.f32 %v6299, %v6305
    %v6307 = vmul.f32 %v6304, %v6305
    %v6308 = vsub.f32 %v311, %v6306
    %v6309 = vsub.f32 %v312, %v6306
    %v6310 = vsub.f32 %v313, %v6306
    %v6311 = vsub.f32 %v314, %v6306
    %v6312 = vsub.f32 %v315, %v6307
    %v6313 = vsub.f32 %v316, %v6307
    %v6314 = vsub.f32 %v317, %v6307
    %v6315 = vsub.f32 %v318, %v6307
    %v6316 = vmul.f32 %v6308, %v6308
    %v6317 = vmul.f32 %v6309, %v6309
    %v6318 = vmul.f32 %v6310, %v6310
    %v6319 = vmul.f32 %v6311, %v6311
    %v6320 = vmul.f32 %v6312, %v6312
    %v6321 = vmul.f32 %v6313, %v6313
    %v6322 = vmul.f32 %v6314, %v6314
    %v6323 = vmul.f32 %v6315, %v6315
    %v6324 = vadd.f32 %v6316, %v6317
    %v6325 = vadd.f32 %v6324, %v6318
    %v6326 = vadd.f32 %v6325, %v6319
    %6327 = vadd.xlane.f32.xlu0 %v6326
    %v6328 = vpop.xlane.xlu0 %6327
    %v6329 = vadd.f32 %v6320, %v6321
    %v6330 = vadd.f32 %v6329, %v6322
    %v6331 = vadd.f32 %v6330, %v6323
    %6332 = vadd.xlane.f32.xlu0 %v6331
    %v6333 = vpop.xlane.xlu0 %6332
    %v6334 = vmul.f32 %v6328, %v6305
    %v6335 = vmul.f32 %v6333, %v6305
    %v6336 = vadd.f32 %v6334, 1e-06
    %v6337 = vadd.f32 %v6335, 1e-06
    %v6338 = vrsqrt.pop %v6336
    %v6339 = vrsqrt.pop %v6337
    %v6340 = vmul.f32 %v6308, %v6338
    %v6341 = vmul.f32 %v6309, %v6338
    %v6342 = vmul.f32 %v6310, %v6338
    %v6343 = vmul.f32 %v6311, %v6338
    %v6344 = vmul.f32 %v6312, %v6339
    %v6345 = vmul.f32 %v6313, %v6339
    %v6346 = vmul.f32 %v6314, %v6339
    %v6347 = vmul.f32 %v6315, %v6339
    %v6348 = vadd.f32 %v6158, 1.0
    %v6349 = vadd.f32 %v6160, 1.0
    %v6350 = vadd.f32 %v6287, 1.0
    %v6351 = vadd.f32 %v6289, 1.0
    %v6352 = vadd.f32 %v6162, 1.0
    %v6353 = vadd.f32 %v6164, 1.0
    %v6354 = vadd.f32 %v6291, 1.0
    %v6355 = vadd.f32 %v6293, 1.0
    %v6356 = vmul.f32 %v6340, %v6348
    %v6357 = vmul.f32 %v6341, %v6349
    %v6358 = vmul.f32 %v6342, %v6350
    %v6359 = vmul.f32 %v6343, %v6351
    %v6360 = vmul.f32 %v6344, %v6352
    %v6361 = vmul.f32 %v6345, %v6353
    %v6362 = vmul.f32 %v6346, %v6354
    %v6363 = vmul.f32 %v6347, %v6355
    %v6364 = vadd.f32 %v6356, %v5900
    %v6365 = vadd.f32 %v6357, %v5902
    %v6366 = vadd.f32 %v6358, %v6029
    %v6367 = vadd.f32 %v6359, %v6031
    %v6368 = vadd.f32 %v6360, %v5904
    %v6369 = vadd.f32 %v6361, %v5906
    %v6370 = vadd.f32 %v6362, %v6033
    %v6371 = vadd.f32 %v6363, %v6035
    %v6372 = vpack.c.bf16 %v6368, %v6364
    %v6373 = vpack.c.bf16 %v6369, %v6365
    %v6374 = vpack.c.bf16 %v6370, %v6366
    %v6375 = vpack.c.bf16 %v6371, %v6367
    %v6376 = vld [vmem:[#allocation16] sm:$0xff]
    %v6377 = vld [vmem:[#allocation16 + $0x8] sm:$0xff]
    %v6378 = vld [vmem:[#allocation16 + $0x10] sm:$0xff]
    %v6379 = vld [vmem:[#allocation16 + $0x18] sm:$0xff]
    %v6380 = vld [vmem:[#allocation16 + $0x20] sm:$0xff]
    %v6381 = vld [vmem:[#allocation16 + $0x28] sm:$0xff]
    %v6382 = vld [vmem:[#allocation16 + $0x30] sm:$0xff]
    %v6383 = vld [vmem:[#allocation16 + $0x38] sm:$0xff]
    %v6384 = vld [vmem:[#allocation16 + $0x40] sm:$0xff]
    %v6385 = vld [vmem:[#allocation16 + $0x48] sm:$0xff]
    %v6386 = vld [vmem:[#allocation16 + $0x50] sm:$0xff]
    %v6387 = vld [vmem:[#allocation16 + $0x58] sm:$0xff]
    %v6388 = vld [vmem:[#allocation16 + $0x60] sm:$0xff]
    %v6389 = vld [vmem:[#allocation16 + $0x68] sm:$0xff]
    %v6390 = vld [vmem:[#allocation16 + $0x70] sm:$0xff]
    %v6391 = vld [vmem:[#allocation16 + $0x78] sm:$0xff]
    %v6392 = vld [vmem:[#allocation16 + $0x80] sm:$0xff]
    %v6393 = vld [vmem:[#allocation16 + $0x88] sm:$0xff]
    %v6394 = vld [vmem:[#allocation16 + $0x90] sm:$0xff]
    %v6395 = vld [vmem:[#allocation16 + $0x98] sm:$0xff]
    %v6396 = vld [vmem:[#allocation16 + $0xa0] sm:$0xff]
    %v6397 = vld [vmem:[#allocation16 + $0xa8] sm:$0xff]
    %v6398 = vld [vmem:[#allocation16 + $0xb0] sm:$0xff]
    %v6399 = vld [vmem:[#allocation16 + $0xb8] sm:$0xff]
    %v6400 = vld [vmem:[#allocation16 + $0xc0] sm:$0xff]
    %v6401 = vld [vmem:[#allocation16 + $0xc8] sm:$0xff]
    %v6402 = vld [vmem:[#allocation16 + $0xd0] sm:$0xff]
    %v6403 = vld [vmem:[#allocation16 + $0xd8] sm:$0xff]
    %v6404 = vld [vmem:[#allocation16 + $0xe0] sm:$0xff]
    %v6405 = vld [vmem:[#allocation16 + $0xe8] sm:$0xff]
    %v6406 = vld [vmem:[#allocation16 + $0xf0] sm:$0xff]
    %v6407 = vld [vmem:[#allocation16 + $0xf8] sm:$0xff]
    %v6408 = vld [vmem:[#allocation16 + $0x100] sm:$0xff]
    %v6409 = vld [vmem:[#allocation16 + $0x108] sm:$0xff]
    %v6410 = vld [vmem:[#allocation16 + $0x110] sm:$0xff]
    %v6411 = vld [vmem:[#allocation16 + $0x118] sm:$0xff]
    %v6412 = vld [vmem:[#allocation16 + $0x120] sm:$0xff]
    %v6413 = vld [vmem:[#allocation16 + $0x128] sm:$0xff]
    %v6414 = vld [vmem:[#allocation16 + $0x130] sm:$0xff]
    %v6415 = vld [vmem:[#allocation16 + $0x138] sm:$0xff]
    %v6416 = vld [vmem:[#allocation16 + $0x140] sm:$0xff]
    %v6417 = vld [vmem:[#allocation16 + $0x148] sm:$0xff]
    %v6418 = vld [vmem:[#allocation16 + $0x150] sm:$0xff]
    %v6419 = vld [vmem:[#allocation16 + $0x158] sm:$0xff]
    %v6420 = vld [vmem:[#allocation16 + $0x160] sm:$0xff]
    %v6421 = vld [vmem:[#allocation16 + $0x168] sm:$0xff]
    %v6422 = vld [vmem:[#allocation16 + $0x170] sm:$0xff]
    %v6423 = vld [vmem:[#allocation16 + $0x178] sm:$0xff]
    %v6424 = vld [vmem:[#allocation16 + $0x180] sm:$0xff]
    %v6425 = vld [vmem:[#allocation16 + $0x188] sm:$0xff]
    %v6426 = vld [vmem:[#allocation16 + $0x190] sm:$0xff]
    %v6427 = vld [vmem:[#allocation16 + $0x198] sm:$0xff]
    %v6428 = vld [vmem:[#allocation16 + $0x1a0] sm:$0xff]
    %v6429 = vld [vmem:[#allocation16 + $0x1a8] sm:$0xff]
    %v6430 = vld [vmem:[#allocation16 + $0x1b0] sm:$0xff]
    %v6431 = vld [vmem:[#allocation16 + $0x1b8] sm:$0xff]
    %v6432 = vld [vmem:[#allocation16 + $0x1c0] sm:$0xff]
    %v6433 = vld [vmem:[#allocation16 + $0x1c8] sm:$0xff]
    %v6434 = vld [vmem:[#allocation16 + $0x1d0] sm:$0xff]
    %v6435 = vld [vmem:[#allocation16 + $0x1d8] sm:$0xff]
    %v6436 = vld [vmem:[#allocation16 + $0x1e0] sm:$0xff]
    %v6437 = vld [vmem:[#allocation16 + $0x1e8] sm:$0xff]
    %v6438 = vld [vmem:[#allocation16 + $0x1f0] sm:$0xff]
    %v6439 = vld [vmem:[#allocation16 + $0x1f8] sm:$0xff]
    %v6440 = vld [vmem:[#allocation16 + $0x200] sm:$0xff]
    %v6441 = vld [vmem:[#allocation16 + $0x208] sm:$0xff]
    %v6442 = vld [vmem:[#allocation16 + $0x210] sm:$0xff]
    %v6443 = vld [vmem:[#allocation16 + $0x218] sm:$0xff]
    %v6444 = vld [vmem:[#allocation16 + $0x220] sm:$0xff]
    %v6445 = vld [vmem:[#allocation16 + $0x228] sm:$0xff]
    %v6446 = vld [vmem:[#allocation16 + $0x230] sm:$0xff]
    %v6447 = vld [vmem:[#allocation16 + $0x238] sm:$0xff]
    %v6448 = vld [vmem:[#allocation16 + $0x240] sm:$0xff]
    %v6449 = vld [vmem:[#allocation16 + $0x248] sm:$0xff]
    %v6450 = vld [vmem:[#allocation16 + $0x250] sm:$0xff]
    %v6451 = vld [vmem:[#allocation16 + $0x258] sm:$0xff]
    %v6452 = vld [vmem:[#allocation16 + $0x260] sm:$0xff]
    %v6453 = vld [vmem:[#allocation16 + $0x268] sm:$0xff]
    %v6454 = vld [vmem:[#allocation16 + $0x270] sm:$0xff]
    %v6455 = vld [vmem:[#allocation16 + $0x278] sm:$0xff]
    %v6456 = vld [vmem:[#allocation16 + $0x280] sm:$0xff]
    %v6457 = vld [vmem:[#allocation16 + $0x288] sm:$0xff]
    %v6458 = vld [vmem:[#allocation16 + $0x290] sm:$0xff]
    %v6459 = vld [vmem:[#allocation16 + $0x298] sm:$0xff]
    %v6460 = vld [vmem:[#allocation16 + $0x2a0] sm:$0xff]
    %v6461 = vld [vmem:[#allocation16 + $0x2a8] sm:$0xff]
    %v6462 = vld [vmem:[#allocation16 + $0x2b0] sm:$0xff]
    %v6463 = vld [vmem:[#allocation16 + $0x2b8] sm:$0xff]
    %v6464 = vld [vmem:[#allocation16 + $0x2c0] sm:$0xff]
    %v6465 = vld [vmem:[#allocation16 + $0x2c8] sm:$0xff]
    %v6466 = vld [vmem:[#allocation16 + $0x2d0] sm:$0xff]
    %v6467 = vld [vmem:[#allocation16 + $0x2d8] sm:$0xff]
    %v6468 = vld [vmem:[#allocation16 + $0x2e0] sm:$0xff]
    %v6469 = vld [vmem:[#allocation16 + $0x2e8] sm:$0xff]
    %v6470 = vld [vmem:[#allocation16 + $0x2f0] sm:$0xff]
    %v6471 = vld [vmem:[#allocation16 + $0x2f8] sm:$0xff]
    %v6472 = vld [vmem:[#allocation16 + $0x300] sm:$0xff]
    %v6473 = vld [vmem:[#allocation16 + $0x308] sm:$0xff]
    %v6474 = vld [vmem:[#allocation16 + $0x310] sm:$0xff]
    %v6475 = vld [vmem:[#allocation16 + $0x318] sm:$0xff]
    %v6476 = vld [vmem:[#allocation16 + $0x320] sm:$0xff]
    %v6477 = vld [vmem:[#allocation16 + $0x328] sm:$0xff]
    %v6478 = vld [vmem:[#allocation16 + $0x330] sm:$0xff]
    %v6479 = vld [vmem:[#allocation16 + $0x338] sm:$0xff]
    %v6480 = vld [vmem:[#allocation16 + $0x340] sm:$0xff]
    %v6481 = vld [vmem:[#allocation16 + $0x348] sm:$0xff]
    %v6482 = vld [vmem:[#allocation16 + $0x350] sm:$0xff]
    %v6483 = vld [vmem:[#allocation16 + $0x358] sm:$0xff]
    %v6484 = vld [vmem:[#allocation16 + $0x360] sm:$0xff]
    %v6485 = vld [vmem:[#allocation16 + $0x368] sm:$0xff]
    %v6486 = vld [vmem:[#allocation16 + $0x370] sm:$0xff]
    %v6487 = vld [vmem:[#allocation16 + $0x378] sm:$0xff]
    %v6488 = vld [vmem:[#allocation16 + $0x380] sm:$0xff]
    %v6489 = vld [vmem:[#allocation16 + $0x388] sm:$0xff]
    %v6490 = vld [vmem:[#allocation16 + $0x390] sm:$0xff]
    %v6491 = vld [vmem:[#allocation16 + $0x398] sm:$0xff]
    %v6492 = vld [vmem:[#allocation16 + $0x3a0] sm:$0xff]
    %v6493 = vld [vmem:[#allocation16 + $0x3a8] sm:$0xff]
    %v6494 = vld [vmem:[#allocation16 + $0x3b0] sm:$0xff]
    %v6495 = vld [vmem:[#allocation16 + $0x3b8] sm:$0xff]
    %v6496 = vld [vmem:[#allocation16 + $0x3c0] sm:$0xff]
    %v6497 = vld [vmem:[#allocation16 + $0x3c8] sm:$0xff]
    %v6498 = vld [vmem:[#allocation16 + $0x3d0] sm:$0xff]
    %v6499 = vld [vmem:[#allocation16 + $0x3d8] sm:$0xff]
    %v6500 = vld [vmem:[#allocation16 + $0x3e0] sm:$0xff]
    %v6501 = vld [vmem:[#allocation16 + $0x3e8] sm:$0xff]
    %v6502 = vld [vmem:[#allocation16 + $0x3f0] sm:$0xff]
    %v6503 = vld [vmem:[#allocation16 + $0x3f8] sm:$0xff]
    %v6504 = vld [vmem:[#allocation16 + $0x400] sm:$0xff]
    %v6505 = vld [vmem:[#allocation16 + $0x408] sm:$0xff]
    %v6506 = vld [vmem:[#allocation16 + $0x410] sm:$0xff]
    %v6507 = vld [vmem:[#allocation16 + $0x418] sm:$0xff]
    %v6508 = vld [vmem:[#allocation16 + $0x420] sm:$0xff]
    %v6509 = vld [vmem:[#allocation16 + $0x428] sm:$0xff]
    %v6510 = vld [vmem:[#allocation16 + $0x430] sm:$0xff]
    %v6511 = vld [vmem:[#allocation16 + $0x438] sm:$0xff]
    %v6512 = vld [vmem:[#allocation16 + $0x440] sm:$0xff]
    %v6513 = vld [vmem:[#allocation16 + $0x448] sm:$0xff]
    %v6514 = vld [vmem:[#allocation16 + $0x450] sm:$0xff]
    %v6515 = vld [vmem:[#allocation16 + $0x458] sm:$0xff]
    %v6516 = vld [vmem:[#allocation16 + $0x460] sm:$0xff]
    %v6517 = vld [vmem:[#allocation16 + $0x468] sm:$0xff]
    %v6518 = vld [vmem:[#allocation16 + $0x470] sm:$0xff]
    %v6519 = vld [vmem:[#allocation16 + $0x478] sm:$0xff]
    %v6520 = vld [vmem:[#allocation16 + $0x480] sm:$0xff]
    %v6521 = vld [vmem:[#allocation16 + $0x488] sm:$0xff]
    %v6522 = vld [vmem:[#allocation16 + $0x490] sm:$0xff]
    %v6523 = vld [vmem:[#allocation16 + $0x498] sm:$0xff]
    %v6524 = vld [vmem:[#allocation16 + $0x4a0] sm:$0xff]
    %v6525 = vld [vmem:[#allocation16 + $0x4a8] sm:$0xff]
    %v6526 = vld [vmem:[#allocation16 + $0x4b0] sm:$0xff]
    %v6527 = vld [vmem:[#allocation16 + $0x4b8] sm:$0xff]
    %v6528 = vld [vmem:[#allocation16 + $0x4c0] sm:$0xff]
    %v6529 = vld [vmem:[#allocation16 + $0x4c8] sm:$0xff]
    %v6530 = vld [vmem:[#allocation16 + $0x4d0] sm:$0xff]
    %v6531 = vld [vmem:[#allocation16 + $0x4d8] sm:$0xff]
    %v6532 = vld [vmem:[#allocation16 + $0x4e0] sm:$0xff]
    %v6533 = vld [vmem:[#allocation16 + $0x4e8] sm:$0xff]
    %v6534 = vld [vmem:[#allocation16 + $0x4f0] sm:$0xff]
    %v6535 = vld [vmem:[#allocation16 + $0x4f8] sm:$0xff]
    %v6536 = vld [vmem:[#allocation16 + $0x500] sm:$0xff]
    %v6537 = vld [vmem:[#allocation16 + $0x508] sm:$0xff]
    %v6538 = vld [vmem:[#allocation16 + $0x510] sm:$0xff]
    %v6539 = vld [vmem:[#allocation16 + $0x518] sm:$0xff]
    %v6540 = vld [vmem:[#allocation16 + $0x520] sm:$0xff]
    %v6541 = vld [vmem:[#allocation16 + $0x528] sm:$0xff]
    %v6542 = vld [vmem:[#allocation16 + $0x530] sm:$0xff]
    %v6543 = vld [vmem:[#allocation16 + $0x538] sm:$0xff]
    %v6544 = vld [vmem:[#allocation16 + $0x540] sm:$0xff]
    %v6545 = vld [vmem:[#allocation16 + $0x548] sm:$0xff]
    %v6546 = vld [vmem:[#allocation16 + $0x550] sm:$0xff]
    %v6547 = vld [vmem:[#allocation16 + $0x558] sm:$0xff]
    %v6548 = vld [vmem:[#allocation16 + $0x560] sm:$0xff]
    %v6549 = vld [vmem:[#allocation16 + $0x568] sm:$0xff]
    %v6550 = vld [vmem:[#allocation16 + $0x570] sm:$0xff]
    %v6551 = vld [vmem:[#allocation16 + $0x578] sm:$0xff]
    %v6552 = vld [vmem:[#allocation16 + $0x580] sm:$0xff]
    %v6553 = vld [vmem:[#allocation16 + $0x588] sm:$0xff]
    %v6554 = vld [vmem:[#allocation16 + $0x590] sm:$0xff]
    %v6555 = vld [vmem:[#allocation16 + $0x598] sm:$0xff]
    %v6556 = vld [vmem:[#allocation16 + $0x5a0] sm:$0xff]
    %v6557 = vld [vmem:[#allocation16 + $0x5a8] sm:$0xff]
    %v6558 = vld [vmem:[#allocation16 + $0x5b0] sm:$0xff]
    %v6559 = vld [vmem:[#allocation16 + $0x5b8] sm:$0xff]
    %v6560 = vld [vmem:[#allocation16 + $0x5c0] sm:$0xff]
    %v6561 = vld [vmem:[#allocation16 + $0x5c8] sm:$0xff]
    %v6562 = vld [vmem:[#allocation16 + $0x5d0] sm:$0xff]
    %v6563 = vld [vmem:[#allocation16 + $0x5d8] sm:$0xff]
    %v6564 = vld [vmem:[#allocation16 + $0x5e0] sm:$0xff]
    %v6565 = vld [vmem:[#allocation16 + $0x5e8] sm:$0xff]
    %v6566 = vld [vmem:[#allocation16 + $0x5f0] sm:$0xff]
    %v6567 = vld [vmem:[#allocation16 + $0x5f8] sm:$0xff]
    %v6568 = vld [vmem:[#allocation16 + $0x600] sm:$0xff]
    %v6569 = vld [vmem:[#allocation16 + $0x608] sm:$0xff]
    %v6570 = vld [vmem:[#allocation16 + $0x610] sm:$0xff]
    %v6571 = vld [vmem:[#allocation16 + $0x618] sm:$0xff]
    %v6572 = vld [vmem:[#allocation16 + $0x620] sm:$0xff]
    %v6573 = vld [vmem:[#allocation16 + $0x628] sm:$0xff]
    %v6574 = vld [vmem:[#allocation16 + $0x630] sm:$0xff]
    %v6575 = vld [vmem:[#allocation16 + $0x638] sm:$0xff]
    %v6576 = vld [vmem:[#allocation16 + $0x640] sm:$0xff]
    %v6577 = vld [vmem:[#allocation16 + $0x648] sm:$0xff]
    %v6578 = vld [vmem:[#allocation16 + $0x650] sm:$0xff]
    %v6579 = vld [vmem:[#allocation16 + $0x658] sm:$0xff]
    %v6580 = vld [vmem:[#allocation16 + $0x660] sm:$0xff]
    %v6581 = vld [vmem:[#allocation16 + $0x668] sm:$0xff]
    %v6582 = vld [vmem:[#allocation16 + $0x670] sm:$0xff]
    %v6583 = vld [vmem:[#allocation16 + $0x678] sm:$0xff]
    %v6584 = vld [vmem:[#allocation16 + $0x680] sm:$0xff]
    %v6585 = vld [vmem:[#allocation16 + $0x688] sm:$0xff]
    %v6586 = vld [vmem:[#allocation16 + $0x690] sm:$0xff]
    %v6587 = vld [vmem:[#allocation16 + $0x698] sm:$0xff]
    %v6588 = vld [vmem:[#allocation16 + $0x6a0] sm:$0xff]
    %v6589 = vld [vmem:[#allocation16 + $0x6a8] sm:$0xff]
    %v6590 = vld [vmem:[#allocation16 + $0x6b0] sm:$0xff]
    %v6591 = vld [vmem:[#allocation16 + $0x6b8] sm:$0xff]
    %v6592 = vld [vmem:[#allocation16 + $0x6c0] sm:$0xff]
    %v6593 = vld [vmem:[#allocation16 + $0x6c8] sm:$0xff]
    %v6594 = vld [vmem:[#allocation16 + $0x6d0] sm:$0xff]
    %v6595 = vld [vmem:[#allocation16 + $0x6d8] sm:$0xff]
    %v6596 = vld [vmem:[#allocation16 + $0x6e0] sm:$0xff]
    %v6597 = vld [vmem:[#allocation16 + $0x6e8] sm:$0xff]
    %v6598 = vld [vmem:[#allocation16 + $0x6f0] sm:$0xff]
    %v6599 = vld [vmem:[#allocation16 + $0x6f8] sm:$0xff]
    %v6600 = vld [vmem:[#allocation16 + $0x700] sm:$0xff]
    %v6601 = vld [vmem:[#allocation16 + $0x708] sm:$0xff]
    %v6602 = vld [vmem:[#allocation16 + $0x710] sm:$0xff]
    %v6603 = vld [vmem:[#allocation16 + $0x718] sm:$0xff]
    %v6604 = vld [vmem:[#allocation16 + $0x720] sm:$0xff]
    %v6605 = vld [vmem:[#allocation16 + $0x728] sm:$0xff]
    %v6606 = vld [vmem:[#allocation16 + $0x730] sm:$0xff]
    %v6607 = vld [vmem:[#allocation16 + $0x738] sm:$0xff]
    %v6608 = vld [vmem:[#allocation16 + $0x740] sm:$0xff]
    %v6609 = vld [vmem:[#allocation16 + $0x748] sm:$0xff]
    %v6610 = vld [vmem:[#allocation16 + $0x750] sm:$0xff]
    %v6611 = vld [vmem:[#allocation16 + $0x758] sm:$0xff]
    %v6612 = vld [vmem:[#allocation16 + $0x760] sm:$0xff]
    %v6613 = vld [vmem:[#allocation16 + $0x768] sm:$0xff]
    %v6614 = vld [vmem:[#allocation16 + $0x770] sm:$0xff]
    %v6615 = vld [vmem:[#allocation16 + $0x778] sm:$0xff]
    %v6616 = vld [vmem:[#allocation16 + $0x780] sm:$0xff]
    %v6617 = vld [vmem:[#allocation16 + $0x788] sm:$0xff]
    %v6618 = vld [vmem:[#allocation16 + $0x790] sm:$0xff]
    %v6619 = vld [vmem:[#allocation16 + $0x798] sm:$0xff]
    %v6620 = vld [vmem:[#allocation16 + $0x7a0] sm:$0xff]
    %v6621 = vld [vmem:[#allocation16 + $0x7a8] sm:$0xff]
    %v6622 = vld [vmem:[#allocation16 + $0x7b0] sm:$0xff]
    %v6623 = vld [vmem:[#allocation16 + $0x7b8] sm:$0xff]
    %v6624 = vld [vmem:[#allocation16 + $0x7c0] sm:$0xff]
    %v6625 = vld [vmem:[#allocation16 + $0x7c8] sm:$0xff]
    %v6626 = vld [vmem:[#allocation16 + $0x7d0] sm:$0xff]
    %v6627 = vld [vmem:[#allocation16 + $0x7d8] sm:$0xff]
    %v6628 = vld [vmem:[#allocation16 + $0x7e0] sm:$0xff]
    %v6629 = vld [vmem:[#allocation16 + $0x7e8] sm:$0xff]
    %v6630 = vld [vmem:[#allocation16 + $0x7f0] sm:$0xff]
    %v6631 = vld [vmem:[#allocation16 + $0x7f8] sm:$0xff]
    %v6632 = vld [vmem:[#allocation16 + $0x800] sm:$0xff]
    %v6633 = vld [vmem:[#allocation16 + $0x808] sm:$0xff]
    %v6634 = vld [vmem:[#allocation16 + $0x810] sm:$0xff]
    %v6635 = vld [vmem:[#allocation16 + $0x818] sm:$0xff]
    %v6636 = vld [vmem:[#allocation16 + $0x820] sm:$0xff]
    %v6637 = vld [vmem:[#allocation16 + $0x828] sm:$0xff]
    %v6638 = vld [vmem:[#allocation16 + $0x830] sm:$0xff]
    %v6639 = vld [vmem:[#allocation16 + $0x838] sm:$0xff]
    %v6640 = vld [vmem:[#allocation16 + $0x840] sm:$0xff]
    %v6641 = vld [vmem:[#allocation16 + $0x848] sm:$0xff]
    %v6642 = vld [vmem:[#allocation16 + $0x850] sm:$0xff]
    %v6643 = vld [vmem:[#allocation16 + $0x858] sm:$0xff]
    %v6644 = vld [vmem:[#allocation16 + $0x860] sm:$0xff]
    %v6645 = vld [vmem:[#allocation16 + $0x868] sm:$0xff]
    %v6646 = vld [vmem:[#allocation16 + $0x870] sm:$0xff]
    %v6647 = vld [vmem:[#allocation16 + $0x878] sm:$0xff]
    %v6648 = vld [vmem:[#allocation16 + $0x880] sm:$0xff]
    %v6649 = vld [vmem:[#allocation16 + $0x888] sm:$0xff]
    %v6650 = vld [vmem:[#allocation16 + $0x890] sm:$0xff]
    %v6651 = vld [vmem:[#allocation16 + $0x898] sm:$0xff]
    %v6652 = vld [vmem:[#allocation16 + $0x8a0] sm:$0xff]
    %v6653 = vld [vmem:[#allocation16 + $0x8a8] sm:$0xff]
    %v6654 = vld [vmem:[#allocation16 + $0x8b0] sm:$0xff]
    %v6655 = vld [vmem:[#allocation16 + $0x8b8] sm:$0xff]
    %v6656 = vld [vmem:[#allocation16 + $0x8c0] sm:$0xff]
    %v6657 = vld [vmem:[#allocation16 + $0x8c8] sm:$0xff]
    %v6658 = vld [vmem:[#allocation16 + $0x8d0] sm:$0xff]
    %v6659 = vld [vmem:[#allocation16 + $0x8d8] sm:$0xff]
    %v6660 = vld [vmem:[#allocation16 + $0x8e0] sm:$0xff]
    %v6661 = vld [vmem:[#allocation16 + $0x8e8] sm:$0xff]
    %v6662 = vld [vmem:[#allocation16 + $0x8f0] sm:$0xff]
    %v6663 = vld [vmem:[#allocation16 + $0x8f8] sm:$0xff]
    %v6664 = vld [vmem:[#allocation16 + $0x900] sm:$0xff]
    %v6665 = vld [vmem:[#allocation16 + $0x908] sm:$0xff]
    %v6666 = vld [vmem:[#allocation16 + $0x910] sm:$0xff]
    %v6667 = vld [vmem:[#allocation16 + $0x918] sm:$0xff]
    %v6668 = vld [vmem:[#allocation16 + $0x920] sm:$0xff]
    %v6669 = vld [vmem:[#allocation16 + $0x928] sm:$0xff]
    %v6670 = vld [vmem:[#allocation16 + $0x930] sm:$0xff]
    %v6671 = vld [vmem:[#allocation16 + $0x938] sm:$0xff]
    %v6672 = vld [vmem:[#allocation16 + $0x940] sm:$0xff]
    %v6673 = vld [vmem:[#allocation16 + $0x948] sm:$0xff]
    %v6674 = vld [vmem:[#allocation16 + $0x950] sm:$0xff]
    %v6675 = vld [vmem:[#allocation16 + $0x958] sm:$0xff]
    %v6676 = vld [vmem:[#allocation16 + $0x960] sm:$0xff]
    %v6677 = vld [vmem:[#allocation16 + $0x968] sm:$0xff]
    %v6678 = vld [vmem:[#allocation16 + $0x970] sm:$0xff]
    %v6679 = vld [vmem:[#allocation16 + $0x978] sm:$0xff]
    %v6680 = vld [vmem:[#allocation16 + $0x980] sm:$0xff]
    %v6681 = vld [vmem:[#allocation16 + $0x988] sm:$0xff]
    %v6682 = vld [vmem:[#allocation16 + $0x990] sm:$0xff]
    %v6683 = vld [vmem:[#allocation16 + $0x998] sm:$0xff]
    %v6684 = vld [vmem:[#allocation16 + $0x9a0] sm:$0xff]
    %v6685 = vld [vmem:[#allocation16 + $0x9a8] sm:$0xff]
    %v6686 = vld [vmem:[#allocation16 + $0x9b0] sm:$0xff]
    %v6687 = vld [vmem:[#allocation16 + $0x9b8] sm:$0xff]
    %v6688 = vld [vmem:[#allocation16 + $0x9c0] sm:$0xff]
    %v6689 = vld [vmem:[#allocation16 + $0x9c8] sm:$0xff]
    %v6690 = vld [vmem:[#allocation16 + $0x9d0] sm:$0xff]
    %v6691 = vld [vmem:[#allocation16 + $0x9d8] sm:$0xff]
    %v6692 = vld [vmem:[#allocation16 + $0x9e0] sm:$0xff]
    %v6693 = vld [vmem:[#allocation16 + $0x9e8] sm:$0xff]
    %v6694 = vld [vmem:[#allocation16 + $0x9f0] sm:$0xff]
    %v6695 = vld [vmem:[#allocation16 + $0x9f8] sm:$0xff]
    %v6696 = vld [vmem:[#allocation16 + $0xa00] sm:$0xff]
    %v6697 = vld [vmem:[#allocation16 + $0xa08] sm:$0xff]
    %v6698 = vld [vmem:[#allocation16 + $0xa10] sm:$0xff]
    %v6699 = vld [vmem:[#allocation16 + $0xa18] sm:$0xff]
    %v6700 = vld [vmem:[#allocation16 + $0xa20] sm:$0xff]
    %v6701 = vld [vmem:[#allocation16 + $0xa28] sm:$0xff]
    %v6702 = vld [vmem:[#allocation16 + $0xa30] sm:$0xff]
    %v6703 = vld [vmem:[#allocation16 + $0xa38] sm:$0xff]
    %v6704 = vld [vmem:[#allocation16 + $0xa40] sm:$0xff]
    %v6705 = vld [vmem:[#allocation16 + $0xa48] sm:$0xff]
    %v6706 = vld [vmem:[#allocation16 + $0xa50] sm:$0xff]
    %v6707 = vld [vmem:[#allocation16 + $0xa58] sm:$0xff]
    %v6708 = vld [vmem:[#allocation16 + $0xa60] sm:$0xff]
    %v6709 = vld [vmem:[#allocation16 + $0xa68] sm:$0xff]
    %v6710 = vld [vmem:[#allocation16 + $0xa70] sm:$0xff]
    %v6711 = vld [vmem:[#allocation16 + $0xa78] sm:$0xff]
    %v6712 = vld [vmem:[#allocation16 + $0xa80] sm:$0xff]
    %v6713 = vld [vmem:[#allocation16 + $0xa88] sm:$0xff]
    %v6714 = vld [vmem:[#allocation16 + $0xa90] sm:$0xff]
    %v6715 = vld [vmem:[#allocation16 + $0xa98] sm:$0xff]
    %v6716 = vld [vmem:[#allocation16 + $0xaa0] sm:$0xff]
    %v6717 = vld [vmem:[#allocation16 + $0xaa8] sm:$0xff]
    %v6718 = vld [vmem:[#allocation16 + $0xab0] sm:$0xff]
    %v6719 = vld [vmem:[#allocation16 + $0xab8] sm:$0xff]
    %v6720 = vld [vmem:[#allocation16 + $0xac0] sm:$0xff]
    %v6721 = vld [vmem:[#allocation16 + $0xac8] sm:$0xff]
    %v6722 = vld [vmem:[#allocation16 + $0xad0] sm:$0xff]
    %v6723 = vld [vmem:[#allocation16 + $0xad8] sm:$0xff]
    %v6724 = vld [vmem:[#allocation16 + $0xae0] sm:$0xff]
    %v6725 = vld [vmem:[#allocation16 + $0xae8] sm:$0xff]
    %v6726 = vld [vmem:[#allocation16 + $0xaf0] sm:$0xff]
    %v6727 = vld [vmem:[#allocation16 + $0xaf8] sm:$0xff]
    %v6728 = vld [vmem:[#allocation16 + $0xb00] sm:$0xff]
    %v6729 = vld [vmem:[#allocation16 + $0xb08] sm:$0xff]
    %v6730 = vld [vmem:[#allocation16 + $0xb10] sm:$0xff]
    %v6731 = vld [vmem:[#allocation16 + $0xb18] sm:$0xff]
    %v6732 = vld [vmem:[#allocation16 + $0xb20] sm:$0xff]
    %v6733 = vld [vmem:[#allocation16 + $0xb28] sm:$0xff]
    %v6734 = vld [vmem:[#allocation16 + $0xb30] sm:$0xff]
    %v6735 = vld [vmem:[#allocation16 + $0xb38] sm:$0xff]
    %v6736 = vld [vmem:[#allocation16 + $0xb40] sm:$0xff]
    %v6737 = vld [vmem:[#allocation16 + $0xb48] sm:$0xff]
    %v6738 = vld [vmem:[#allocation16 + $0xb50] sm:$0xff]
    %v6739 = vld [vmem:[#allocation16 + $0xb58] sm:$0xff]
    %v6740 = vld [vmem:[#allocation16 + $0xb60] sm:$0xff]
    %v6741 = vld [vmem:[#allocation16 + $0xb68] sm:$0xff]
    %v6742 = vld [vmem:[#allocation16 + $0xb70] sm:$0xff]
    %v6743 = vld [vmem:[#allocation16 + $0xb78] sm:$0xff]
    %v6744 = vld [vmem:[#allocation16 + $0xb80] sm:$0xff]
    %v6745 = vld [vmem:[#allocation16 + $0xb88] sm:$0xff]
    %v6746 = vld [vmem:[#allocation16 + $0xb90] sm:$0xff]
    %v6747 = vld [vmem:[#allocation16 + $0xb98] sm:$0xff]
    %v6748 = vld [vmem:[#allocation16 + $0xba0] sm:$0xff]
    %v6749 = vld [vmem:[#allocation16 + $0xba8] sm:$0xff]
    %v6750 = vld [vmem:[#allocation16 + $0xbb0] sm:$0xff]
    %v6751 = vld [vmem:[#allocation16 + $0xbb8] sm:$0xff]
    %v6752 = vld [vmem:[#allocation16 + $0xbc0] sm:$0xff]
    %v6753 = vld [vmem:[#allocation16 + $0xbc8] sm:$0xff]
    %v6754 = vld [vmem:[#allocation16 + $0xbd0] sm:$0xff]
    %v6755 = vld [vmem:[#allocation16 + $0xbd8] sm:$0xff]
    %v6756 = vld [vmem:[#allocation16 + $0xbe0] sm:$0xff]
    %v6757 = vld [vmem:[#allocation16 + $0xbe8] sm:$0xff]
    %v6758 = vld [vmem:[#allocation16 + $0xbf0] sm:$0xff]
    %v6759 = vld [vmem:[#allocation16 + $0xbf8] sm:$0xff]
    %v6760 = vld [vmem:[#allocation17] sm:$0xff]
    %v6761 = vld [vmem:[#allocation17 + $0x8] sm:$0xf]
    %v6764 = vlaneseq
    %v6765 = vshrl.u32 %v6764, 7
    %v6766 = vsub.s32 0, %v6765
    %v6767 = vrot.slane %v6760, %v6766
    %v6768 = vlaneseq
    %v6769 = vshrl.u32 %v6768, 7
    %v6770 = vsub.s32 1, %v6769
    %v6771 = vrot.slane %v6760, %v6770
    %v6772 = vlaneseq
    %v6773 = vshrl.u32 %v6772, 7
    %v6774 = vsub.s32 2, %v6773
    %v6775 = vrot.slane %v6760, %v6774
    %v6776 = vlaneseq
    %v6777 = vshrl.u32 %v6776, 7
    %v6778 = vsub.s32 3, %v6777
    %v6779 = vrot.slane %v6760, %v6778
    %v6780 = vlaneseq
    %v6781 = vshrl.u32 %v6780, 7
    %v6782 = vsub.s32 4, %v6781
    %v6783 = vrot.slane %v6760, %v6782
    %v6784 = vlaneseq
    %v6785 = vshrl.u32 %v6784, 7
    %v6786 = vsub.s32 5, %v6785
    %v6787 = vrot.slane %v6760, %v6786
    %v6788 = vlaneseq
    %v6789 = vshrl.u32 %v6788, 7
    %v6790 = vsub.s32 6, %v6789
    %v6791 = vrot.slane %v6760, %v6790
    %v6792 = vlaneseq
    %v6793 = vshrl.u32 %v6792, 7
    %v6794 = vsub.s32 7, %v6793
    %v6795 = vrot.slane %v6760, %v6794
    %v6796 = vlaneseq
    %v6797 = vshrl.u32 %v6796, 7
    %v6798 = vsub.s32 0, %v6797
    %v6799 = vrot.slane %v6761, %v6798
    %v6800 = vlaneseq
    %v6801 = vshrl.u32 %v6800, 7
    %v6802 = vsub.s32 1, %v6801
    %v6803 = vrot.slane %v6761, %v6802
    %v6804 = vlaneseq
    %v6805 = vshrl.u32 %v6804, 7
    %v6806 = vsub.s32 2, %v6805
    %v6807 = vrot.slane %v6761, %v6806
    %v6808 = vlaneseq
    %v6809 = vshrl.u32 %v6808, 7
    %v6810 = vsub.s32 3, %v6809
    %v6811 = vrot.slane %v6761, %v6810
    %v7208 = vunpack.c.l.b16 %v6376
    %v7209 = vunpack.c.h.b16 %v6376
    %v7210 = vunpack.c.l.b16 %v6377
    %v7211 = vunpack.c.h.b16 %v6377
    %v7212 = vunpack.c.l.b16 %v6378
    %v7213 = vunpack.c.h.b16 %v6378
    %v7214 = vunpack.c.l.b16 %v6379
    %v7215 = vunpack.c.h.b16 %v6379
    %v7216 = vunpack.c.l.b16 %v6380
    %v7217 = vunpack.c.h.b16 %v6380
    %v7218 = vunpack.c.l.b16 %v6381
    %v7219 = vunpack.c.h.b16 %v6381
    %v7220 = vunpack.c.l.b16 %v6382
    %v7221 = vunpack.c.h.b16 %v6382
    %v7222 = vunpack.c.l.b16 %v6383
    %v7223 = vunpack.c.h.b16 %v6383
    %v7224 = vunpack.c.l.b16 %v6384
    %v7225 = vunpack.c.h.b16 %v6384
    %v7226 = vunpack.c.l.b16 %v6385
    %v7227 = vunpack.c.h.b16 %v6385
    %v7228 = vunpack.c.l.b16 %v6386
    %v7229 = vunpack.c.h.b16 %v6386
    %v7230 = vunpack.c.l.b16 %v6387
    %v7231 = vunpack.c.h.b16 %v6387
    %v7232 = vunpack.c.l.b16 %v6388
    %v7233 = vunpack.c.h.b16 %v6388
    %v7234 = vunpack.c.l.b16 %v6389
    %v7235 = vunpack.c.h.b16 %v6389
    %v7236 = vunpack.c.l.b16 %v6390
    %v7237 = vunpack.c.h.b16 %v6390
    %v7238 = vunpack.c.l.b16 %v6391
    %v7239 = vunpack.c.h.b16 %v6391
    %v7240 = vunpack.c.l.b16 %v6392
    %v7241 = vunpack.c.h.b16 %v6392
    %v7242 = vunpack.c.l.b16 %v6393
    %v7243 = vunpack.c.h.b16 %v6393
    %v7244 = vunpack.c.l.b16 %v6394
    %v7245 = vunpack.c.h.b16 %v6394
    %v7246 = vunpack.c.l.b16 %v6395
    %v7247 = vunpack.c.h.b16 %v6395
    %v7248 = vunpack.c.l.b16 %v6396
    %v7249 = vunpack.c.h.b16 %v6396
    %v7250 = vunpack.c.l.b16 %v6397
    %v7251 = vunpack.c.h.b16 %v6397
    %v7252 = vunpack.c.l.b16 %v6398
    %v7253 = vunpack.c.h.b16 %v6398
    %v7254 = vunpack.c.l.b16 %v6399
    %v7255 = vunpack.c.h.b16 %v6399
    %v7256 = vunpack.c.l.b16 %v6400
    %v7257 = vunpack.c.h.b16 %v6400
    %v7258 = vunpack.c.l.b16 %v6401
    %v7259 = vunpack.c.h.b16 %v6401
    %v7260 = vunpack.c.l.b16 %v6402
    %v7261 = vunpack.c.h.b16 %v6402
    %v7262 = vunpack.c.l.b16 %v6403
    %v7263 = vunpack.c.h.b16 %v6403
    %v7264 = vunpack.c.l.b16 %v6404
    %v7265 = vunpack.c.h.b16 %v6404
    %v7266 = vunpack.c.l.b16 %v6405
    %v7267 = vunpack.c.h.b16 %v6405
    %v7268 = vunpack.c.l.b16 %v6406
    %v7269 = vunpack.c.h.b16 %v6406
    %v7270 = vunpack.c.l.b16 %v6407
    %v7271 = vunpack.c.h.b16 %v6407
    %v7272 = vunpack.c.l.b16 %v6408
    %v7273 = vunpack.c.h.b16 %v6408
    %v7274 = vunpack.c.l.b16 %v6409
    %v7275 = vunpack.c.h.b16 %v6409
    %v7276 = vunpack.c.l.b16 %v6410
    %v7277 = vunpack.c.h.b16 %v6410
    %v7278 = vunpack.c.l.b16 %v6411
    %v7279 = vunpack.c.h.b16 %v6411
    %v7280 = vunpack.c.l.b16 %v6412
    %v7281 = vunpack.c.h.b16 %v6412
    %v7282 = vunpack.c.l.b16 %v6413
    %v7283 = vunpack.c.h.b16 %v6413
    %v7284 = vunpack.c.l.b16 %v6414
    %v7285 = vunpack.c.h.b16 %v6414
    %v7286 = vunpack.c.l.b16 %v6415
    %v7287 = vunpack.c.h.b16 %v6415
    %v7288 = vunpack.c.l.b16 %v6416
    %v7289 = vunpack.c.h.b16 %v6416
    %v7290 = vunpack.c.l.b16 %v6417
    %v7291 = vunpack.c.h.b16 %v6417
    %v7292 = vunpack.c.l.b16 %v6418
    %v7293 = vunpack.c.h.b16 %v6418
    %v7294 = vunpack.c.l.b16 %v6419
    %v7295 = vunpack.c.h.b16 %v6419
    %v7296 = vunpack.c.l.b16 %v6420
    %v7297 = vunpack.c.h.b16 %v6420
    %v7298 = vunpack.c.l.b16 %v6421
    %v7299 = vunpack.c.h.b16 %v6421
    %v7300 = vunpack.c.l.b16 %v6422
    %v7301 = vunpack.c.h.b16 %v6422
    %v7302 = vunpack.c.l.b16 %v6423
    %v7303 = vunpack.c.h.b16 %v6423
    %v7304 = vunpack.c.l.b16 %v6424
    %v7305 = vunpack.c.h.b16 %v6424
    %v7306 = vunpack.c.l.b16 %v6425
    %v7307 = vunpack.c.h.b16 %v6425
    %v7308 = vunpack.c.l.b16 %v6426
    %v7309 = vunpack.c.h.b16 %v6426
    %v7310 = vunpack.c.l.b16 %v6427
    %v7311 = vunpack.c.h.b16 %v6427
    %v7312 = vunpack.c.l.b16 %v6428
    %v7313 = vunpack.c.h.b16 %v6428
    %v7314 = vunpack.c.l.b16 %v6429
    %v7315 = vunpack.c.h.b16 %v6429
    %v7316 = vunpack.c.l.b16 %v6430
    %v7317 = vunpack.c.h.b16 %v6430
    %v7318 = vunpack.c.l.b16 %v6431
    %v7319 = vunpack.c.h.b16 %v6431
    %v7320 = vunpack.c.l.b16 %v6432
    %v7321 = vunpack.c.h.b16 %v6432
    %v7322 = vunpack.c.l.b16 %v6433
    %v7323 = vunpack.c.h.b16 %v6433
    %v7324 = vunpack.c.l.b16 %v6434
    %v7325 = vunpack.c.h.b16 %v6434
    %v7326 = vunpack.c.l.b16 %v6435
    %v7327 = vunpack.c.h.b16 %v6435
    %v7328 = vunpack.c.l.b16 %v6436
    %v7329 = vunpack.c.h.b16 %v6436
    %v7330 = vunpack.c.l.b16 %v6437
    %v7331 = vunpack.c.h.b16 %v6437
    %v7332 = vunpack.c.l.b16 %v6438
    %v7333 = vunpack.c.h.b16 %v6438
    %v7334 = vunpack.c.l.b16 %v6439
    %v7335 = vunpack.c.h.b16 %v6439
    %v7336 = vunpack.c.l.b16 %v6440
    %v7337 = vunpack.c.h.b16 %v6440
    %v7338 = vunpack.c.l.b16 %v6441
    %v7339 = vunpack.c.h.b16 %v6441
    %v7340 = vunpack.c.l.b16 %v6442
    %v7341 = vunpack.c.h.b16 %v6442
    %v7342 = vunpack.c.l.b16 %v6443
    %v7343 = vunpack.c.h.b16 %v6443
    %v7344 = vunpack.c.l.b16 %v6444
    %v7345 = vunpack.c.h.b16 %v6444
    %v7346 = vunpack.c.l.b16 %v6445
    %v7347 = vunpack.c.h.b16 %v6445
    %v7348 = vunpack.c.l.b16 %v6446
    %v7349 = vunpack.c.h.b16 %v6446
    %v7350 = vunpack.c.l.b16 %v6447
    %v7351 = vunpack.c.h.b16 %v6447
    %v7352 = vunpack.c.l.b16 %v6448
    %v7353 = vunpack.c.h.b16 %v6448
    %v7354 = vunpack.c.l.b16 %v6449
    %v7355 = vunpack.c.h.b16 %v6449
    %v7356 = vunpack.c.l.b16 %v6450
    %v7357 = vunpack.c.h.b16 %v6450
    %v7358 = vunpack.c.l.b16 %v6451
    %v7359 = vunpack.c.h.b16 %v6451
    %v7360 = vunpack.c.l.b16 %v6452
    %v7361 = vunpack.c.h.b16 %v6452
    %v7362 = vunpack.c.l.b16 %v6453
    %v7363 = vunpack.c.h.b16 %v6453
    %v7364 = vunpack.c.l.b16 %v6454
    %v7365 = vunpack.c.h.b16 %v6454
    %v7366 = vunpack.c.l.b16 %v6455
    %v7367 = vunpack.c.h.b16 %v6455
    %v7368 = vunpack.c.l.b16 %v6456
    %v7369 = vunpack.c.h.b16 %v6456
    %v7370 = vunpack.c.l.b16 %v6457
    %v7371 = vunpack.c.h.b16 %v6457
    %v7372 = vunpack.c.l.b16 %v6458
    %v7373 = vunpack.c.h.b16 %v6458
    %v7374 = vunpack.c.l.b16 %v6459
    %v7375 = vunpack.c.h.b16 %v6459
    %v7376 = vunpack.c.l.b16 %v6460
    %v7377 = vunpack.c.h.b16 %v6460
    %v7378 = vunpack.c.l.b16 %v6461
    %v7379 = vunpack.c.h.b16 %v6461
    %v7380 = vunpack.c.l.b16 %v6462
    %v7381 = vunpack.c.h.b16 %v6462
    %v7382 = vunpack.c.l.b16 %v6463
    %v7383 = vunpack.c.h.b16 %v6463
    %v7384 = vunpack.c.l.b16 %v6464
    %v7385 = vunpack.c.h.b16 %v6464
    %v7386 = vunpack.c.l.b16 %v6465
    %v7387 = vunpack.c.h.b16 %v6465
    %v7388 = vunpack.c.l.b16 %v6466
    %v7389 = vunpack.c.h.b16 %v6466
    %v7390 = vunpack.c.l.b16 %v6467
    %v7391 = vunpack.c.h.b16 %v6467
    %v7392 = vunpack.c.l.b16 %v6468
    %v7393 = vunpack.c.h.b16 %v6468
    %v7394 = vunpack.c.l.b16 %v6469
    %v7395 = vunpack.c.h.b16 %v6469
    %v7396 = vunpack.c.l.b16 %v6470
    %v7397 = vunpack.c.h.b16 %v6470
    %v7398 = vunpack.c.l.b16 %v6471
    %v7399 = vunpack.c.h.b16 %v6471
    %v7400 = vunpack.c.l.b16 %v6472
    %v7401 = vunpack.c.h.b16 %v6472
    %v7402 = vunpack.c.l.b16 %v6473
    %v7403 = vunpack.c.h.b16 %v6473
    %v7404 = vunpack.c.l.b16 %v6474
    %v7405 = vunpack.c.h.b16 %v6474
    %v7406 = vunpack.c.l.b16 %v6475
    %v7407 = vunpack.c.h.b16 %v6475
    %v7408 = vunpack.c.l.b16 %v6476
    %v7409 = vunpack.c.h.b16 %v6476
    %v7410 = vunpack.c.l.b16 %v6477
    %v7411 = vunpack.c.h.b16 %v6477
    %v7412 = vunpack.c.l.b16 %v6478
    %v7413 = vunpack.c.h.b16 %v6478
    %v7414 = vunpack.c.l.b16 %v6479
    %v7415 = vunpack.c.h.b16 %v6479
    %v7416 = vunpack.c.l.b16 %v6480
    %v7417 = vunpack.c.h.b16 %v6480
    %v7418 = vunpack.c.l.b16 %v6481
    %v7419 = vunpack.c.h.b16 %v6481
    %v7420 = vunpack.c.l.b16 %v6482
    %v7421 = vunpack.c.h.b16 %v6482
    %v7422 = vunpack.c.l.b16 %v6483
    %v7423 = vunpack.c.h.b16 %v6483
    %v7424 = vunpack.c.l.b16 %v6484
    %v7425 = vunpack.c.h.b16 %v6484
    %v7426 = vunpack.c.l.b16 %v6485
    %v7427 = vunpack.c.h.b16 %v6485
    %v7428 = vunpack.c.l.b16 %v6486
    %v7429 = vunpack.c.h.b16 %v6486
    %v7430 = vunpack.c.l.b16 %v6487
    %v7431 = vunpack.c.h.b16 %v6487
    %v7432 = vunpack.c.l.b16 %v6488
    %v7433 = vunpack.c.h.b16 %v6488
    %v7434 = vunpack.c.l.b16 %v6489
    %v7435 = vunpack.c.h.b16 %v6489
    %v7436 = vunpack.c.l.b16 %v6490
    %v7437 = vunpack.c.h.b16 %v6490
    %v7438 = vunpack.c.l.b16 %v6491
    %v7439 = vunpack.c.h.b16 %v6491
    %v7440 = vunpack.c.l.b16 %v6492
    %v7441 = vunpack.c.h.b16 %v6492
    %v7442 = vunpack.c.l.b16 %v6493
    %v7443 = vunpack.c.h.b16 %v6493
    %v7444 = vunpack.c.l.b16 %v6494
    %v7445 = vunpack.c.h.b16 %v6494
    %v7446 = vunpack.c.l.b16 %v6495
    %v7447 = vunpack.c.h.b16 %v6495
    %v7448 = vunpack.c.l.b16 %v6496
    %v7449 = vunpack.c.h.b16 %v6496
    %v7450 = vunpack.c.l.b16 %v6497
    %v7451 = vunpack.c.h.b16 %v6497
    %v7452 = vunpack.c.l.b16 %v6498
    %v7453 = vunpack.c.h.b16 %v6498
    %v7454 = vunpack.c.l.b16 %v6499
    %v7455 = vunpack.c.h.b16 %v6499
    %v7456 = vunpack.c.l.b16 %v6500
    %v7457 = vunpack.c.h.b16 %v6500
    %v7458 = vunpack.c.l.b16 %v6501
    %v7459 = vunpack.c.h.b16 %v6501
    %v7460 = vunpack.c.l.b16 %v6502
    %v7461 = vunpack.c.h.b16 %v6502
    %v7462 = vunpack.c.l.b16 %v6503
    %v7463 = vunpack.c.h.b16 %v6503
    %v7464 = vunpack.c.l.b16 %v6504
    %v7465 = vunpack.c.h.b16 %v6504
    %v7466 = vunpack.c.l.b16 %v6505
    %v7467 = vunpack.c.h.b16 %v6505
    %v7468 = vunpack.c.l.b16 %v6506
    %v7469 = vunpack.c.h.b16 %v6506
    %v7470 = vunpack.c.l.b16 %v6507
    %v7471 = vunpack.c.h.b16 %v6507
    %v7472 = vunpack.c.l.b16 %v6508
    %v7473 = vunpack.c.h.b16 %v6508
    %v7474 = vunpack.c.l.b16 %v6509
    %v7475 = vunpack.c.h.b16 %v6509
    %v7476 = vunpack.c.l.b16 %v6510
    %v7477 = vunpack.c.h.b16 %v6510
    %v7478 = vunpack.c.l.b16 %v6511
    %v7479 = vunpack.c.h.b16 %v6511
    %v7480 = vunpack.c.l.b16 %v6512
    %v7481 = vunpack.c.h.b16 %v6512
    %v7482 = vunpack.c.l.b16 %v6513
    %v7483 = vunpack.c.h.b16 %v6513
    %v7484 = vunpack.c.l.b16 %v6514
    %v7485 = vunpack.c.h.b16 %v6514
    %v7486 = vunpack.c.l.b16 %v6515
    %v7487 = vunpack.c.h.b16 %v6515
    %v7488 = vunpack.c.l.b16 %v6516
    %v7489 = vunpack.c.h.b16 %v6516
    %v7490 = vunpack.c.l.b16 %v6517
    %v7491 = vunpack.c.h.b16 %v6517
    %v7492 = vunpack.c.l.b16 %v6518
    %v7493 = vunpack.c.h.b16 %v6518
    %v7494 = vunpack.c.l.b16 %v6519
    %v7495 = vunpack.c.h.b16 %v6519
    %v7496 = vunpack.c.l.b16 %v6520
    %v7497 = vunpack.c.h.b16 %v6520
    %v7498 = vunpack.c.l.b16 %v6521
    %v7499 = vunpack.c.h.b16 %v6521
    %v7500 = vunpack.c.l.b16 %v6522
    %v7501 = vunpack.c.h.b16 %v6522
    %v7502 = vunpack.c.l.b16 %v6523
    %v7503 = vunpack.c.h.b16 %v6523
    %v7504 = vunpack.c.l.b16 %v6524
    %v7505 = vunpack.c.h.b16 %v6524
    %v7506 = vunpack.c.l.b16 %v6525
    %v7507 = vunpack.c.h.b16 %v6525
    %v7508 = vunpack.c.l.b16 %v6526
    %v7509 = vunpack.c.h.b16 %v6526
    %v7510 = vunpack.c.l.b16 %v6527
    %v7511 = vunpack.c.h.b16 %v6527
    %v7512 = vunpack.c.l.b16 %v6528
    %v7513 = vunpack.c.h.b16 %v6528
    %v7514 = vunpack.c.l.b16 %v6529
    %v7515 = vunpack.c.h.b16 %v6529
    %v7516 = vunpack.c.l.b16 %v6530
    %v7517 = vunpack.c.h.b16 %v6530
    %v7518 = vunpack.c.l.b16 %v6531
    %v7519 = vunpack.c.h.b16 %v6531
    %v7520 = vunpack.c.l.b16 %v6532
    %v7521 = vunpack.c.h.b16 %v6532
    %v7522 = vunpack.c.l.b16 %v6533
    %v7523 = vunpack.c.h.b16 %v6533
    %v7524 = vunpack.c.l.b16 %v6534
    %v7525 = vunpack.c.h.b16 %v6534
    %v7526 = vunpack.c.l.b16 %v6535
    %v7527 = vunpack.c.h.b16 %v6535
    %v7528 = vunpack.c.l.b16 %v6536
    %v7529 = vunpack.c.h.b16 %v6536
    %v7530 = vunpack.c.l.b16 %v6537
    %v7531 = vunpack.c.h.b16 %v6537
    %v7532 = vunpack.c.l.b16 %v6538
    %v7533 = vunpack.c.h.b16 %v6538
    %v7534 = vunpack.c.l.b16 %v6539
    %v7535 = vunpack.c.h.b16 %v6539
    %v7536 = vunpack.c.l.b16 %v6540
    %v7537 = vunpack.c.h.b16 %v6540
    %v7538 = vunpack.c.l.b16 %v6541
    %v7539 = vunpack.c.h.b16 %v6541
    %v7540 = vunpack.c.l.b16 %v6542
    %v7541 = vunpack.c.h.b16 %v6542
    %v7542 = vunpack.c.l.b16 %v6543
    %v7543 = vunpack.c.h.b16 %v6543
    %v7544 = vunpack.c.l.b16 %v6544
    %v7545 = vunpack.c.h.b16 %v6544
    %v7546 = vunpack.c.l.b16 %v6545
    %v7547 = vunpack.c.h.b16 %v6545
    %v7548 = vunpack.c.l.b16 %v6546
    %v7549 = vunpack.c.h.b16 %v6546
    %v7550 = vunpack.c.l.b16 %v6547
    %v7551 = vunpack.c.h.b16 %v6547
    %v7552 = vunpack.c.l.b16 %v6548
    %v7553 = vunpack.c.h.b16 %v6548
    %v7554 = vunpack.c.l.b16 %v6549
    %v7555 = vunpack.c.h.b16 %v6549
    %v7556 = vunpack.c.l.b16 %v6550
    %v7557 = vunpack.c.h.b16 %v6550
    %v7558 = vunpack.c.l.b16 %v6551
    %v7559 = vunpack.c.h.b16 %v6551
    %v7560 = vunpack.c.l.b16 %v6552
    %v7561 = vunpack.c.h.b16 %v6552
    %v7562 = vunpack.c.l.b16 %v6553
    %v7563 = vunpack.c.h.b16 %v6553
    %v7564 = vunpack.c.l.b16 %v6554
    %v7565 = vunpack.c.h.b16 %v6554
    %v7566 = vunpack.c.l.b16 %v6555
    %v7567 = vunpack.c.h.b16 %v6555
    %v7568 = vunpack.c.l.b16 %v6556
    %v7569 = vunpack.c.h.b16 %v6556
    %v7570 = vunpack.c.l.b16 %v6557
    %v7571 = vunpack.c.h.b16 %v6557
    %v7572 = vunpack.c.l.b16 %v6558
    %v7573 = vunpack.c.h.b16 %v6558
    %v7574 = vunpack.c.l.b16 %v6559
    %v7575 = vunpack.c.h.b16 %v6559
    %v7576 = vunpack.c.l.b16 %v6560
    %v7577 = vunpack.c.h.b16 %v6560
    %v7578 = vunpack.c.l.b16 %v6561
    %v7579 = vunpack.c.h.b16 %v6561
    %v7580 = vunpack.c.l.b16 %v6562
    %v7581 = vunpack.c.h.b16 %v6562
    %v7582 = vunpack.c.l.b16 %v6563
    %v7583 = vunpack.c.h.b16 %v6563
    %v7584 = vunpack.c.l.b16 %v6564
    %v7585 = vunpack.c.h.b16 %v6564
    %v7586 = vunpack.c.l.b16 %v6565
    %v7587 = vunpack.c.h.b16 %v6565
    %v7588 = vunpack.c.l.b16 %v6566
    %v7589 = vunpack.c.h.b16 %v6566
    %v7590 = vunpack.c.l.b16 %v6567
    %v7591 = vunpack.c.h.b16 %v6567
    %v7592 = vunpack.c.l.b16 %v6568
    %v7593 = vunpack.c.h.b16 %v6568
    %v7594 = vunpack.c.l.b16 %v6569
    %v7595 = vunpack.c.h.b16 %v6569
    %v7596 = vunpack.c.l.b16 %v6570
    %v7597 = vunpack.c.h.b16 %v6570
    %v7598 = vunpack.c.l.b16 %v6571
    %v7599 = vunpack.c.h.b16 %v6571
    %v7600 = vunpack.c.l.b16 %v6572
    %v7601 = vunpack.c.h.b16 %v6572
    %v7602 = vunpack.c.l.b16 %v6573
    %v7603 = vunpack.c.h.b16 %v6573
    %v7604 = vunpack.c.l.b16 %v6574
    %v7605 = vunpack.c.h.b16 %v6574
    %v7606 = vunpack.c.l.b16 %v6575
    %v7607 = vunpack.c.h.b16 %v6575
    %v7608 = vunpack.c.l.b16 %v6576
    %v7609 = vunpack.c.h.b16 %v6576
    %v7610 = vunpack.c.l.b16 %v6577
    %v7611 = vunpack.c.h.b16 %v6577
    %v7612 = vunpack.c.l.b16 %v6578
    %v7613 = vunpack.c.h.b16 %v6578
    %v7614 = vunpack.c.l.b16 %v6579
    %v7615 = vunpack.c.h.b16 %v6579
    %v7616 = vunpack.c.l.b16 %v6580
    %v7617 = vunpack.c.h.b16 %v6580
    %v7618 = vunpack.c.l.b16 %v6581
    %v7619 = vunpack.c.h.b16 %v6581
    %v7620 = vunpack.c.l.b16 %v6582
    %v7621 = vunpack.c.h.b16 %v6582
    %v7622 = vunpack.c.l.b16 %v6583
    %v7623 = vunpack.c.h.b16 %v6583
    %v7624 = vunpack.c.l.b16 %v6584
    %v7625 = vunpack.c.h.b16 %v6584
    %v7626 = vunpack.c.l.b16 %v6585
    %v7627 = vunpack.c.h.b16 %v6585
    %v7628 = vunpack.c.l.b16 %v6586
    %v7629 = vunpack.c.h.b16 %v6586
    %v7630 = vunpack.c.l.b16 %v6587
    %v7631 = vunpack.c.h.b16 %v6587
    %v7632 = vunpack.c.l.b16 %v6588
    %v7633 = vunpack.c.h.b16 %v6588
    %v7634 = vunpack.c.l.b16 %v6589
    %v7635 = vunpack.c.h.b16 %v6589
    %v7636 = vunpack.c.l.b16 %v6590
    %v7637 = vunpack.c.h.b16 %v6590
    %v7638 = vunpack.c.l.b16 %v6591
    %v7639 = vunpack.c.h.b16 %v6591
    %v7640 = vunpack.c.l.b16 %v6592
    %v7641 = vunpack.c.h.b16 %v6592
    %v7642 = vunpack.c.l.b16 %v6593
    %v7643 = vunpack.c.h.b16 %v6593
    %v7644 = vunpack.c.l.b16 %v6594
    %v7645 = vunpack.c.h.b16 %v6594
    %v7646 = vunpack.c.l.b16 %v6595
    %v7647 = vunpack.c.h.b16 %v6595
    %v7648 = vunpack.c.l.b16 %v6596
    %v7649 = vunpack.c.h.b16 %v6596
    %v7650 = vunpack.c.l.b16 %v6597
    %v7651 = vunpack.c.h.b16 %v6597
    %v7652 = vunpack.c.l.b16 %v6598
    %v7653 = vunpack.c.h.b16 %v6598
    %v7654 = vunpack.c.l.b16 %v6599
    %v7655 = vunpack.c.h.b16 %v6599
    %v7656 = vunpack.c.l.b16 %v6600
    %v7657 = vunpack.c.h.b16 %v6600
    %v7658 = vunpack.c.l.b16 %v6601
    %v7659 = vunpack.c.h.b16 %v6601
    %v7660 = vunpack.c.l.b16 %v6602
    %v7661 = vunpack.c.h.b16 %v6602
    %v7662 = vunpack.c.l.b16 %v6603
    %v7663 = vunpack.c.h.b16 %v6603
    %v7664 = vunpack.c.l.b16 %v6604
    %v7665 = vunpack.c.h.b16 %v6604
    %v7666 = vunpack.c.l.b16 %v6605
    %v7667 = vunpack.c.h.b16 %v6605
    %v7668 = vunpack.c.l.b16 %v6606
    %v7669 = vunpack.c.h.b16 %v6606
    %v7670 = vunpack.c.l.b16 %v6607
    %v7671 = vunpack.c.h.b16 %v6607
    %v7672 = vunpack.c.l.b16 %v6608
    %v7673 = vunpack.c.h.b16 %v6608
    %v7674 = vunpack.c.l.b16 %v6609
    %v7675 = vunpack.c.h.b16 %v6609
    %v7676 = vunpack.c.l.b16 %v6610
    %v7677 = vunpack.c.h.b16 %v6610
    %v7678 = vunpack.c.l.b16 %v6611
    %v7679 = vunpack.c.h.b16 %v6611
    %v7680 = vunpack.c.l.b16 %v6612
    %v7681 = vunpack.c.h.b16 %v6612
    %v7682 = vunpack.c.l.b16 %v6613
    %v7683 = vunpack.c.h.b16 %v6613
    %v7684 = vunpack.c.l.b16 %v6614
    %v7685 = vunpack.c.h.b16 %v6614
    %v7686 = vunpack.c.l.b16 %v6615
    %v7687 = vunpack.c.h.b16 %v6615
    %v7688 = vunpack.c.l.b16 %v6616
    %v7689 = vunpack.c.h.b16 %v6616
    %v7690 = vunpack.c.l.b16 %v6617
    %v7691 = vunpack.c.h.b16 %v6617
    %v7692 = vunpack.c.l.b16 %v6618
    %v7693 = vunpack.c.h.b16 %v6618
    %v7694 = vunpack.c.l.b16 %v6619
    %v7695 = vunpack.c.h.b16 %v6619
    %v7696 = vunpack.c.l.b16 %v6620
    %v7697 = vunpack.c.h.b16 %v6620
    %v7698 = vunpack.c.l.b16 %v6621
    %v7699 = vunpack.c.h.b16 %v6621
    %v7700 = vunpack.c.l.b16 %v6622
    %v7701 = vunpack.c.h.b16 %v6622
    %v7702 = vunpack.c.l.b16 %v6623
    %v7703 = vunpack.c.h.b16 %v6623
    %v7704 = vunpack.c.l.b16 %v6624
    %v7705 = vunpack.c.h.b16 %v6624
    %v7706 = vunpack.c.l.b16 %v6625
    %v7707 = vunpack.c.h.b16 %v6625
    %v7708 = vunpack.c.l.b16 %v6626
    %v7709 = vunpack.c.h.b16 %v6626
    %v7710 = vunpack.c.l.b16 %v6627
    %v7711 = vunpack.c.h.b16 %v6627
    %v7712 = vunpack.c.l.b16 %v6628
    %v7713 = vunpack.c.h.b16 %v6628
    %v7714 = vunpack.c.l.b16 %v6629
    %v7715 = vunpack.c.h.b16 %v6629
    %v7716 = vunpack.c.l.b16 %v6630
    %v7717 = vunpack.c.h.b16 %v6630
    %v7718 = vunpack.c.l.b16 %v6631
    %v7719 = vunpack.c.h.b16 %v6631
    %v7720 = vunpack.c.l.b16 %v6632
    %v7721 = vunpack.c.h.b16 %v6632
    %v7722 = vunpack.c.l.b16 %v6633
    %v7723 = vunpack.c.h.b16 %v6633
    %v7724 = vunpack.c.l.b16 %v6634
    %v7725 = vunpack.c.h.b16 %v6634
    %v7726 = vunpack.c.l.b16 %v6635
    %v7727 = vunpack.c.h.b16 %v6635
    %v7728 = vunpack.c.l.b16 %v6636
    %v7729 = vunpack.c.h.b16 %v6636
    %v7730 = vunpack.c.l.b16 %v6637
    %v7731 = vunpack.c.h.b16 %v6637
    %v7732 = vunpack.c.l.b16 %v6638
    %v7733 = vunpack.c.h.b16 %v6638
    %v7734 = vunpack.c.l.b16 %v6639
    %v7735 = vunpack.c.h.b16 %v6639
    %v7736 = vunpack.c.l.b16 %v6640
    %v7737 = vunpack.c.h.b16 %v6640
    %v7738 = vunpack.c.l.b16 %v6641
    %v7739 = vunpack.c.h.b16 %v6641
    %v7740 = vunpack.c.l.b16 %v6642
    %v7741 = vunpack.c.h.b16 %v6642
    %v7742 = vunpack.c.l.b16 %v6643
    %v7743 = vunpack.c.h.b16 %v6643
    %v7744 = vunpack.c.l.b16 %v6644
    %v7745 = vunpack.c.h.b16 %v6644
    %v7746 = vunpack.c.l.b16 %v6645
    %v7747 = vunpack.c.h.b16 %v6645
    %v7748 = vunpack.c.l.b16 %v6646
    %v7749 = vunpack.c.h.b16 %v6646
    %v7750 = vunpack.c.l.b16 %v6647
    %v7751 = vunpack.c.h.b16 %v6647
    %v7752 = vunpack.c.l.b16 %v6648
    %v7753 = vunpack.c.h.b16 %v6648
    %v7754 = vunpack.c.l.b16 %v6649
    %v7755 = vunpack.c.h.b16 %v6649
    %v7756 = vunpack.c.l.b16 %v6650
    %v7757 = vunpack.c.h.b16 %v6650
    %v7758 = vunpack.c.l.b16 %v6651
    %v7759 = vunpack.c.h.b16 %v6651
    %v7760 = vunpack.c.l.b16 %v6652
    %v7761 = vunpack.c.h.b16 %v6652
    %v7762 = vunpack.c.l.b16 %v6653
    %v7763 = vunpack.c.h.b16 %v6653
    %v7764 = vunpack.c.l.b16 %v6654
    %v7765 = vunpack.c.h.b16 %v6654
    %v7766 = vunpack.c.l.b16 %v6655
    %v7767 = vunpack.c.h.b16 %v6655
    %v7768 = vunpack.c.l.b16 %v6656
    %v7769 = vunpack.c.h.b16 %v6656
    %v7770 = vunpack.c.l.b16 %v6657
    %v7771 = vunpack.c.h.b16 %v6657
    %v7772 = vunpack.c.l.b16 %v6658
    %v7773 = vunpack.c.h.b16 %v6658
    %v7774 = vunpack.c.l.b16 %v6659
    %v7775 = vunpack.c.h.b16 %v6659
    %v7776 = vunpack.c.l.b16 %v6660
    %v7777 = vunpack.c.h.b16 %v6660
    %v7778 = vunpack.c.l.b16 %v6661
    %v7779 = vunpack.c.h.b16 %v6661
    %v7780 = vunpack.c.l.b16 %v6662
    %v7781 = vunpack.c.h.b16 %v6662
    %v7782 = vunpack.c.l.b16 %v6663
    %v7783 = vunpack.c.h.b16 %v6663
    %v7784 = vunpack.c.l.b16 %v6664
    %v7785 = vunpack.c.h.b16 %v6664
    %v7786 = vunpack.c.l.b16 %v6665
    %v7787 = vunpack.c.h.b16 %v6665
    %v7788 = vunpack.c.l.b16 %v6666
    %v7789 = vunpack.c.h.b16 %v6666
    %v7790 = vunpack.c.l.b16 %v6667
    %v7791 = vunpack.c.h.b16 %v6667
    %v7792 = vunpack.c.l.b16 %v6668
    %v7793 = vunpack.c.h.b16 %v6668
    %v7794 = vunpack.c.l.b16 %v6669
    %v7795 = vunpack.c.h.b16 %v6669
    %v7796 = vunpack.c.l.b16 %v6670
    %v7797 = vunpack.c.h.b16 %v6670
    %v7798 = vunpack.c.l.b16 %v6671
    %v7799 = vunpack.c.h.b16 %v6671
    %v7800 = vunpack.c.l.b16 %v6672
    %v7801 = vunpack.c.h.b16 %v6672
    %v7802 = vunpack.c.l.b16 %v6673
    %v7803 = vunpack.c.h.b16 %v6673
    %v7804 = vunpack.c.l.b16 %v6674
    %v7805 = vunpack.c.h.b16 %v6674
    %v7806 = vunpack.c.l.b16 %v6675
    %v7807 = vunpack.c.h.b16 %v6675
    %v7808 = vunpack.c.l.b16 %v6676
    %v7809 = vunpack.c.h.b16 %v6676
    %v7810 = vunpack.c.l.b16 %v6677
    %v7811 = vunpack.c.h.b16 %v6677
    %v7812 = vunpack.c.l.b16 %v6678
    %v7813 = vunpack.c.h.b16 %v6678
    %v7814 = vunpack.c.l.b16 %v6679
    %v7815 = vunpack.c.h.b16 %v6679
    %v7816 = vunpack.c.l.b16 %v6680
    %v7817 = vunpack.c.h.b16 %v6680
    %v7818 = vunpack.c.l.b16 %v6681
    %v7819 = vunpack.c.h.b16 %v6681
    %v7820 = vunpack.c.l.b16 %v6682
    %v7821 = vunpack.c.h.b16 %v6682
    %v7822 = vunpack.c.l.b16 %v6683
    %v7823 = vunpack.c.h.b16 %v6683
    %v7824 = vunpack.c.l.b16 %v6684
    %v7825 = vunpack.c.h.b16 %v6684
    %v7826 = vunpack.c.l.b16 %v6685
    %v7827 = vunpack.c.h.b16 %v6685
    %v7828 = vunpack.c.l.b16 %v6686
    %v7829 = vunpack.c.h.b16 %v6686
    %v7830 = vunpack.c.l.b16 %v6687
    %v7831 = vunpack.c.h.b16 %v6687
    %v7832 = vunpack.c.l.b16 %v6688
    %v7833 = vunpack.c.h.b16 %v6688
    %v7834 = vunpack.c.l.b16 %v6689
    %v7835 = vunpack.c.h.b16 %v6689
    %v7836 = vunpack.c.l.b16 %v6690
    %v7837 = vunpack.c.h.b16 %v6690
    %v7838 = vunpack.c.l.b16 %v6691
    %v7839 = vunpack.c.h.b16 %v6691
    %v7840 = vunpack.c.l.b16 %v6692
    %v7841 = vunpack.c.h.b16 %v6692
    %v7842 = vunpack.c.l.b16 %v6693
    %v7843 = vunpack.c.h.b16 %v6693
    %v7844 = vunpack.c.l.b16 %v6694
    %v7845 = vunpack.c.h.b16 %v6694
    %v7846 = vunpack.c.l.b16 %v6695
    %v7847 = vunpack.c.h.b16 %v6695
    %v7848 = vunpack.c.l.b16 %v6696
    %v7849 = vunpack.c.h.b16 %v6696
    %v7850 = vunpack.c.l.b16 %v6697
    %v7851 = vunpack.c.h.b16 %v6697
    %v7852 = vunpack.c.l.b16 %v6698
    %v7853 = vunpack.c.h.b16 %v6698
    %v7854 = vunpack.c.l.b16 %v6699
    %v7855 = vunpack.c.h.b16 %v6699
    %v7856 = vunpack.c.l.b16 %v6700
    %v7857 = vunpack.c.h.b16 %v6700
    %v7858 = vunpack.c.l.b16 %v6701
    %v7859 = vunpack.c.h.b16 %v6701
    %v7860 = vunpack.c.l.b16 %v6702
    %v7861 = vunpack.c.h.b16 %v6702
    %v7862 = vunpack.c.l.b16 %v6703
    %v7863 = vunpack.c.h.b16 %v6703
    %v7864 = vunpack.c.l.b16 %v6704
    %v7865 = vunpack.c.h.b16 %v6704
    %v7866 = vunpack.c.l.b16 %v6705
    %v7867 = vunpack.c.h.b16 %v6705
    %v7868 = vunpack.c.l.b16 %v6706
    %v7869 = vunpack.c.h.b16 %v6706
    %v7870 = vunpack.c.l.b16 %v6707
    %v7871 = vunpack.c.h.b16 %v6707
    %v7872 = vunpack.c.l.b16 %v6708
    %v7873 = vunpack.c.h.b16 %v6708
    %v7874 = vunpack.c.l.b16 %v6709
    %v7875 = vunpack.c.h.b16 %v6709
    %v7876 = vunpack.c.l.b16 %v6710
    %v7877 = vunpack.c.h.b16 %v6710
    %v7878 = vunpack.c.l.b16 %v6711
    %v7879 = vunpack.c.h.b16 %v6711
    %v7880 = vunpack.c.l.b16 %v6712
    %v7881 = vunpack.c.h.b16 %v6712
    %v7882 = vunpack.c.l.b16 %v6713
    %v7883 = vunpack.c.h.b16 %v6713
    %v7884 = vunpack.c.l.b16 %v6714
    %v7885 = vunpack.c.h.b16 %v6714
    %v7886 = vunpack.c.l.b16 %v6715
    %v7887 = vunpack.c.h.b16 %v6715
    %v7888 = vunpack.c.l.b16 %v6716
    %v7889 = vunpack.c.h.b16 %v6716
    %v7890 = vunpack.c.l.b16 %v6717
    %v7891 = vunpack.c.h.b16 %v6717
    %v7892 = vunpack.c.l.b16 %v6718
    %v7893 = vunpack.c.h.b16 %v6718
    %v7894 = vunpack.c.l.b16 %v6719
    %v7895 = vunpack.c.h.b16 %v6719
    %v7896 = vunpack.c.l.b16 %v6720
    %v7897 = vunpack.c.h.b16 %v6720
    %v7898 = vunpack.c.l.b16 %v6721
    %v7899 = vunpack.c.h.b16 %v6721
    %v7900 = vunpack.c.l.b16 %v6722
    %v7901 = vunpack.c.h.b16 %v6722
    %v7902 = vunpack.c.l.b16 %v6723
    %v7903 = vunpack.c.h.b16 %v6723
    %v7904 = vunpack.c.l.b16 %v6724
    %v7905 = vunpack.c.h.b16 %v6724
    %v7906 = vunpack.c.l.b16 %v6725
    %v7907 = vunpack.c.h.b16 %v6725
    %v7908 = vunpack.c.l.b16 %v6726
    %v7909 = vunpack.c.h.b16 %v6726
    %v7910 = vunpack.c.l.b16 %v6727
    %v7911 = vunpack.c.h.b16 %v6727
    %v7912 = vunpack.c.l.b16 %v6728
    %v7913 = vunpack.c.h.b16 %v6728
    %v7914 = vunpack.c.l.b16 %v6729
    %v7915 = vunpack.c.h.b16 %v6729
    %v7916 = vunpack.c.l.b16 %v6730
    %v7917 = vunpack.c.h.b16 %v6730
    %v7918 = vunpack.c.l.b16 %v6731
    %v7919 = vunpack.c.h.b16 %v6731
    %v7920 = vunpack.c.l.b16 %v6732
    %v7921 = vunpack.c.h.b16 %v6732
    %v7922 = vunpack.c.l.b16 %v6733
    %v7923 = vunpack.c.h.b16 %v6733
    %v7924 = vunpack.c.l.b16 %v6734
    %v7925 = vunpack.c.h.b16 %v6734
    %v7926 = vunpack.c.l.b16 %v6735
    %v7927 = vunpack.c.h.b16 %v6735
    %v7928 = vunpack.c.l.b16 %v6736
    %v7929 = vunpack.c.h.b16 %v6736
    %v7930 = vunpack.c.l.b16 %v6737
    %v7931 = vunpack.c.h.b16 %v6737
    %v7932 = vunpack.c.l.b16 %v6738
    %v7933 = vunpack.c.h.b16 %v6738
    %v7934 = vunpack.c.l.b16 %v6739
    %v7935 = vunpack.c.h.b16 %v6739
    %v7936 = vunpack.c.l.b16 %v6740
    %v7937 = vunpack.c.h.b16 %v6740
    %v7938 = vunpack.c.l.b16 %v6741
    %v7939 = vunpack.c.h.b16 %v6741
    %v7940 = vunpack.c.l.b16 %v6742
    %v7941 = vunpack.c.h.b16 %v6742
    %v7942 = vunpack.c.l.b16 %v6743
    %v7943 = vunpack.c.h.b16 %v6743
    %v7944 = vunpack.c.l.b16 %v6744
    %v7945 = vunpack.c.h.b16 %v6744
    %v7946 = vunpack.c.l.b16 %v6745
    %v7947 = vunpack.c.h.b16 %v6745
    %v7948 = vunpack.c.l.b16 %v6746
    %v7949 = vunpack.c.h.b16 %v6746
    %v7950 = vunpack.c.l.b16 %v6747
    %v7951 = vunpack.c.h.b16 %v6747
    %v7952 = vunpack.c.l.b16 %v6748
    %v7953 = vunpack.c.h.b16 %v6748
    %v7954 = vunpack.c.l.b16 %v6749
    %v7955 = vunpack.c.h.b16 %v6749
    %v7956 = vunpack.c.l.b16 %v6750
    %v7957 = vunpack.c.h.b16 %v6750
    %v7958 = vunpack.c.l.b16 %v6751
    %v7959 = vunpack.c.h.b16 %v6751
    %v7960 = vunpack.c.l.b16 %v6752
    %v7961 = vunpack.c.h.b16 %v6752
    %v7962 = vunpack.c.l.b16 %v6753
    %v7963 = vunpack.c.h.b16 %v6753
    %v7964 = vunpack.c.l.b16 %v6754
    %v7965 = vunpack.c.h.b16 %v6754
    %v7966 = vunpack.c.l.b16 %v6755
    %v7967 = vunpack.c.h.b16 %v6755
    %v7968 = vunpack.c.l.b16 %v6756
    %v7969 = vunpack.c.h.b16 %v6756
    %v7970 = vunpack.c.l.b16 %v6757
    %v7971 = vunpack.c.h.b16 %v6757
    %v7972 = vunpack.c.l.b16 %v6758
    %v7973 = vunpack.c.h.b16 %v6758
    %v7974 = vunpack.c.l.b16 %v6759
    %v7975 = vunpack.c.h.b16 %v6759
    %v7976 = vpack.c.b16 %v7220, %v7208
    %v7977 = vpack.c.b16 %v7221, %v7209
    %v7978 = vpack.c.b16 %v7222, %v7210
    %v7979 = vpack.c.b16 %v7223, %v7211
    %v7980 = vpack.c.b16 %v7224, %v7212
    %v7981 = vpack.c.b16 %v7225, %v7213
    %v7982 = vpack.c.b16 %v7226, %v7214
    %v7983 = vpack.c.b16 %v7227, %v7215
    %v7984 = vpack.c.b16 %v7228, %v7216
    %v7985 = vpack.c.b16 %v7229, %v7217
    %v7986 = vpack.c.b16 %v7230, %v7218
    %v7987 = vpack.c.b16 %v7231, %v7219
    %v7988 = vpack.c.b16 %v7244, %v7232
    %v7989 = vpack.c.b16 %v7245, %v7233
    %v7990 = vpack.c.b16 %v7246, %v7234
    %v7991 = vpack.c.b16 %v7247, %v7235
    %v7992 = vpack.c.b16 %v7248, %v7236
    %v7993 = vpack.c.b16 %v7249, %v7237
    %v7994 = vpack.c.b16 %v7250, %v7238
    %v7995 = vpack.c.b16 %v7251, %v7239
    %v7996 = vpack.c.b16 %v7252, %v7240
    %v7997 = vpack.c.b16 %v7253, %v7241
    %v7998 = vpack.c.b16 %v7254, %v7242
    %v7999 = vpack.c.b16 %v7255, %v7243
    %v8000 = vpack.c.b16 %v7268, %v7256
    %v8001 = vpack.c.b16 %v7269, %v7257
    %v8002 = vpack.c.b16 %v7270, %v7258
    %v8003 = vpack.c.b16 %v7271, %v7259
    %v8004 = vpack.c.b16 %v7272, %v7260
    %v8005 = vpack.c.b16 %v7273, %v7261
    %v8006 = vpack.c.b16 %v7274, %v7262
    %v8007 = vpack.c.b16 %v7275, %v7263
    %v8008 = vpack.c.b16 %v7276, %v7264
    %v8009 = vpack.c.b16 %v7277, %v7265
    %v8010 = vpack.c.b16 %v7278, %v7266
    %v8011 = vpack.c.b16 %v7279, %v7267
    %v8012 = vpack.c.b16 %v7292, %v7280
    %v8013 = vpack.c.b16 %v7293, %v7281
    %v8014 = vpack.c.b16 %v7294, %v7282
    %v8015 = vpack.c.b16 %v7295, %v7283
    %v8016 = vpack.c.b16 %v7296, %v7284
    %v8017 = vpack.c.b16 %v7297, %v7285
    %v8018 = vpack.c.b16 %v7298, %v7286
    %v8019 = vpack.c.b16 %v7299, %v7287
    %v8020 = vpack.c.b16 %v7300, %v7288
    %v8021 = vpack.c.b16 %v7301, %v7289
    %v8022 = vpack.c.b16 %v7302, %v7290
    %v8023 = vpack.c.b16 %v7303, %v7291
    %v8024 = vpack.c.b16 %v7316, %v7304
    %v8025 = vpack.c.b16 %v7317, %v7305
    %v8026 = vpack.c.b16 %v7318, %v7306
    %v8027 = vpack.c.b16 %v7319, %v7307
    %v8028 = vpack.c.b16 %v7320, %v7308
    %v8029 = vpack.c.b16 %v7321, %v7309
    %v8030 = vpack.c.b16 %v7322, %v7310
    %v8031 = vpack.c.b16 %v7323, %v7311
    %v8032 = vpack.c.b16 %v7324, %v7312
    %v8033 = vpack.c.b16 %v7325, %v7313
    %v8034 = vpack.c.b16 %v7326, %v7314
    %v8035 = vpack.c.b16 %v7327, %v7315
    %v8036 = vpack.c.b16 %v7340, %v7328
    %v8037 = vpack.c.b16 %v7341, %v7329
    %v8038 = vpack.c.b16 %v7342, %v7330
    %v8039 = vpack.c.b16 %v7343, %v7331
    %v8040 = vpack.c.b16 %v7344, %v7332
    %v8041 = vpack.c.b16 %v7345, %v7333
    %v8042 = vpack.c.b16 %v7346, %v7334
    %v8043 = vpack.c.b16 %v7347, %v7335
    %v8044 = vpack.c.b16 %v7348, %v7336
    %v8045 = vpack.c.b16 %v7349, %v7337
    %v8046 = vpack.c.b16 %v7350, %v7338
    %v8047 = vpack.c.b16 %v7351, %v7339
    %v8048 = vpack.c.b16 %v7364, %v7352
    %v8049 = vpack.c.b16 %v7365, %v7353
    %v8050 = vpack.c.b16 %v7366, %v7354
    %v8051 = vpack.c.b16 %v7367, %v7355
    %v8052 = vpack.c.b16 %v7368, %v7356
    %v8053 = vpack.c.b16 %v7369, %v7357
    %v8054 = vpack.c.b16 %v7370, %v7358
    %v8055 = vpack.c.b16 %v7371, %v7359
    %v8056 = vpack.c.b16 %v7372, %v7360
    %v8057 = vpack.c.b16 %v7373, %v7361
    %v8058 = vpack.c.b16 %v7374, %v7362
    %v8059 = vpack.c.b16 %v7375, %v7363
    %v8060 = vpack.c.b16 %v7388, %v7376
    %v8061 = vpack.c.b16 %v7389, %v7377
    %v8062 = vpack.c.b16 %v7390, %v7378
    %v8063 = vpack.c.b16 %v7391, %v7379
    %v8064 = vpack.c.b16 %v7392, %v7380
    %v8065 = vpack.c.b16 %v7393, %v7381
    %v8066 = vpack.c.b16 %v7394, %v7382
    %v8067 = vpack.c.b16 %v7395, %v7383
    %v8068 = vpack.c.b16 %v7396, %v7384
    %v8069 = vpack.c.b16 %v7397, %v7385
    %v8070 = vpack.c.b16 %v7398, %v7386
    %v8071 = vpack.c.b16 %v7399, %v7387
    %v8072 = vpack.c.b16 %v7412, %v7400
    %v8073 = vpack.c.b16 %v7413, %v7401
    %v8074 = vpack.c.b16 %v7414, %v7402
    %v8075 = vpack.c.b16 %v7415, %v7403
    %v8076 = vpack.c.b16 %v7416, %v7404
    %v8077 = vpack.c.b16 %v7417, %v7405
    %v8078 = vpack.c.b16 %v7418, %v7406
    %v8079 = vpack.c.b16 %v7419, %v7407
    %v8080 = vpack.c.b16 %v7420, %v7408
    %v8081 = vpack.c.b16 %v7421, %v7409
    %v8082 = vpack.c.b16 %v7422, %v7410
    %v8083 = vpack.c.b16 %v7423, %v7411
    %v8084 = vpack.c.b16 %v7436, %v7424
    %v8085 = vpack.c.b16 %v7437, %v7425
    %v8086 = vpack.c.b16 %v7438, %v7426
    %v8087 = vpack.c.b16 %v7439, %v7427
    %v8088 = vpack.c.b16 %v7440, %v7428
    %v8089 = vpack.c.b16 %v7441, %v7429
    %v8090 = vpack.c.b16 %v7442, %v7430
    %v8091 = vpack.c.b16 %v7443, %v7431
    %v8092 = vpack.c.b16 %v7444, %v7432
    %v8093 = vpack.c.b16 %v7445, %v7433
    %v8094 = vpack.c.b16 %v7446, %v7434
    %v8095 = vpack.c.b16 %v7447, %v7435
    %v8096 = vpack.c.b16 %v7460, %v7448
    %v8097 = vpack.c.b16 %v7461, %v7449
    %v8098 = vpack.c.b16 %v7462, %v7450
    %v8099 = vpack.c.b16 %v7463, %v7451
    %v8100 = vpack.c.b16 %v7464, %v7452
    %v8101 = vpack.c.b16 %v7465, %v7453
    %v8102 = vpack.c.b16 %v7466, %v7454
    %v8103 = vpack.c.b16 %v7467, %v7455
    %v8104 = vpack.c.b16 %v7468, %v7456
    %v8105 = vpack.c.b16 %v7469, %v7457
    %v8106 = vpack.c.b16 %v7470, %v7458
    %v8107 = vpack.c.b16 %v7471, %v7459
    %v8108 = vpack.c.b16 %v7484, %v7472
    %v8109 = vpack.c.b16 %v7485, %v7473
    %v8110 = vpack.c.b16 %v7486, %v7474
    %v8111 = vpack.c.b16 %v7487, %v7475
    %v8112 = vpack.c.b16 %v7488, %v7476
    %v8113 = vpack.c.b16 %v7489, %v7477
    %v8114 = vpack.c.b16 %v7490, %v7478
    %v8115 = vpack.c.b16 %v7491, %v7479
    %v8116 = vpack.c.b16 %v7492, %v7480
    %v8117 = vpack.c.b16 %v7493, %v7481
    %v8118 = vpack.c.b16 %v7494, %v7482
    %v8119 = vpack.c.b16 %v7495, %v7483
    %v8120 = vpack.c.b16 %v7508, %v7496
    %v8121 = vpack.c.b16 %v7509, %v7497
    %v8122 = vpack.c.b16 %v7510, %v7498
    %v8123 = vpack.c.b16 %v7511, %v7499
    %v8124 = vpack.c.b16 %v7512, %v7500
    %v8125 = vpack.c.b16 %v7513, %v7501
    %v8126 = vpack.c.b16 %v7514, %v7502
    %v8127 = vpack.c.b16 %v7515, %v7503
    %v8128 = vpack.c.b16 %v7516, %v7504
    %v8129 = vpack.c.b16 %v7517, %v7505
    %v8130 = vpack.c.b16 %v7518, %v7506
    %v8131 = vpack.c.b16 %v7519, %v7507
    %v8132 = vpack.c.b16 %v7532, %v7520
    %v8133 = vpack.c.b16 %v7533, %v7521
    %v8134 = vpack.c.b16 %v7534, %v7522
    %v8135 = vpack.c.b16 %v7535, %v7523
    %v8136 = vpack.c.b16 %v7536, %v7524
    %v8137 = vpack.c.b16 %v7537, %v7525
    %v8138 = vpack.c.b16 %v7538, %v7526
    %v8139 = vpack.c.b16 %v7539, %v7527
    %v8140 = vpack.c.b16 %v7540, %v7528
    %v8141 = vpack.c.b16 %v7541, %v7529
    %v8142 = vpack.c.b16 %v7542, %v7530
    %v8143 = vpack.c.b16 %v7543, %v7531
    %v8144 = vpack.c.b16 %v7556, %v7544
    %v8145 = vpack.c.b16 %v7557, %v7545
    %v8146 = vpack.c.b16 %v7558, %v7546
    %v8147 = vpack.c.b16 %v7559, %v7547
    %v8148 = vpack.c.b16 %v7560, %v7548
    %v8149 = vpack.c.b16 %v7561, %v7549
    %v8150 = vpack.c.b16 %v7562, %v7550
    %v8151 = vpack.c.b16 %v7563, %v7551
    %v8152 = vpack.c.b16 %v7564, %v7552
    %v8153 = vpack.c.b16 %v7565, %v7553
    %v8154 = vpack.c.b16 %v7566, %v7554
    %v8155 = vpack.c.b16 %v7567, %v7555
    %v8156 = vpack.c.b16 %v7580, %v7568
    %v8157 = vpack.c.b16 %v7581, %v7569
    %v8158 = vpack.c.b16 %v7582, %v7570
    %v8159 = vpack.c.b16 %v7583, %v7571
    %v8160 = vpack.c.b16 %v7584, %v7572
    %v8161 = vpack.c.b16 %v7585, %v7573
    %v8162 = vpack.c.b16 %v7586, %v7574
    %v8163 = vpack.c.b16 %v7587, %v7575
    %v8164 = vpack.c.b16 %v7588, %v7576
    %v8165 = vpack.c.b16 %v7589, %v7577
    %v8166 = vpack.c.b16 %v7590, %v7578
    %v8167 = vpack.c.b16 %v7591, %v7579
    %v8168 = vpack.c.b16 %v7604, %v7592
    %v8169 = vpack.c.b16 %v7605, %v7593
    %v8170 = vpack.c.b16 %v7606, %v7594
    %v8171 = vpack.c.b16 %v7607, %v7595
    %v8172 = vpack.c.b16 %v7608, %v7596
    %v8173 = vpack.c.b16 %v7609, %v7597
    %v8174 = vpack.c.b16 %v7610, %v7598
    %v8175 = vpack.c.b16 %v7611, %v7599
    %v8176 = vpack.c.b16 %v7612, %v7600
    %v8177 = vpack.c.b16 %v7613, %v7601
    %v8178 = vpack.c.b16 %v7614, %v7602
    %v8179 = vpack.c.b16 %v7615, %v7603
    %v8180 = vpack.c.b16 %v7628, %v7616
    %v8181 = vpack.c.b16 %v7629, %v7617
    %v8182 = vpack.c.b16 %v7630, %v7618
    %v8183 = vpack.c.b16 %v7631, %v7619
    %v8184 = vpack.c.b16 %v7632, %v7620
    %v8185 = vpack.c.b16 %v7633, %v7621
    %v8186 = vpack.c.b16 %v7634, %v7622
    %v8187 = vpack.c.b16 %v7635, %v7623
    %v8188 = vpack.c.b16 %v7636, %v7624
    %v8189 = vpack.c.b16 %v7637, %v7625
    %v8190 = vpack.c.b16 %v7638, %v7626
    %v8191 = vpack.c.b16 %v7639, %v7627
    %v8192 = vpack.c.b16 %v7652, %v7640
    %v8193 = vpack.c.b16 %v7653, %v7641
    %v8194 = vpack.c.b16 %v7654, %v7642
    %v8195 = vpack.c.b16 %v7655, %v7643
    %v8196 = vpack.c.b16 %v7656, %v7644
    %v8197 = vpack.c.b16 %v7657, %v7645
    %v8198 = vpack.c.b16 %v7658, %v7646
    %v8199 = vpack.c.b16 %v7659, %v7647
    %v8200 = vpack.c.b16 %v7660, %v7648
    %v8201 = vpack.c.b16 %v7661, %v7649
    %v8202 = vpack.c.b16 %v7662, %v7650
    %v8203 = vpack.c.b16 %v7663, %v7651
    %v8204 = vpack.c.b16 %v7676, %v7664
    %v8205 = vpack.c.b16 %v7677, %v7665
    %v8206 = vpack.c.b16 %v7678, %v7666
    %v8207 = vpack.c.b16 %v7679, %v7667
    %v8208 = vpack.c.b16 %v7680, %v7668
    %v8209 = vpack.c.b16 %v7681, %v7669
    %v8210 = vpack.c.b16 %v7682, %v7670
    %v8211 = vpack.c.b16 %v7683, %v7671
    %v8212 = vpack.c.b16 %v7684, %v7672
    %v8213 = vpack.c.b16 %v7685, %v7673
    %v8214 = vpack.c.b16 %v7686, %v7674
    %v8215 = vpack.c.b16 %v7687, %v7675
    %v8216 = vpack.c.b16 %v7700, %v7688
    %v8217 = vpack.c.b16 %v7701, %v7689
    %v8218 = vpack.c.b16 %v7702, %v7690
    %v8219 = vpack.c.b16 %v7703, %v7691
    %v8220 = vpack.c.b16 %v7704, %v7692
    %v8221 = vpack.c.b16 %v7705, %v7693
    %v8222 = vpack.c.b16 %v7706, %v7694
    %v8223 = vpack.c.b16 %v7707, %v7695
    %v8224 = vpack.c.b16 %v7708, %v7696
    %v8225 = vpack.c.b16 %v7709, %v7697
    %v8226 = vpack.c.b16 %v7710, %v7698
    %v8227 = vpack.c.b16 %v7711, %v7699
    %v8228 = vpack.c.b16 %v7724, %v7712
    %v8229 = vpack.c.b16 %v7725, %v7713
    %v8230 = vpack.c.b16 %v7726, %v7714
    %v8231 = vpack.c.b16 %v7727, %v7715
    %v8232 = vpack.c.b16 %v7728, %v7716
    %v8233 = vpack.c.b16 %v7729, %v7717
    %v8234 = vpack.c.b16 %v7730, %v7718
    %v8235 = vpack.c.b16 %v7731, %v7719
    %v8236 = vpack.c.b16 %v7732, %v7720
    %v8237 = vpack.c.b16 %v7733, %v7721
    %v8238 = vpack.c.b16 %v7734, %v7722
    %v8239 = vpack.c.b16 %v7735, %v7723
    %v8240 = vpack.c.b16 %v7748, %v7736
    %v8241 = vpack.c.b16 %v7749, %v7737
    %v8242 = vpack.c.b16 %v7750, %v7738
    %v8243 = vpack.c.b16 %v7751, %v7739
    %v8244 = vpack.c.b16 %v7752, %v7740
    %v8245 = vpack.c.b16 %v7753, %v7741
    %v8246 = vpack.c.b16 %v7754, %v7742
    %v8247 = vpack.c.b16 %v7755, %v7743
    %v8248 = vpack.c.b16 %v7756, %v7744
    %v8249 = vpack.c.b16 %v7757, %v7745
    %v8250 = vpack.c.b16 %v7758, %v7746
    %v8251 = vpack.c.b16 %v7759, %v7747
    %v8252 = vpack.c.b16 %v7772, %v7760
    %v8253 = vpack.c.b16 %v7773, %v7761
    %v8254 = vpack.c.b16 %v7774, %v7762
    %v8255 = vpack.c.b16 %v7775, %v7763
    %v8256 = vpack.c.b16 %v7776, %v7764
    %v8257 = vpack.c.b16 %v7777, %v7765
    %v8258 = vpack.c.b16 %v7778, %v7766
    %v8259 = vpack.c.b16 %v7779, %v7767
    %v8260 = vpack.c.b16 %v7780, %v7768
    %v8261 = vpack.c.b16 %v7781, %v7769
    %v8262 = vpack.c.b16 %v7782, %v7770
    %v8263 = vpack.c.b16 %v7783, %v7771
    %v8264 = vpack.c.b16 %v7796, %v7784
    %v8265 = vpack.c.b16 %v7797, %v7785
    %v8266 = vpack.c.b16 %v7798, %v7786
    %v8267 = vpack.c.b16 %v7799, %v7787
    %v8268 = vpack.c.b16 %v7800, %v7788
    %v8269 = vpack.c.b16 %v7801, %v7789
    %v8270 = vpack.c.b16 %v7802, %v7790
    %v8271 = vpack.c.b16 %v7803, %v7791
    %v8272 = vpack.c.b16 %v7804, %v7792
    %v8273 = vpack.c.b16 %v7805, %v7793
    %v8274 = vpack.c.b16 %v7806, %v7794
    %v8275 = vpack.c.b16 %v7807, %v7795
    %v8276 = vpack.c.b16 %v7820, %v7808
    %v8277 = vpack.c.b16 %v7821, %v7809
    %v8278 = vpack.c.b16 %v7822, %v7810
    %v8279 = vpack.c.b16 %v7823, %v7811
    %v8280 = vpack.c.b16 %v7824, %v7812
    %v8281 = vpack.c.b16 %v7825, %v7813
    %v8282 = vpack.c.b16 %v7826, %v7814
    %v8283 = vpack.c.b16 %v7827, %v7815
    %v8284 = vpack.c.b16 %v7828, %v7816
    %v8285 = vpack.c.b16 %v7829, %v7817
    %v8286 = vpack.c.b16 %v7830, %v7818
    %v8287 = vpack.c.b16 %v7831, %v7819
    %v8288 = vpack.c.b16 %v7844, %v7832
    %v8289 = vpack.c.b16 %v7845, %v7833
    %v8290 = vpack.c.b16 %v7846, %v7834
    %v8291 = vpack.c.b16 %v7847, %v7835
    %v8292 = vpack.c.b16 %v7848, %v7836
    %v8293 = vpack.c.b16 %v7849, %v7837
    %v8294 = vpack.c.b16 %v7850, %v7838
    %v8295 = vpack.c.b16 %v7851, %v7839
    %v8296 = vpack.c.b16 %v7852, %v7840
    %v8297 = vpack.c.b16 %v7853, %v7841
    %v8298 = vpack.c.b16 %v7854, %v7842
    %v8299 = vpack.c.b16 %v7855, %v7843
    %v8300 = vpack.c.b16 %v7868, %v7856
    %v8301 = vpack.c.b16 %v7869, %v7857
    %v8302 = vpack.c.b16 %v7870, %v7858
    %v8303 = vpack.c.b16 %v7871, %v7859
    %v8304 = vpack.c.b16 %v7872, %v7860
    %v8305 = vpack.c.b16 %v7873, %v7861
    %v8306 = vpack.c.b16 %v7874, %v7862
    %v8307 = vpack.c.b16 %v7875, %v7863
    %v8308 = vpack.c.b16 %v7876, %v7864
    %v8309 = vpack.c.b16 %v7877, %v7865
    %v8310 = vpack.c.b16 %v7878, %v7866
    %v8311 = vpack.c.b16 %v7879, %v7867
    %v8312 = vpack.c.b16 %v7892, %v7880
    %v8313 = vpack.c.b16 %v7893, %v7881
    %v8314 = vpack.c.b16 %v7894, %v7882
    %v8315 = vpack.c.b16 %v7895, %v7883
    %v8316 = vpack.c.b16 %v7896, %v7884
    %v8317 = vpack.c.b16 %v7897, %v7885
    %v8318 = vpack.c.b16 %v7898, %v7886
    %v8319 = vpack.c.b16 %v7899, %v7887
    %v8320 = vpack.c.b16 %v7900, %v7888
    %v8321 = vpack.c.b16 %v7901, %v7889
    %v8322 = vpack.c.b16 %v7902, %v7890
    %v8323 = vpack.c.b16 %v7903, %v7891
    %v8324 = vpack.c.b16 %v7916, %v7904
    %v8325 = vpack.c.b16 %v7917, %v7905
    %v8326 = vpack.c.b16 %v7918, %v7906
    %v8327 = vpack.c.b16 %v7919, %v7907
    %v8328 = vpack.c.b16 %v7920, %v7908
    %v8329 = vpack.c.b16 %v7921, %v7909
    %v8330 = vpack.c.b16 %v7922, %v7910
    %v8331 = vpack.c.b16 %v7923, %v7911
    %v8332 = vpack.c.b16 %v7924, %v7912
    %v8333 = vpack.c.b16 %v7925, %v7913
    %v8334 = vpack.c.b16 %v7926, %v7914
    %v8335 = vpack.c.b16 %v7927, %v7915
    %v8336 = vpack.c.b16 %v7940, %v7928
    %v8337 = vpack.c.b16 %v7941, %v7929
    %v8338 = vpack.c.b16 %v7942, %v7930
    %v8339 = vpack.c.b16 %v7943, %v7931
    %v8340 = vpack.c.b16 %v7944, %v7932
    %v8341 = vpack.c.b16 %v7945, %v7933
    %v8342 = vpack.c.b16 %v7946, %v7934
    %v8343 = vpack.c.b16 %v7947, %v7935
    %v8344 = vpack.c.b16 %v7948, %v7936
    %v8345 = vpack.c.b16 %v7949, %v7937
    %v8346 = vpack.c.b16 %v7950, %v7938
    %v8347 = vpack.c.b16 %v7951, %v7939
    %v8348 = vpack.c.b16 %v7964, %v7952
    %v8349 = vpack.c.b16 %v7965, %v7953
    %v8350 = vpack.c.b16 %v7966, %v7954
    %v8351 = vpack.c.b16 %v7967, %v7955
    %v8352 = vpack.c.b16 %v7968, %v7956
    %v8353 = vpack.c.b16 %v7969, %v7957
    %v8354 = vpack.c.b16 %v7970, %v7958
    %v8355 = vpack.c.b16 %v7971, %v7959
    %v8356 = vpack.c.b16 %v7972, %v7960
    %v8357 = vpack.c.b16 %v7973, %v7961
    %v8358 = vpack.c.b16 %v7974, %v7962
    %v8359 = vpack.c.b16 %v7975, %v7963
    %8744 = vmatprep.subr.bf16.mxu0 %v8061
    %8745 = vmatpush1.bf16.msra.mxu0 %v8060
    %8746 = vmatprep.subr.bf16.mxu0 %v8049
    %8747 = vmatpush1.bf16.msra.mxu0 %v8048
    %8748 = vmatprep.subr.bf16.mxu0 %v8037
    %8749 = vmatpush1.bf16.msra.mxu0 %v8036
    %8750 = vmatprep.subr.bf16.mxu0 %v8025
    %8751 = vmatpush1.bf16.msra.mxu0 %v8024
    %8752 = vmatprep.subr.bf16.mxu0 %v8013
    %8753 = vmatpush1.bf16.msra.mxu0 %v8012
    %8754 = vmatprep.subr.bf16.mxu0 %v8001
    %8755 = vmatpush1.bf16.msra.mxu0 %v8000
    %8756 = vmatprep.subr.bf16.mxu0 %v7989
    %8757 = vmatpush1.bf16.msra.mxu0 %v7988
    %8758 = vmatprep.subr.bf16.mxu0 %v7977
    %8759 = vmatpush1.bf16.msra.mxu0 %v7976
    %8760 = vmatprep.subr.bf16.mxu0 %v8157
    %8761 = vmatpush2.bf16.msra.mxu0 %v8156
    %8762 = vmatprep.subr.bf16.mxu0 %v8145
    %8763 = vmatpush2.bf16.msra.mxu0 %v8144
    %8764 = vmatprep.subr.bf16.mxu0 %v8133
    %8765 = vmatpush2.bf16.msra.mxu0 %v8132
    %8766 = vmatprep.subr.bf16.mxu0 %v8121
    %8767 = vmatpush2.bf16.msra.mxu0 %v8120
    %8768 = vmatprep.subr.bf16.mxu0 %v8109
    %8769 = vmatpush2.bf16.msra.mxu0 %v8108
    %8770 = vmatprep.subr.bf16.mxu0 %v8097
    %8771 = vmatpush2.bf16.msra.mxu0 %v8096
    %8772 = vmatprep.subr.bf16.mxu0 %v8085
    %8773 = vmatpush2.bf16.msra.mxu0 %v8084
    %8774 = vmatprep.subr.bf16.mxu0 %v8073
    %8775 = vmatpush2.bf16.msra.mxu0 %v8072
    %8776 = vmatprep.mubr.bf16.mxu0 %v6373
    %8777 = vmatmul.mubr.bf16.gmra.mxu0 %v6372
    %v8778 = vpop.f32.mrf.mxu0
    %v8779 = vadd.f32 %v6767, %v8778
    %v8780 = vpop.f32.mrf.mxu0
    %v8781 = vadd.f32 %v6771, %v8780
    %v8782 = vpop.f32.mrf.mxu0
    %v8783 = vadd.f32 %v6767, %v8782
    %v8784 = vpop.f32.mrf.mxu0
    %v8785 = vadd.f32 %v6771, %v8784
    %8786 = vdwg.mxu0
    %8787 = vmatprep.subr.bf16.mxu0 %v8253
    %8788 = vmatpush1.bf16.msra.mxu0 %v8252
    %8789 = vmatprep.subr.bf16.mxu0 %v8241
    %8790 = vmatpush1.bf16.msra.mxu0 %v8240
    %8791 = vmatprep.subr.bf16.mxu0 %v8229
    %8792 = vmatpush1.bf16.msra.mxu0 %v8228
    %8793 = vmatprep.subr.bf16.mxu0 %v8217
    %8794 = vmatpush1.bf16.msra.mxu0 %v8216
    %8795 = vmatprep.subr.bf16.mxu0 %v8205
    %8796 = vmatpush1.bf16.msra.mxu0 %v8204
    %8797 = vmatprep.subr.bf16.mxu0 %v8193
    %8798 = vmatpush1.bf16.msra.mxu0 %v8192
    %8799 = vmatprep.subr.bf16.mxu0 %v8181
    %8800 = vmatpush1.bf16.msra.mxu0 %v8180
    %8801 = vmatprep.subr.bf16.mxu0 %v8169
    %8802 = vmatpush1.bf16.msra.mxu0 %v8168
    %8803 = vmatprep.subr.bf16.mxu0 %v8349
    %8804 = vmatpush2.bf16.msra.mxu0 %v8348
    %8805 = vmatprep.subr.bf16.mxu0 %v8337
    %8806 = vmatpush2.bf16.msra.mxu0 %v8336
    %8807 = vmatprep.subr.bf16.mxu0 %v8325
    %8808 = vmatpush2.bf16.msra.mxu0 %v8324
    %8809 = vmatprep.subr.bf16.mxu0 %v8313
    %8810 = vmatpush2.bf16.msra.mxu0 %v8312
    %8811 = vmatprep.subr.bf16.mxu0 %v8301
    %8812 = vmatpush2.bf16.msra.mxu0 %v8300
    %8813 = vmatprep.subr.bf16.mxu0 %v8289
    %8814 = vmatpush2.bf16.msra.mxu0 %v8288
    %8815 = vmatprep.subr.bf16.mxu0 %v8277
    %8816 = vmatpush2.bf16.msra.mxu0 %v8276
    %8817 = vmatprep.subr.bf16.mxu0 %v8265
    %8818 = vmatpush2.bf16.msra.mxu0 %v8264
    %8819 = vmatprep.mubr.bf16.mxu0 %v6375
    %8820 = vmatmul.mubr.bf16.gmra.mxu0 %v6374
    %v8821 = vpop.f32.mrf.mxu0
    %v8822 = vadd.f32 %v8779, %v8821
    %v8823 = vpop.f32.mrf.mxu0
    %v8824 = vadd.f32 %v8781, %v8823
    %v8825 = vpop.f32.mrf.mxu0
    %v8826 = vadd.f32 %v8783, %v8825
    %v8827 = vpop.f32.mrf.mxu0
    %v8828 = vadd.f32 %v8785, %v8827
    %8829 = vdwg.mxu0
    %8830 = vmatprep.subr.bf16.mxu0 %v8063
    %8831 = vmatpush1.bf16.msra.mxu0 %v8062
    %8832 = vmatprep.subr.bf16.mxu0 %v8051
    %8833 = vmatpush1.bf16.msra.mxu0 %v8050
    %8834 = vmatprep.subr.bf16.mxu0 %v8039
    %8835 = vmatpush1.bf16.msra.mxu0 %v8038
    %8836 = vmatprep.subr.bf16.mxu0 %v8027
    %8837 = vmatpush1.bf16.msra.mxu0 %v8026
    %8838 = vmatprep.subr.bf16.mxu0 %v8015
    %8839 = vmatpush1.bf16.msra.mxu0 %v8014
    %8840 = vmatprep.subr.bf16.mxu0 %v8003
    %8841 = vmatpush1.bf16.msra.mxu0 %v8002
    %8842 = vmatprep.subr.bf16.mxu0 %v7991
    %8843 = vmatpush1.bf16.msra.mxu0 %v7990
    %8844 = vmatprep.subr.bf16.mxu0 %v7979
    %8845 = vmatpush1.bf16.msra.mxu0 %v7978
    %8846 = vmatprep.subr.bf16.mxu0 %v8159
    %8847 = vmatpush2.bf16.msra.mxu0 %v8158
    %8848 = vmatprep.subr.bf16.mxu0 %v8147
    %8849 = vmatpush2.bf16.msra.mxu0 %v8146
    %8850 = vmatprep.subr.bf16.mxu0 %v8135
    %8851 = vmatpush2.bf16.msra.mxu0 %v8134
    %8852 = vmatprep.subr.bf16.mxu0 %v8123
    %8853 = vmatpush2.bf16.msra.mxu0 %v8122
    %8854 = vmatprep.subr.bf16.mxu0 %v8111
    %8855 = vmatpush2.bf16.msra.mxu0 %v8110
    %8856 = vmatprep.subr.bf16.mxu0 %v8099
    %8857 = vmatpush2.bf16.msra.mxu0 %v8098
    %8858 = vmatprep.subr.bf16.mxu0 %v8087
    %8859 = vmatpush2.bf16.msra.mxu0 %v8086
    %8860 = vmatprep.subr.bf16.mxu0 %v8075
    %8861 = vmatpush2.bf16.msra.mxu0 %v8074
    %8862 = vmatprep.mubr.bf16.mxu0 %v6373
    %8863 = vmatmul.mubr.bf16.gmra.mxu0 %v6372
    %v8864 = vpop.f32.mrf.mxu0
    %v8865 = vadd.f32 %v6775, %v8864
    %v8866 = vpop.f32.mrf.mxu0
    %v8867 = vadd.f32 %v6779, %v8866
    %v8868 = vpop.f32.mrf.mxu0
    %v8869 = vadd.f32 %v6775, %v8868
    %v8870 = vpop.f32.mrf.mxu0
    %v8871 = vadd.f32 %v6779, %v8870
    %8872 = vdwg.mxu0
    %8873 = vmatprep.subr.bf16.mxu0 %v8255
    %8874 = vmatpush1.bf16.msra.mxu0 %v8254
    %8875 = vmatprep.subr.bf16.mxu0 %v8243
    %8876 = vmatpush1.bf16.msra.mxu0 %v8242
    %8877 = vmatprep.subr.bf16.mxu0 %v8231
    %8878 = vmatpush1.bf16.msra.mxu0 %v8230
    %8879 = vmatprep.subr.bf16.mxu0 %v8219
    %8880 = vmatpush1.bf16.msra.mxu0 %v8218
    %8881 = vmatprep.subr.bf16.mxu0 %v8207
    %8882 = vmatpush1.bf16.msra.mxu0 %v8206
    %8883 = vmatprep.subr.bf16.mxu0 %v8195
    %8884 = vmatpush1.bf16.msra.mxu0 %v8194
    %8885 = vmatprep.subr.bf16.mxu0 %v8183
    %8886 = vmatpush1.bf16.msra.mxu0 %v8182
    %8887 = vmatprep.subr.bf16.mxu0 %v8171
    %8888 = vmatpush1.bf16.msra.mxu0 %v8170
    %8889 = vmatprep.subr.bf16.mxu0 %v8351
    %8890 = vmatpush2.bf16.msra.mxu0 %v8350
    %8891 = vmatprep.subr.bf16.mxu0 %v8339
    %8892 = vmatpush2.bf16.msra.mxu0 %v8338
    %8893 = vmatprep.subr.bf16.mxu0 %v8327
    %8894 = vmatpush2.bf16.msra.mxu0 %v8326
    %8895 = vmatprep.subr.bf16.mxu0 %v8315
    %8896 = vmatpush2.bf16.msra.mxu0 %v8314
    %8897 = vmatprep.subr.bf16.mxu0 %v8303
    %8898 = vmatpush2.bf16.msra.mxu0 %v8302
    %8899 = vmatprep.subr.bf16.mxu0 %v8291
    %8900 = vmatpush2.bf16.msra.mxu0 %v8290
    %8901 = vmatprep.subr.bf16.mxu0 %v8279
    %8902 = vmatpush2.bf16.msra.mxu0 %v8278
    %8903 = vmatprep.subr.bf16.mxu0 %v8267
    %8904 = vmatpush2.bf16.msra.mxu0 %v8266
    %8905 = vmatprep.mubr.bf16.mxu0 %v6375
    %8906 = vmatmul.mubr.bf16.gmra.mxu0 %v6374
    %v8907 = vpop.f32.mrf.mxu0
    %v8908 = vadd.f32 %v8865, %v8907
    %v8909 = vpop.f32.mrf.mxu0
    %v8910 = vadd.f32 %v8867, %v8909
    %v8911 = vpop.f32.mrf.mxu0
    %v8912 = vadd.f32 %v8869, %v8911
    %v8913 = vpop.f32.mrf.mxu0
    %v8914 = vadd.f32 %v8871, %v8913
    %8915 = vdwg.mxu0
    %8916 = vmatprep.subr.bf16.mxu0 %v8065
    %8917 = vmatpush1.bf16.msra.mxu0 %v8064
    %8918 = vmatprep.subr.bf16.mxu0 %v8053
    %8919 = vmatpush1.bf16.msra.mxu0 %v8052
    %8920 = vmatprep.subr.bf16.mxu0 %v8041
    %8921 = vmatpush1.bf16.msra.mxu0 %v8040
    %8922 = vmatprep.subr.bf16.mxu0 %v8029
    %8923 = vmatpush1.bf16.msra.mxu0 %v8028
    %8924 = vmatprep.subr.bf16.mxu0 %v8017
    %8925 = vmatpush1.bf16.msra.mxu0 %v8016
    %8926 = vmatprep.subr.bf16.mxu0 %v8005
    %8927 = vmatpush1.bf16.msra.mxu0 %v8004
    %8928 = vmatprep.subr.bf16.mxu0 %v7993
    %8929 = vmatpush1.bf16.msra.mxu0 %v7992
    %8930 = vmatprep.subr.bf16.mxu0 %v7981
    %8931 = vmatpush1.bf16.msra.mxu0 %v7980
    %8932 = vmatprep.subr.bf16.mxu0 %v8161
    %8933 = vmatpush2.bf16.msra.mxu0 %v8160
    %8934 = vmatprep.subr.bf16.mxu0 %v8149
    %8935 = vmatpush2.bf16.msra.mxu0 %v8148
    %8936 = vmatprep.subr.bf16.mxu0 %v8137
    %8937 = vmatpush2.bf16.msra.mxu0 %v8136
    %8938 = vmatprep.subr.bf16.mxu0 %v8125
    %8939 = vmatpush2.bf16.msra.mxu0 %v8124
    %8940 = vmatprep.subr.bf16.mxu0 %v8113
    %8941 = vmatpush2.bf16.msra.mxu0 %v8112
    %8942 = vmatprep.subr.bf16.mxu0 %v8101
    %8943 = vmatpush2.bf16.msra.mxu0 %v8100
    %8944 = vmatprep.subr.bf16.mxu0 %v8089
    %8945 = vmatpush2.bf16.msra.mxu0 %v8088
    %8946 = vmatprep.subr.bf16.mxu0 %v8077
    %8947 = vmatpush2.bf16.msra.mxu0 %v8076
    %8948 = vmatprep.mubr.bf16.mxu0 %v6373
    %8949 = vmatmul.mubr.bf16.gmra.mxu0 %v6372
    %v8950 = vpop.f32.mrf.mxu0
    %v8951 = vadd.f32 %v6783, %v8950
    %v8952 = vpop.f32.mrf.mxu0
    %v8953 = vadd.f32 %v6787, %v8952
    %v8954 = vpop.f32.mrf.mxu0
    %v8955 = vadd.f32 %v6783, %v8954
    %v8956 = vpop.f32.mrf.mxu0
    %v8957 = vadd.f32 %v6787, %v8956
    %8958 = vdwg.mxu0
    %8959 = vmatprep.subr.bf16.mxu0 %v8257
    %8960 = vmatpush1.bf16.msra.mxu0 %v8256
    %8961 = vmatprep.subr.bf16.mxu0 %v8245
    %8962 = vmatpush1.bf16.msra.mxu0 %v8244
    %8963 = vmatprep.subr.bf16.mxu0 %v8233
    %8964 = vmatpush1.bf16.msra.mxu0 %v8232
    %8965 = vmatprep.subr.bf16.mxu0 %v8221
    %8966 = vmatpush1.bf16.msra.mxu0 %v8220
    %8967 = vmatprep.subr.bf16.mxu0 %v8209
    %8968 = vmatpush1.bf16.msra.mxu0 %v8208
    %8969 = vmatprep.subr.bf16.mxu0 %v8197
    %8970 = vmatpush1.bf16.msra.mxu0 %v8196
    %8971 = vmatprep.subr.bf16.mxu0 %v8185
    %8972 = vmatpush1.bf16.msra.mxu0 %v8184
    %8973 = vmatprep.subr.bf16.mxu0 %v8173
    %8974 = vmatpush1.bf16.msra.mxu0 %v8172
    %8975 = vmatprep.subr.bf16.mxu0 %v8353
    %8976 = vmatpush2.bf16.msra.mxu0 %v8352
    %8977 = vmatprep.subr.bf16.mxu0 %v8341
    %8978 = vmatpush2.bf16.msra.mxu0 %v8340
    %8979 = vmatprep.subr.bf16.mxu0 %v8329
    %8980 = vmatpush2.bf16.msra.mxu0 %v8328
    %8981 = vmatprep.subr.bf16.mxu0 %v8317
    %8982 = vmatpush2.bf16.msra.mxu0 %v8316
    %8983 = vmatprep.subr.bf16.mxu0 %v8305
    %8984 = vmatpush2.bf16.msra.mxu0 %v8304
    %8985 = vmatprep.subr.bf16.mxu0 %v8293
    %8986 = vmatpush2.bf16.msra.mxu0 %v8292
    %8987 = vmatprep.subr.bf16.mxu0 %v8281
    %8988 = vmatpush2.bf16.msra.mxu0 %v8280
    %8989 = vmatprep.subr.bf16.mxu0 %v8269
    %8990 = vmatpush2.bf16.msra.mxu0 %v8268
    %8991 = vmatprep.mubr.bf16.mxu0 %v6375
    %8992 = vmatmul.mubr.bf16.gmra.mxu0 %v6374
    %v8993 = vpop.f32.mrf.mxu0
    %v8994 = vadd.f32 %v8951, %v8993
    %v8995 = vpop.f32.mrf.mxu0
    %v8996 = vadd.f32 %v8953, %v8995
    %v8997 = vpop.f32.mrf.mxu0
    %v8998 = vadd.f32 %v8955, %v8997
    %v8999 = vpop.f32.mrf.mxu0
    %v9000 = vadd.f32 %v8957, %v8999
    %9001 = vdwg.mxu0
    %9002 = vmatprep.subr.bf16.mxu0 %v8067
    %9003 = vmatpush1.bf16.msra.mxu0 %v8066
    %9004 = vmatprep.subr.bf16.mxu0 %v8055
    %9005 = vmatpush1.bf16.msra.mxu0 %v8054
    %9006 = vmatprep.subr.bf16.mxu0 %v8043
    %9007 = vmatpush1.bf16.msra.mxu0 %v8042
    %9008 = vmatprep.subr.bf16.mxu0 %v8031
    %9009 = vmatpush1.bf16.msra.mxu0 %v8030
    %9010 = vmatprep.subr.bf16.mxu0 %v8019
    %9011 = vmatpush1.bf16.msra.mxu0 %v8018
    %9012 = vmatprep.subr.bf16.mxu0 %v8007
    %9013 = vmatpush1.bf16.msra.mxu0 %v8006
    %9014 = vmatprep.subr.bf16.mxu0 %v7995
    %9015 = vmatpush1.bf16.msra.mxu0 %v7994
    %9016 = vmatprep.subr.bf16.mxu0 %v7983
    %9017 = vmatpush1.bf16.msra.mxu0 %v7982
    %9018 = vmatprep.subr.bf16.mxu0 %v8163
    %9019 = vmatpush2.bf16.msra.mxu0 %v8162
    %9020 = vmatprep.subr.bf16.mxu0 %v8151
    %9021 = vmatpush2.bf16.msra.mxu0 %v8150
    %9022 = vmatprep.subr.bf16.mxu0 %v8139
    %9023 = vmatpush2.bf16.msra.mxu0 %v8138
    %9024 = vmatprep.subr.bf16.mxu0 %v8127
    %9025 = vmatpush2.bf16.msra.mxu0 %v8126
    %9026 = vmatprep.subr.bf16.mxu0 %v8115
    %9027 = vmatpush2.bf16.msra.mxu0 %v8114
    %9028 = vmatprep.subr.bf16.mxu0 %v8103
    %9029 = vmatpush2.bf16.msra.mxu0 %v8102
    %9030 = vmatprep.subr.bf16.mxu0 %v8091
    %9031 = vmatpush2.bf16.msra.mxu0 %v8090
    %9032 = vmatprep.subr.bf16.mxu0 %v8079
    %9033 = vmatpush2.bf16.msra.mxu0 %v8078
    %9034 = vmatprep.mubr.bf16.mxu0 %v6373
    %9035 = vmatmul.mubr.bf16.gmra.mxu0 %v6372
    %v9036 = vpop.f32.mrf.mxu0
    %v9037 = vadd.f32 %v6791, %v9036
    %v9038 = vpop.f32.mrf.mxu0
    %v9039 = vadd.f32 %v6795, %v9038
    %v9040 = vpop.f32.mrf.mxu0
    %v9041 = vadd.f32 %v6791, %v9040
    %v9042 = vpop.f32.mrf.mxu0
    %v9043 = vadd.f32 %v6795, %v9042
    %9044 = vdwg.mxu0
    %9045 = vmatprep.subr.bf16.mxu0 %v8259
    %9046 = vmatpush1.bf16.msra.mxu0 %v8258
    %9047 = vmatprep.subr.bf16.mxu0 %v8247
    %9048 = vmatpush1.bf16.msra.mxu0 %v8246
    %9049 = vmatprep.subr.bf16.mxu0 %v8235
    %9050 = vmatpush1.bf16.msra.mxu0 %v8234
    %9051 = vmatprep.subr.bf16.mxu0 %v8223
    %9052 = vmatpush1.bf16.msra.mxu0 %v8222
    %9053 = vmatprep.subr.bf16.mxu0 %v8211
    %9054 = vmatpush1.bf16.msra.mxu0 %v8210
    %9055 = vmatprep.subr.bf16.mxu0 %v8199
    %9056 = vmatpush1.bf16.msra.mxu0 %v8198
    %9057 = vmatprep.subr.bf16.mxu0 %v8187
    %9058 = vmatpush1.bf16.msra.mxu0 %v8186
    %9059 = vmatprep.subr.bf16.mxu0 %v8175
    %9060 = vmatpush1.bf16.msra.mxu0 %v8174
    %9061 = vmatprep.subr.bf16.mxu0 %v8355
    %9062 = vmatpush2.bf16.msra.mxu0 %v8354
    %9063 = vmatprep.subr.bf16.mxu0 %v8343
    %9064 = vmatpush2.bf16.msra.mxu0 %v8342
    %9065 = vmatprep.subr.bf16.mxu0 %v8331
    %9066 = vmatpush2.bf16.msra.mxu0 %v8330
    %9067 = vmatprep.subr.bf16.mxu0 %v8319
    %9068 = vmatpush2.bf16.msra.mxu0 %v8318
    %9069 = vmatprep.subr.bf16.mxu0 %v8307
    %9070 = vmatpush2.bf16.msra.mxu0 %v8306
    %9071 = vmatprep.subr.bf16.mxu0 %v8295
    %9072 = vmatpush2.bf16.msra.mxu0 %v8294
    %9073 = vmatprep.subr.bf16.mxu0 %v8283
    %9074 = vmatpush2.bf16.msra.mxu0 %v8282
    %9075 = vmatprep.subr.bf16.mxu0 %v8271
    %9076 = vmatpush2.bf16.msra.mxu0 %v8270
    %9077 = vmatprep.mubr.bf16.mxu0 %v6375
    %9078 = vmatmul.mubr.bf16.gmra.mxu0 %v6374
    %v9079 = vpop.f32.mrf.mxu0
    %v9080 = vadd.f32 %v9037, %v9079
    %v9081 = vpop.f32.mrf.mxu0
    %v9082 = vadd.f32 %v9039, %v9081
    %v9083 = vpop.f32.mrf.mxu0
    %v9084 = vadd.f32 %v9041, %v9083
    %v9085 = vpop.f32.mrf.mxu0
    %v9086 = vadd.f32 %v9043, %v9085
    %9087 = vdwg.mxu0
    %9088 = vmatprep.subr.bf16.mxu0 %v8069
    %9089 = vmatpush1.bf16.msra.mxu0 %v8068
    %9090 = vmatprep.subr.bf16.mxu0 %v8057
    %9091 = vmatpush1.bf16.msra.mxu0 %v8056
    %9092 = vmatprep.subr.bf16.mxu0 %v8045
    %9093 = vmatpush1.bf16.msra.mxu0 %v8044
    %9094 = vmatprep.subr.bf16.mxu0 %v8033
    %9095 = vmatpush1.bf16.msra.mxu0 %v8032
    %9096 = vmatprep.subr.bf16.mxu0 %v8021
    %9097 = vmatpush1.bf16.msra.mxu0 %v8020
    %9098 = vmatprep.subr.bf16.mxu0 %v8009
    %9099 = vmatpush1.bf16.msra.mxu0 %v8008
    %9100 = vmatprep.subr.bf16.mxu0 %v7997
    %9101 = vmatpush1.bf16.msra.mxu0 %v7996
    %9102 = vmatprep.subr.bf16.mxu0 %v7985
    %9103 = vmatpush1.bf16.msra.mxu0 %v7984
    %9104 = vmatprep.subr.bf16.mxu0 %v8165
    %9105 = vmatpush2.bf16.msra.mxu0 %v8164
    %9106 = vmatprep.subr.bf16.mxu0 %v8153
    %9107 = vmatpush2.bf16.msra.mxu0 %v8152
    %9108 = vmatprep.subr.bf16.mxu0 %v8141
    %9109 = vmatpush2.bf16.msra.mxu0 %v8140
    %9110 = vmatprep.subr.bf16.mxu0 %v8129
    %9111 = vmatpush2.bf16.msra.mxu0 %v8128
    %9112 = vmatprep.subr.bf16.mxu0 %v8117
    %9113 = vmatpush2.bf16.msra.mxu0 %v8116
    %9114 = vmatprep.subr.bf16.mxu0 %v8105
    %9115 = vmatpush2.bf16.msra.mxu0 %v8104
    %9116 = vmatprep.subr.bf16.mxu0 %v8093
    %9117 = vmatpush2.bf16.msra.mxu0 %v8092
    %9118 = vmatprep.subr.bf16.mxu0 %v8081
    %9119 = vmatpush2.bf16.msra.mxu0 %v8080
    %9120 = vmatprep.mubr.bf16.mxu0 %v6373
    %9121 = vmatmul.mubr.bf16.gmra.mxu0 %v6372
    %v9122 = vpop.f32.mrf.mxu0
    %v9123 = vadd.f32 %v6799, %v9122
    %v9124 = vpop.f32.mrf.mxu0
    %v9125 = vadd.f32 %v6803, %v9124
    %v9126 = vpop.f32.mrf.mxu0
    %v9127 = vadd.f32 %v6799, %v9126
    %v9128 = vpop.f32.mrf.mxu0
    %v9129 = vadd.f32 %v6803, %v9128
    %9130 = vdwg.mxu0
    %9131 = vmatprep.subr.bf16.mxu0 %v8261
    %9132 = vmatpush1.bf16.msra.mxu0 %v8260
    %9133 = vmatprep.subr.bf16.mxu0 %v8249
    %9134 = vmatpush1.bf16.msra.mxu0 %v8248
    %9135 = vmatprep.subr.bf16.mxu0 %v8237
    %9136 = vmatpush1.bf16.msra.mxu0 %v8236
    %9137 = vmatprep.subr.bf16.mxu0 %v8225
    %9138 = vmatpush1.bf16.msra.mxu0 %v8224
    %9139 = vmatprep.subr.bf16.mxu0 %v8213
    %9140 = vmatpush1.bf16.msra.mxu0 %v8212
    %9141 = vmatprep.subr.bf16.mxu0 %v8201
    %9142 = vmatpush1.bf16.msra.mxu0 %v8200
    %9143 = vmatprep.subr.bf16.mxu0 %v8189
    %9144 = vmatpush1.bf16.msra.mxu0 %v8188
    %9145 = vmatprep.subr.bf16.mxu0 %v8177
    %9146 = vmatpush1.bf16.msra.mxu0 %v8176
    %9147 = vmatprep.subr.bf16.mxu0 %v8357
    %9148 = vmatpush2.bf16.msra.mxu0 %v8356
    %9149 = vmatprep.subr.bf16.mxu0 %v8345
    %9150 = vmatpush2.bf16.msra.mxu0 %v8344
    %9151 = vmatprep.subr.bf16.mxu0 %v8333
    %9152 = vmatpush2.bf16.msra.mxu0 %v8332
    %9153 = vmatprep.subr.bf16.mxu0 %v8321
    %9154 = vmatpush2.bf16.msra.mxu0 %v8320
    %9155 = vmatprep.subr.bf16.mxu0 %v8309
    %9156 = vmatpush2.bf16.msra.mxu0 %v8308
    %9157 = vmatprep.subr.bf16.mxu0 %v8297
    %9158 = vmatpush2.bf16.msra.mxu0 %v8296
    %9159 = vmatprep.subr.bf16.mxu0 %v8285
    %9160 = vmatpush2.bf16.msra.mxu0 %v8284
    %9161 = vmatprep.subr.bf16.mxu0 %v8273
    %9162 = vmatpush2.bf16.msra.mxu0 %v8272
    %9163 = vmatprep.mubr.bf16.mxu0 %v6375
    %9164 = vmatmul.mubr.bf16.gmra.mxu0 %v6374
    %v9165 = vpop.f32.mrf.mxu0
    %v9166 = vadd.f32 %v9123, %v9165
    %v9167 = vpop.f32.mrf.mxu0
    %v9168 = vadd.f32 %v9125, %v9167
    %v9169 = vpop.f32.mrf.mxu0
    %v9170 = vadd.f32 %v9127, %v9169
    %v9171 = vpop.f32.mrf.mxu0
    %v9172 = vadd.f32 %v9129, %v9171
    %9173 = vdwg.mxu0
    %9174 = vmatprep.subr.bf16.mxu0 %v8071
    %9175 = vmatpush1.bf16.msra.mxu0 %v8070
    %9176 = vmatprep.subr.bf16.mxu0 %v8059
    %9177 = vmatpush1.bf16.msra.mxu0 %v8058
    %9178 = vmatprep.subr.bf16.mxu0 %v8047
    %9179 = vmatpush1.bf16.msra.mxu0 %v8046
    %9180 = vmatprep.subr.bf16.mxu0 %v8035
    %9181 = vmatpush1.bf16.msra.mxu0 %v8034
    %9182 = vmatprep.subr.bf16.mxu0 %v8023
    %9183 = vmatpush1.bf16.msra.mxu0 %v8022
    %9184 = vmatprep.subr.bf16.mxu0 %v8011
    %9185 = vmatpush1.bf16.msra.mxu0 %v8010
    %9186 = vmatprep.subr.bf16.mxu0 %v7999
    %9187 = vmatpush1.bf16.msra.mxu0 %v7998
    %9188 = vmatprep.subr.bf16.mxu0 %v7987
    %9189 = vmatpush1.bf16.msra.mxu0 %v7986
    %9190 = vmatprep.subr.bf16.mxu0 %v8167
    %9191 = vmatpush2.bf16.msra.mxu0 %v8166
    %9192 = vmatprep.subr.bf16.mxu0 %v8155
    %9193 = vmatpush2.bf16.msra.mxu0 %v8154
    %9194 = vmatprep.subr.bf16.mxu0 %v8143
    %9195 = vmatpush2.bf16.msra.mxu0 %v8142
    %9196 = vmatprep.subr.bf16.mxu0 %v8131
    %9197 = vmatpush2.bf16.msra.mxu0 %v8130
    %9198 = vmatprep.subr.bf16.mxu0 %v8119
    %9199 = vmatpush2.bf16.msra.mxu0 %v8118
    %9200 = vmatprep.subr.bf16.mxu0 %v8107
    %9201 = vmatpush2.bf16.msra.mxu0 %v8106
    %9202 = vmatprep.subr.bf16.mxu0 %v8095
    %9203 = vmatpush2.bf16.msra.mxu0 %v8094
    %9204 = vmatprep.subr.bf16.mxu0 %v8083
    %9205 = vmatpush2.bf16.msra.mxu0 %v8082
    %9206 = vmatprep.mubr.bf16.mxu0 %v6373
    %9207 = vmatmul.mubr.bf16.gmra.mxu0 %v6372
    %v9208 = vpop.f32.mrf.mxu0
    %v9209 = vadd.f32 %v6807, %v9208
    %v9210 = vpop.f32.mrf.mxu0
    %v9211 = vadd.f32 %v6811, %v9210
    %v9212 = vpop.f32.mrf.mxu0
    %v9213 = vadd.f32 %v6807, %v9212
    %v9214 = vpop.f32.mrf.mxu0
    %v9215 = vadd.f32 %v6811, %v9214
    %9216 = vdwg.mxu0
    %9217 = vmatprep.subr.bf16.mxu0 %v8263
    %9218 = vmatpush1.bf16.msra.mxu0 %v8262
    %9219 = vmatprep.subr.bf16.mxu0 %v8251
    %9220 = vmatpush1.bf16.msra.mxu0 %v8250
    %9221 = vmatprep.subr.bf16.mxu0 %v8239
    %9222 = vmatpush1.bf16.msra.mxu0 %v8238
    %9223 = vmatprep.subr.bf16.mxu0 %v8227
    %9224 = vmatpush1.bf16.msra.mxu0 %v8226
    %9225 = vmatprep.subr.bf16.mxu0 %v8215
    %9226 = vmatpush1.bf16.msra.mxu0 %v8214
    %9227 = vmatprep.subr.bf16.mxu0 %v8203
    %9228 = vmatpush1.bf16.msra.mxu0 %v8202
    %9229 = vmatprep.subr.bf16.mxu0 %v8191
    %9230 = vmatpush1.bf16.msra.mxu0 %v8190
    %9231 = vmatprep.subr.bf16.mxu0 %v8179
    %9232 = vmatpush1.bf16.msra.mxu0 %v8178
    %9233 = vmatprep.subr.bf16.mxu0 %v8359
    %9234 = vmatpush2.bf16.msra.mxu0 %v8358
    %9235 = vmatprep.subr.bf16.mxu0 %v8347
    %9236 = vmatpush2.bf16.msra.mxu0 %v8346
    %9237 = vmatprep.subr.bf16.mxu0 %v8335
    %9238 = vmatpush2.bf16.msra.mxu0 %v8334
    %9239 = vmatprep.subr.bf16.mxu0 %v8323
    %9240 = vmatpush2.bf16.msra.mxu0 %v8322
    %9241 = vmatprep.subr.bf16.mxu0 %v8311
    %9242 = vmatpush2.bf16.msra.mxu0 %v8310
    %9243 = vmatprep.subr.bf16.mxu0 %v8299
    %9244 = vmatpush2.bf16.msra.mxu0 %v8298
    %9245 = vmatprep.subr.bf16.mxu0 %v8287
    %9246 = vmatpush2.bf16.msra.mxu0 %v8286
    %9247 = vmatprep.subr.bf16.mxu0 %v8275
    %9248 = vmatpush2.bf16.msra.mxu0 %v8274
    %9249 = vmatprep.mubr.bf16.mxu0 %v6375
    %9250 = vmatmul.mubr.bf16.gmra.mxu0 %v6374
    %v9251 = vpop.f32.mrf.mxu0
    %v9252 = vadd.f32 %v9209, %v9251
    %v9253 = vpop.f32.mrf.mxu0
    %v9254 = vadd.f32 %v9211, %v9253
    %v9255 = vpop.f32.mrf.mxu0
    %v9256 = vadd.f32 %v9213, %v9255
    %v9257 = vpop.f32.mrf.mxu0
    %v9258 = vadd.f32 %v9215, %v9257
    %9259 = vdwg.mxu0
    %v9260 = vadd.f32 %v8822, %v8824
    %v9261 = vadd.f32 %v9260, %v8908
    %v9262 = vadd.f32 %v9261, %v8910
    %v9263 = vadd.f32 %v9262, %v8994
    %v9264 = vadd.f32 %v9263, %v8996
    %v9265 = vadd.f32 %v9264, %v9080
    %v9266 = vadd.f32 %v9265, %v9082
    %v9267 = vadd.f32 %v9266, %v9166
    %v9268 = vadd.f32 %v9267, %v9168
    %v9269 = vadd.f32 %v9268, %v9252
    %v9270 = vadd.f32 %v9269, %v9254
    %9271 = vadd.xlane.f32.xlu0 %v9270
    %v9272 = vpop.xlane.xlu0 %9271
    %v9273 = vadd.f32 %v8826, %v8828
    %v9274 = vadd.f32 %v9273, %v8912
    %v9275 = vadd.f32 %v9274, %v8914
    %v9276 = vadd.f32 %v9275, %v8998
    %v9277 = vadd.f32 %v9276, %v9000
    %v9278 = vadd.f32 %v9277, %v9084
    %v9279 = vadd.f32 %v9278, %v9086
    %v9280 = vadd.f32 %v9279, %v9170
    %v9281 = vadd.f32 %v9280, %v9172
    %v9282 = vadd.f32 %v9281, %v9256
    %v9283 = vadd.f32 %v9282, %v9258
    %9284 = vadd.xlane.f32.xlu0 %v9283
    %v9285 = vpop.xlane.xlu0 %9284
    %v9286 = vrcp.pop 1536.0
    %v9287 = vmul.f32 %v9272, %v9286
    %v9288 = vmul.f32 %v9285, %v9286
    %v9289 = vsub.f32 %v8822, %v9287
    %v9290 = vsub.f32 %v8824, %v9287
    %v9291 = vsub.f32 %v8908, %v9287
    %v9292 = vsub.f32 %v8910, %v9287
    %v9293 = vsub.f32 %v8994, %v9287
    %v9294 = vsub.f32 %v8996, %v9287
    %v9295 = vsub.f32 %v9080, %v9287
    %v9296 = vsub.f32 %v9082, %v9287
    %v9297 = vsub.f32 %v9166, %v9287
    %v9298 = vsub.f32 %v9168, %v9287
    %v9299 = vsub.f32 %v9252, %v9287
    %v9300 = vsub.f32 %v9254, %v9287
    %v9301 = vsub.f32 %v8826, %v9288
    %v9302 = vsub.f32 %v8828, %v9288
    %v9303 = vsub.f32 %v8912, %v9288
    %v9304 = vsub.f32 %v8914, %v9288
    %v9305 = vsub.f32 %v8998, %v9288
    %v9306 = vsub.f32 %v9000, %v9288
    %v9307 = vsub.f32 %v9084, %v9288
    %v9308 = vsub.f32 %v9086, %v9288
    %v9309 = vsub.f32 %v9170, %v9288
    %v9310 = vsub.f32 %v9172, %v9288
    %v9311 = vsub.f32 %v9256, %v9288
    %v9312 = vsub.f32 %v9258, %v9288
    %v9313 = vmul.f32 %v9289, %v9289
    %v9314 = vmul.f32 %v9290, %v9290
    %v9315 = vmul.f32 %v9291, %v9291
    %v9316 = vmul.f32 %v9292, %v9292
    %v9317 = vmul.f32 %v9293, %v9293
    %v9318 = vmul.f32 %v9294, %v9294
    %v9319 = vmul.f32 %v9295, %v9295
    %v9320 = vmul.f32 %v9296, %v9296
    %v9321 = vmul.f32 %v9297, %v9297
    %v9322 = vmul.f32 %v9298, %v9298
    %v9323 = vmul.f32 %v9299, %v9299
    %v9324 = vmul.f32 %v9300, %v9300
    %v9325 = vmul.f32 %v9301, %v9301
    %v9326 = vmul.f32 %v9302, %v9302
    %v9327 = vmul.f32 %v9303, %v9303
    %v9328 = vmul.f32 %v9304, %v9304
    %v9329 = vmul.f32 %v9305, %v9305
    %v9330 = vmul.f32 %v9306, %v9306
    %v9331 = vmul.f32 %v9307, %v9307
    %v9332 = vmul.f32 %v9308, %v9308
    %v9333 = vmul.f32 %v9309, %v9309
    %v9334 = vmul.f32 %v9310, %v9310
    %v9335 = vmul.f32 %v9311, %v9311
    %v9336 = vmul.f32 %v9312, %v9312
    %v9337 = vadd.f32 %v9313, %v9314
    %v9338 = vadd.f32 %v9337, %v9315
    %v9339 = vadd.f32 %v9338, %v9316
    %v9340 = vadd.f32 %v9339, %v9317
    %v9341 = vadd.f32 %v9340, %v9318
    %v9342 = vadd.f32 %v9341, %v9319
    %v9343 = vadd.f32 %v9342, %v9320
    %v9344 = vadd.f32 %v9343, %v9321
    %v9345 = vadd.f32 %v9344, %v9322
    %v9346 = vadd.f32 %v9345, %v9323
    %v9347 = vadd.f32 %v9346, %v9324
    %9348 = vadd.xlane.f32.xlu0 %v9347
    %v9349 = vpop.xlane.xlu0 %9348
    %v9350 = vadd.f32 %v9325, %v9326
    %v9351 = vadd.f32 %v9350, %v9327
    %v9352 = vadd.f32 %v9351, %v9328
    %v9353 = vadd.f32 %v9352, %v9329
    %v9354 = vadd.f32 %v9353, %v9330
    %v9355 = vadd.f32 %v9354, %v9331
    %v9356 = vadd.f32 %v9355, %v9332
    %v9357 = vadd.f32 %v9356, %v9333
    %v9358 = vadd.f32 %v9357, %v9334
    %v9359 = vadd.f32 %v9358, %v9335
    %v9360 = vadd.f32 %v9359, %v9336
    %9361 = vadd.xlane.f32.xlu0 %v9360
    %v9362 = vpop.xlane.xlu0 %9361
    %v9363 = vmul.f32 %v9349, %v9286
    %v9364 = vmul.f32 %v9362, %v9286
    %v9365 = vadd.f32 %v9363, 1e-06
    %v9366 = vadd.f32 %v9364, 1e-06
    %v9367 = vrsqrt.pop %v9365
    %v9368 = vrsqrt.pop %v9366
    %v9369 = vmul.f32 %v9289, %v9367
    %v9370 = vmul.f32 %v9290, %v9367
    %v9371 = vmul.f32 %v9291, %v9367
    %v9372 = vmul.f32 %v9292, %v9367
    %v9373 = vmul.f32 %v9293, %v9367
    %v9374 = vmul.f32 %v9294, %v9367
    %v9375 = vmul.f32 %v9295, %v9367
    %v9376 = vmul.f32 %v9296, %v9367
    %v9377 = vmul.f32 %v9297, %v9367
    %v9378 = vmul.f32 %v9298, %v9367
    %v9379 = vmul.f32 %v9299, %v9367
    %v9380 = vmul.f32 %v9300, %v9367
    %v9381 = vmul.f32 %v9301, %v9368
    %v9382 = vmul.f32 %v9302, %v9368
    %v9383 = vmul.f32 %v9303, %v9368
    %v9384 = vmul.f32 %v9304, %v9368
    %v9385 = vmul.f32 %v9305, %v9368
    %v9386 = vmul.f32 %v9306, %v9368
    %v9387 = vmul.f32 %v9307, %v9368
    %v9388 = vmul.f32 %v9308, %v9368
    %v9389 = vmul.f32 %v9309, %v9368
    %v9390 = vmul.f32 %v9310, %v9368
    %v9391 = vmul.f32 %v9311, %v9368
    %v9392 = vmul.f32 %v9312, %v9368
    %v9393 = vpack.c.bf16 %v9381, %v9369
    %v9394 = vpack.c.bf16 %v9382, %v9370
    %v9395 = vpack.c.bf16 %v9383, %v9371
    %v9396 = vpack.c.bf16 %v9384, %v9372
    %v9397 = vpack.c.bf16 %v9385, %v9373
    %v9398 = vpack.c.bf16 %v9386, %v9374
    %v9399 = vpack.c.bf16 %v9387, %v9375
    %v9400 = vpack.c.bf16 %v9388, %v9376
    %v9401 = vpack.c.bf16 %v9389, %v9377
    %v9402 = vpack.c.bf16 %v9390, %v9378
    %v9403 = vpack.c.bf16 %v9391, %v9379
    %v9404 = vpack.c.bf16 %v9392, %v9380
    %v9405 = vld [vmem:[#allocation19] sm:$0xff]
    %v9406 = vld [vmem:[#allocation19 + $0x8] sm:$0xff]
    %v9407 = vld [vmem:[#allocation19 + $0x10] sm:$0xff]
    %v9408 = vld [vmem:[#allocation19 + $0x18] sm:$0xff]
    %v9409 = vld [vmem:[#allocation19 + $0x20] sm:$0xff]
    %v9410 = vld [vmem:[#allocation19 + $0x28] sm:$0xff]
    %v9411 = vld [vmem:[#allocation19 + $0x30] sm:$0xff]
    %v9412 = vld [vmem:[#allocation19 + $0x38] sm:$0xff]
    %v9413 = vld [vmem:[#allocation19 + $0x40] sm:$0xff]
    %v9414 = vld [vmem:[#allocation19 + $0x48] sm:$0xff]
    %v9415 = vld [vmem:[#allocation19 + $0x50] sm:$0xff]
    %v9416 = vld [vmem:[#allocation19 + $0x58] sm:$0xff]
    %v9417 = vld [vmem:[#allocation19 + $0x60] sm:$0xff]
    %v9418 = vld [vmem:[#allocation19 + $0x68] sm:$0xff]
    %v9419 = vld [vmem:[#allocation19 + $0x70] sm:$0xff]
    %v9420 = vld [vmem:[#allocation19 + $0x78] sm:$0xff]
    %v9421 = vld [vmem:[#allocation19 + $0x80] sm:$0xff]
    %v9422 = vld [vmem:[#allocation19 + $0x88] sm:$0xff]
    %v9423 = vld [vmem:[#allocation19 + $0x90] sm:$0xff]
    %v9424 = vld [vmem:[#allocation19 + $0x98] sm:$0xff]
    %v9425 = vld [vmem:[#allocation19 + $0xa0] sm:$0xff]
    %v9426 = vld [vmem:[#allocation19 + $0xa8] sm:$0xff]
    %v9427 = vld [vmem:[#allocation19 + $0xb0] sm:$0xff]
    %v9428 = vld [vmem:[#allocation19 + $0xb8] sm:$0xff]
    %v9429 = vld [vmem:[#allocation19 + $0xc0] sm:$0xff]
    %v9430 = vld [vmem:[#allocation19 + $0xc8] sm:$0xff]
    %v9431 = vld [vmem:[#allocation19 + $0xd0] sm:$0xff]
    %v9432 = vld [vmem:[#allocation19 + $0xd8] sm:$0xff]
    %v9433 = vld [vmem:[#allocation19 + $0xe0] sm:$0xff]
    %v9434 = vld [vmem:[#allocation19 + $0xe8] sm:$0xff]
    %v9435 = vld [vmem:[#allocation19 + $0xf0] sm:$0xff]
    %v9436 = vld [vmem:[#allocation19 + $0xf8] sm:$0xff]
    %v9437 = vld [vmem:[#allocation19 + $0x100] sm:$0xff]
    %v9438 = vld [vmem:[#allocation19 + $0x108] sm:$0xff]
    %v9439 = vld [vmem:[#allocation19 + $0x110] sm:$0xff]
    %v9440 = vld [vmem:[#allocation19 + $0x118] sm:$0xff]
    %v9441 = vld [vmem:[#allocation19 + $0x120] sm:$0xff]
    %v9442 = vld [vmem:[#allocation19 + $0x128] sm:$0xff]
    %v9443 = vld [vmem:[#allocation19 + $0x130] sm:$0xff]
    %v9444 = vld [vmem:[#allocation19 + $0x138] sm:$0xff]
    %v9445 = vld [vmem:[#allocation19 + $0x140] sm:$0xff]
    %v9446 = vld [vmem:[#allocation19 + $0x148] sm:$0xff]
    %v9447 = vld [vmem:[#allocation19 + $0x150] sm:$0xff]
    %v9448 = vld [vmem:[#allocation19 + $0x158] sm:$0xff]
    %v9449 = vld [vmem:[#allocation19 + $0x160] sm:$0xff]
    %v9450 = vld [vmem:[#allocation19 + $0x168] sm:$0xff]
    %v9451 = vld [vmem:[#allocation19 + $0x170] sm:$0xff]
    %v9452 = vld [vmem:[#allocation19 + $0x178] sm:$0xff]
    %v9453 = vld [vmem:[#allocation19 + $0x180] sm:$0xff]
    %v9454 = vld [vmem:[#allocation19 + $0x188] sm:$0xff]
    %v9455 = vld [vmem:[#allocation19 + $0x190] sm:$0xff]
    %v9456 = vld [vmem:[#allocation19 + $0x198] sm:$0xff]
    %v9457 = vld [vmem:[#allocation19 + $0x1a0] sm:$0xff]
    %v9458 = vld [vmem:[#allocation19 + $0x1a8] sm:$0xff]
    %v9459 = vld [vmem:[#allocation19 + $0x1b0] sm:$0xff]
    %v9460 = vld [vmem:[#allocation19 + $0x1b8] sm:$0xff]
    %v9461 = vld [vmem:[#allocation19 + $0x1c0] sm:$0xff]
    %v9462 = vld [vmem:[#allocation19 + $0x1c8] sm:$0xff]
    %v9463 = vld [vmem:[#allocation19 + $0x1d0] sm:$0xff]
    %v9464 = vld [vmem:[#allocation19 + $0x1d8] sm:$0xff]
    %v9465 = vld [vmem:[#allocation19 + $0x1e0] sm:$0xff]
    %v9466 = vld [vmem:[#allocation19 + $0x1e8] sm:$0xff]
    %v9467 = vld [vmem:[#allocation19 + $0x1f0] sm:$0xff]
    %v9468 = vld [vmem:[#allocation19 + $0x1f8] sm:$0xff]
    %v9469 = vld [vmem:[#allocation19 + $0x200] sm:$0xff]
    %v9470 = vld [vmem:[#allocation19 + $0x208] sm:$0xff]
    %v9471 = vld [vmem:[#allocation19 + $0x210] sm:$0xff]
    %v9472 = vld [vmem:[#allocation19 + $0x218] sm:$0xff]
    %v9473 = vld [vmem:[#allocation19 + $0x220] sm:$0xff]
    %v9474 = vld [vmem:[#allocation19 + $0x228] sm:$0xff]
    %v9475 = vld [vmem:[#allocation19 + $0x230] sm:$0xff]
    %v9476 = vld [vmem:[#allocation19 + $0x238] sm:$0xff]
    %v9477 = vld [vmem:[#allocation19 + $0x240] sm:$0xff]
    %v9478 = vld [vmem:[#allocation19 + $0x248] sm:$0xff]
    %v9479 = vld [vmem:[#allocation19 + $0x250] sm:$0xff]
    %v9480 = vld [vmem:[#allocation19 + $0x258] sm:$0xff]
    %v9481 = vld [vmem:[#allocation19 + $0x260] sm:$0xff]
    %v9482 = vld [vmem:[#allocation19 + $0x268] sm:$0xff]
    %v9483 = vld [vmem:[#allocation19 + $0x270] sm:$0xff]
    %v9484 = vld [vmem:[#allocation19 + $0x278] sm:$0xff]
    %v9485 = vld [vmem:[#allocation19 + $0x280] sm:$0xff]
    %v9486 = vld [vmem:[#allocation19 + $0x288] sm:$0xff]
    %v9487 = vld [vmem:[#allocation19 + $0x290] sm:$0xff]
    %v9488 = vld [vmem:[#allocation19 + $0x298] sm:$0xff]
    %v9489 = vld [vmem:[#allocation19 + $0x2a0] sm:$0xff]
    %v9490 = vld [vmem:[#allocation19 + $0x2a8] sm:$0xff]
    %v9491 = vld [vmem:[#allocation19 + $0x2b0] sm:$0xff]
    %v9492 = vld [vmem:[#allocation19 + $0x2b8] sm:$0xff]
    %v9493 = vld [vmem:[#allocation19 + $0x2c0] sm:$0xff]
    %v9494 = vld [vmem:[#allocation19 + $0x2c8] sm:$0xff]
    %v9495 = vld [vmem:[#allocation19 + $0x2d0] sm:$0xff]
    %v9496 = vld [vmem:[#allocation19 + $0x2d8] sm:$0xff]
    %v9497 = vld [vmem:[#allocation19 + $0x2e0] sm:$0xff]
    %v9498 = vld [vmem:[#allocation19 + $0x2e8] sm:$0xff]
    %v9499 = vld [vmem:[#allocation19 + $0x2f0] sm:$0xff]
    %v9500 = vld [vmem:[#allocation19 + $0x2f8] sm:$0xff]
    %v9501 = vld [vmem:[#allocation19 + $0x300] sm:$0xff]
    %v9502 = vld [vmem:[#allocation19 + $0x308] sm:$0xff]
    %v9503 = vld [vmem:[#allocation19 + $0x310] sm:$0xff]
    %v9504 = vld [vmem:[#allocation19 + $0x318] sm:$0xff]
    %v9505 = vld [vmem:[#allocation19 + $0x320] sm:$0xff]
    %v9506 = vld [vmem:[#allocation19 + $0x328] sm:$0xff]
    %v9507 = vld [vmem:[#allocation19 + $0x330] sm:$0xff]
    %v9508 = vld [vmem:[#allocation19 + $0x338] sm:$0xff]
    %v9509 = vld [vmem:[#allocation19 + $0x340] sm:$0xff]
    %v9510 = vld [vmem:[#allocation19 + $0x348] sm:$0xff]
    %v9511 = vld [vmem:[#allocation19 + $0x350] sm:$0xff]
    %v9512 = vld [vmem:[#allocation19 + $0x358] sm:$0xff]
    %v9513 = vld [vmem:[#allocation19 + $0x360] sm:$0xff]
    %v9514 = vld [vmem:[#allocation19 + $0x368] sm:$0xff]
    %v9515 = vld [vmem:[#allocation19 + $0x370] sm:$0xff]
    %v9516 = vld [vmem:[#allocation19 + $0x378] sm:$0xff]
    %v9517 = vld [vmem:[#allocation19 + $0x380] sm:$0xff]
    %v9518 = vld [vmem:[#allocation19 + $0x388] sm:$0xff]
    %v9519 = vld [vmem:[#allocation19 + $0x390] sm:$0xff]
    %v9520 = vld [vmem:[#allocation19 + $0x398] sm:$0xff]
    %v9521 = vld [vmem:[#allocation19 + $0x3a0] sm:$0xff]
    %v9522 = vld [vmem:[#allocation19 + $0x3a8] sm:$0xff]
    %v9523 = vld [vmem:[#allocation19 + $0x3b0] sm:$0xff]
    %v9524 = vld [vmem:[#allocation19 + $0x3b8] sm:$0xff]
    %v9525 = vld [vmem:[#allocation19 + $0x3c0] sm:$0xff]
    %v9526 = vld [vmem:[#allocation19 + $0x3c8] sm:$0xff]
    %v9527 = vld [vmem:[#allocation19 + $0x3d0] sm:$0xff]
    %v9528 = vld [vmem:[#allocation19 + $0x3d8] sm:$0xff]
    %v9529 = vld [vmem:[#allocation19 + $0x3e0] sm:$0xff]
    %v9530 = vld [vmem:[#allocation19 + $0x3e8] sm:$0xff]
    %v9531 = vld [vmem:[#allocation19 + $0x3f0] sm:$0xff]
    %v9532 = vld [vmem:[#allocation19 + $0x3f8] sm:$0xff]
    %v9533 = vld [vmem:[#allocation19 + $0x400] sm:$0xff]
    %v9534 = vld [vmem:[#allocation19 + $0x408] sm:$0xff]
    %v9535 = vld [vmem:[#allocation19 + $0x410] sm:$0xff]
    %v9536 = vld [vmem:[#allocation19 + $0x418] sm:$0xff]
    %v9537 = vld [vmem:[#allocation19 + $0x420] sm:$0xff]
    %v9538 = vld [vmem:[#allocation19 + $0x428] sm:$0xff]
    %v9539 = vld [vmem:[#allocation19 + $0x430] sm:$0xff]
    %v9540 = vld [vmem:[#allocation19 + $0x438] sm:$0xff]
    %v9541 = vld [vmem:[#allocation19 + $0x440] sm:$0xff]
    %v9542 = vld [vmem:[#allocation19 + $0x448] sm:$0xff]
    %v9543 = vld [vmem:[#allocation19 + $0x450] sm:$0xff]
    %v9544 = vld [vmem:[#allocation19 + $0x458] sm:$0xff]
    %v9545 = vld [vmem:[#allocation19 + $0x460] sm:$0xff]
    %v9546 = vld [vmem:[#allocation19 + $0x468] sm:$0xff]
    %v9547 = vld [vmem:[#allocation19 + $0x470] sm:$0xff]
    %v9548 = vld [vmem:[#allocation19 + $0x478] sm:$0xff]
    %v9549 = vld [vmem:[#allocation19 + $0x480] sm:$0xff]
    %v9550 = vld [vmem:[#allocation19 + $0x488] sm:$0xff]
    %v9551 = vld [vmem:[#allocation19 + $0x490] sm:$0xff]
    %v9552 = vld [vmem:[#allocation19 + $0x498] sm:$0xff]
    %v9553 = vld [vmem:[#allocation19 + $0x4a0] sm:$0xff]
    %v9554 = vld [vmem:[#allocation19 + $0x4a8] sm:$0xff]
    %v9555 = vld [vmem:[#allocation19 + $0x4b0] sm:$0xff]
    %v9556 = vld [vmem:[#allocation19 + $0x4b8] sm:$0xff]
    %v9557 = vld [vmem:[#allocation19 + $0x4c0] sm:$0xff]
    %v9558 = vld [vmem:[#allocation19 + $0x4c8] sm:$0xff]
    %v9559 = vld [vmem:[#allocation19 + $0x4d0] sm:$0xff]
    %v9560 = vld [vmem:[#allocation19 + $0x4d8] sm:$0xff]
    %v9561 = vld [vmem:[#allocation19 + $0x4e0] sm:$0xff]
    %v9562 = vld [vmem:[#allocation19 + $0x4e8] sm:$0xff]
    %v9563 = vld [vmem:[#allocation19 + $0x4f0] sm:$0xff]
    %v9564 = vld [vmem:[#allocation19 + $0x4f8] sm:$0xff]
    %v9565 = vld [vmem:[#allocation19 + $0x500] sm:$0xff]
    %v9566 = vld [vmem:[#allocation19 + $0x508] sm:$0xff]
    %v9567 = vld [vmem:[#allocation19 + $0x510] sm:$0xff]
    %v9568 = vld [vmem:[#allocation19 + $0x518] sm:$0xff]
    %v9569 = vld [vmem:[#allocation19 + $0x520] sm:$0xff]
    %v9570 = vld [vmem:[#allocation19 + $0x528] sm:$0xff]
    %v9571 = vld [vmem:[#allocation19 + $0x530] sm:$0xff]
    %v9572 = vld [vmem:[#allocation19 + $0x538] sm:$0xff]
    %v9573 = vld [vmem:[#allocation19 + $0x540] sm:$0xff]
    %v9574 = vld [vmem:[#allocation19 + $0x548] sm:$0xff]
    %v9575 = vld [vmem:[#allocation19 + $0x550] sm:$0xff]
    %v9576 = vld [vmem:[#allocation19 + $0x558] sm:$0xff]
    %v9577 = vld [vmem:[#allocation19 + $0x560] sm:$0xff]
    %v9578 = vld [vmem:[#allocation19 + $0x568] sm:$0xff]
    %v9579 = vld [vmem:[#allocation19 + $0x570] sm:$0xff]
    %v9580 = vld [vmem:[#allocation19 + $0x578] sm:$0xff]
    %v9581 = vld [vmem:[#allocation19 + $0x580] sm:$0xff]
    %v9582 = vld [vmem:[#allocation19 + $0x588] sm:$0xff]
    %v9583 = vld [vmem:[#allocation19 + $0x590] sm:$0xff]
    %v9584 = vld [vmem:[#allocation19 + $0x598] sm:$0xff]
    %v9585 = vld [vmem:[#allocation19 + $0x5a0] sm:$0xff]
    %v9586 = vld [vmem:[#allocation19 + $0x5a8] sm:$0xff]
    %v9587 = vld [vmem:[#allocation19 + $0x5b0] sm:$0xff]
    %v9588 = vld [vmem:[#allocation19 + $0x5b8] sm:$0xff]
    %v9589 = vld [vmem:[#allocation19 + $0x5c0] sm:$0xff]
    %v9590 = vld [vmem:[#allocation19 + $0x5c8] sm:$0xff]
    %v9591 = vld [vmem:[#allocation19 + $0x5d0] sm:$0xff]
    %v9592 = vld [vmem:[#allocation19 + $0x5d8] sm:$0xff]
    %v9593 = vld [vmem:[#allocation19 + $0x5e0] sm:$0xff]
    %v9594 = vld [vmem:[#allocation19 + $0x5e8] sm:$0xff]
    %v9595 = vld [vmem:[#allocation19 + $0x5f0] sm:$0xff]
    %v9596 = vld [vmem:[#allocation19 + $0x5f8] sm:$0xff]
    %v9597 = vld [vmem:[#allocation19 + $0x600] sm:$0xff]
    %v9598 = vld [vmem:[#allocation19 + $0x608] sm:$0xff]
    %v9599 = vld [vmem:[#allocation19 + $0x610] sm:$0xff]
    %v9600 = vld [vmem:[#allocation19 + $0x618] sm:$0xff]
    %v9601 = vld [vmem:[#allocation19 + $0x620] sm:$0xff]
    %v9602 = vld [vmem:[#allocation19 + $0x628] sm:$0xff]
    %v9603 = vld [vmem:[#allocation19 + $0x630] sm:$0xff]
    %v9604 = vld [vmem:[#allocation19 + $0x638] sm:$0xff]
    %v9605 = vld [vmem:[#allocation19 + $0x640] sm:$0xff]
    %v9606 = vld [vmem:[#allocation19 + $0x648] sm:$0xff]
    %v9607 = vld [vmem:[#allocation19 + $0x650] sm:$0xff]
    %v9608 = vld [vmem:[#allocation19 + $0x658] sm:$0xff]
    %v9609 = vld [vmem:[#allocation19 + $0x660] sm:$0xff]
    %v9610 = vld [vmem:[#allocation19 + $0x668] sm:$0xff]
    %v9611 = vld [vmem:[#allocation19 + $0x670] sm:$0xff]
    %v9612 = vld [vmem:[#allocation19 + $0x678] sm:$0xff]
    %v9613 = vld [vmem:[#allocation19 + $0x680] sm:$0xff]
    %v9614 = vld [vmem:[#allocation19 + $0x688] sm:$0xff]
    %v9615 = vld [vmem:[#allocation19 + $0x690] sm:$0xff]
    %v9616 = vld [vmem:[#allocation19 + $0x698] sm:$0xff]
    %v9617 = vld [vmem:[#allocation19 + $0x6a0] sm:$0xff]
    %v9618 = vld [vmem:[#allocation19 + $0x6a8] sm:$0xff]
    %v9619 = vld [vmem:[#allocation19 + $0x6b0] sm:$0xff]
    %v9620 = vld [vmem:[#allocation19 + $0x6b8] sm:$0xff]
    %v9621 = vld [vmem:[#allocation19 + $0x6c0] sm:$0xff]
    %v9622 = vld [vmem:[#allocation19 + $0x6c8] sm:$0xff]
    %v9623 = vld [vmem:[#allocation19 + $0x6d0] sm:$0xff]
    %v9624 = vld [vmem:[#allocation19 + $0x6d8] sm:$0xff]
    %v9625 = vld [vmem:[#allocation19 + $0x6e0] sm:$0xff]
    %v9626 = vld [vmem:[#allocation19 + $0x6e8] sm:$0xff]
    %v9627 = vld [vmem:[#allocation19 + $0x6f0] sm:$0xff]
    %v9628 = vld [vmem:[#allocation19 + $0x6f8] sm:$0xff]
    %v9629 = vld [vmem:[#allocation19 + $0x700] sm:$0xff]
    %v9630 = vld [vmem:[#allocation19 + $0x708] sm:$0xff]
    %v9631 = vld [vmem:[#allocation19 + $0x710] sm:$0xff]
    %v9632 = vld [vmem:[#allocation19 + $0x718] sm:$0xff]
    %v9633 = vld [vmem:[#allocation19 + $0x720] sm:$0xff]
    %v9634 = vld [vmem:[#allocation19 + $0x728] sm:$0xff]
    %v9635 = vld [vmem:[#allocation19 + $0x730] sm:$0xff]
    %v9636 = vld [vmem:[#allocation19 + $0x738] sm:$0xff]
    %v9637 = vld [vmem:[#allocation19 + $0x740] sm:$0xff]
    %v9638 = vld [vmem:[#allocation19 + $0x748] sm:$0xff]
    %v9639 = vld [vmem:[#allocation19 + $0x750] sm:$0xff]
    %v9640 = vld [vmem:[#allocation19 + $0x758] sm:$0xff]
    %v9641 = vld [vmem:[#allocation19 + $0x760] sm:$0xff]
    %v9642 = vld [vmem:[#allocation19 + $0x768] sm:$0xff]
    %v9643 = vld [vmem:[#allocation19 + $0x770] sm:$0xff]
    %v9644 = vld [vmem:[#allocation19 + $0x778] sm:$0xff]
    %v9645 = vld [vmem:[#allocation19 + $0x780] sm:$0xff]
    %v9646 = vld [vmem:[#allocation19 + $0x788] sm:$0xff]
    %v9647 = vld [vmem:[#allocation19 + $0x790] sm:$0xff]
    %v9648 = vld [vmem:[#allocation19 + $0x798] sm:$0xff]
    %v9649 = vld [vmem:[#allocation19 + $0x7a0] sm:$0xff]
    %v9650 = vld [vmem:[#allocation19 + $0x7a8] sm:$0xff]
    %v9651 = vld [vmem:[#allocation19 + $0x7b0] sm:$0xff]
    %v9652 = vld [vmem:[#allocation19 + $0x7b8] sm:$0xff]
    %v9653 = vld [vmem:[#allocation19 + $0x7c0] sm:$0xff]
    %v9654 = vld [vmem:[#allocation19 + $0x7c8] sm:$0xff]
    %v9655 = vld [vmem:[#allocation19 + $0x7d0] sm:$0xff]
    %v9656 = vld [vmem:[#allocation19 + $0x7d8] sm:$0xff]
    %v9657 = vld [vmem:[#allocation19 + $0x7e0] sm:$0xff]
    %v9658 = vld [vmem:[#allocation19 + $0x7e8] sm:$0xff]
    %v9659 = vld [vmem:[#allocation19 + $0x7f0] sm:$0xff]
    %v9660 = vld [vmem:[#allocation19 + $0x7f8] sm:$0xff]
    %v9661 = vld [vmem:[#allocation19 + $0x800] sm:$0xff]
    %v9662 = vld [vmem:[#allocation19 + $0x808] sm:$0xff]
    %v9663 = vld [vmem:[#allocation19 + $0x810] sm:$0xff]
    %v9664 = vld [vmem:[#allocation19 + $0x818] sm:$0xff]
    %v9665 = vld [vmem:[#allocation19 + $0x820] sm:$0xff]
    %v9666 = vld [vmem:[#allocation19 + $0x828] sm:$0xff]
    %v9667 = vld [vmem:[#allocation19 + $0x830] sm:$0xff]
    %v9668 = vld [vmem:[#allocation19 + $0x838] sm:$0xff]
    %v9669 = vld [vmem:[#allocation19 + $0x840] sm:$0xff]
    %v9670 = vld [vmem:[#allocation19 + $0x848] sm:$0xff]
    %v9671 = vld [vmem:[#allocation19 + $0x850] sm:$0xff]
    %v9672 = vld [vmem:[#allocation19 + $0x858] sm:$0xff]
    %v9673 = vld [vmem:[#allocation19 + $0x860] sm:$0xff]
    %v9674 = vld [vmem:[#allocation19 + $0x868] sm:$0xff]
    %v9675 = vld [vmem:[#allocation19 + $0x870] sm:$0xff]
    %v9676 = vld [vmem:[#allocation19 + $0x878] sm:$0xff]
    %v9677 = vld [vmem:[#allocation19 + $0x880] sm:$0xff]
    %v9678 = vld [vmem:[#allocation19 + $0x888] sm:$0xff]
    %v9679 = vld [vmem:[#allocation19 + $0x890] sm:$0xff]
    %v9680 = vld [vmem:[#allocation19 + $0x898] sm:$0xff]
    %v9681 = vld [vmem:[#allocation19 + $0x8a0] sm:$0xff]
    %v9682 = vld [vmem:[#allocation19 + $0x8a8] sm:$0xff]
    %v9683 = vld [vmem:[#allocation19 + $0x8b0] sm:$0xff]
    %v9684 = vld [vmem:[#allocation19 + $0x8b8] sm:$0xff]
    %v9685 = vld [vmem:[#allocation19 + $0x8c0] sm:$0xff]
    %v9686 = vld [vmem:[#allocation19 + $0x8c8] sm:$0xff]
    %v9687 = vld [vmem:[#allocation19 + $0x8d0] sm:$0xff]
    %v9688 = vld [vmem:[#allocation19 + $0x8d8] sm:$0xff]
    %v9689 = vld [vmem:[#allocation19 + $0x8e0] sm:$0xff]
    %v9690 = vld [vmem:[#allocation19 + $0x8e8] sm:$0xff]
    %v9691 = vld [vmem:[#allocation19 + $0x8f0] sm:$0xff]
    %v9692 = vld [vmem:[#allocation19 + $0x8f8] sm:$0xff]
    %v9693 = vld [vmem:[#allocation19 + $0x900] sm:$0xff]
    %v9694 = vld [vmem:[#allocation19 + $0x908] sm:$0xff]
    %v9695 = vld [vmem:[#allocation19 + $0x910] sm:$0xff]
    %v9696 = vld [vmem:[#allocation19 + $0x918] sm:$0xff]
    %v9697 = vld [vmem:[#allocation19 + $0x920] sm:$0xff]
    %v9698 = vld [vmem:[#allocation19 + $0x928] sm:$0xff]
    %v9699 = vld [vmem:[#allocation19 + $0x930] sm:$0xff]
    %v9700 = vld [vmem:[#allocation19 + $0x938] sm:$0xff]
    %v9701 = vld [vmem:[#allocation19 + $0x940] sm:$0xff]
    %v9702 = vld [vmem:[#allocation19 + $0x948] sm:$0xff]
    %v9703 = vld [vmem:[#allocation19 + $0x950] sm:$0xff]
    %v9704 = vld [vmem:[#allocation19 + $0x958] sm:$0xff]
    %v9705 = vld [vmem:[#allocation19 + $0x960] sm:$0xff]
    %v9706 = vld [vmem:[#allocation19 + $0x968] sm:$0xff]
    %v9707 = vld [vmem:[#allocation19 + $0x970] sm:$0xff]
    %v9708 = vld [vmem:[#allocation19 + $0x978] sm:$0xff]
    %v9709 = vld [vmem:[#allocation19 + $0x980] sm:$0xff]
    %v9710 = vld [vmem:[#allocation19 + $0x988] sm:$0xff]
    %v9711 = vld [vmem:[#allocation19 + $0x990] sm:$0xff]
    %v9712 = vld [vmem:[#allocation19 + $0x998] sm:$0xff]
    %v9713 = vld [vmem:[#allocation19 + $0x9a0] sm:$0xff]
    %v9714 = vld [vmem:[#allocation19 + $0x9a8] sm:$0xff]
    %v9715 = vld [vmem:[#allocation19 + $0x9b0] sm:$0xff]
    %v9716 = vld [vmem:[#allocation19 + $0x9b8] sm:$0xff]
    %v9717 = vld [vmem:[#allocation19 + $0x9c0] sm:$0xff]
    %v9718 = vld [vmem:[#allocation19 + $0x9c8] sm:$0xff]
    %v9719 = vld [vmem:[#allocation19 + $0x9d0] sm:$0xff]
    %v9720 = vld [vmem:[#allocation19 + $0x9d8] sm:$0xff]
    %v9721 = vld [vmem:[#allocation19 + $0x9e0] sm:$0xff]
    %v9722 = vld [vmem:[#allocation19 + $0x9e8] sm:$0xff]
    %v9723 = vld [vmem:[#allocation19 + $0x9f0] sm:$0xff]
    %v9724 = vld [vmem:[#allocation19 + $0x9f8] sm:$0xff]
    %v9725 = vld [vmem:[#allocation19 + $0xa00] sm:$0xff]
    %v9726 = vld [vmem:[#allocation19 + $0xa08] sm:$0xff]
    %v9727 = vld [vmem:[#allocation19 + $0xa10] sm:$0xff]
    %v9728 = vld [vmem:[#allocation19 + $0xa18] sm:$0xff]
    %v9729 = vld [vmem:[#allocation19 + $0xa20] sm:$0xff]
    %v9730 = vld [vmem:[#allocation19 + $0xa28] sm:$0xff]
    %v9731 = vld [vmem:[#allocation19 + $0xa30] sm:$0xff]
    %v9732 = vld [vmem:[#allocation19 + $0xa38] sm:$0xff]
    %v9733 = vld [vmem:[#allocation19 + $0xa40] sm:$0xff]
    %v9734 = vld [vmem:[#allocation19 + $0xa48] sm:$0xff]
    %v9735 = vld [vmem:[#allocation19 + $0xa50] sm:$0xff]
    %v9736 = vld [vmem:[#allocation19 + $0xa58] sm:$0xff]
    %v9737 = vld [vmem:[#allocation19 + $0xa60] sm:$0xff]
    %v9738 = vld [vmem:[#allocation19 + $0xa68] sm:$0xff]
    %v9739 = vld [vmem:[#allocation19 + $0xa70] sm:$0xff]
    %v9740 = vld [vmem:[#allocation19 + $0xa78] sm:$0xff]
    %v9741 = vld [vmem:[#allocation19 + $0xa80] sm:$0xff]
    %v9742 = vld [vmem:[#allocation19 + $0xa88] sm:$0xff]
    %v9743 = vld [vmem:[#allocation19 + $0xa90] sm:$0xff]
    %v9744 = vld [vmem:[#allocation19 + $0xa98] sm:$0xff]
    %v9745 = vld [vmem:[#allocation19 + $0xaa0] sm:$0xff]
    %v9746 = vld [vmem:[#allocation19 + $0xaa8] sm:$0xff]
    %v9747 = vld [vmem:[#allocation19 + $0xab0] sm:$0xff]
    %v9748 = vld [vmem:[#allocation19 + $0xab8] sm:$0xff]
    %v9749 = vld [vmem:[#allocation19 + $0xac0] sm:$0xff]
    %v9750 = vld [vmem:[#allocation19 + $0xac8] sm:$0xff]
    %v9751 = vld [vmem:[#allocation19 + $0xad0] sm:$0xff]
    %v9752 = vld [vmem:[#allocation19 + $0xad8] sm:$0xff]
    %v9753 = vld [vmem:[#allocation19 + $0xae0] sm:$0xff]
    %v9754 = vld [vmem:[#allocation19 + $0xae8] sm:$0xff]
    %v9755 = vld [vmem:[#allocation19 + $0xaf0] sm:$0xff]
    %v9756 = vld [vmem:[#allocation19 + $0xaf8] sm:$0xff]
    %v9757 = vld [vmem:[#allocation19 + $0xb00] sm:$0xff]
    %v9758 = vld [vmem:[#allocation19 + $0xb08] sm:$0xff]
    %v9759 = vld [vmem:[#allocation19 + $0xb10] sm:$0xff]
    %v9760 = vld [vmem:[#allocation19 + $0xb18] sm:$0xff]
    %v9761 = vld [vmem:[#allocation19 + $0xb20] sm:$0xff]
    %v9762 = vld [vmem:[#allocation19 + $0xb28] sm:$0xff]
    %v9763 = vld [vmem:[#allocation19 + $0xb30] sm:$0xff]
    %v9764 = vld [vmem:[#allocation19 + $0xb38] sm:$0xff]
    %v9765 = vld [vmem:[#allocation19 + $0xb40] sm:$0xff]
    %v9766 = vld [vmem:[#allocation19 + $0xb48] sm:$0xff]
    %v9767 = vld [vmem:[#allocation19 + $0xb50] sm:$0xff]
    %v9768 = vld [vmem:[#allocation19 + $0xb58] sm:$0xff]
    %v9769 = vld [vmem:[#allocation19 + $0xb60] sm:$0xff]
    %v9770 = vld [vmem:[#allocation19 + $0xb68] sm:$0xff]
    %v9771 = vld [vmem:[#allocation19 + $0xb70] sm:$0xff]
    %v9772 = vld [vmem:[#allocation19 + $0xb78] sm:$0xff]
    %v9773 = vld [vmem:[#allocation19 + $0xb80] sm:$0xff]
    %v9774 = vld [vmem:[#allocation19 + $0xb88] sm:$0xff]
    %v9775 = vld [vmem:[#allocation19 + $0xb90] sm:$0xff]
    %v9776 = vld [vmem:[#allocation19 + $0xb98] sm:$0xff]
    %v9777 = vld [vmem:[#allocation19 + $0xba0] sm:$0xff]
    %v9778 = vld [vmem:[#allocation19 + $0xba8] sm:$0xff]
    %v9779 = vld [vmem:[#allocation19 + $0xbb0] sm:$0xff]
    %v9780 = vld [vmem:[#allocation19 + $0xbb8] sm:$0xff]
    %v9781 = vld [vmem:[#allocation19 + $0xbc0] sm:$0xff]
    %v9782 = vld [vmem:[#allocation19 + $0xbc8] sm:$0xff]
    %v9783 = vld [vmem:[#allocation19 + $0xbd0] sm:$0xff]
    %v9784 = vld [vmem:[#allocation19 + $0xbd8] sm:$0xff]
    %v9785 = vld [vmem:[#allocation19 + $0xbe0] sm:$0xff]
    %v9786 = vld [vmem:[#allocation19 + $0xbe8] sm:$0xff]
    %v9787 = vld [vmem:[#allocation19 + $0xbf0] sm:$0xff]
    %v9788 = vld [vmem:[#allocation19 + $0xbf8] sm:$0xff]
    %v9789 = vld [vmem:[#allocation20] sm:$0xf]
    %v9791 = vlaneseq
    %v9792 = vshrl.u32 %v9791, 7
    %v9793 = vsub.s32 0, %v9792
    %v9794 = vrot.slane %v9789, %v9793
    %v9795 = vlaneseq
    %v9796 = vshrl.u32 %v9795, 7
    %v9797 = vsub.s32 1, %v9796
    %v9798 = vrot.slane %v9789, %v9797
    %v9799 = vlaneseq
    %v9800 = vshrl.u32 %v9799, 7
    %v9801 = vsub.s32 2, %v9800
    %v9802 = vrot.slane %v9789, %v9801
    %v9803 = vlaneseq
    %v9804 = vshrl.u32 %v9803, 7
    %v9805 = vsub.s32 3, %v9804
    %v9806 = vrot.slane %v9789, %v9805
    %v10195 = vunpack.c.l.b16 %v9405
    %v10196 = vunpack.c.h.b16 %v9405
    %v10197 = vunpack.c.l.b16 %v9406
    %v10198 = vunpack.c.h.b16 %v9406
    %v10199 = vunpack.c.l.b16 %v9407
    %v10200 = vunpack.c.h.b16 %v9407
    %v10201 = vunpack.c.l.b16 %v9408
    %v10202 = vunpack.c.h.b16 %v9408
    %v10203 = vunpack.c.l.b16 %v9409
    %v10204 = vunpack.c.h.b16 %v9409
    %v10205 = vunpack.c.l.b16 %v9410
    %v10206 = vunpack.c.h.b16 %v9410
    %v10207 = vunpack.c.l.b16 %v9411
    %v10208 = vunpack.c.h.b16 %v9411
    %v10209 = vunpack.c.l.b16 %v9412
    %v10210 = vunpack.c.h.b16 %v9412
    %v10211 = vunpack.c.l.b16 %v9413
    %v10212 = vunpack.c.h.b16 %v9413
    %v10213 = vunpack.c.l.b16 %v9414
    %v10214 = vunpack.c.h.b16 %v9414
    %v10215 = vunpack.c.l.b16 %v9415
    %v10216 = vunpack.c.h.b16 %v9415
    %v10217 = vunpack.c.l.b16 %v9416
    %v10218 = vunpack.c.h.b16 %v9416
    %v10219 = vunpack.c.l.b16 %v9417
    %v10220 = vunpack.c.h.b16 %v9417
    %v10221 = vunpack.c.l.b16 %v9418
    %v10222 = vunpack.c.h.b16 %v9418
    %v10223 = vunpack.c.l.b16 %v9419
    %v10224 = vunpack.c.h.b16 %v9419
    %v10225 = vunpack.c.l.b16 %v9420
    %v10226 = vunpack.c.h.b16 %v9420
    %v10227 = vunpack.c.l.b16 %v9421
    %v10228 = vunpack.c.h.b16 %v9421
    %v10229 = vunpack.c.l.b16 %v9422
    %v10230 = vunpack.c.h.b16 %v9422
    %v10231 = vunpack.c.l.b16 %v9423
    %v10232 = vunpack.c.h.b16 %v9423
    %v10233 = vunpack.c.l.b16 %v9424
    %v10234 = vunpack.c.h.b16 %v9424
    %v10235 = vunpack.c.l.b16 %v9425
    %v10236 = vunpack.c.h.b16 %v9425
    %v10237 = vunpack.c.l.b16 %v9426
    %v10238 = vunpack.c.h.b16 %v9426
    %v10239 = vunpack.c.l.b16 %v9427
    %v10240 = vunpack.c.h.b16 %v9427
    %v10241 = vunpack.c.l.b16 %v9428
    %v10242 = vunpack.c.h.b16 %v9428
    %v10243 = vunpack.c.l.b16 %v9429
    %v10244 = vunpack.c.h.b16 %v9429
    %v10245 = vunpack.c.l.b16 %v9430
    %v10246 = vunpack.c.h.b16 %v9430
    %v10247 = vunpack.c.l.b16 %v9431
    %v10248 = vunpack.c.h.b16 %v9431
    %v10249 = vunpack.c.l.b16 %v9432
    %v10250 = vunpack.c.h.b16 %v9432
    %v10251 = vunpack.c.l.b16 %v9433
    %v10252 = vunpack.c.h.b16 %v9433
    %v10253 = vunpack.c.l.b16 %v9434
    %v10254 = vunpack.c.h.b16 %v9434
    %v10255 = vunpack.c.l.b16 %v9435
    %v10256 = vunpack.c.h.b16 %v9435
    %v10257 = vunpack.c.l.b16 %v9436
    %v10258 = vunpack.c.h.b16 %v9436
    %v10259 = vunpack.c.l.b16 %v9437
    %v10260 = vunpack.c.h.b16 %v9437
    %v10261 = vunpack.c.l.b16 %v9438
    %v10262 = vunpack.c.h.b16 %v9438
    %v10263 = vunpack.c.l.b16 %v9439
    %v10264 = vunpack.c.h.b16 %v9439
    %v10265 = vunpack.c.l.b16 %v9440
    %v10266 = vunpack.c.h.b16 %v9440
    %v10267 = vunpack.c.l.b16 %v9441
    %v10268 = vunpack.c.h.b16 %v9441
    %v10269 = vunpack.c.l.b16 %v9442
    %v10270 = vunpack.c.h.b16 %v9442
    %v10271 = vunpack.c.l.b16 %v9443
    %v10272 = vunpack.c.h.b16 %v9443
    %v10273 = vunpack.c.l.b16 %v9444
    %v10274 = vunpack.c.h.b16 %v9444
    %v10275 = vunpack.c.l.b16 %v9445
    %v10276 = vunpack.c.h.b16 %v9445
    %v10277 = vunpack.c.l.b16 %v9446
    %v10278 = vunpack.c.h.b16 %v9446
    %v10279 = vunpack.c.l.b16 %v9447
    %v10280 = vunpack.c.h.b16 %v9447
    %v10281 = vunpack.c.l.b16 %v9448
    %v10282 = vunpack.c.h.b16 %v9448
    %v10283 = vunpack.c.l.b16 %v9449
    %v10284 = vunpack.c.h.b16 %v9449
    %v10285 = vunpack.c.l.b16 %v9450
    %v10286 = vunpack.c.h.b16 %v9450
    %v10287 = vunpack.c.l.b16 %v9451
    %v10288 = vunpack.c.h.b16 %v9451
    %v10289 = vunpack.c.l.b16 %v9452
    %v10290 = vunpack.c.h.b16 %v9452
    %v10291 = vunpack.c.l.b16 %v9453
    %v10292 = vunpack.c.h.b16 %v9453
    %v10293 = vunpack.c.l.b16 %v9454
    %v10294 = vunpack.c.h.b16 %v9454
    %v10295 = vunpack.c.l.b16 %v9455
    %v10296 = vunpack.c.h.b16 %v9455
    %v10297 = vunpack.c.l.b16 %v9456
    %v10298 = vunpack.c.h.b16 %v9456
    %v10299 = vunpack.c.l.b16 %v9457
    %v10300 = vunpack.c.h.b16 %v9457
    %v10301 = vunpack.c.l.b16 %v9458
    %v10302 = vunpack.c.h.b16 %v9458
    %v10303 = vunpack.c.l.b16 %v9459
    %v10304 = vunpack.c.h.b16 %v9459
    %v10305 = vunpack.c.l.b16 %v9460
    %v10306 = vunpack.c.h.b16 %v9460
    %v10307 = vunpack.c.l.b16 %v9461
    %v10308 = vunpack.c.h.b16 %v9461
    %v10309 = vunpack.c.l.b16 %v9462
    %v10310 = vunpack.c.h.b16 %v9462
    %v10311 = vunpack.c.l.b16 %v9463
    %v10312 = vunpack.c.h.b16 %v9463
    %v10313 = vunpack.c.l.b16 %v9464
    %v10314 = vunpack.c.h.b16 %v9464
    %v10315 = vunpack.c.l.b16 %v9465
    %v10316 = vunpack.c.h.b16 %v9465
    %v10317 = vunpack.c.l.b16 %v9466
    %v10318 = vunpack.c.h.b16 %v9466
    %v10319 = vunpack.c.l.b16 %v9467
    %v10320 = vunpack.c.h.b16 %v9467
    %v10321 = vunpack.c.l.b16 %v9468
    %v10322 = vunpack.c.h.b16 %v9468
    %v10323 = vunpack.c.l.b16 %v9469
    %v10324 = vunpack.c.h.b16 %v9469
    %v10325 = vunpack.c.l.b16 %v9470
    %v10326 = vunpack.c.h.b16 %v9470
    %v10327 = vunpack.c.l.b16 %v9471
    %v10328 = vunpack.c.h.b16 %v9471
    %v10329 = vunpack.c.l.b16 %v9472
    %v10330 = vunpack.c.h.b16 %v9472
    %v10331 = vunpack.c.l.b16 %v9473
    %v10332 = vunpack.c.h.b16 %v9473
    %v10333 = vunpack.c.l.b16 %v9474
    %v10334 = vunpack.c.h.b16 %v9474
    %v10335 = vunpack.c.l.b16 %v9475
    %v10336 = vunpack.c.h.b16 %v9475
    %v10337 = vunpack.c.l.b16 %v9476
    %v10338 = vunpack.c.h.b16 %v9476
    %v10339 = vunpack.c.l.b16 %v9477
    %v10340 = vunpack.c.h.b16 %v9477
    %v10341 = vunpack.c.l.b16 %v9478
    %v10342 = vunpack.c.h.b16 %v9478
    %v10343 = vunpack.c.l.b16 %v9479
    %v10344 = vunpack.c.h.b16 %v9479
    %v10345 = vunpack.c.l.b16 %v9480
    %v10346 = vunpack.c.h.b16 %v9480
    %v10347 = vunpack.c.l.b16 %v9481
    %v10348 = vunpack.c.h.b16 %v9481
    %v10349 = vunpack.c.l.b16 %v9482
    %v10350 = vunpack.c.h.b16 %v9482
    %v10351 = vunpack.c.l.b16 %v9483
    %v10352 = vunpack.c.h.b16 %v9483
    %v10353 = vunpack.c.l.b16 %v9484
    %v10354 = vunpack.c.h.b16 %v9484
    %v10355 = vunpack.c.l.b16 %v9485
    %v10356 = vunpack.c.h.b16 %v9485
    %v10357 = vunpack.c.l.b16 %v9486
    %v10358 = vunpack.c.h.b16 %v9486
    %v10359 = vunpack.c.l.b16 %v9487
    %v10360 = vunpack.c.h.b16 %v9487
    %v10361 = vunpack.c.l.b16 %v9488
    %v10362 = vunpack.c.h.b16 %v9488
    %v10363 = vunpack.c.l.b16 %v9489
    %v10364 = vunpack.c.h.b16 %v9489
    %v10365 = vunpack.c.l.b16 %v9490
    %v10366 = vunpack.c.h.b16 %v9490
    %v10367 = vunpack.c.l.b16 %v9491
    %v10368 = vunpack.c.h.b16 %v9491
    %v10369 = vunpack.c.l.b16 %v9492
    %v10370 = vunpack.c.h.b16 %v9492
    %v10371 = vunpack.c.l.b16 %v9493
    %v10372 = vunpack.c.h.b16 %v9493
    %v10373 = vunpack.c.l.b16 %v9494
    %v10374 = vunpack.c.h.b16 %v9494
    %v10375 = vunpack.c.l.b16 %v9495
    %v10376 = vunpack.c.h.b16 %v9495
    %v10377 = vunpack.c.l.b16 %v9496
    %v10378 = vunpack.c.h.b16 %v9496
    %v10379 = vunpack.c.l.b16 %v9497
    %v10380 = vunpack.c.h.b16 %v9497
    %v10381 = vunpack.c.l.b16 %v9498
    %v10382 = vunpack.c.h.b16 %v9498
    %v10383 = vunpack.c.l.b16 %v9499
    %v10384 = vunpack.c.h.b16 %v9499
    %v10385 = vunpack.c.l.b16 %v9500
    %v10386 = vunpack.c.h.b16 %v9500
    %v10387 = vunpack.c.l.b16 %v9501
    %v10388 = vunpack.c.h.b16 %v9501
    %v10389 = vunpack.c.l.b16 %v9502
    %v10390 = vunpack.c.h.b16 %v9502
    %v10391 = vunpack.c.l.b16 %v9503
    %v10392 = vunpack.c.h.b16 %v9503
    %v10393 = vunpack.c.l.b16 %v9504
    %v10394 = vunpack.c.h.b16 %v9504
    %v10395 = vunpack.c.l.b16 %v9505
    %v10396 = vunpack.c.h.b16 %v9505
    %v10397 = vunpack.c.l.b16 %v9506
    %v10398 = vunpack.c.h.b16 %v9506
    %v10399 = vunpack.c.l.b16 %v9507
    %v10400 = vunpack.c.h.b16 %v9507
    %v10401 = vunpack.c.l.b16 %v9508
    %v10402 = vunpack.c.h.b16 %v9508
    %v10403 = vunpack.c.l.b16 %v9509
    %v10404 = vunpack.c.h.b16 %v9509
    %v10405 = vunpack.c.l.b16 %v9510
    %v10406 = vunpack.c.h.b16 %v9510
    %v10407 = vunpack.c.l.b16 %v9511
    %v10408 = vunpack.c.h.b16 %v9511
    %v10409 = vunpack.c.l.b16 %v9512
    %v10410 = vunpack.c.h.b16 %v9512
    %v10411 = vunpack.c.l.b16 %v9513
    %v10412 = vunpack.c.h.b16 %v9513
    %v10413 = vunpack.c.l.b16 %v9514
    %v10414 = vunpack.c.h.b16 %v9514
    %v10415 = vunpack.c.l.b16 %v9515
    %v10416 = vunpack.c.h.b16 %v9515
    %v10417 = vunpack.c.l.b16 %v9516
    %v10418 = vunpack.c.h.b16 %v9516
    %v10419 = vunpack.c.l.b16 %v9517
    %v10420 = vunpack.c.h.b16 %v9517
    %v10421 = vunpack.c.l.b16 %v9518
    %v10422 = vunpack.c.h.b16 %v9518
    %v10423 = vunpack.c.l.b16 %v9519
    %v10424 = vunpack.c.h.b16 %v9519
    %v10425 = vunpack.c.l.b16 %v9520
    %v10426 = vunpack.c.h.b16 %v9520
    %v10427 = vunpack.c.l.b16 %v9521
    %v10428 = vunpack.c.h.b16 %v9521
    %v10429 = vunpack.c.l.b16 %v9522
    %v10430 = vunpack.c.h.b16 %v9522
    %v10431 = vunpack.c.l.b16 %v9523
    %v10432 = vunpack.c.h.b16 %v9523
    %v10433 = vunpack.c.l.b16 %v9524
    %v10434 = vunpack.c.h.b16 %v9524
    %v10435 = vunpack.c.l.b16 %v9525
    %v10436 = vunpack.c.h.b16 %v9525
    %v10437 = vunpack.c.l.b16 %v9526
    %v10438 = vunpack.c.h.b16 %v9526
    %v10439 = vunpack.c.l.b16 %v9527
    %v10440 = vunpack.c.h.b16 %v9527
    %v10441 = vunpack.c.l.b16 %v9528
    %v10442 = vunpack.c.h.b16 %v9528
    %v10443 = vunpack.c.l.b16 %v9529
    %v10444 = vunpack.c.h.b16 %v9529
    %v10445 = vunpack.c.l.b16 %v9530
    %v10446 = vunpack.c.h.b16 %v9530
    %v10447 = vunpack.c.l.b16 %v9531
    %v10448 = vunpack.c.h.b16 %v9531
    %v10449 = vunpack.c.l.b16 %v9532
    %v10450 = vunpack.c.h.b16 %v9532
    %v10451 = vunpack.c.l.b16 %v9533
    %v10452 = vunpack.c.h.b16 %v9533
    %v10453 = vunpack.c.l.b16 %v9534
    %v10454 = vunpack.c.h.b16 %v9534
    %v10455 = vunpack.c.l.b16 %v9535
    %v10456 = vunpack.c.h.b16 %v9535
    %v10457 = vunpack.c.l.b16 %v9536
    %v10458 = vunpack.c.h.b16 %v9536
    %v10459 = vunpack.c.l.b16 %v9537
    %v10460 = vunpack.c.h.b16 %v9537
    %v10461 = vunpack.c.l.b16 %v9538
    %v10462 = vunpack.c.h.b16 %v9538
    %v10463 = vunpack.c.l.b16 %v9539
    %v10464 = vunpack.c.h.b16 %v9539
    %v10465 = vunpack.c.l.b16 %v9540
    %v10466 = vunpack.c.h.b16 %v9540
    %v10467 = vunpack.c.l.b16 %v9541
    %v10468 = vunpack.c.h.b16 %v9541
    %v10469 = vunpack.c.l.b16 %v9542
    %v10470 = vunpack.c.h.b16 %v9542
    %v10471 = vunpack.c.l.b16 %v9543
    %v10472 = vunpack.c.h.b16 %v9543
    %v10473 = vunpack.c.l.b16 %v9544
    %v10474 = vunpack.c.h.b16 %v9544
    %v10475 = vunpack.c.l.b16 %v9545
    %v10476 = vunpack.c.h.b16 %v9545
    %v10477 = vunpack.c.l.b16 %v9546
    %v10478 = vunpack.c.h.b16 %v9546
    %v10479 = vunpack.c.l.b16 %v9547
    %v10480 = vunpack.c.h.b16 %v9547
    %v10481 = vunpack.c.l.b16 %v9548
    %v10482 = vunpack.c.h.b16 %v9548
    %v10483 = vunpack.c.l.b16 %v9549
    %v10484 = vunpack.c.h.b16 %v9549
    %v10485 = vunpack.c.l.b16 %v9550
    %v10486 = vunpack.c.h.b16 %v9550
    %v10487 = vunpack.c.l.b16 %v9551
    %v10488 = vunpack.c.h.b16 %v9551
    %v10489 = vunpack.c.l.b16 %v9552
    %v10490 = vunpack.c.h.b16 %v9552
    %v10491 = vunpack.c.l.b16 %v9553
    %v10492 = vunpack.c.h.b16 %v9553
    %v10493 = vunpack.c.l.b16 %v9554
    %v10494 = vunpack.c.h.b16 %v9554
    %v10495 = vunpack.c.l.b16 %v9555
    %v10496 = vunpack.c.h.b16 %v9555
    %v10497 = vunpack.c.l.b16 %v9556
    %v10498 = vunpack.c.h.b16 %v9556
    %v10499 = vunpack.c.l.b16 %v9557
    %v10500 = vunpack.c.h.b16 %v9557
    %v10501 = vunpack.c.l.b16 %v9558
    %v10502 = vunpack.c.h.b16 %v9558
    %v10503 = vunpack.c.l.b16 %v9559
    %v10504 = vunpack.c.h.b16 %v9559
    %v10505 = vunpack.c.l.b16 %v9560
    %v10506 = vunpack.c.h.b16 %v9560
    %v10507 = vunpack.c.l.b16 %v9561
    %v10508 = vunpack.c.h.b16 %v9561
    %v10509 = vunpack.c.l.b16 %v9562
    %v10510 = vunpack.c.h.b16 %v9562
    %v10511 = vunpack.c.l.b16 %v9563
    %v10512 = vunpack.c.h.b16 %v9563
    %v10513 = vunpack.c.l.b16 %v9564
    %v10514 = vunpack.c.h.b16 %v9564
    %v10515 = vunpack.c.l.b16 %v9565
    %v10516 = vunpack.c.h.b16 %v9565
    %v10517 = vunpack.c.l.b16 %v9566
    %v10518 = vunpack.c.h.b16 %v9566
    %v10519 = vunpack.c.l.b16 %v9567
    %v10520 = vunpack.c.h.b16 %v9567
    %v10521 = vunpack.c.l.b16 %v9568
    %v10522 = vunpack.c.h.b16 %v9568
    %v10523 = vunpack.c.l.b16 %v9569
    %v10524 = vunpack.c.h.b16 %v9569
    %v10525 = vunpack.c.l.b16 %v9570
    %v10526 = vunpack.c.h.b16 %v9570
    %v10527 = vunpack.c.l.b16 %v9571
    %v10528 = vunpack.c.h.b16 %v9571
    %v10529 = vunpack.c.l.b16 %v9572
    %v10530 = vunpack.c.h.b16 %v9572
    %v10531 = vunpack.c.l.b16 %v9573
    %v10532 = vunpack.c.h.b16 %v9573
    %v10533 = vunpack.c.l.b16 %v9574
    %v10534 = vunpack.c.h.b16 %v9574
    %v10535 = vunpack.c.l.b16 %v9575
    %v10536 = vunpack.c.h.b16 %v9575
    %v10537 = vunpack.c.l.b16 %v9576
    %v10538 = vunpack.c.h.b16 %v9576
    %v10539 = vunpack.c.l.b16 %v9577
    %v10540 = vunpack.c.h.b16 %v9577
    %v10541 = vunpack.c.l.b16 %v9578
    %v10542 = vunpack.c.h.b16 %v9578
    %v10543 = vunpack.c.l.b16 %v9579
    %v10544 = vunpack.c.h.b16 %v9579
    %v10545 = vunpack.c.l.b16 %v9580
    %v10546 = vunpack.c.h.b16 %v9580
    %v10547 = vunpack.c.l.b16 %v9581
    %v10548 = vunpack.c.h.b16 %v9581
    %v10549 = vunpack.c.l.b16 %v9582
    %v10550 = vunpack.c.h.b16 %v9582
    %v10551 = vunpack.c.l.b16 %v9583
    %v10552 = vunpack.c.h.b16 %v9583
    %v10553 = vunpack.c.l.b16 %v9584
    %v10554 = vunpack.c.h.b16 %v9584
    %v10555 = vunpack.c.l.b16 %v9585
    %v10556 = vunpack.c.h.b16 %v9585
    %v10557 = vunpack.c.l.b16 %v9586
    %v10558 = vunpack.c.h.b16 %v9586
    %v10559 = vunpack.c.l.b16 %v9587
    %v10560 = vunpack.c.h.b16 %v9587
    %v10561 = vunpack.c.l.b16 %v9588
    %v10562 = vunpack.c.h.b16 %v9588
    %v10563 = vunpack.c.l.b16 %v9589
    %v10564 = vunpack.c.h.b16 %v9589
    %v10565 = vunpack.c.l.b16 %v9590
    %v10566 = vunpack.c.h.b16 %v9590
    %v10567 = vunpack.c.l.b16 %v9591
    %v10568 = vunpack.c.h.b16 %v9591
    %v10569 = vunpack.c.l.b16 %v9592
    %v10570 = vunpack.c.h.b16 %v9592
    %v10571 = vunpack.c.l.b16 %v9593
    %v10572 = vunpack.c.h.b16 %v9593
    %v10573 = vunpack.c.l.b16 %v9594
    %v10574 = vunpack.c.h.b16 %v9594
    %v10575 = vunpack.c.l.b16 %v9595
    %v10576 = vunpack.c.h.b16 %v9595
    %v10577 = vunpack.c.l.b16 %v9596
    %v10578 = vunpack.c.h.b16 %v9596
    %v10579 = vunpack.c.l.b16 %v9597
    %v10580 = vunpack.c.h.b16 %v9597
    %v10581 = vunpack.c.l.b16 %v9598
    %v10582 = vunpack.c.h.b16 %v9598
    %v10583 = vunpack.c.l.b16 %v9599
    %v10584 = vunpack.c.h.b16 %v9599
    %v10585 = vunpack.c.l.b16 %v9600
    %v10586 = vunpack.c.h.b16 %v9600
    %v10587 = vunpack.c.l.b16 %v9601
    %v10588 = vunpack.c.h.b16 %v9601
    %v10589 = vunpack.c.l.b16 %v9602
    %v10590 = vunpack.c.h.b16 %v9602
    %v10591 = vunpack.c.l.b16 %v9603
    %v10592 = vunpack.c.h.b16 %v9603
    %v10593 = vunpack.c.l.b16 %v9604
    %v10594 = vunpack.c.h.b16 %v9604
    %v10595 = vunpack.c.l.b16 %v9605
    %v10596 = vunpack.c.h.b16 %v9605
    %v10597 = vunpack.c.l.b16 %v9606
    %v10598 = vunpack.c.h.b16 %v9606
    %v10599 = vunpack.c.l.b16 %v9607
    %v10600 = vunpack.c.h.b16 %v9607
    %v10601 = vunpack.c.l.b16 %v9608
    %v10602 = vunpack.c.h.b16 %v9608
    %v10603 = vunpack.c.l.b16 %v9609
    %v10604 = vunpack.c.h.b16 %v9609
    %v10605 = vunpack.c.l.b16 %v9610
    %v10606 = vunpack.c.h.b16 %v9610
    %v10607 = vunpack.c.l.b16 %v9611
    %v10608 = vunpack.c.h.b16 %v9611
    %v10609 = vunpack.c.l.b16 %v9612
    %v10610 = vunpack.c.h.b16 %v9612
    %v10611 = vunpack.c.l.b16 %v9613
    %v10612 = vunpack.c.h.b16 %v9613
    %v10613 = vunpack.c.l.b16 %v9614
    %v10614 = vunpack.c.h.b16 %v9614
    %v10615 = vunpack.c.l.b16 %v9615
    %v10616 = vunpack.c.h.b16 %v9615
    %v10617 = vunpack.c.l.b16 %v9616
    %v10618 = vunpack.c.h.b16 %v9616
    %v10619 = vunpack.c.l.b16 %v9617
    %v10620 = vunpack.c.h.b16 %v9617
    %v10621 = vunpack.c.l.b16 %v9618
    %v10622 = vunpack.c.h.b16 %v9618
    %v10623 = vunpack.c.l.b16 %v9619
    %v10624 = vunpack.c.h.b16 %v9619
    %v10625 = vunpack.c.l.b16 %v9620
    %v10626 = vunpack.c.h.b16 %v9620
    %v10627 = vunpack.c.l.b16 %v9621
    %v10628 = vunpack.c.h.b16 %v9621
    %v10629 = vunpack.c.l.b16 %v9622
    %v10630 = vunpack.c.h.b16 %v9622
    %v10631 = vunpack.c.l.b16 %v9623
    %v10632 = vunpack.c.h.b16 %v9623
    %v10633 = vunpack.c.l.b16 %v9624
    %v10634 = vunpack.c.h.b16 %v9624
    %v10635 = vunpack.c.l.b16 %v9625
    %v10636 = vunpack.c.h.b16 %v9625
    %v10637 = vunpack.c.l.b16 %v9626
    %v10638 = vunpack.c.h.b16 %v9626
    %v10639 = vunpack.c.l.b16 %v9627
    %v10640 = vunpack.c.h.b16 %v9627
    %v10641 = vunpack.c.l.b16 %v9628
    %v10642 = vunpack.c.h.b16 %v9628
    %v10643 = vunpack.c.l.b16 %v9629
    %v10644 = vunpack.c.h.b16 %v9629
    %v10645 = vunpack.c.l.b16 %v9630
    %v10646 = vunpack.c.h.b16 %v9630
    %v10647 = vunpack.c.l.b16 %v9631
    %v10648 = vunpack.c.h.b16 %v9631
    %v10649 = vunpack.c.l.b16 %v9632
    %v10650 = vunpack.c.h.b16 %v9632
    %v10651 = vunpack.c.l.b16 %v9633
    %v10652 = vunpack.c.h.b16 %v9633
    %v10653 = vunpack.c.l.b16 %v9634
    %v10654 = vunpack.c.h.b16 %v9634
    %v10655 = vunpack.c.l.b16 %v9635
    %v10656 = vunpack.c.h.b16 %v9635
    %v10657 = vunpack.c.l.b16 %v9636
    %v10658 = vunpack.c.h.b16 %v9636
    %v10659 = vunpack.c.l.b16 %v9637
    %v10660 = vunpack.c.h.b16 %v9637
    %v10661 = vunpack.c.l.b16 %v9638
    %v10662 = vunpack.c.h.b16 %v9638
    %v10663 = vunpack.c.l.b16 %v9639
    %v10664 = vunpack.c.h.b16 %v9639
    %v10665 = vunpack.c.l.b16 %v9640
    %v10666 = vunpack.c.h.b16 %v9640
    %v10667 = vunpack.c.l.b16 %v9641
    %v10668 = vunpack.c.h.b16 %v9641
    %v10669 = vunpack.c.l.b16 %v9642
    %v10670 = vunpack.c.h.b16 %v9642
    %v10671 = vunpack.c.l.b16 %v9643
    %v10672 = vunpack.c.h.b16 %v9643
    %v10673 = vunpack.c.l.b16 %v9644
    %v10674 = vunpack.c.h.b16 %v9644
    %v10675 = vunpack.c.l.b16 %v9645
    %v10676 = vunpack.c.h.b16 %v9645
    %v10677 = vunpack.c.l.b16 %v9646
    %v10678 = vunpack.c.h.b16 %v9646
    %v10679 = vunpack.c.l.b16 %v9647
    %v10680 = vunpack.c.h.b16 %v9647
    %v10681 = vunpack.c.l.b16 %v9648
    %v10682 = vunpack.c.h.b16 %v9648
    %v10683 = vunpack.c.l.b16 %v9649
    %v10684 = vunpack.c.h.b16 %v9649
    %v10685 = vunpack.c.l.b16 %v9650
    %v10686 = vunpack.c.h.b16 %v9650
    %v10687 = vunpack.c.l.b16 %v9651
    %v10688 = vunpack.c.h.b16 %v9651
    %v10689 = vunpack.c.l.b16 %v9652
    %v10690 = vunpack.c.h.b16 %v9652
    %v10691 = vunpack.c.l.b16 %v9653
    %v10692 = vunpack.c.h.b16 %v9653
    %v10693 = vunpack.c.l.b16 %v9654
    %v10694 = vunpack.c.h.b16 %v9654
    %v10695 = vunpack.c.l.b16 %v9655
    %v10696 = vunpack.c.h.b16 %v9655
    %v10697 = vunpack.c.l.b16 %v9656
    %v10698 = vunpack.c.h.b16 %v9656
    %v10699 = vunpack.c.l.b16 %v9657
    %v10700 = vunpack.c.h.b16 %v9657
    %v10701 = vunpack.c.l.b16 %v9658
    %v10702 = vunpack.c.h.b16 %v9658
    %v10703 = vunpack.c.l.b16 %v9659
    %v10704 = vunpack.c.h.b16 %v9659
    %v10705 = vunpack.c.l.b16 %v9660
    %v10706 = vunpack.c.h.b16 %v9660
    %v10707 = vunpack.c.l.b16 %v9661
    %v10708 = vunpack.c.h.b16 %v9661
    %v10709 = vunpack.c.l.b16 %v9662
    %v10710 = vunpack.c.h.b16 %v9662
    %v10711 = vunpack.c.l.b16 %v9663
    %v10712 = vunpack.c.h.b16 %v9663
    %v10713 = vunpack.c.l.b16 %v9664
    %v10714 = vunpack.c.h.b16 %v9664
    %v10715 = vunpack.c.l.b16 %v9665
    %v10716 = vunpack.c.h.b16 %v9665
    %v10717 = vunpack.c.l.b16 %v9666
    %v10718 = vunpack.c.h.b16 %v9666
    %v10719 = vunpack.c.l.b16 %v9667
    %v10720 = vunpack.c.h.b16 %v9667
    %v10721 = vunpack.c.l.b16 %v9668
    %v10722 = vunpack.c.h.b16 %v9668
    %v10723 = vunpack.c.l.b16 %v9669
    %v10724 = vunpack.c.h.b16 %v9669
    %v10725 = vunpack.c.l.b16 %v9670
    %v10726 = vunpack.c.h.b16 %v9670
    %v10727 = vunpack.c.l.b16 %v9671
    %v10728 = vunpack.c.h.b16 %v9671
    %v10729 = vunpack.c.l.b16 %v9672
    %v10730 = vunpack.c.h.b16 %v9672
    %v10731 = vunpack.c.l.b16 %v9673
    %v10732 = vunpack.c.h.b16 %v9673
    %v10733 = vunpack.c.l.b16 %v9674
    %v10734 = vunpack.c.h.b16 %v9674
    %v10735 = vunpack.c.l.b16 %v9675
    %v10736 = vunpack.c.h.b16 %v9675
    %v10737 = vunpack.c.l.b16 %v9676
    %v10738 = vunpack.c.h.b16 %v9676
    %v10739 = vunpack.c.l.b16 %v9677
    %v10740 = vunpack.c.h.b16 %v9677
    %v10741 = vunpack.c.l.b16 %v9678
    %v10742 = vunpack.c.h.b16 %v9678
    %v10743 = vunpack.c.l.b16 %v9679
    %v10744 = vunpack.c.h.b16 %v9679
    %v10745 = vunpack.c.l.b16 %v9680
    %v10746 = vunpack.c.h.b16 %v9680
    %v10747 = vunpack.c.l.b16 %v9681
    %v10748 = vunpack.c.h.b16 %v9681
    %v10749 = vunpack.c.l.b16 %v9682
    %v10750 = vunpack.c.h.b16 %v9682
    %v10751 = vunpack.c.l.b16 %v9683
    %v10752 = vunpack.c.h.b16 %v9683
    %v10753 = vunpack.c.l.b16 %v9684
    %v10754 = vunpack.c.h.b16 %v9684
    %v10755 = vunpack.c.l.b16 %v9685
    %v10756 = vunpack.c.h.b16 %v9685
    %v10757 = vunpack.c.l.b16 %v9686
    %v10758 = vunpack.c.h.b16 %v9686
    %v10759 = vunpack.c.l.b16 %v9687
    %v10760 = vunpack.c.h.b16 %v9687
    %v10761 = vunpack.c.l.b16 %v9688
    %v10762 = vunpack.c.h.b16 %v9688
    %v10763 = vunpack.c.l.b16 %v9689
    %v10764 = vunpack.c.h.b16 %v9689
    %v10765 = vunpack.c.l.b16 %v9690
    %v10766 = vunpack.c.h.b16 %v9690
    %v10767 = vunpack.c.l.b16 %v9691
    %v10768 = vunpack.c.h.b16 %v9691
    %v10769 = vunpack.c.l.b16 %v9692
    %v10770 = vunpack.c.h.b16 %v9692
    %v10771 = vunpack.c.l.b16 %v9693
    %v10772 = vunpack.c.h.b16 %v9693
    %v10773 = vunpack.c.l.b16 %v9694
    %v10774 = vunpack.c.h.b16 %v9694
    %v10775 = vunpack.c.l.b16 %v9695
    %v10776 = vunpack.c.h.b16 %v9695
    %v10777 = vunpack.c.l.b16 %v9696
    %v10778 = vunpack.c.h.b16 %v9696
    %v10779 = vunpack.c.l.b16 %v9697
    %v10780 = vunpack.c.h.b16 %v9697
    %v10781 = vunpack.c.l.b16 %v9698
    %v10782 = vunpack.c.h.b16 %v9698
    %v10783 = vunpack.c.l.b16 %v9699
    %v10784 = vunpack.c.h.b16 %v9699
    %v10785 = vunpack.c.l.b16 %v9700
    %v10786 = vunpack.c.h.b16 %v9700
    %v10787 = vunpack.c.l.b16 %v9701
    %v10788 = vunpack.c.h.b16 %v9701
    %v10789 = vunpack.c.l.b16 %v9702
    %v10790 = vunpack.c.h.b16 %v9702
    %v10791 = vunpack.c.l.b16 %v9703
    %v10792 = vunpack.c.h.b16 %v9703
    %v10793 = vunpack.c.l.b16 %v9704
    %v10794 = vunpack.c.h.b16 %v9704
    %v10795 = vunpack.c.l.b16 %v9705
    %v10796 = vunpack.c.h.b16 %v9705
    %v10797 = vunpack.c.l.b16 %v9706
    %v10798 = vunpack.c.h.b16 %v9706
    %v10799 = vunpack.c.l.b16 %v9707
    %v10800 = vunpack.c.h.b16 %v9707
    %v10801 = vunpack.c.l.b16 %v9708
    %v10802 = vunpack.c.h.b16 %v9708
    %v10803 = vunpack.c.l.b16 %v9709
    %v10804 = vunpack.c.h.b16 %v9709
    %v10805 = vunpack.c.l.b16 %v9710
    %v10806 = vunpack.c.h.b16 %v9710
    %v10807 = vunpack.c.l.b16 %v9711
    %v10808 = vunpack.c.h.b16 %v9711
    %v10809 = vunpack.c.l.b16 %v9712
    %v10810 = vunpack.c.h.b16 %v9712
    %v10811 = vunpack.c.l.b16 %v9713
    %v10812 = vunpack.c.h.b16 %v9713
    %v10813 = vunpack.c.l.b16 %v9714
    %v10814 = vunpack.c.h.b16 %v9714
    %v10815 = vunpack.c.l.b16 %v9715
    %v10816 = vunpack.c.h.b16 %v9715
    %v10817 = vunpack.c.l.b16 %v9716
    %v10818 = vunpack.c.h.b16 %v9716
    %v10819 = vunpack.c.l.b16 %v9717
    %v10820 = vunpack.c.h.b16 %v9717
    %v10821 = vunpack.c.l.b16 %v9718
    %v10822 = vunpack.c.h.b16 %v9718
    %v10823 = vunpack.c.l.b16 %v9719
    %v10824 = vunpack.c.h.b16 %v9719
    %v10825 = vunpack.c.l.b16 %v9720
    %v10826 = vunpack.c.h.b16 %v9720
    %v10827 = vunpack.c.l.b16 %v9721
    %v10828 = vunpack.c.h.b16 %v9721
    %v10829 = vunpack.c.l.b16 %v9722
    %v10830 = vunpack.c.h.b16 %v9722
    %v10831 = vunpack.c.l.b16 %v9723
    %v10832 = vunpack.c.h.b16 %v9723
    %v10833 = vunpack.c.l.b16 %v9724
    %v10834 = vunpack.c.h.b16 %v9724
    %v10835 = vunpack.c.l.b16 %v9725
    %v10836 = vunpack.c.h.b16 %v9725
    %v10837 = vunpack.c.l.b16 %v9726
    %v10838 = vunpack.c.h.b16 %v9726
    %v10839 = vunpack.c.l.b16 %v9727
    %v10840 = vunpack.c.h.b16 %v9727
    %v10841 = vunpack.c.l.b16 %v9728
    %v10842 = vunpack.c.h.b16 %v9728
    %v10843 = vunpack.c.l.b16 %v9729
    %v10844 = vunpack.c.h.b16 %v9729
    %v10845 = vunpack.c.l.b16 %v9730
    %v10846 = vunpack.c.h.b16 %v9730
    %v10847 = vunpack.c.l.b16 %v9731
    %v10848 = vunpack.c.h.b16 %v9731
    %v10849 = vunpack.c.l.b16 %v9732
    %v10850 = vunpack.c.h.b16 %v9732
    %v10851 = vunpack.c.l.b16 %v9733
    %v10852 = vunpack.c.h.b16 %v9733
    %v10853 = vunpack.c.l.b16 %v9734
    %v10854 = vunpack.c.h.b16 %v9734
    %v10855 = vunpack.c.l.b16 %v9735
    %v10856 = vunpack.c.h.b16 %v9735
    %v10857 = vunpack.c.l.b16 %v9736
    %v10858 = vunpack.c.h.b16 %v9736
    %v10859 = vunpack.c.l.b16 %v9737
    %v10860 = vunpack.c.h.b16 %v9737
    %v10861 = vunpack.c.l.b16 %v9738
    %v10862 = vunpack.c.h.b16 %v9738
    %v10863 = vunpack.c.l.b16 %v9739
    %v10864 = vunpack.c.h.b16 %v9739
    %v10865 = vunpack.c.l.b16 %v9740
    %v10866 = vunpack.c.h.b16 %v9740
    %v10867 = vunpack.c.l.b16 %v9741
    %v10868 = vunpack.c.h.b16 %v9741
    %v10869 = vunpack.c.l.b16 %v9742
    %v10870 = vunpack.c.h.b16 %v9742
    %v10871 = vunpack.c.l.b16 %v9743
    %v10872 = vunpack.c.h.b16 %v9743
    %v10873 = vunpack.c.l.b16 %v9744
    %v10874 = vunpack.c.h.b16 %v9744
    %v10875 = vunpack.c.l.b16 %v9745
    %v10876 = vunpack.c.h.b16 %v9745
    %v10877 = vunpack.c.l.b16 %v9746
    %v10878 = vunpack.c.h.b16 %v9746
    %v10879 = vunpack.c.l.b16 %v9747
    %v10880 = vunpack.c.h.b16 %v9747
    %v10881 = vunpack.c.l.b16 %v9748
    %v10882 = vunpack.c.h.b16 %v9748
    %v10883 = vunpack.c.l.b16 %v9749
    %v10884 = vunpack.c.h.b16 %v9749
    %v10885 = vunpack.c.l.b16 %v9750
    %v10886 = vunpack.c.h.b16 %v9750
    %v10887 = vunpack.c.l.b16 %v9751
    %v10888 = vunpack.c.h.b16 %v9751
    %v10889 = vunpack.c.l.b16 %v9752
    %v10890 = vunpack.c.h.b16 %v9752
    %v10891 = vunpack.c.l.b16 %v9753
    %v10892 = vunpack.c.h.b16 %v9753
    %v10893 = vunpack.c.l.b16 %v9754
    %v10894 = vunpack.c.h.b16 %v9754
    %v10895 = vunpack.c.l.b16 %v9755
    %v10896 = vunpack.c.h.b16 %v9755
    %v10897 = vunpack.c.l.b16 %v9756
    %v10898 = vunpack.c.h.b16 %v9756
    %v10899 = vunpack.c.l.b16 %v9757
    %v10900 = vunpack.c.h.b16 %v9757
    %v10901 = vunpack.c.l.b16 %v9758
    %v10902 = vunpack.c.h.b16 %v9758
    %v10903 = vunpack.c.l.b16 %v9759
    %v10904 = vunpack.c.h.b16 %v9759
    %v10905 = vunpack.c.l.b16 %v9760
    %v10906 = vunpack.c.h.b16 %v9760
    %v10907 = vunpack.c.l.b16 %v9761
    %v10908 = vunpack.c.h.b16 %v9761
    %v10909 = vunpack.c.l.b16 %v9762
    %v10910 = vunpack.c.h.b16 %v9762
    %v10911 = vunpack.c.l.b16 %v9763
    %v10912 = vunpack.c.h.b16 %v9763
    %v10913 = vunpack.c.l.b16 %v9764
    %v10914 = vunpack.c.h.b16 %v9764
    %v10915 = vunpack.c.l.b16 %v9765
    %v10916 = vunpack.c.h.b16 %v9765
    %v10917 = vunpack.c.l.b16 %v9766
    %v10918 = vunpack.c.h.b16 %v9766
    %v10919 = vunpack.c.l.b16 %v9767
    %v10920 = vunpack.c.h.b16 %v9767
    %v10921 = vunpack.c.l.b16 %v9768
    %v10922 = vunpack.c.h.b16 %v9768
    %v10923 = vunpack.c.l.b16 %v9769
    %v10924 = vunpack.c.h.b16 %v9769
    %v10925 = vunpack.c.l.b16 %v9770
    %v10926 = vunpack.c.h.b16 %v9770
    %v10927 = vunpack.c.l.b16 %v9771
    %v10928 = vunpack.c.h.b16 %v9771
    %v10929 = vunpack.c.l.b16 %v9772
    %v10930 = vunpack.c.h.b16 %v9772
    %v10931 = vunpack.c.l.b16 %v9773
    %v10932 = vunpack.c.h.b16 %v9773
    %v10933 = vunpack.c.l.b16 %v9774
    %v10934 = vunpack.c.h.b16 %v9774
    %v10935 = vunpack.c.l.b16 %v9775
    %v10936 = vunpack.c.h.b16 %v9775
    %v10937 = vunpack.c.l.b16 %v9776
    %v10938 = vunpack.c.h.b16 %v9776
    %v10939 = vunpack.c.l.b16 %v9777
    %v10940 = vunpack.c.h.b16 %v9777
    %v10941 = vunpack.c.l.b16 %v9778
    %v10942 = vunpack.c.h.b16 %v9778
    %v10943 = vunpack.c.l.b16 %v9779
    %v10944 = vunpack.c.h.b16 %v9779
    %v10945 = vunpack.c.l.b16 %v9780
    %v10946 = vunpack.c.h.b16 %v9780
    %v10947 = vunpack.c.l.b16 %v9781
    %v10948 = vunpack.c.h.b16 %v9781
    %v10949 = vunpack.c.l.b16 %v9782
    %v10950 = vunpack.c.h.b16 %v9782
    %v10951 = vunpack.c.l.b16 %v9783
    %v10952 = vunpack.c.h.b16 %v9783
    %v10953 = vunpack.c.l.b16 %v9784
    %v10954 = vunpack.c.h.b16 %v9784
    %v10955 = vunpack.c.l.b16 %v9785
    %v10956 = vunpack.c.h.b16 %v9785
    %v10957 = vunpack.c.l.b16 %v9786
    %v10958 = vunpack.c.h.b16 %v9786
    %v10959 = vunpack.c.l.b16 %v9787
    %v10960 = vunpack.c.h.b16 %v9787
    %v10961 = vunpack.c.l.b16 %v9788
    %v10962 = vunpack.c.h.b16 %v9788
    %v10963 = vpack.c.b16 %v10199, %v10195
    %v10964 = vpack.c.b16 %v10200, %v10196
    %v10965 = vpack.c.b16 %v10201, %v10197
    %v10966 = vpack.c.b16 %v10202, %v10198
    %v10967 = vpack.c.b16 %v10207, %v10203
    %v10968 = vpack.c.b16 %v10208, %v10204
    %v10969 = vpack.c.b16 %v10209, %v10205
    %v10970 = vpack.c.b16 %v10210, %v10206
    %v10971 = vpack.c.b16 %v10215, %v10211
    %v10972 = vpack.c.b16 %v10216, %v10212
    %v10973 = vpack.c.b16 %v10217, %v10213
    %v10974 = vpack.c.b16 %v10218, %v10214
    %v10975 = vpack.c.b16 %v10223, %v10219
    %v10976 = vpack.c.b16 %v10224, %v10220
    %v10977 = vpack.c.b16 %v10225, %v10221
    %v10978 = vpack.c.b16 %v10226, %v10222
    %v10979 = vpack.c.b16 %v10231, %v10227
    %v10980 = vpack.c.b16 %v10232, %v10228
    %v10981 = vpack.c.b16 %v10233, %v10229
    %v10982 = vpack.c.b16 %v10234, %v10230
    %v10983 = vpack.c.b16 %v10239, %v10235
    %v10984 = vpack.c.b16 %v10240, %v10236
    %v10985 = vpack.c.b16 %v10241, %v10237
    %v10986 = vpack.c.b16 %v10242, %v10238
    %v10987 = vpack.c.b16 %v10247, %v10243
    %v10988 = vpack.c.b16 %v10248, %v10244
    %v10989 = vpack.c.b16 %v10249, %v10245
    %v10990 = vpack.c.b16 %v10250, %v10246
    %v10991 = vpack.c.b16 %v10255, %v10251
    %v10992 = vpack.c.b16 %v10256, %v10252
    %v10993 = vpack.c.b16 %v10257, %v10253
    %v10994 = vpack.c.b16 %v10258, %v10254
    %v10995 = vpack.c.b16 %v10263, %v10259
    %v10996 = vpack.c.b16 %v10264, %v10260
    %v10997 = vpack.c.b16 %v10265, %v10261
    %v10998 = vpack.c.b16 %v10266, %v10262
    %v10999 = vpack.c.b16 %v10271, %v10267
    %v11000 = vpack.c.b16 %v10272, %v10268
    %v11001 = vpack.c.b16 %v10273, %v10269
    %v11002 = vpack.c.b16 %v10274, %v10270
    %v11003 = vpack.c.b16 %v10279, %v10275
    %v11004 = vpack.c.b16 %v10280, %v10276
    %v11005 = vpack.c.b16 %v10281, %v10277
    %v11006 = vpack.c.b16 %v10282, %v10278
    %v11007 = vpack.c.b16 %v10287, %v10283
    %v11008 = vpack.c.b16 %v10288, %v10284
    %v11009 = vpack.c.b16 %v10289, %v10285
    %v11010 = vpack.c.b16 %v10290, %v10286
    %v11011 = vpack.c.b16 %v10295, %v10291
    %v11012 = vpack.c.b16 %v10296, %v10292
    %v11013 = vpack.c.b16 %v10297, %v10293
    %v11014 = vpack.c.b16 %v10298, %v10294
    %v11015 = vpack.c.b16 %v10303, %v10299
    %v11016 = vpack.c.b16 %v10304, %v10300
    %v11017 = vpack.c.b16 %v10305, %v10301
    %v11018 = vpack.c.b16 %v10306, %v10302
    %v11019 = vpack.c.b16 %v10311, %v10307
    %v11020 = vpack.c.b16 %v10312, %v10308
    %v11021 = vpack.c.b16 %v10313, %v10309
    %v11022 = vpack.c.b16 %v10314, %v10310
    %v11023 = vpack.c.b16 %v10319, %v10315
    %v11024 = vpack.c.b16 %v10320, %v10316
    %v11025 = vpack.c.b16 %v10321, %v10317
    %v11026 = vpack.c.b16 %v10322, %v10318
    %v11027 = vpack.c.b16 %v10327, %v10323
    %v11028 = vpack.c.b16 %v10328, %v10324
    %v11029 = vpack.c.b16 %v10329, %v10325
    %v11030 = vpack.c.b16 %v10330, %v10326
    %v11031 = vpack.c.b16 %v10335, %v10331
    %v11032 = vpack.c.b16 %v10336, %v10332
    %v11033 = vpack.c.b16 %v10337, %v10333
    %v11034 = vpack.c.b16 %v10338, %v10334
    %v11035 = vpack.c.b16 %v10343, %v10339
    %v11036 = vpack.c.b16 %v10344, %v10340
    %v11037 = vpack.c.b16 %v10345, %v10341
    %v11038 = vpack.c.b16 %v10346, %v10342
    %v11039 = vpack.c.b16 %v10351, %v10347
    %v11040 = vpack.c.b16 %v10352, %v10348
    %v11041 = vpack.c.b16 %v10353, %v10349
    %v11042 = vpack.c.b16 %v10354, %v10350
    %v11043 = vpack.c.b16 %v10359, %v10355
    %v11044 = vpack.c.b16 %v10360, %v10356
    %v11045 = vpack.c.b16 %v10361, %v10357
    %v11046 = vpack.c.b16 %v10362, %v10358
    %v11047 = vpack.c.b16 %v10367, %v10363
    %v11048 = vpack.c.b16 %v10368, %v10364
    %v11049 = vpack.c.b16 %v10369, %v10365
    %v11050 = vpack.c.b16 %v10370, %v10366
    %v11051 = vpack.c.b16 %v10375, %v10371
    %v11052 = vpack.c.b16 %v10376, %v10372
    %v11053 = vpack.c.b16 %v10377, %v10373
    %v11054 = vpack.c.b16 %v10378, %v10374
    %v11055 = vpack.c.b16 %v10383, %v10379
    %v11056 = vpack.c.b16 %v10384, %v10380
    %v11057 = vpack.c.b16 %v10385, %v10381
    %v11058 = vpack.c.b16 %v10386, %v10382
    %v11059 = vpack.c.b16 %v10391, %v10387
    %v11060 = vpack.c.b16 %v10392, %v10388
    %v11061 = vpack.c.b16 %v10393, %v10389
    %v11062 = vpack.c.b16 %v10394, %v10390
    %v11063 = vpack.c.b16 %v10399, %v10395
    %v11064 = vpack.c.b16 %v10400, %v10396
    %v11065 = vpack.c.b16 %v10401, %v10397
    %v11066 = vpack.c.b16 %v10402, %v10398
    %v11067 = vpack.c.b16 %v10407, %v10403
    %v11068 = vpack.c.b16 %v10408, %v10404
    %v11069 = vpack.c.b16 %v10409, %v10405
    %v11070 = vpack.c.b16 %v10410, %v10406
    %v11071 = vpack.c.b16 %v10415, %v10411
    %v11072 = vpack.c.b16 %v10416, %v10412
    %v11073 = vpack.c.b16 %v10417, %v10413
    %v11074 = vpack.c.b16 %v10418, %v10414
    %v11075 = vpack.c.b16 %v10423, %v10419
    %v11076 = vpack.c.b16 %v10424, %v10420
    %v11077 = vpack.c.b16 %v10425, %v10421
    %v11078 = vpack.c.b16 %v10426, %v10422
    %v11079 = vpack.c.b16 %v10431, %v10427
    %v11080 = vpack.c.b16 %v10432, %v10428
    %v11081 = vpack.c.b16 %v10433, %v10429
    %v11082 = vpack.c.b16 %v10434, %v10430
    %v11083 = vpack.c.b16 %v10439, %v10435
    %v11084 = vpack.c.b16 %v10440, %v10436
    %v11085 = vpack.c.b16 %v10441, %v10437
    %v11086 = vpack.c.b16 %v10442, %v10438
    %v11087 = vpack.c.b16 %v10447, %v10443
    %v11088 = vpack.c.b16 %v10448, %v10444
    %v11089 = vpack.c.b16 %v10449, %v10445
    %v11090 = vpack.c.b16 %v10450, %v10446
    %v11091 = vpack.c.b16 %v10455, %v10451
    %v11092 = vpack.c.b16 %v10456, %v10452
    %v11093 = vpack.c.b16 %v10457, %v10453
    %v11094 = vpack.c.b16 %v10458, %v10454
    %v11095 = vpack.c.b16 %v10463, %v10459
    %v11096 = vpack.c.b16 %v10464, %v10460
    %v11097 = vpack.c.b16 %v10465, %v10461
    %v11098 = vpack.c.b16 %v10466, %v10462
    %v11099 = vpack.c.b16 %v10471, %v10467
    %v11100 = vpack.c.b16 %v10472, %v10468
    %v11101 = vpack.c.b16 %v10473, %v10469
    %v11102 = vpack.c.b16 %v10474, %v10470
    %v11103 = vpack.c.b16 %v10479, %v10475
    %v11104 = vpack.c.b16 %v10480, %v10476
    %v11105 = vpack.c.b16 %v10481, %v10477
    %v11106 = vpack.c.b16 %v10482, %v10478
    %v11107 = vpack.c.b16 %v10487, %v10483
    %v11108 = vpack.c.b16 %v10488, %v10484
    %v11109 = vpack.c.b16 %v10489, %v10485
    %v11110 = vpack.c.b16 %v10490, %v10486
    %v11111 = vpack.c.b16 %v10495, %v10491
    %v11112 = vpack.c.b16 %v10496, %v10492
    %v11113 = vpack.c.b16 %v10497, %v10493
    %v11114 = vpack.c.b16 %v10498, %v10494
    %v11115 = vpack.c.b16 %v10503, %v10499
    %v11116 = vpack.c.b16 %v10504, %v10500
    %v11117 = vpack.c.b16 %v10505, %v10501
    %v11118 = vpack.c.b16 %v10506, %v10502
    %v11119 = vpack.c.b16 %v10511, %v10507
    %v11120 = vpack.c.b16 %v10512, %v10508
    %v11121 = vpack.c.b16 %v10513, %v10509
    %v11122 = vpack.c.b16 %v10514, %v10510
    %v11123 = vpack.c.b16 %v10519, %v10515
    %v11124 = vpack.c.b16 %v10520, %v10516
    %v11125 = vpack.c.b16 %v10521, %v10517
    %v11126 = vpack.c.b16 %v10522, %v10518
    %v11127 = vpack.c.b16 %v10527, %v10523
    %v11128 = vpack.c.b16 %v10528, %v10524
    %v11129 = vpack.c.b16 %v10529, %v10525
    %v11130 = vpack.c.b16 %v10530, %v10526
    %v11131 = vpack.c.b16 %v10535, %v10531
    %v11132 = vpack.c.b16 %v10536, %v10532
    %v11133 = vpack.c.b16 %v10537, %v10533
    %v11134 = vpack.c.b16 %v10538, %v10534
    %v11135 = vpack.c.b16 %v10543, %v10539
    %v11136 = vpack.c.b16 %v10544, %v10540
    %v11137 = vpack.c.b16 %v10545, %v10541
    %v11138 = vpack.c.b16 %v10546, %v10542
    %v11139 = vpack.c.b16 %v10551, %v10547
    %v11140 = vpack.c.b16 %v10552, %v10548
    %v11141 = vpack.c.b16 %v10553, %v10549
    %v11142 = vpack.c.b16 %v10554, %v10550
    %v11143 = vpack.c.b16 %v10559, %v10555
    %v11144 = vpack.c.b16 %v10560, %v10556
    %v11145 = vpack.c.b16 %v10561, %v10557
    %v11146 = vpack.c.b16 %v10562, %v10558
    %v11147 = vpack.c.b16 %v10567, %v10563
    %v11148 = vpack.c.b16 %v10568, %v10564
    %v11149 = vpack.c.b16 %v10569, %v10565
    %v11150 = vpack.c.b16 %v10570, %v10566
    %v11151 = vpack.c.b16 %v10575, %v10571
    %v11152 = vpack.c.b16 %v10576, %v10572
    %v11153 = vpack.c.b16 %v10577, %v10573
    %v11154 = vpack.c.b16 %v10578, %v10574
    %v11155 = vpack.c.b16 %v10583, %v10579
    %v11156 = vpack.c.b16 %v10584, %v10580
    %v11157 = vpack.c.b16 %v10585, %v10581
    %v11158 = vpack.c.b16 %v10586, %v10582
    %v11159 = vpack.c.b16 %v10591, %v10587
    %v11160 = vpack.c.b16 %v10592, %v10588
    %v11161 = vpack.c.b16 %v10593, %v10589
    %v11162 = vpack.c.b16 %v10594, %v10590
    %v11163 = vpack.c.b16 %v10599, %v10595
    %v11164 = vpack.c.b16 %v10600, %v10596
    %v11165 = vpack.c.b16 %v10601, %v10597
    %v11166 = vpack.c.b16 %v10602, %v10598
    %v11167 = vpack.c.b16 %v10607, %v10603
    %v11168 = vpack.c.b16 %v10608, %v10604
    %v11169 = vpack.c.b16 %v10609, %v10605
    %v11170 = vpack.c.b16 %v10610, %v10606
    %v11171 = vpack.c.b16 %v10615, %v10611
    %v11172 = vpack.c.b16 %v10616, %v10612
    %v11173 = vpack.c.b16 %v10617, %v10613
    %v11174 = vpack.c.b16 %v10618, %v10614
    %v11175 = vpack.c.b16 %v10623, %v10619
    %v11176 = vpack.c.b16 %v10624, %v10620
    %v11177 = vpack.c.b16 %v10625, %v10621
    %v11178 = vpack.c.b16 %v10626, %v10622
    %v11179 = vpack.c.b16 %v10631, %v10627
    %v11180 = vpack.c.b16 %v10632, %v10628
    %v11181 = vpack.c.b16 %v10633, %v10629
    %v11182 = vpack.c.b16 %v10634, %v10630
    %v11183 = vpack.c.b16 %v10639, %v10635
    %v11184 = vpack.c.b16 %v10640, %v10636
    %v11185 = vpack.c.b16 %v10641, %v10637
    %v11186 = vpack.c.b16 %v10642, %v10638
    %v11187 = vpack.c.b16 %v10647, %v10643
    %v11188 = vpack.c.b16 %v10648, %v10644
    %v11189 = vpack.c.b16 %v10649, %v10645
    %v11190 = vpack.c.b16 %v10650, %v10646
    %v11191 = vpack.c.b16 %v10655, %v10651
    %v11192 = vpack.c.b16 %v10656, %v10652
    %v11193 = vpack.c.b16 %v10657, %v10653
    %v11194 = vpack.c.b16 %v10658, %v10654
    %v11195 = vpack.c.b16 %v10663, %v10659
    %v11196 = vpack.c.b16 %v10664, %v10660
    %v11197 = vpack.c.b16 %v10665, %v10661
    %v11198 = vpack.c.b16 %v10666, %v10662
    %v11199 = vpack.c.b16 %v10671, %v10667
    %v11200 = vpack.c.b16 %v10672, %v10668
    %v11201 = vpack.c.b16 %v10673, %v10669
    %v11202 = vpack.c.b16 %v10674, %v10670
    %v11203 = vpack.c.b16 %v10679, %v10675
    %v11204 = vpack.c.b16 %v10680, %v10676
    %v11205 = vpack.c.b16 %v10681, %v10677
    %v11206 = vpack.c.b16 %v10682, %v10678
    %v11207 = vpack.c.b16 %v10687, %v10683
    %v11208 = vpack.c.b16 %v10688, %v10684
    %v11209 = vpack.c.b16 %v10689, %v10685
    %v11210 = vpack.c.b16 %v10690, %v10686
    %v11211 = vpack.c.b16 %v10695, %v10691
    %v11212 = vpack.c.b16 %v10696, %v10692
    %v11213 = vpack.c.b16 %v10697, %v10693
    %v11214 = vpack.c.b16 %v10698, %v10694
    %v11215 = vpack.c.b16 %v10703, %v10699
    %v11216 = vpack.c.b16 %v10704, %v10700
    %v11217 = vpack.c.b16 %v10705, %v10701
    %v11218 = vpack.c.b16 %v10706, %v10702
    %v11219 = vpack.c.b16 %v10711, %v10707
    %v11220 = vpack.c.b16 %v10712, %v10708
    %v11221 = vpack.c.b16 %v10713, %v10709
    %v11222 = vpack.c.b16 %v10714, %v10710
    %v11223 = vpack.c.b16 %v10719, %v10715
    %v11224 = vpack.c.b16 %v10720, %v10716
    %v11225 = vpack.c.b16 %v10721, %v10717
    %v11226 = vpack.c.b16 %v10722, %v10718
    %v11227 = vpack.c.b16 %v10727, %v10723
    %v11228 = vpack.c.b16 %v10728, %v10724
    %v11229 = vpack.c.b16 %v10729, %v10725
    %v11230 = vpack.c.b16 %v10730, %v10726
    %v11231 = vpack.c.b16 %v10735, %v10731
    %v11232 = vpack.c.b16 %v10736, %v10732
    %v11233 = vpack.c.b16 %v10737, %v10733
    %v11234 = vpack.c.b16 %v10738, %v10734
    %v11235 = vpack.c.b16 %v10743, %v10739
    %v11236 = vpack.c.b16 %v10744, %v10740
    %v11237 = vpack.c.b16 %v10745, %v10741
    %v11238 = vpack.c.b16 %v10746, %v10742
    %v11239 = vpack.c.b16 %v10751, %v10747
    %v11240 = vpack.c.b16 %v10752, %v10748
    %v11241 = vpack.c.b16 %v10753, %v10749
    %v11242 = vpack.c.b16 %v10754, %v10750
    %v11243 = vpack.c.b16 %v10759, %v10755
    %v11244 = vpack.c.b16 %v10760, %v10756
    %v11245 = vpack.c.b16 %v10761, %v10757
    %v11246 = vpack.c.b16 %v10762, %v10758
    %v11247 = vpack.c.b16 %v10767, %v10763
    %v11248 = vpack.c.b16 %v10768, %v10764
    %v11249 = vpack.c.b16 %v10769, %v10765
    %v11250 = vpack.c.b16 %v10770, %v10766
    %v11251 = vpack.c.b16 %v10775, %v10771
    %v11252 = vpack.c.b16 %v10776, %v10772
    %v11253 = vpack.c.b16 %v10777, %v10773
    %v11254 = vpack.c.b16 %v10778, %v10774
    %v11255 = vpack.c.b16 %v10783, %v10779
    %v11256 = vpack.c.b16 %v10784, %v10780
    %v11257 = vpack.c.b16 %v10785, %v10781
    %v11258 = vpack.c.b16 %v10786, %v10782
    %v11259 = vpack.c.b16 %v10791, %v10787
    %v11260 = vpack.c.b16 %v10792, %v10788
    %v11261 = vpack.c.b16 %v10793, %v10789
    %v11262 = vpack.c.b16 %v10794, %v10790
    %v11263 = vpack.c.b16 %v10799, %v10795
    %v11264 = vpack.c.b16 %v10800, %v10796
    %v11265 = vpack.c.b16 %v10801, %v10797
    %v11266 = vpack.c.b16 %v10802, %v10798
    %v11267 = vpack.c.b16 %v10807, %v10803
    %v11268 = vpack.c.b16 %v10808, %v10804
    %v11269 = vpack.c.b16 %v10809, %v10805
    %v11270 = vpack.c.b16 %v10810, %v10806
    %v11271 = vpack.c.b16 %v10815, %v10811
    %v11272 = vpack.c.b16 %v10816, %v10812
    %v11273 = vpack.c.b16 %v10817, %v10813
    %v11274 = vpack.c.b16 %v10818, %v10814
    %v11275 = vpack.c.b16 %v10823, %v10819
    %v11276 = vpack.c.b16 %v10824, %v10820
    %v11277 = vpack.c.b16 %v10825, %v10821
    %v11278 = vpack.c.b16 %v10826, %v10822
    %v11279 = vpack.c.b16 %v10831, %v10827
    %v11280 = vpack.c.b16 %v10832, %v10828
    %v11281 = vpack.c.b16 %v10833, %v10829
    %v11282 = vpack.c.b16 %v10834, %v10830
    %v11283 = vpack.c.b16 %v10839, %v10835
    %v11284 = vpack.c.b16 %v10840, %v10836
    %v11285 = vpack.c.b16 %v10841, %v10837
    %v11286 = vpack.c.b16 %v10842, %v10838
    %v11287 = vpack.c.b16 %v10847, %v10843
    %v11288 = vpack.c.b16 %v10848, %v10844
    %v11289 = vpack.c.b16 %v10849, %v10845
    %v11290 = vpack.c.b16 %v10850, %v10846
    %v11291 = vpack.c.b16 %v10855, %v10851
    %v11292 = vpack.c.b16 %v10856, %v10852
    %v11293 = vpack.c.b16 %v10857, %v10853
    %v11294 = vpack.c.b16 %v10858, %v10854
    %v11295 = vpack.c.b16 %v10863, %v10859
    %v11296 = vpack.c.b16 %v10864, %v10860
    %v11297 = vpack.c.b16 %v10865, %v10861
    %v11298 = vpack.c.b16 %v10866, %v10862
    %v11299 = vpack.c.b16 %v10871, %v10867
    %v11300 = vpack.c.b16 %v10872, %v10868
    %v11301 = vpack.c.b16 %v10873, %v10869
    %v11302 = vpack.c.b16 %v10874, %v10870
    %v11303 = vpack.c.b16 %v10879, %v10875
    %v11304 = vpack.c.b16 %v10880, %v10876
    %v11305 = vpack.c.b16 %v10881, %v10877
    %v11306 = vpack.c.b16 %v10882, %v10878
    %v11307 = vpack.c.b16 %v10887, %v10883
    %v11308 = vpack.c.b16 %v10888, %v10884
    %v11309 = vpack.c.b16 %v10889, %v10885
    %v11310 = vpack.c.b16 %v10890, %v10886
    %v11311 = vpack.c.b16 %v10895, %v10891
    %v11312 = vpack.c.b16 %v10896, %v10892
    %v11313 = vpack.c.b16 %v10897, %v10893
    %v11314 = vpack.c.b16 %v10898, %v10894
    %v11315 = vpack.c.b16 %v10903, %v10899
    %v11316 = vpack.c.b16 %v10904, %v10900
    %v11317 = vpack.c.b16 %v10905, %v10901
    %v11318 = vpack.c.b16 %v10906, %v10902
    %v11319 = vpack.c.b16 %v10911, %v10907
    %v11320 = vpack.c.b16 %v10912, %v10908
    %v11321 = vpack.c.b16 %v10913, %v10909
    %v11322 = vpack.c.b16 %v10914, %v10910
    %v11323 = vpack.c.b16 %v10919, %v10915
    %v11324 = vpack.c.b16 %v10920, %v10916
    %v11325 = vpack.c.b16 %v10921, %v10917
    %v11326 = vpack.c.b16 %v10922, %v10918
    %v11327 = vpack.c.b16 %v10927, %v10923
    %v11328 = vpack.c.b16 %v10928, %v10924
    %v11329 = vpack.c.b16 %v10929, %v10925
    %v11330 = vpack.c.b16 %v10930, %v10926
    %v11331 = vpack.c.b16 %v10935, %v10931
    %v11332 = vpack.c.b16 %v10936, %v10932
    %v11333 = vpack.c.b16 %v10937, %v10933
    %v11334 = vpack.c.b16 %v10938, %v10934
    %v11335 = vpack.c.b16 %v10943, %v10939
    %v11336 = vpack.c.b16 %v10944, %v10940
    %v11337 = vpack.c.b16 %v10945, %v10941
    %v11338 = vpack.c.b16 %v10946, %v10942
    %v11339 = vpack.c.b16 %v10951, %v10947
    %v11340 = vpack.c.b16 %v10952, %v10948
    %v11341 = vpack.c.b16 %v10953, %v10949
    %v11342 = vpack.c.b16 %v10954, %v10950
    %v11343 = vpack.c.b16 %v10959, %v10955
    %v11344 = vpack.c.b16 %v10960, %v10956
    %v11345 = vpack.c.b16 %v10961, %v10957
    %v11346 = vpack.c.b16 %v10962, %v10958
    %11731 = vmatprep.subr.bf16.mxu0 %v10992
    %11732 = vmatpush1.bf16.msra.mxu0 %v10991
    %11733 = vmatprep.subr.bf16.mxu0 %v10988
    %11734 = vmatpush1.bf16.msra.mxu0 %v10987
    %11735 = vmatprep.subr.bf16.mxu0 %v10984
    %11736 = vmatpush1.bf16.msra.mxu0 %v10983
    %11737 = vmatprep.subr.bf16.mxu0 %v10980
    %11738 = vmatpush1.bf16.msra.mxu0 %v10979
    %11739 = vmatprep.subr.bf16.mxu0 %v10976
    %11740 = vmatpush1.bf16.msra.mxu0 %v10975
    %11741 = vmatprep.subr.bf16.mxu0 %v10972
    %11742 = vmatpush1.bf16.msra.mxu0 %v10971
    %11743 = vmatprep.subr.bf16.mxu0 %v10968
    %11744 = vmatpush1.bf16.msra.mxu0 %v10967
    %11745 = vmatprep.subr.bf16.mxu0 %v10964
    %11746 = vmatpush1.bf16.msra.mxu0 %v10963
    %11747 = vmatprep.subr.bf16.mxu0 %v11024
    %11748 = vmatpush2.bf16.msra.mxu0 %v11023
    %11749 = vmatprep.subr.bf16.mxu0 %v11020
    %11750 = vmatpush2.bf16.msra.mxu0 %v11019
    %11751 = vmatprep.subr.bf16.mxu0 %v11016
    %11752 = vmatpush2.bf16.msra.mxu0 %v11015
    %11753 = vmatprep.subr.bf16.mxu0 %v11012
    %11754 = vmatpush2.bf16.msra.mxu0 %v11011
    %11755 = vmatprep.subr.bf16.mxu0 %v11008
    %11756 = vmatpush2.bf16.msra.mxu0 %v11007
    %11757 = vmatprep.subr.bf16.mxu0 %v11004
    %11758 = vmatpush2.bf16.msra.mxu0 %v11003
    %11759 = vmatprep.subr.bf16.mxu0 %v11000
    %11760 = vmatpush2.bf16.msra.mxu0 %v10999
    %11761 = vmatprep.subr.bf16.mxu0 %v10996
    %11762 = vmatpush2.bf16.msra.mxu0 %v10995
    %11763 = vmatprep.mubr.bf16.mxu0 %v9394
    %11764 = vmatmul.mubr.bf16.gmra.mxu0 %v9393
    %v11765 = vpop.f32.mrf.mxu0
    %v11766 = vadd.f32 %v9794, %v11765
    %v11767 = vpop.f32.mrf.mxu0
    %v11768 = vadd.f32 %v9798, %v11767
    %v11769 = vpop.f32.mrf.mxu0
    %v11770 = vadd.f32 %v9794, %v11769
    %v11771 = vpop.f32.mrf.mxu0
    %v11772 = vadd.f32 %v9798, %v11771
    %11773 = vdwg.mxu0
    %11774 = vmatprep.subr.bf16.mxu0 %v11056
    %11775 = vmatpush1.bf16.msra.mxu0 %v11055
    %11776 = vmatprep.subr.bf16.mxu0 %v11052
    %11777 = vmatpush1.bf16.msra.mxu0 %v11051
    %11778 = vmatprep.subr.bf16.mxu0 %v11048
    %11779 = vmatpush1.bf16.msra.mxu0 %v11047
    %11780 = vmatprep.subr.bf16.mxu0 %v11044
    %11781 = vmatpush1.bf16.msra.mxu0 %v11043
    %11782 = vmatprep.subr.bf16.mxu0 %v11040
    %11783 = vmatpush1.bf16.msra.mxu0 %v11039
    %11784 = vmatprep.subr.bf16.mxu0 %v11036
    %11785 = vmatpush1.bf16.msra.mxu0 %v11035
    %11786 = vmatprep.subr.bf16.mxu0 %v11032
    %11787 = vmatpush1.bf16.msra.mxu0 %v11031
    %11788 = vmatprep.subr.bf16.mxu0 %v11028
    %11789 = vmatpush1.bf16.msra.mxu0 %v11027
    %11790 = vmatprep.subr.bf16.mxu0 %v11088
    %11791 = vmatpush2.bf16.msra.mxu0 %v11087
    %11792 = vmatprep.subr.bf16.mxu0 %v11084
    %11793 = vmatpush2.bf16.msra.mxu0 %v11083
    %11794 = vmatprep.subr.bf16.mxu0 %v11080
    %11795 = vmatpush2.bf16.msra.mxu0 %v11079
    %11796 = vmatprep.subr.bf16.mxu0 %v11076
    %11797 = vmatpush2.bf16.msra.mxu0 %v11075
    %11798 = vmatprep.subr.bf16.mxu0 %v11072
    %11799 = vmatpush2.bf16.msra.mxu0 %v11071
    %11800 = vmatprep.subr.bf16.mxu0 %v11068
    %11801 = vmatpush2.bf16.msra.mxu0 %v11067
    %11802 = vmatprep.subr.bf16.mxu0 %v11064
    %11803 = vmatpush2.bf16.msra.mxu0 %v11063
    %11804 = vmatprep.subr.bf16.mxu0 %v11060
    %11805 = vmatpush2.bf16.msra.mxu0 %v11059
    %11806 = vmatprep.mubr.bf16.mxu0 %v9396
    %11807 = vmatmul.mubr.bf16.gmra.mxu0 %v9395
    %v11808 = vpop.f32.mrf.mxu0
    %v11809 = vadd.f32 %v11766, %v11808
    %v11810 = vpop.f32.mrf.mxu0
    %v11811 = vadd.f32 %v11768, %v11810
    %v11812 = vpop.f32.mrf.mxu0
    %v11813 = vadd.f32 %v11770, %v11812
    %v11814 = vpop.f32.mrf.mxu0
    %v11815 = vadd.f32 %v11772, %v11814
    %11816 = vdwg.mxu0
    %11817 = vmatprep.subr.bf16.mxu0 %v11120
    %11818 = vmatpush1.bf16.msra.mxu0 %v11119
    %11819 = vmatprep.subr.bf16.mxu0 %v11116
    %11820 = vmatpush1.bf16.msra.mxu0 %v11115
    %11821 = vmatprep.subr.bf16.mxu0 %v11112
    %11822 = vmatpush1.bf16.msra.mxu0 %v11111
    %11823 = vmatprep.subr.bf16.mxu0 %v11108
    %11824 = vmatpush1.bf16.msra.mxu0 %v11107
    %11825 = vmatprep.subr.bf16.mxu0 %v11104
    %11826 = vmatpush1.bf16.msra.mxu0 %v11103
    %11827 = vmatprep.subr.bf16.mxu0 %v11100
    %11828 = vmatpush1.bf16.msra.mxu0 %v11099
    %11829 = vmatprep.subr.bf16.mxu0 %v11096
    %11830 = vmatpush1.bf16.msra.mxu0 %v11095
    %11831 = vmatprep.subr.bf16.mxu0 %v11092
    %11832 = vmatpush1.bf16.msra.mxu0 %v11091
    %11833 = vmatprep.subr.bf16.mxu0 %v11152
    %11834 = vmatpush2.bf16.msra.mxu0 %v11151
    %11835 = vmatprep.subr.bf16.mxu0 %v11148
    %11836 = vmatpush2.bf16.msra.mxu0 %v11147
    %11837 = vmatprep.subr.bf16.mxu0 %v11144
    %11838 = vmatpush2.bf16.msra.mxu0 %v11143
    %11839 = vmatprep.subr.bf16.mxu0 %v11140
    %11840 = vmatpush2.bf16.msra.mxu0 %v11139
    %11841 = vmatprep.subr.bf16.mxu0 %v11136
    %11842 = vmatpush2.bf16.msra.mxu0 %v11135
    %11843 = vmatprep.subr.bf16.mxu0 %v11132
    %11844 = vmatpush2.bf16.msra.mxu0 %v11131
    %11845 = vmatprep.subr.bf16.mxu0 %v11128
    %11846 = vmatpush2.bf16.msra.mxu0 %v11127
    %11847 = vmatprep.subr.bf16.mxu0 %v11124
    %11848 = vmatpush2.bf16.msra.mxu0 %v11123
    %11849 = vmatprep.mubr.bf16.mxu0 %v9398
    %11850 = vmatmul.mubr.bf16.gmra.mxu0 %v9397
    %v11851 = vpop.f32.mrf.mxu0
    %v11852 = vadd.f32 %v11809, %v11851
    %v11853 = vpop.f32.mrf.mxu0
    %v11854 = vadd.f32 %v11811, %v11853
    %v11855 = vpop.f32.mrf.mxu0
    %v11856 = vadd.f32 %v11813, %v11855
    %v11857 = vpop.f32.mrf.mxu0
    %v11858 = vadd.f32 %v11815, %v11857
    %11859 = vdwg.mxu0
    %11860 = vmatprep.subr.bf16.mxu0 %v11184
    %11861 = vmatpush1.bf16.msra.mxu0 %v11183
    %11862 = vmatprep.subr.bf16.mxu0 %v11180
    %11863 = vmatpush1.bf16.msra.mxu0 %v11179
    %11864 = vmatprep.subr.bf16.mxu0 %v11176
    %11865 = vmatpush1.bf16.msra.mxu0 %v11175
    %11866 = vmatprep.subr.bf16.mxu0 %v11172
    %11867 = vmatpush1.bf16.msra.mxu0 %v11171
    %11868 = vmatprep.subr.bf16.mxu0 %v11168
    %11869 = vmatpush1.bf16.msra.mxu0 %v11167
    %11870 = vmatprep.subr.bf16.mxu0 %v11164
    %11871 = vmatpush1.bf16.msra.mxu0 %v11163
    %11872 = vmatprep.subr.bf16.mxu0 %v11160
    %11873 = vmatpush1.bf16.msra.mxu0 %v11159
    %11874 = vmatprep.subr.bf16.mxu0 %v11156
    %11875 = vmatpush1.bf16.msra.mxu0 %v11155
    %11876 = vmatprep.subr.bf16.mxu0 %v11216
    %11877 = vmatpush2.bf16.msra.mxu0 %v11215
    %11878 = vmatprep.subr.bf16.mxu0 %v11212
    %11879 = vmatpush2.bf16.msra.mxu0 %v11211
    %11880 = vmatprep.subr.bf16.mxu0 %v11208
    %11881 = vmatpush2.bf16.msra.mxu0 %v11207
    %11882 = vmatprep.subr.bf16.mxu0 %v11204
    %11883 = vmatpush2.bf16.msra.mxu0 %v11203
    %11884 = vmatprep.subr.bf16.mxu0 %v11200
    %11885 = vmatpush2.bf16.msra.mxu0 %v11199
    %11886 = vmatprep.subr.bf16.mxu0 %v11196
    %11887 = vmatpush2.bf16.msra.mxu0 %v11195
    %11888 = vmatprep.subr.bf16.mxu0 %v11192
    %11889 = vmatpush2.bf16.msra.mxu0 %v11191
    %11890 = vmatprep.subr.bf16.mxu0 %v11188
    %11891 = vmatpush2.bf16.msra.mxu0 %v11187
    %11892 = vmatprep.mubr.bf16.mxu0 %v9400
    %11893 = vmatmul.mubr.bf16.gmra.mxu0 %v9399
    %v11894 = vpop.f32.mrf.mxu0
    %v11895 = vadd.f32 %v11852, %v11894
    %v11896 = vpop.f32.mrf.mxu0
    %v11897 = vadd.f32 %v11854, %v11896
    %v11898 = vpop.f32.mrf.mxu0
    %v11899 = vadd.f32 %v11856, %v11898
    %v11900 = vpop.f32.mrf.mxu0
    %v11901 = vadd.f32 %v11858, %v11900
    %11902 = vdwg.mxu0
    %11903 = vmatprep.subr.bf16.mxu0 %v11248
    %11904 = vmatpush1.bf16.msra.mxu0 %v11247
    %11905 = vmatprep.subr.bf16.mxu0 %v11244
    %11906 = vmatpush1.bf16.msra.mxu0 %v11243
    %11907 = vmatprep.subr.bf16.mxu0 %v11240
    %11908 = vmatpush1.bf16.msra.mxu0 %v11239
    %11909 = vmatprep.subr.bf16.mxu0 %v11236
    %11910 = vmatpush1.bf16.msra.mxu0 %v11235
    %11911 = vmatprep.subr.bf16.mxu0 %v11232
    %11912 = vmatpush1.bf16.msra.mxu0 %v11231
    %11913 = vmatprep.subr.bf16.mxu0 %v11228
    %11914 = vmatpush1.bf16.msra.mxu0 %v11227
    %11915 = vmatprep.subr.bf16.mxu0 %v11224
    %11916 = vmatpush1.bf16.msra.mxu0 %v11223
    %11917 = vmatprep.subr.bf16.mxu0 %v11220
    %11918 = vmatpush1.bf16.msra.mxu0 %v11219
    %11919 = vmatprep.subr.bf16.mxu0 %v11280
    %11920 = vmatpush2.bf16.msra.mxu0 %v11279
    %11921 = vmatprep.subr.bf16.mxu0 %v11276
    %11922 = vmatpush2.bf16.msra.mxu0 %v11275
    %11923 = vmatprep.subr.bf16.mxu0 %v11272
    %11924 = vmatpush2.bf16.msra.mxu0 %v11271
    %11925 = vmatprep.subr.bf16.mxu0 %v11268
    %11926 = vmatpush2.bf16.msra.mxu0 %v11267
    %11927 = vmatprep.subr.bf16.mxu0 %v11264
    %11928 = vmatpush2.bf16.msra.mxu0 %v11263
    %11929 = vmatprep.subr.bf16.mxu0 %v11260
    %11930 = vmatpush2.bf16.msra.mxu0 %v11259
    %11931 = vmatprep.subr.bf16.mxu0 %v11256
    %11932 = vmatpush2.bf16.msra.mxu0 %v11255
    %11933 = vmatprep.subr.bf16.mxu0 %v11252
    %11934 = vmatpush2.bf16.msra.mxu0 %v11251
    %11935 = vmatprep.mubr.bf16.mxu0 %v9402
    %11936 = vmatmul.mubr.bf16.gmra.mxu0 %v9401
    %v11937 = vpop.f32.mrf.mxu0
    %v11938 = vadd.f32 %v11895, %v11937
    %v11939 = vpop.f32.mrf.mxu0
    %v11940 = vadd.f32 %v11897, %v11939
    %v11941 = vpop.f32.mrf.mxu0
    %v11942 = vadd.f32 %v11899, %v11941
    %v11943 = vpop.f32.mrf.mxu0
    %v11944 = vadd.f32 %v11901, %v11943
    %11945 = vdwg.mxu0
    %11946 = vmatprep.subr.bf16.mxu0 %v11312
    %11947 = vmatpush1.bf16.msra.mxu0 %v11311
    %11948 = vmatprep.subr.bf16.mxu0 %v11308
    %11949 = vmatpush1.bf16.msra.mxu0 %v11307
    %11950 = vmatprep.subr.bf16.mxu0 %v11304
    %11951 = vmatpush1.bf16.msra.mxu0 %v11303
    %11952 = vmatprep.subr.bf16.mxu0 %v11300
    %11953 = vmatpush1.bf16.msra.mxu0 %v11299
    %11954 = vmatprep.subr.bf16.mxu0 %v11296
    %11955 = vmatpush1.bf16.msra.mxu0 %v11295
    %11956 = vmatprep.subr.bf16.mxu0 %v11292
    %11957 = vmatpush1.bf16.msra.mxu0 %v11291
    %11958 = vmatprep.subr.bf16.mxu0 %v11288
    %11959 = vmatpush1.bf16.msra.mxu0 %v11287
    %11960 = vmatprep.subr.bf16.mxu0 %v11284
    %11961 = vmatpush1.bf16.msra.mxu0 %v11283
    %11962 = vmatprep.subr.bf16.mxu0 %v11344
    %11963 = vmatpush2.bf16.msra.mxu0 %v11343
    %11964 = vmatprep.subr.bf16.mxu0 %v11340
    %11965 = vmatpush2.bf16.msra.mxu0 %v11339
    %11966 = vmatprep.subr.bf16.mxu0 %v11336
    %11967 = vmatpush2.bf16.msra.mxu0 %v11335
    %11968 = vmatprep.subr.bf16.mxu0 %v11332
    %11969 = vmatpush2.bf16.msra.mxu0 %v11331
    %11970 = vmatprep.subr.bf16.mxu0 %v11328
    %11971 = vmatpush2.bf16.msra.mxu0 %v11327
    %11972 = vmatprep.subr.bf16.mxu0 %v11324
    %11973 = vmatpush2.bf16.msra.mxu0 %v11323
    %11974 = vmatprep.subr.bf16.mxu0 %v11320
    %11975 = vmatpush2.bf16.msra.mxu0 %v11319
    %11976 = vmatprep.subr.bf16.mxu0 %v11316
    %11977 = vmatpush2.bf16.msra.mxu0 %v11315
    %11978 = vmatprep.mubr.bf16.mxu0 %v9404
    %11979 = vmatmul.mubr.bf16.gmra.mxu0 %v9403
    %v11980 = vpop.f32.mrf.mxu0
    %v11981 = vadd.f32 %v11938, %v11980
    %v11982 = vpop.f32.mrf.mxu0
    %v11983 = vadd.f32 %v11940, %v11982
    %v11984 = vpop.f32.mrf.mxu0
    %v11985 = vadd.f32 %v11942, %v11984
    %v11986 = vpop.f32.mrf.mxu0
    %v11987 = vadd.f32 %v11944, %v11986
    %11988 = vdwg.mxu0
    %11989 = vmatprep.subr.bf16.mxu0 %v10994
    %11990 = vmatpush1.bf16.msra.mxu0 %v10993
    %11991 = vmatprep.subr.bf16.mxu0 %v10990
    %11992 = vmatpush1.bf16.msra.mxu0 %v10989
    %11993 = vmatprep.subr.bf16.mxu0 %v10986
    %11994 = vmatpush1.bf16.msra.mxu0 %v10985
    %11995 = vmatprep.subr.bf16.mxu0 %v10982
    %11996 = vmatpush1.bf16.msra.mxu0 %v10981
    %11997 = vmatprep.subr.bf16.mxu0 %v10978
    %11998 = vmatpush1.bf16.msra.mxu0 %v10977
    %11999 = vmatprep.subr.bf16.mxu0 %v10974
    %12000 = vmatpush1.bf16.msra.mxu0 %v10973
    %12001 = vmatprep.subr.bf16.mxu0 %v10970
    %12002 = vmatpush1.bf16.msra.mxu0 %v10969
    %12003 = vmatprep.subr.bf16.mxu0 %v10966
    %12004 = vmatpush1.bf16.msra.mxu0 %v10965
    %12005 = vmatprep.subr.bf16.mxu0 %v11026
    %12006 = vmatpush2.bf16.msra.mxu0 %v11025
    %12007 = vmatprep.subr.bf16.mxu0 %v11022
    %12008 = vmatpush2.bf16.msra.mxu0 %v11021
    %12009 = vmatprep.subr.bf16.mxu0 %v11018
    %12010 = vmatpush2.bf16.msra.mxu0 %v11017
    %12011 = vmatprep.subr.bf16.mxu0 %v11014
    %12012 = vmatpush2.bf16.msra.mxu0 %v11013
    %12013 = vmatprep.subr.bf16.mxu0 %v11010
    %12014 = vmatpush2.bf16.msra.mxu0 %v11009
    %12015 = vmatprep.subr.bf16.mxu0 %v11006
    %12016 = vmatpush2.bf16.msra.mxu0 %v11005
    %12017 = vmatprep.subr.bf16.mxu0 %v11002
    %12018 = vmatpush2.bf16.msra.mxu0 %v11001
    %12019 = vmatprep.subr.bf16.mxu0 %v10998
    %12020 = vmatpush2.bf16.msra.mxu0 %v10997
    %12021 = vmatprep.mubr.bf16.mxu0 %v9394
    %12022 = vmatmul.mubr.bf16.gmra.mxu0 %v9393
    %v12023 = vpop.f32.mrf.mxu0
    %v12024 = vadd.f32 %v9802, %v12023
    %v12025 = vpop.f32.mrf.mxu0
    %v12026 = vadd.f32 %v9806, %v12025
    %v12027 = vpop.f32.mrf.mxu0
    %v12028 = vadd.f32 %v9802, %v12027
    %v12029 = vpop.f32.mrf.mxu0
    %v12030 = vadd.f32 %v9806, %v12029
    %12031 = vdwg.mxu0
    %12032 = vmatprep.subr.bf16.mxu0 %v11058
    %12033 = vmatpush1.bf16.msra.mxu0 %v11057
    %12034 = vmatprep.subr.bf16.mxu0 %v11054
    %12035 = vmatpush1.bf16.msra.mxu0 %v11053
    %12036 = vmatprep.subr.bf16.mxu0 %v11050
    %12037 = vmatpush1.bf16.msra.mxu0 %v11049
    %12038 = vmatprep.subr.bf16.mxu0 %v11046
    %12039 = vmatpush1.bf16.msra.mxu0 %v11045
    %12040 = vmatprep.subr.bf16.mxu0 %v11042
    %12041 = vmatpush1.bf16.msra.mxu0 %v11041
    %12042 = vmatprep.subr.bf16.mxu0 %v11038
    %12043 = vmatpush1.bf16.msra.mxu0 %v11037
    %12044 = vmatprep.subr.bf16.mxu0 %v11034
    %12045 = vmatpush1.bf16.msra.mxu0 %v11033
    %12046 = vmatprep.subr.bf16.mxu0 %v11030
    %12047 = vmatpush1.bf16.msra.mxu0 %v11029
    %12048 = vmatprep.subr.bf16.mxu0 %v11090
    %12049 = vmatpush2.bf16.msra.mxu0 %v11089
    %12050 = vmatprep.subr.bf16.mxu0 %v11086
    %12051 = vmatpush2.bf16.msra.mxu0 %v11085
    %12052 = vmatprep.subr.bf16.mxu0 %v11082
    %12053 = vmatpush2.bf16.msra.mxu0 %v11081
    %12054 = vmatprep.subr.bf16.mxu0 %v11078
    %12055 = vmatpush2.bf16.msra.mxu0 %v11077
    %12056 = vmatprep.subr.bf16.mxu0 %v11074
    %12057 = vmatpush2.bf16.msra.mxu0 %v11073
    %12058 = vmatprep.subr.bf16.mxu0 %v11070
    %12059 = vmatpush2.bf16.msra.mxu0 %v11069
    %12060 = vmatprep.subr.bf16.mxu0 %v11066
    %12061 = vmatpush2.bf16.msra.mxu0 %v11065
    %12062 = vmatprep.subr.bf16.mxu0 %v11062
    %12063 = vmatpush2.bf16.msra.mxu0 %v11061
    %12064 = vmatprep.mubr.bf16.mxu0 %v9396
    %12065 = vmatmul.mubr.bf16.gmra.mxu0 %v9395
    %v12066 = vpop.f32.mrf.mxu0
    %v12067 = vadd.f32 %v12024, %v12066
    %v12068 = vpop.f32.mrf.mxu0
    %v12069 = vadd.f32 %v12026, %v12068
    %v12070 = vpop.f32.mrf.mxu0
    %v12071 = vadd.f32 %v12028, %v12070
    %v12072 = vpop.f32.mrf.mxu0
    %v12073 = vadd.f32 %v12030, %v12072
    %12074 = vdwg.mxu0
    %12075 = vmatprep.subr.bf16.mxu0 %v11122
    %12076 = vmatpush1.bf16.msra.mxu0 %v11121
    %12077 = vmatprep.subr.bf16.mxu0 %v11118
    %12078 = vmatpush1.bf16.msra.mxu0 %v11117
    %12079 = vmatprep.subr.bf16.mxu0 %v11114
    %12080 = vmatpush1.bf16.msra.mxu0 %v11113
    %12081 = vmatprep.subr.bf16.mxu0 %v11110
    %12082 = vmatpush1.bf16.msra.mxu0 %v11109
    %12083 = vmatprep.subr.bf16.mxu0 %v11106
    %12084 = vmatpush1.bf16.msra.mxu0 %v11105
    %12085 = vmatprep.subr.bf16.mxu0 %v11102
    %12086 = vmatpush1.bf16.msra.mxu0 %v11101
    %12087 = vmatprep.subr.bf16.mxu0 %v11098
    %12088 = vmatpush1.bf16.msra.mxu0 %v11097
    %12089 = vmatprep.subr.bf16.mxu0 %v11094
    %12090 = vmatpush1.bf16.msra.mxu0 %v11093
    %12091 = vmatprep.subr.bf16.mxu0 %v11154
    %12092 = vmatpush2.bf16.msra.mxu0 %v11153
    %12093 = vmatprep.subr.bf16.mxu0 %v11150
    %12094 = vmatpush2.bf16.msra.mxu0 %v11149
    %12095 = vmatprep.subr.bf16.mxu0 %v11146
    %12096 = vmatpush2.bf16.msra.mxu0 %v11145
    %12097 = vmatprep.subr.bf16.mxu0 %v11142
    %12098 = vmatpush2.bf16.msra.mxu0 %v11141
    %12099 = vmatprep.subr.bf16.mxu0 %v11138
    %12100 = vmatpush2.bf16.msra.mxu0 %v11137
    %12101 = vmatprep.subr.bf16.mxu0 %v11134
    %12102 = vmatpush2.bf16.msra.mxu0 %v11133
    %12103 = vmatprep.subr.bf16.mxu0 %v11130
    %12104 = vmatpush2.bf16.msra.mxu0 %v11129
    %12105 = vmatprep.subr.bf16.mxu0 %v11126
    %12106 = vmatpush2.bf16.msra.mxu0 %v11125
    %12107 = vmatprep.mubr.bf16.mxu0 %v9398
    %12108 = vmatmul.mubr.bf16.gmra.mxu0 %v9397
    %v12109 = vpop.f32.mrf.mxu0
    %v12110 = vadd.f32 %v12067, %v12109
    %v12111 = vpop.f32.mrf.mxu0
    %v12112 = vadd.f32 %v12069, %v12111
    %v12113 = vpop.f32.mrf.mxu0
    %v12114 = vadd.f32 %v12071, %v12113
    %v12115 = vpop.f32.mrf.mxu0
    %v12116 = vadd.f32 %v12073, %v12115
    %12117 = vdwg.mxu0
    %12118 = vmatprep.subr.bf16.mxu0 %v11186
    %12119 = vmatpush1.bf16.msra.mxu0 %v11185
    %12120 = vmatprep.subr.bf16.mxu0 %v11182
    %12121 = vmatpush1.bf16.msra.mxu0 %v11181
    %12122 = vmatprep.subr.bf16.mxu0 %v11178
    %12123 = vmatpush1.bf16.msra.mxu0 %v11177
    %12124 = vmatprep.subr.bf16.mxu0 %v11174
    %12125 = vmatpush1.bf16.msra.mxu0 %v11173
    %12126 = vmatprep.subr.bf16.mxu0 %v11170
    %12127 = vmatpush1.bf16.msra.mxu0 %v11169
    %12128 = vmatprep.subr.bf16.mxu0 %v11166
    %12129 = vmatpush1.bf16.msra.mxu0 %v11165
    %12130 = vmatprep.subr.bf16.mxu0 %v11162
    %12131 = vmatpush1.bf16.msra.mxu0 %v11161
    %12132 = vmatprep.subr.bf16.mxu0 %v11158
    %12133 = vmatpush1.bf16.msra.mxu0 %v11157
    %12134 = vmatprep.subr.bf16.mxu0 %v11218
    %12135 = vmatpush2.bf16.msra.mxu0 %v11217
    %12136 = vmatprep.subr.bf16.mxu0 %v11214
    %12137 = vmatpush2.bf16.msra.mxu0 %v11213
    %12138 = vmatprep.subr.bf16.mxu0 %v11210
    %12139 = vmatpush2.bf16.msra.mxu0 %v11209
    %12140 = vmatprep.subr.bf16.mxu0 %v11206
    %12141 = vmatpush2.bf16.msra.mxu0 %v11205
    %12142 = vmatprep.subr.bf16.mxu0 %v11202
    %12143 = vmatpush2.bf16.msra.mxu0 %v11201
    %12144 = vmatprep.subr.bf16.mxu0 %v11198
    %12145 = vmatpush2.bf16.msra.mxu0 %v11197
    %12146 = vmatprep.subr.bf16.mxu0 %v11194
    %12147 = vmatpush2.bf16.msra.mxu0 %v11193
    %12148 = vmatprep.subr.bf16.mxu0 %v11190
    %12149 = vmatpush2.bf16.msra.mxu0 %v11189
    %12150 = vmatprep.mubr.bf16.mxu0 %v9400
    %12151 = vmatmul.mubr.bf16.gmra.mxu0 %v9399
    %v12152 = vpop.f32.mrf.mxu0
    %v12153 = vadd.f32 %v12110, %v12152
    %v12154 = vpop.f32.mrf.mxu0
    %v12155 = vadd.f32 %v12112, %v12154
    %v12156 = vpop.f32.mrf.mxu0
    %v12157 = vadd.f32 %v12114, %v12156
    %v12158 = vpop.f32.mrf.mxu0
    %v12159 = vadd.f32 %v12116, %v12158
    %12160 = vdwg.mxu0
    %12161 = vmatprep.subr.bf16.mxu0 %v11250
    %12162 = vmatpush1.bf16.msra.mxu0 %v11249
    %12163 = vmatprep.subr.bf16.mxu0 %v11246
    %12164 = vmatpush1.bf16.msra.mxu0 %v11245
    %12165 = vmatprep.subr.bf16.mxu0 %v11242
    %12166 = vmatpush1.bf16.msra.mxu0 %v11241
    %12167 = vmatprep.subr.bf16.mxu0 %v11238
    %12168 = vmatpush1.bf16.msra.mxu0 %v11237
    %12169 = vmatprep.subr.bf16.mxu0 %v11234
    %12170 = vmatpush1.bf16.msra.mxu0 %v11233
    %12171 = vmatprep.subr.bf16.mxu0 %v11230
    %12172 = vmatpush1.bf16.msra.mxu0 %v11229
    %12173 = vmatprep.subr.bf16.mxu0 %v11226
    %12174 = vmatpush1.bf16.msra.mxu0 %v11225
    %12175 = vmatprep.subr.bf16.mxu0 %v11222
    %12176 = vmatpush1.bf16.msra.mxu0 %v11221
    %12177 = vmatprep.subr.bf16.mxu0 %v11282
    %12178 = vmatpush2.bf16.msra.mxu0 %v11281
    %12179 = vmatprep.subr.bf16.mxu0 %v11278
    %12180 = vmatpush2.bf16.msra.mxu0 %v11277
    %12181 = vmatprep.subr.bf16.mxu0 %v11274
    %12182 = vmatpush2.bf16.msra.mxu0 %v11273
    %12183 = vmatprep.subr.bf16.mxu0 %v11270
    %12184 = vmatpush2.bf16.msra.mxu0 %v11269
    %12185 = vmatprep.subr.bf16.mxu0 %v11266
    %12186 = vmatpush2.bf16.msra.mxu0 %v11265
    %12187 = vmatprep.subr.bf16.mxu0 %v11262
    %12188 = vmatpush2.bf16.msra.mxu0 %v11261
    %12189 = vmatprep.subr.bf16.mxu0 %v11258
    %12190 = vmatpush2.bf16.msra.mxu0 %v11257
    %12191 = vmatprep.subr.bf16.mxu0 %v11254
    %12192 = vmatpush2.bf16.msra.mxu0 %v11253
    %12193 = vmatprep.mubr.bf16.mxu0 %v9402
    %12194 = vmatmul.mubr.bf16.gmra.mxu0 %v9401
    %v12195 = vpop.f32.mrf.mxu0
    %v12196 = vadd.f32 %v12153, %v12195
    %v12197 = vpop.f32.mrf.mxu0
    %v12198 = vadd.f32 %v12155, %v12197
    %v12199 = vpop.f32.mrf.mxu0
    %v12200 = vadd.f32 %v12157, %v12199
    %v12201 = vpop.f32.mrf.mxu0
    %v12202 = vadd.f32 %v12159, %v12201
    %12203 = vdwg.mxu0
    %12204 = vmatprep.subr.bf16.mxu0 %v11314
    %12205 = vmatpush1.bf16.msra.mxu0 %v11313
    %12206 = vmatprep.subr.bf16.mxu0 %v11310
    %12207 = vmatpush1.bf16.msra.mxu0 %v11309
    %12208 = vmatprep.subr.bf16.mxu0 %v11306
    %12209 = vmatpush1.bf16.msra.mxu0 %v11305
    %12210 = vmatprep.subr.bf16.mxu0 %v11302
    %12211 = vmatpush1.bf16.msra.mxu0 %v11301
    %12212 = vmatprep.subr.bf16.mxu0 %v11298
    %12213 = vmatpush1.bf16.msra.mxu0 %v11297
    %12214 = vmatprep.subr.bf16.mxu0 %v11294
    %12215 = vmatpush1.bf16.msra.mxu0 %v11293
    %12216 = vmatprep.subr.bf16.mxu0 %v11290
    %12217 = vmatpush1.bf16.msra.mxu0 %v11289
    %12218 = vmatprep.subr.bf16.mxu0 %v11286
    %12219 = vmatpush1.bf16.msra.mxu0 %v11285
    %12220 = vmatprep.subr.bf16.mxu0 %v11346
    %12221 = vmatpush2.bf16.msra.mxu0 %v11345
    %12222 = vmatprep.subr.bf16.mxu0 %v11342
    %12223 = vmatpush2.bf16.msra.mxu0 %v11341
    %12224 = vmatprep.subr.bf16.mxu0 %v11338
    %12225 = vmatpush2.bf16.msra.mxu0 %v11337
    %12226 = vmatprep.subr.bf16.mxu0 %v11334
    %12227 = vmatpush2.bf16.msra.mxu0 %v11333
    %12228 = vmatprep.subr.bf16.mxu0 %v11330
    %12229 = vmatpush2.bf16.msra.mxu0 %v11329
    %12230 = vmatprep.subr.bf16.mxu0 %v11326
    %12231 = vmatpush2.bf16.msra.mxu0 %v11325
    %12232 = vmatprep.subr.bf16.mxu0 %v11322
    %12233 = vmatpush2.bf16.msra.mxu0 %v11321
    %12234 = vmatprep.subr.bf16.mxu0 %v11318
    %12235 = vmatpush2.bf16.msra.mxu0 %v11317
    %12236 = vmatprep.mubr.bf16.mxu0 %v9404
    %12237 = vmatmul.mubr.bf16.gmra.mxu0 %v9403
    %v12238 = vpop.f32.mrf.mxu0
    %v12239 = vadd.f32 %v12196, %v12238
    %v12240 = vpop.f32.mrf.mxu0
    %v12241 = vadd.f32 %v12198, %v12240
    %v12242 = vpop.f32.mrf.mxu0
    %v12243 = vadd.f32 %v12200, %v12242
    %v12244 = vpop.f32.mrf.mxu0
    %v12245 = vadd.f32 %v12202, %v12244
    %12246 = vdwg.mxu0
    %v12247 = vld [vmem:[%s5] sm:$0xff]
    %v12248 = vld [vmem:[%s5 + $0x8] sm:$0xff]
    %12250 = vset.pattern.permute.xlu0 0
    %12251 = vperm.xlu0 %12250, %v12247
    %v12252 = vpop.permute.xlu0 %12251
    %12255 = vset.pattern.permute.xlu0 0
    %12256 = vperm.xlu0 %12255, %v12248
    %v12257 = vpop.permute.xlu0 %12256
    %v12259 = vmul.f32 %v11981, %v12252
    %v12260 = vmul.f32 %v11983, %v12252
    %v12261 = vmul.f32 %v12239, %v12252
    %v12262 = vmul.f32 %v12241, %v12252
    %v12263 = vmul.f32 %v11985, %v12257
    %v12264 = vmul.f32 %v11987, %v12257
    %v12265 = vmul.f32 %v12243, %v12257
    %v12266 = vmul.f32 %v12245, %v12257
    %v12267 = vpack.c.bf16 %v315, %v311
    %v12268 = vpack.c.bf16 %v316, %v312
    %v12269 = vpack.c.bf16 %v317, %v313
    %v12270 = vpack.c.bf16 %v318, %v314
    %v12271 = vld [vmem:[#allocation22] sm:$0xff]
    %v12272 = vld [vmem:[#allocation22 + $0x8] sm:$0xff]
    %v12273 = vld [vmem:[#allocation22 + $0x10] sm:$0xff]
    %v12274 = vld [vmem:[#allocation22 + $0x18] sm:$0xff]
    %v12275 = vld [vmem:[#allocation22 + $0x20] sm:$0xff]
    %v12276 = vld [vmem:[#allocation22 + $0x28] sm:$0xff]
    %v12277 = vld [vmem:[#allocation22 + $0x30] sm:$0xff]
    %v12278 = vld [vmem:[#allocation22 + $0x38] sm:$0xff]
    %v12279 = vld [vmem:[#allocation22 + $0x40] sm:$0xff]
    %v12280 = vld [vmem:[#allocation22 + $0x48] sm:$0xff]
    %v12281 = vld [vmem:[#allocation22 + $0x50] sm:$0xff]
    %v12282 = vld [vmem:[#allocation22 + $0x58] sm:$0xff]
    %v12283 = vld [vmem:[#allocation22 + $0x60] sm:$0xff]
    %v12284 = vld [vmem:[#allocation22 + $0x68] sm:$0xff]
    %v12285 = vld [vmem:[#allocation22 + $0x70] sm:$0xff]
    %v12286 = vld [vmem:[#allocation22 + $0x78] sm:$0xff]
    %v12287 = vld [vmem:[#allocation22 + $0x80] sm:$0xff]
    %v12288 = vld [vmem:[#allocation22 + $0x88] sm:$0xff]
    %v12289 = vld [vmem:[#allocation22 + $0x90] sm:$0xff]
    %v12290 = vld [vmem:[#allocation22 + $0x98] sm:$0xff]
    %v12291 = vld [vmem:[#allocation22 + $0xa0] sm:$0xff]
    %v12292 = vld [vmem:[#allocation22 + $0xa8] sm:$0xff]
    %v12293 = vld [vmem:[#allocation22 + $0xb0] sm:$0xff]
    %v12294 = vld [vmem:[#allocation22 + $0xb8] sm:$0xff]
    %v12295 = vld [vmem:[#allocation22 + $0xc0] sm:$0xff]
    %v12296 = vld [vmem:[#allocation22 + $0xc8] sm:$0xff]
    %v12297 = vld [vmem:[#allocation22 + $0xd0] sm:$0xff]
    %v12298 = vld [vmem:[#allocation22 + $0xd8] sm:$0xff]
    %v12299 = vld [vmem:[#allocation22 + $0xe0] sm:$0xff]
    %v12300 = vld [vmem:[#allocation22 + $0xe8] sm:$0xff]
    %v12301 = vld [vmem:[#allocation22 + $0xf0] sm:$0xff]
    %v12302 = vld [vmem:[#allocation22 + $0xf8] sm:$0xff]
    %v12303 = vld [vmem:[#allocation22 + $0x100] sm:$0xff]
    %v12304 = vld [vmem:[#allocation22 + $0x108] sm:$0xff]
    %v12305 = vld [vmem:[#allocation22 + $0x110] sm:$0xff]
    %v12306 = vld [vmem:[#allocation22 + $0x118] sm:$0xff]
    %v12307 = vld [vmem:[#allocation22 + $0x120] sm:$0xff]
    %v12308 = vld [vmem:[#allocation22 + $0x128] sm:$0xff]
    %v12309 = vld [vmem:[#allocation22 + $0x130] sm:$0xff]
    %v12310 = vld [vmem:[#allocation22 + $0x138] sm:$0xff]
    %v12311 = vld [vmem:[#allocation22 + $0x140] sm:$0xff]
    %v12312 = vld [vmem:[#allocation22 + $0x148] sm:$0xff]
    %v12313 = vld [vmem:[#allocation22 + $0x150] sm:$0xff]
    %v12314 = vld [vmem:[#allocation22 + $0x158] sm:$0xff]
    %v12315 = vld [vmem:[#allocation22 + $0x160] sm:$0xff]
    %v12316 = vld [vmem:[#allocation22 + $0x168] sm:$0xff]
    %v12317 = vld [vmem:[#allocation22 + $0x170] sm:$0xff]
    %v12318 = vld [vmem:[#allocation22 + $0x178] sm:$0xff]
    %v12319 = vld [vmem:[#allocation22 + $0x180] sm:$0xff]
    %v12320 = vld [vmem:[#allocation22 + $0x188] sm:$0xff]
    %v12321 = vld [vmem:[#allocation22 + $0x190] sm:$0xff]
    %v12322 = vld [vmem:[#allocation22 + $0x198] sm:$0xff]
    %v12323 = vld [vmem:[#allocation22 + $0x1a0] sm:$0xff]
    %v12324 = vld [vmem:[#allocation22 + $0x1a8] sm:$0xff]
    %v12325 = vld [vmem:[#allocation22 + $0x1b0] sm:$0xff]
    %v12326 = vld [vmem:[#allocation22 + $0x1b8] sm:$0xff]
    %v12327 = vld [vmem:[#allocation22 + $0x1c0] sm:$0xff]
    %v12328 = vld [vmem:[#allocation22 + $0x1c8] sm:$0xff]
    %v12329 = vld [vmem:[#allocation22 + $0x1d0] sm:$0xff]
    %v12330 = vld [vmem:[#allocation22 + $0x1d8] sm:$0xff]
    %v12331 = vld [vmem:[#allocation22 + $0x1e0] sm:$0xff]
    %v12332 = vld [vmem:[#allocation22 + $0x1e8] sm:$0xff]
    %v12333 = vld [vmem:[#allocation22 + $0x1f0] sm:$0xff]
    %v12334 = vld [vmem:[#allocation22 + $0x1f8] sm:$0xff]
    %v12335 = vld [vmem:[#allocation22 + $0x200] sm:$0xff]
    %v12336 = vld [vmem:[#allocation22 + $0x208] sm:$0xff]
    %v12337 = vld [vmem:[#allocation22 + $0x210] sm:$0xff]
    %v12338 = vld [vmem:[#allocation22 + $0x218] sm:$0xff]
    %v12339 = vld [vmem:[#allocation22 + $0x220] sm:$0xff]
    %v12340 = vld [vmem:[#allocation22 + $0x228] sm:$0xff]
    %v12341 = vld [vmem:[#allocation22 + $0x230] sm:$0xff]
    %v12342 = vld [vmem:[#allocation22 + $0x238] sm:$0xff]
    %v12343 = vld [vmem:[#allocation22 + $0x240] sm:$0xff]
    %v12344 = vld [vmem:[#allocation22 + $0x248] sm:$0xff]
    %v12345 = vld [vmem:[#allocation22 + $0x250] sm:$0xff]
    %v12346 = vld [vmem:[#allocation22 + $0x258] sm:$0xff]
    %v12347 = vld [vmem:[#allocation22 + $0x260] sm:$0xff]
    %v12348 = vld [vmem:[#allocation22 + $0x268] sm:$0xff]
    %v12349 = vld [vmem:[#allocation22 + $0x270] sm:$0xff]
    %v12350 = vld [vmem:[#allocation22 + $0x278] sm:$0xff]
    %v12351 = vld [vmem:[#allocation22 + $0x280] sm:$0xff]
    %v12352 = vld [vmem:[#allocation22 + $0x288] sm:$0xff]
    %v12353 = vld [vmem:[#allocation22 + $0x290] sm:$0xff]
    %v12354 = vld [vmem:[#allocation22 + $0x298] sm:$0xff]
    %v12355 = vld [vmem:[#allocation22 + $0x2a0] sm:$0xff]
    %v12356 = vld [vmem:[#allocation22 + $0x2a8] sm:$0xff]
    %v12357 = vld [vmem:[#allocation22 + $0x2b0] sm:$0xff]
    %v12358 = vld [vmem:[#allocation22 + $0x2b8] sm:$0xff]
    %v12359 = vld [vmem:[#allocation22 + $0x2c0] sm:$0xff]
    %v12360 = vld [vmem:[#allocation22 + $0x2c8] sm:$0xff]
    %v12361 = vld [vmem:[#allocation22 + $0x2d0] sm:$0xff]
    %v12362 = vld [vmem:[#allocation22 + $0x2d8] sm:$0xff]
    %v12363 = vld [vmem:[#allocation22 + $0x2e0] sm:$0xff]
    %v12364 = vld [vmem:[#allocation22 + $0x2e8] sm:$0xff]
    %v12365 = vld [vmem:[#allocation22 + $0x2f0] sm:$0xff]
    %v12366 = vld [vmem:[#allocation22 + $0x2f8] sm:$0xff]
    %v12367 = vld [vmem:[#allocation22 + $0x300] sm:$0xff]
    %v12368 = vld [vmem:[#allocation22 + $0x308] sm:$0xff]
    %v12369 = vld [vmem:[#allocation22 + $0x310] sm:$0xff]
    %v12370 = vld [vmem:[#allocation22 + $0x318] sm:$0xff]
    %v12371 = vld [vmem:[#allocation22 + $0x320] sm:$0xff]
    %v12372 = vld [vmem:[#allocation22 + $0x328] sm:$0xff]
    %v12373 = vld [vmem:[#allocation22 + $0x330] sm:$0xff]
    %v12374 = vld [vmem:[#allocation22 + $0x338] sm:$0xff]
    %v12375 = vld [vmem:[#allocation22 + $0x340] sm:$0xff]
    %v12376 = vld [vmem:[#allocation22 + $0x348] sm:$0xff]
    %v12377 = vld [vmem:[#allocation22 + $0x350] sm:$0xff]
    %v12378 = vld [vmem:[#allocation22 + $0x358] sm:$0xff]
    %v12379 = vld [vmem:[#allocation22 + $0x360] sm:$0xff]
    %v12380 = vld [vmem:[#allocation22 + $0x368] sm:$0xff]
    %v12381 = vld [vmem:[#allocation22 + $0x370] sm:$0xff]
    %v12382 = vld [vmem:[#allocation22 + $0x378] sm:$0xff]
    %v12383 = vld [vmem:[#allocation22 + $0x380] sm:$0xff]
    %v12384 = vld [vmem:[#allocation22 + $0x388] sm:$0xff]
    %v12385 = vld [vmem:[#allocation22 + $0x390] sm:$0xff]
    %v12386 = vld [vmem:[#allocation22 + $0x398] sm:$0xff]
    %v12387 = vld [vmem:[#allocation22 + $0x3a0] sm:$0xff]
    %v12388 = vld [vmem:[#allocation22 + $0x3a8] sm:$0xff]
    %v12389 = vld [vmem:[#allocation22 + $0x3b0] sm:$0xff]
    %v12390 = vld [vmem:[#allocation22 + $0x3b8] sm:$0xff]
    %v12391 = vld [vmem:[#allocation22 + $0x3c0] sm:$0xff]
    %v12392 = vld [vmem:[#allocation22 + $0x3c8] sm:$0xff]
    %v12393 = vld [vmem:[#allocation22 + $0x3d0] sm:$0xff]
    %v12394 = vld [vmem:[#allocation22 + $0x3d8] sm:$0xff]
    %v12395 = vld [vmem:[#allocation22 + $0x3e0] sm:$0xff]
    %v12396 = vld [vmem:[#allocation22 + $0x3e8] sm:$0xff]
    %v12397 = vld [vmem:[#allocation22 + $0x3f0] sm:$0xff]
    %v12398 = vld [vmem:[#allocation22 + $0x3f8] sm:$0xff]
    %v12399 = vpack.c.bf16 %v12263, %v12259
    %v12400 = vpack.c.bf16 %v12264, %v12260
    %v12401 = vpack.c.bf16 %v12265, %v12261
    %v12402 = vpack.c.bf16 %v12266, %v12262
    %v12403 = vld [vmem:[#allocation23] sm:$0xff]
    %v12404 = vld [vmem:[#allocation23 + $0x8] sm:$0xff]
    %v12405 = vld [vmem:[#allocation23 + $0x10] sm:$0xff]
    %v12406 = vld [vmem:[#allocation23 + $0x18] sm:$0xff]
    %v12407 = vld [vmem:[#allocation23 + $0x20] sm:$0xff]
    %v12408 = vld [vmem:[#allocation23 + $0x28] sm:$0xff]
    %v12409 = vld [vmem:[#allocation23 + $0x30] sm:$0xff]
    %v12410 = vld [vmem:[#allocation23 + $0x38] sm:$0xff]
    %v12411 = vld [vmem:[#allocation23 + $0x40] sm:$0xff]
    %v12412 = vld [vmem:[#allocation23 + $0x48] sm:$0xff]
    %v12413 = vld [vmem:[#allocation23 + $0x50] sm:$0xff]
    %v12414 = vld [vmem:[#allocation23 + $0x58] sm:$0xff]
    %v12415 = vld [vmem:[#allocation23 + $0x60] sm:$0xff]
    %v12416 = vld [vmem:[#allocation23 + $0x68] sm:$0xff]
    %v12417 = vld [vmem:[#allocation23 + $0x70] sm:$0xff]
    %v12418 = vld [vmem:[#allocation23 + $0x78] sm:$0xff]
    %v12419 = vld [vmem:[#allocation23 + $0x80] sm:$0xff]
    %v12420 = vld [vmem:[#allocation23 + $0x88] sm:$0xff]
    %v12421 = vld [vmem:[#allocation23 + $0x90] sm:$0xff]
    %v12422 = vld [vmem:[#allocation23 + $0x98] sm:$0xff]
    %v12423 = vld [vmem:[#allocation23 + $0xa0] sm:$0xff]
    %v12424 = vld [vmem:[#allocation23 + $0xa8] sm:$0xff]
    %v12425 = vld [vmem:[#allocation23 + $0xb0] sm:$0xff]
    %v12426 = vld [vmem:[#allocation23 + $0xb8] sm:$0xff]
    %v12427 = vld [vmem:[#allocation23 + $0xc0] sm:$0xff]
    %v12428 = vld [vmem:[#allocation23 + $0xc8] sm:$0xff]
    %v12429 = vld [vmem:[#allocation23 + $0xd0] sm:$0xff]
    %v12430 = vld [vmem:[#allocation23 + $0xd8] sm:$0xff]
    %v12431 = vld [vmem:[#allocation23 + $0xe0] sm:$0xff]
    %v12432 = vld [vmem:[#allocation23 + $0xe8] sm:$0xff]
    %v12433 = vld [vmem:[#allocation23 + $0xf0] sm:$0xff]
    %v12434 = vld [vmem:[#allocation23 + $0xf8] sm:$0xff]
    %v12435 = vld [vmem:[#allocation23 + $0x100] sm:$0xff]
    %v12436 = vld [vmem:[#allocation23 + $0x108] sm:$0xff]
    %v12437 = vld [vmem:[#allocation23 + $0x110] sm:$0xff]
    %v12438 = vld [vmem:[#allocation23 + $0x118] sm:$0xff]
    %v12439 = vld [vmem:[#allocation23 + $0x120] sm:$0xff]
    %v12440 = vld [vmem:[#allocation23 + $0x128] sm:$0xff]
    %v12441 = vld [vmem:[#allocation23 + $0x130] sm:$0xff]
    %v12442 = vld [vmem:[#allocation23 + $0x138] sm:$0xff]
    %v12443 = vld [vmem:[#allocation23 + $0x140] sm:$0xff]
    %v12444 = vld [vmem:[#allocation23 + $0x148] sm:$0xff]
    %v12445 = vld [vmem:[#allocation23 + $0x150] sm:$0xff]
    %v12446 = vld [vmem:[#allocation23 + $0x158] sm:$0xff]
    %v12447 = vld [vmem:[#allocation23 + $0x160] sm:$0xff]
    %v12448 = vld [vmem:[#allocation23 + $0x168] sm:$0xff]
    %v12449 = vld [vmem:[#allocation23 + $0x170] sm:$0xff]
    %v12450 = vld [vmem:[#allocation23 + $0x178] sm:$0xff]
    %v12451 = vld [vmem:[#allocation23 + $0x180] sm:$0xff]
    %v12452 = vld [vmem:[#allocation23 + $0x188] sm:$0xff]
    %v12453 = vld [vmem:[#allocation23 + $0x190] sm:$0xff]
    %v12454 = vld [vmem:[#allocation23 + $0x198] sm:$0xff]
    %v12455 = vld [vmem:[#allocation23 + $0x1a0] sm:$0xff]
    %v12456 = vld [vmem:[#allocation23 + $0x1a8] sm:$0xff]
    %v12457 = vld [vmem:[#allocation23 + $0x1b0] sm:$0xff]
    %v12458 = vld [vmem:[#allocation23 + $0x1b8] sm:$0xff]
    %v12459 = vld [vmem:[#allocation23 + $0x1c0] sm:$0xff]
    %v12460 = vld [vmem:[#allocation23 + $0x1c8] sm:$0xff]
    %v12461 = vld [vmem:[#allocation23 + $0x1d0] sm:$0xff]
    %v12462 = vld [vmem:[#allocation23 + $0x1d8] sm:$0xff]
    %v12463 = vld [vmem:[#allocation23 + $0x1e0] sm:$0xff]
    %v12464 = vld [vmem:[#allocation23 + $0x1e8] sm:$0xff]
    %v12465 = vld [vmem:[#allocation23 + $0x1f0] sm:$0xff]
    %v12466 = vld [vmem:[#allocation23 + $0x1f8] sm:$0xff]
    %v12467 = vld [vmem:[#allocation23 + $0x200] sm:$0xff]
    %v12468 = vld [vmem:[#allocation23 + $0x208] sm:$0xff]
    %v12469 = vld [vmem:[#allocation23 + $0x210] sm:$0xff]
    %v12470 = vld [vmem:[#allocation23 + $0x218] sm:$0xff]
    %v12471 = vld [vmem:[#allocation23 + $0x220] sm:$0xff]
    %v12472 = vld [vmem:[#allocation23 + $0x228] sm:$0xff]
    %v12473 = vld [vmem:[#allocation23 + $0x230] sm:$0xff]
    %v12474 = vld [vmem:[#allocation23 + $0x238] sm:$0xff]
    %v12475 = vld [vmem:[#allocation23 + $0x240] sm:$0xff]
    %v12476 = vld [vmem:[#allocation23 + $0x248] sm:$0xff]
    %v12477 = vld [vmem:[#allocation23 + $0x250] sm:$0xff]
    %v12478 = vld [vmem:[#allocation23 + $0x258] sm:$0xff]
    %v12479 = vld [vmem:[#allocation23 + $0x260] sm:$0xff]
    %v12480 = vld [vmem:[#allocation23 + $0x268] sm:$0xff]
    %v12481 = vld [vmem:[#allocation23 + $0x270] sm:$0xff]
    %v12482 = vld [vmem:[#allocation23 + $0x278] sm:$0xff]
    %v12483 = vld [vmem:[#allocation23 + $0x280] sm:$0xff]
    %v12484 = vld [vmem:[#allocation23 + $0x288] sm:$0xff]
    %v12485 = vld [vmem:[#allocation23 + $0x290] sm:$0xff]
    %v12486 = vld [vmem:[#allocation23 + $0x298] sm:$0xff]
    %v12487 = vld [vmem:[#allocation23 + $0x2a0] sm:$0xff]
    %v12488 = vld [vmem:[#allocation23 + $0x2a8] sm:$0xff]
    %v12489 = vld [vmem:[#allocation23 + $0x2b0] sm:$0xff]
    %v12490 = vld [vmem:[#allocation23 + $0x2b8] sm:$0xff]
    %v12491 = vld [vmem:[#allocation23 + $0x2c0] sm:$0xff]
    %v12492 = vld [vmem:[#allocation23 + $0x2c8] sm:$0xff]
    %v12493 = vld [vmem:[#allocation23 + $0x2d0] sm:$0xff]
    %v12494 = vld [vmem:[#allocation23 + $0x2d8] sm:$0xff]
    %v12495 = vld [vmem:[#allocation23 + $0x2e0] sm:$0xff]
    %v12496 = vld [vmem:[#allocation23 + $0x2e8] sm:$0xff]
    %v12497 = vld [vmem:[#allocation23 + $0x2f0] sm:$0xff]
    %v12498 = vld [vmem:[#allocation23 + $0x2f8] sm:$0xff]
    %v12499 = vld [vmem:[#allocation23 + $0x300] sm:$0xff]
    %v12500 = vld [vmem:[#allocation23 + $0x308] sm:$0xff]
    %v12501 = vld [vmem:[#allocation23 + $0x310] sm:$0xff]
    %v12502 = vld [vmem:[#allocation23 + $0x318] sm:$0xff]
    %v12503 = vld [vmem:[#allocation23 + $0x320] sm:$0xff]
    %v12504 = vld [vmem:[#allocation23 + $0x328] sm:$0xff]
    %v12505 = vld [vmem:[#allocation23 + $0x330] sm:$0xff]
    %v12506 = vld [vmem:[#allocation23 + $0x338] sm:$0xff]
    %v12507 = vld [vmem:[#allocation23 + $0x340] sm:$0xff]
    %v12508 = vld [vmem:[#allocation23 + $0x348] sm:$0xff]
    %v12509 = vld [vmem:[#allocation23 + $0x350] sm:$0xff]
    %v12510 = vld [vmem:[#allocation23 + $0x358] sm:$0xff]
    %v12511 = vld [vmem:[#allocation23 + $0x360] sm:$0xff]
    %v12512 = vld [vmem:[#allocation23 + $0x368] sm:$0xff]
    %v12513 = vld [vmem:[#allocation23 + $0x370] sm:$0xff]
    %v12514 = vld [vmem:[#allocation23 + $0x378] sm:$0xff]
    %v12515 = vld [vmem:[#allocation23 + $0x380] sm:$0xff]
    %v12516 = vld [vmem:[#allocation23 + $0x388] sm:$0xff]
    %v12517 = vld [vmem:[#allocation23 + $0x390] sm:$0xff]
    %v12518 = vld [vmem:[#allocation23 + $0x398] sm:$0xff]
    %v12519 = vld [vmem:[#allocation23 + $0x3a0] sm:$0xff]
    %v12520 = vld [vmem:[#allocation23 + $0x3a8] sm:$0xff]
    %v12521 = vld [vmem:[#allocation23 + $0x3b0] sm:$0xff]
    %v12522 = vld [vmem:[#allocation23 + $0x3b8] sm:$0xff]
    %v12523 = vld [vmem:[#allocation23 + $0x3c0] sm:$0xff]
    %v12524 = vld [vmem:[#allocation23 + $0x3c8] sm:$0xff]
    %v12525 = vld [vmem:[#allocation23 + $0x3d0] sm:$0xff]
    %v12526 = vld [vmem:[#allocation23 + $0x3d8] sm:$0xff]
    %v12527 = vld [vmem:[#allocation23 + $0x3e0] sm:$0xff]
    %v12528 = vld [vmem:[#allocation23 + $0x3e8] sm:$0xff]
    %v12529 = vld [vmem:[#allocation23 + $0x3f0] sm:$0xff]
    %v12530 = vld [vmem:[#allocation23 + $0x3f8] sm:$0xff]
    %v12659 = vunpack.c.l.b16 %v12403
    %v12660 = vunpack.c.h.b16 %v12403
    %v12661 = vunpack.c.l.b16 %v12404
    %v12662 = vunpack.c.h.b16 %v12404
    %v12663 = vunpack.c.l.b16 %v12405
    %v12664 = vunpack.c.h.b16 %v12405
    %v12665 = vunpack.c.l.b16 %v12406
    %v12666 = vunpack.c.h.b16 %v12406
    %v12667 = vunpack.c.l.b16 %v12407
    %v12668 = vunpack.c.h.b16 %v12407
    %v12669 = vunpack.c.l.b16 %v12408
    %v12670 = vunpack.c.h.b16 %v12408
    %v12671 = vunpack.c.l.b16 %v12409
    %v12672 = vunpack.c.h.b16 %v12409
    %v12673 = vunpack.c.l.b16 %v12410
    %v12674 = vunpack.c.h.b16 %v12410
    %v12675 = vunpack.c.l.b16 %v12411
    %v12676 = vunpack.c.h.b16 %v12411
    %v12677 = vunpack.c.l.b16 %v12412
    %v12678 = vunpack.c.h.b16 %v12412
    %v12679 = vunpack.c.l.b16 %v12413
    %v12680 = vunpack.c.h.b16 %v12413
    %v12681 = vunpack.c.l.b16 %v12414
    %v12682 = vunpack.c.h.b16 %v12414
    %v12683 = vunpack.c.l.b16 %v12415
    %v12684 = vunpack.c.h.b16 %v12415
    %v12685 = vunpack.c.l.b16 %v12416
    %v12686 = vunpack.c.h.b16 %v12416
    %v12687 = vunpack.c.l.b16 %v12417
    %v12688 = vunpack.c.h.b16 %v12417
    %v12689 = vunpack.c.l.b16 %v12418
    %v12690 = vunpack.c.h.b16 %v12418
    %v12691 = vunpack.c.l.b16 %v12419
    %v12692 = vunpack.c.h.b16 %v12419
    %v12693 = vunpack.c.l.b16 %v12420
    %v12694 = vunpack.c.h.b16 %v12420
    %v12695 = vunpack.c.l.b16 %v12421
    %v12696 = vunpack.c.h.b16 %v12421
    %v12697 = vunpack.c.l.b16 %v12422
    %v12698 = vunpack.c.h.b16 %v12422
    %v12699 = vunpack.c.l.b16 %v12423
    %v12700 = vunpack.c.h.b16 %v12423
    %v12701 = vunpack.c.l.b16 %v12424
    %v12702 = vunpack.c.h.b16 %v12424
    %v12703 = vunpack.c.l.b16 %v12425
    %v12704 = vunpack.c.h.b16 %v12425
    %v12705 = vunpack.c.l.b16 %v12426
    %v12706 = vunpack.c.h.b16 %v12426
    %v12707 = vunpack.c.l.b16 %v12427
    %v12708 = vunpack.c.h.b16 %v12427
    %v12709 = vunpack.c.l.b16 %v12428
    %v12710 = vunpack.c.h.b16 %v12428
    %v12711 = vunpack.c.l.b16 %v12429
    %v12712 = vunpack.c.h.b16 %v12429
    %v12713 = vunpack.c.l.b16 %v12430
    %v12714 = vunpack.c.h.b16 %v12430
    %v12715 = vunpack.c.l.b16 %v12431
    %v12716 = vunpack.c.h.b16 %v12431
    %v12717 = vunpack.c.l.b16 %v12432
    %v12718 = vunpack.c.h.b16 %v12432
    %v12719 = vunpack.c.l.b16 %v12433
    %v12720 = vunpack.c.h.b16 %v12433
    %v12721 = vunpack.c.l.b16 %v12434
    %v12722 = vunpack.c.h.b16 %v12434
    %v12723 = vunpack.c.l.b16 %v12435
    %v12724 = vunpack.c.h.b16 %v12435
    %v12725 = vunpack.c.l.b16 %v12436
    %v12726 = vunpack.c.h.b16 %v12436
    %v12727 = vunpack.c.l.b16 %v12437
    %v12728 = vunpack.c.h.b16 %v12437
    %v12729 = vunpack.c.l.b16 %v12438
    %v12730 = vunpack.c.h.b16 %v12438
    %v12731 = vunpack.c.l.b16 %v12439
    %v12732 = vunpack.c.h.b16 %v12439
    %v12733 = vunpack.c.l.b16 %v12440
    %v12734 = vunpack.c.h.b16 %v12440
    %v12735 = vunpack.c.l.b16 %v12441
    %v12736 = vunpack.c.h.b16 %v12441
    %v12737 = vunpack.c.l.b16 %v12442
    %v12738 = vunpack.c.h.b16 %v12442
    %v12739 = vunpack.c.l.b16 %v12443
    %v12740 = vunpack.c.h.b16 %v12443
    %v12741 = vunpack.c.l.b16 %v12444
    %v12742 = vunpack.c.h.b16 %v12444
    %v12743 = vunpack.c.l.b16 %v12445
    %v12744 = vunpack.c.h.b16 %v12445
    %v12745 = vunpack.c.l.b16 %v12446
    %v12746 = vunpack.c.h.b16 %v12446
    %v12747 = vunpack.c.l.b16 %v12447
    %v12748 = vunpack.c.h.b16 %v12447
    %v12749 = vunpack.c.l.b16 %v12448
    %v12750 = vunpack.c.h.b16 %v12448
    %v12751 = vunpack.c.l.b16 %v12449
    %v12752 = vunpack.c.h.b16 %v12449
    %v12753 = vunpack.c.l.b16 %v12450
    %v12754 = vunpack.c.h.b16 %v12450
    %v12755 = vunpack.c.l.b16 %v12451
    %v12756 = vunpack.c.h.b16 %v12451
    %v12757 = vunpack.c.l.b16 %v12452
    %v12758 = vunpack.c.h.b16 %v12452
    %v12759 = vunpack.c.l.b16 %v12453
    %v12760 = vunpack.c.h.b16 %v12453
    %v12761 = vunpack.c.l.b16 %v12454
    %v12762 = vunpack.c.h.b16 %v12454
    %v12763 = vunpack.c.l.b16 %v12455
    %v12764 = vunpack.c.h.b16 %v12455
    %v12765 = vunpack.c.l.b16 %v12456
    %v12766 = vunpack.c.h.b16 %v12456
    %v12767 = vunpack.c.l.b16 %v12457
    %v12768 = vunpack.c.h.b16 %v12457
    %v12769 = vunpack.c.l.b16 %v12458
    %v12770 = vunpack.c.h.b16 %v12458
    %v12771 = vunpack.c.l.b16 %v12459
    %v12772 = vunpack.c.h.b16 %v12459
    %v12773 = vunpack.c.l.b16 %v12460
    %v12774 = vunpack.c.h.b16 %v12460
    %v12775 = vunpack.c.l.b16 %v12461
    %v12776 = vunpack.c.h.b16 %v12461
    %v12777 = vunpack.c.l.b16 %v12462
    %v12778 = vunpack.c.h.b16 %v12462
    %v12779 = vunpack.c.l.b16 %v12463
    %v12780 = vunpack.c.h.b16 %v12463
    %v12781 = vunpack.c.l.b16 %v12464
    %v12782 = vunpack.c.h.b16 %v12464
    %v12783 = vunpack.c.l.b16 %v12465
    %v12784 = vunpack.c.h.b16 %v12465
    %v12785 = vunpack.c.l.b16 %v12466
    %v12786 = vunpack.c.h.b16 %v12466
    %v12787 = vunpack.c.l.b16 %v12467
    %v12788 = vunpack.c.h.b16 %v12467
    %v12789 = vunpack.c.l.b16 %v12468
    %v12790 = vunpack.c.h.b16 %v12468
    %v12791 = vunpack.c.l.b16 %v12469
    %v12792 = vunpack.c.h.b16 %v12469
    %v12793 = vunpack.c.l.b16 %v12470
    %v12794 = vunpack.c.h.b16 %v12470
    %v12795 = vunpack.c.l.b16 %v12471
    %v12796 = vunpack.c.h.b16 %v12471
    %v12797 = vunpack.c.l.b16 %v12472
    %v12798 = vunpack.c.h.b16 %v12472
    %v12799 = vunpack.c.l.b16 %v12473
    %v12800 = vunpack.c.h.b16 %v12473
    %v12801 = vunpack.c.l.b16 %v12474
    %v12802 = vunpack.c.h.b16 %v12474
    %v12803 = vunpack.c.l.b16 %v12475
    %v12804 = vunpack.c.h.b16 %v12475
    %v12805 = vunpack.c.l.b16 %v12476
    %v12806 = vunpack.c.h.b16 %v12476
    %v12807 = vunpack.c.l.b16 %v12477
    %v12808 = vunpack.c.h.b16 %v12477
    %v12809 = vunpack.c.l.b16 %v12478
    %v12810 = vunpack.c.h.b16 %v12478
    %v12811 = vunpack.c.l.b16 %v12479
    %v12812 = vunpack.c.h.b16 %v12479
    %v12813 = vunpack.c.l.b16 %v12480
    %v12814 = vunpack.c.h.b16 %v12480
    %v12815 = vunpack.c.l.b16 %v12481
    %v12816 = vunpack.c.h.b16 %v12481
    %v12817 = vunpack.c.l.b16 %v12482
    %v12818 = vunpack.c.h.b16 %v12482
    %v12819 = vunpack.c.l.b16 %v12483
    %v12820 = vunpack.c.h.b16 %v12483
    %v12821 = vunpack.c.l.b16 %v12484
    %v12822 = vunpack.c.h.b16 %v12484
    %v12823 = vunpack.c.l.b16 %v12485
    %v12824 = vunpack.c.h.b16 %v12485
    %v12825 = vunpack.c.l.b16 %v12486
    %v12826 = vunpack.c.h.b16 %v12486
    %v12827 = vunpack.c.l.b16 %v12487
    %v12828 = vunpack.c.h.b16 %v12487
    %v12829 = vunpack.c.l.b16 %v12488
    %v12830 = vunpack.c.h.b16 %v12488
    %v12831 = vunpack.c.l.b16 %v12489
    %v12832 = vunpack.c.h.b16 %v12489
    %v12833 = vunpack.c.l.b16 %v12490
    %v12834 = vunpack.c.h.b16 %v12490
    %v12835 = vunpack.c.l.b16 %v12491
    %v12836 = vunpack.c.h.b16 %v12491
    %v12837 = vunpack.c.l.b16 %v12492
    %v12838 = vunpack.c.h.b16 %v12492
    %v12839 = vunpack.c.l.b16 %v12493
    %v12840 = vunpack.c.h.b16 %v12493
    %v12841 = vunpack.c.l.b16 %v12494
    %v12842 = vunpack.c.h.b16 %v12494
    %v12843 = vunpack.c.l.b16 %v12495
    %v12844 = vunpack.c.h.b16 %v12495
    %v12845 = vunpack.c.l.b16 %v12496
    %v12846 = vunpack.c.h.b16 %v12496
    %v12847 = vunpack.c.l.b16 %v12497
    %v12848 = vunpack.c.h.b16 %v12497
    %v12849 = vunpack.c.l.b16 %v12498
    %v12850 = vunpack.c.h.b16 %v12498
    %v12851 = vunpack.c.l.b16 %v12499
    %v12852 = vunpack.c.h.b16 %v12499
    %v12853 = vunpack.c.l.b16 %v12500
    %v12854 = vunpack.c.h.b16 %v12500
    %v12855 = vunpack.c.l.b16 %v12501
    %v12856 = vunpack.c.h.b16 %v12501
    %v12857 = vunpack.c.l.b16 %v12502
    %v12858 = vunpack.c.h.b16 %v12502
    %v12859 = vunpack.c.l.b16 %v12503
    %v12860 = vunpack.c.h.b16 %v12503
    %v12861 = vunpack.c.l.b16 %v12504
    %v12862 = vunpack.c.h.b16 %v12504
    %v12863 = vunpack.c.l.b16 %v12505
    %v12864 = vunpack.c.h.b16 %v12505
    %v12865 = vunpack.c.l.b16 %v12506
    %v12866 = vunpack.c.h.b16 %v12506
    %v12867 = vunpack.c.l.b16 %v12507
    %v12868 = vunpack.c.h.b16 %v12507
    %v12869 = vunpack.c.l.b16 %v12508
    %v12870 = vunpack.c.h.b16 %v12508
    %v12871 = vunpack.c.l.b16 %v12509
    %v12872 = vunpack.c.h.b16 %v12509
    %v12873 = vunpack.c.l.b16 %v12510
    %v12874 = vunpack.c.h.b16 %v12510
    %v12875 = vunpack.c.l.b16 %v12511
    %v12876 = vunpack.c.h.b16 %v12511
    %v12877 = vunpack.c.l.b16 %v12512
    %v12878 = vunpack.c.h.b16 %v12512
    %v12879 = vunpack.c.l.b16 %v12513
    %v12880 = vunpack.c.h.b16 %v12513
    %v12881 = vunpack.c.l.b16 %v12514
    %v12882 = vunpack.c.h.b16 %v12514
    %v12883 = vunpack.c.l.b16 %v12515
    %v12884 = vunpack.c.h.b16 %v12515
    %v12885 = vunpack.c.l.b16 %v12516
    %v12886 = vunpack.c.h.b16 %v12516
    %v12887 = vunpack.c.l.b16 %v12517
    %v12888 = vunpack.c.h.b16 %v12517
    %v12889 = vunpack.c.l.b16 %v12518
    %v12890 = vunpack.c.h.b16 %v12518
    %v12891 = vunpack.c.l.b16 %v12519
    %v12892 = vunpack.c.h.b16 %v12519
    %v12893 = vunpack.c.l.b16 %v12520
    %v12894 = vunpack.c.h.b16 %v12520
    %v12895 = vunpack.c.l.b16 %v12521
    %v12896 = vunpack.c.h.b16 %v12521
    %v12897 = vunpack.c.l.b16 %v12522
    %v12898 = vunpack.c.h.b16 %v12522
    %v12899 = vunpack.c.l.b16 %v12523
    %v12900 = vunpack.c.h.b16 %v12523
    %v12901 = vunpack.c.l.b16 %v12524
    %v12902 = vunpack.c.h.b16 %v12524
    %v12903 = vunpack.c.l.b16 %v12525
    %v12904 = vunpack.c.h.b16 %v12525
    %v12905 = vunpack.c.l.b16 %v12526
    %v12906 = vunpack.c.h.b16 %v12526
    %v12907 = vunpack.c.l.b16 %v12527
    %v12908 = vunpack.c.h.b16 %v12527
    %v12909 = vunpack.c.l.b16 %v12528
    %v12910 = vunpack.c.h.b16 %v12528
    %v12911 = vunpack.c.l.b16 %v12529
    %v12912 = vunpack.c.h.b16 %v12529
    %v12913 = vunpack.c.l.b16 %v12530
    %v12914 = vunpack.c.h.b16 %v12530
    %v12915 = vpack.c.b16 %v12663, %v12659
    %v12916 = vpack.c.b16 %v12664, %v12660
    %v12917 = vpack.c.b16 %v12665, %v12661
    %v12918 = vpack.c.b16 %v12666, %v12662
    %v12919 = vpack.c.b16 %v12671, %v12667
    %v12920 = vpack.c.b16 %v12672, %v12668
    %v12921 = vpack.c.b16 %v12673, %v12669
    %v12922 = vpack.c.b16 %v12674, %v12670
    %v12923 = vpack.c.b16 %v12679, %v12675
    %v12924 = vpack.c.b16 %v12680, %v12676
    %v12925 = vpack.c.b16 %v12681, %v12677
    %v12926 = vpack.c.b16 %v12682, %v12678
    %v12927 = vpack.c.b16 %v12687, %v12683
    %v12928 = vpack.c.b16 %v12688, %v12684
    %v12929 = vpack.c.b16 %v12689, %v12685
    %v12930 = vpack.c.b16 %v12690, %v12686
    %v12931 = vpack.c.b16 %v12695, %v12691
    %v12932 = vpack.c.b16 %v12696, %v12692
    %v12933 = vpack.c.b16 %v12697, %v12693
    %v12934 = vpack.c.b16 %v12698, %v12694
    %v12935 = vpack.c.b16 %v12703, %v12699
    %v12936 = vpack.c.b16 %v12704, %v12700
    %v12937 = vpack.c.b16 %v12705, %v12701
    %v12938 = vpack.c.b16 %v12706, %v12702
    %v12939 = vpack.c.b16 %v12711, %v12707
    %v12940 = vpack.c.b16 %v12712, %v12708
    %v12941 = vpack.c.b16 %v12713, %v12709
    %v12942 = vpack.c.b16 %v12714, %v12710
    %v12943 = vpack.c.b16 %v12719, %v12715
    %v12944 = vpack.c.b16 %v12720, %v12716
    %v12945 = vpack.c.b16 %v12721, %v12717
    %v12946 = vpack.c.b16 %v12722, %v12718
    %v12947 = vpack.c.b16 %v12727, %v12723
    %v12948 = vpack.c.b16 %v12728, %v12724
    %v12949 = vpack.c.b16 %v12729, %v12725
    %v12950 = vpack.c.b16 %v12730, %v12726
    %v12951 = vpack.c.b16 %v12735, %v12731
    %v12952 = vpack.c.b16 %v12736, %v12732
    %v12953 = vpack.c.b16 %v12737, %v12733
    %v12954 = vpack.c.b16 %v12738, %v12734
    %v12955 = vpack.c.b16 %v12743, %v12739
    %v12956 = vpack.c.b16 %v12744, %v12740
    %v12957 = vpack.c.b16 %v12745, %v12741
    %v12958 = vpack.c.b16 %v12746, %v12742
    %v12959 = vpack.c.b16 %v12751, %v12747
    %v12960 = vpack.c.b16 %v12752, %v12748
    %v12961 = vpack.c.b16 %v12753, %v12749
    %v12962 = vpack.c.b16 %v12754, %v12750
    %v12963 = vpack.c.b16 %v12759, %v12755
    %v12964 = vpack.c.b16 %v12760, %v12756
    %v12965 = vpack.c.b16 %v12761, %v12757
    %v12966 = vpack.c.b16 %v12762, %v12758
    %v12967 = vpack.c.b16 %v12767, %v12763
    %v12968 = vpack.c.b16 %v12768, %v12764
    %v12969 = vpack.c.b16 %v12769, %v12765
    %v12970 = vpack.c.b16 %v12770, %v12766
    %v12971 = vpack.c.b16 %v12775, %v12771
    %v12972 = vpack.c.b16 %v12776, %v12772
    %v12973 = vpack.c.b16 %v12777, %v12773
    %v12974 = vpack.c.b16 %v12778, %v12774
    %v12975 = vpack.c.b16 %v12783, %v12779
    %v12976 = vpack.c.b16 %v12784, %v12780
    %v12977 = vpack.c.b16 %v12785, %v12781
    %v12978 = vpack.c.b16 %v12786, %v12782
    %v12979 = vpack.c.b16 %v12791, %v12787
    %v12980 = vpack.c.b16 %v12792, %v12788
    %v12981 = vpack.c.b16 %v12793, %v12789
    %v12982 = vpack.c.b16 %v12794, %v12790
    %v12983 = vpack.c.b16 %v12799, %v12795
    %v12984 = vpack.c.b16 %v12800, %v12796
    %v12985 = vpack.c.b16 %v12801, %v12797
    %v12986 = vpack.c.b16 %v12802, %v12798
    %v12987 = vpack.c.b16 %v12807, %v12803
    %v12988 = vpack.c.b16 %v12808, %v12804
    %v12989 = vpack.c.b16 %v12809, %v12805
    %v12990 = vpack.c.b16 %v12810, %v12806
    %v12991 = vpack.c.b16 %v12815, %v12811
    %v12992 = vpack.c.b16 %v12816, %v12812
    %v12993 = vpack.c.b16 %v12817, %v12813
    %v12994 = vpack.c.b16 %v12818, %v12814
    %v12995 = vpack.c.b16 %v12823, %v12819
    %v12996 = vpack.c.b16 %v12824, %v12820
    %v12997 = vpack.c.b16 %v12825, %v12821
    %v12998 = vpack.c.b16 %v12826, %v12822
    %v12999 = vpack.c.b16 %v12831, %v12827
    %v13000 = vpack.c.b16 %v12832, %v12828
    %v13001 = vpack.c.b16 %v12833, %v12829
    %v13002 = vpack.c.b16 %v12834, %v12830
    %v13003 = vpack.c.b16 %v12839, %v12835
    %v13004 = vpack.c.b16 %v12840, %v12836
    %v13005 = vpack.c.b16 %v12841, %v12837
    %v13006 = vpack.c.b16 %v12842, %v12838
    %v13007 = vpack.c.b16 %v12847, %v12843
    %v13008 = vpack.c.b16 %v12848, %v12844
    %v13009 = vpack.c.b16 %v12849, %v12845
    %v13010 = vpack.c.b16 %v12850, %v12846
    %v13011 = vpack.c.b16 %v12855, %v12851
    %v13012 = vpack.c.b16 %v12856, %v12852
    %v13013 = vpack.c.b16 %v12857, %v12853
    %v13014 = vpack.c.b16 %v12858, %v12854
    %v13015 = vpack.c.b16 %v12863, %v12859
    %v13016 = vpack.c.b16 %v12864, %v12860
    %v13017 = vpack.c.b16 %v12865, %v12861
    %v13018 = vpack.c.b16 %v12866, %v12862
    %v13019 = vpack.c.b16 %v12871, %v12867
    %v13020 = vpack.c.b16 %v12872, %v12868
    %v13021 = vpack.c.b16 %v12873, %v12869
    %v13022 = vpack.c.b16 %v12874, %v12870
    %v13023 = vpack.c.b16 %v12879, %v12875
    %v13024 = vpack.c.b16 %v12880, %v12876
    %v13025 = vpack.c.b16 %v12881, %v12877
    %v13026 = vpack.c.b16 %v12882, %v12878
    %v13027 = vpack.c.b16 %v12887, %v12883
    %v13028 = vpack.c.b16 %v12888, %v12884
    %v13029 = vpack.c.b16 %v12889, %v12885
    %v13030 = vpack.c.b16 %v12890, %v12886
    %v13031 = vpack.c.b16 %v12895, %v12891
    %v13032 = vpack.c.b16 %v12896, %v12892
    %v13033 = vpack.c.b16 %v12897, %v12893
    %v13034 = vpack.c.b16 %v12898, %v12894
    %v13035 = vpack.c.b16 %v12903, %v12899
    %v13036 = vpack.c.b16 %v12904, %v12900
    %v13037 = vpack.c.b16 %v12905, %v12901
    %v13038 = vpack.c.b16 %v12906, %v12902
    %v13039 = vpack.c.b16 %v12911, %v12907
    %v13040 = vpack.c.b16 %v12912, %v12908
    %v13041 = vpack.c.b16 %v12913, %v12909
    %v13042 = vpack.c.b16 %v12914, %v12910
    %13171 = vmatprep.subr.bf16.mxu0 %v12944
    %13172 = vmatpush1.bf16.msra.mxu0 %v12943
    %13173 = vmatprep.subr.bf16.mxu0 %v12940
    %13174 = vmatpush1.bf16.msra.mxu0 %v12939
    %13175 = vmatprep.subr.bf16.mxu0 %v12936
    %13176 = vmatpush1.bf16.msra.mxu0 %v12935
    %13177 = vmatprep.subr.bf16.mxu0 %v12932
    %13178 = vmatpush1.bf16.msra.mxu0 %v12931
    %13179 = vmatprep.subr.bf16.mxu0 %v12928
    %13180 = vmatpush1.bf16.msra.mxu0 %v12927
    %13181 = vmatprep.subr.bf16.mxu0 %v12924
    %13182 = vmatpush1.bf16.msra.mxu0 %v12923
    %13183 = vmatprep.subr.bf16.mxu0 %v12920
    %13184 = vmatpush1.bf16.msra.mxu0 %v12919
    %13185 = vmatprep.subr.bf16.mxu0 %v12916
    %13186 = vmatpush1.bf16.msra.mxu0 %v12915
    %13187 = vmatprep.subr.bf16.mxu0 %v12976
    %13188 = vmatpush2.bf16.msra.mxu0 %v12975
    %13189 = vmatprep.subr.bf16.mxu0 %v12972
    %13190 = vmatpush2.bf16.msra.mxu0 %v12971
    %13191 = vmatprep.subr.bf16.mxu0 %v12968
    %13192 = vmatpush2.bf16.msra.mxu0 %v12967
    %13193 = vmatprep.subr.bf16.mxu0 %v12964
    %13194 = vmatpush2.bf16.msra.mxu0 %v12963
    %13195 = vmatprep.subr.bf16.mxu0 %v12960
    %13196 = vmatpush2.bf16.msra.mxu0 %v12959
    %13197 = vmatprep.subr.bf16.mxu0 %v12956
    %13198 = vmatpush2.bf16.msra.mxu0 %v12955
    %13199 = vmatprep.subr.bf16.mxu0 %v12952
    %13200 = vmatpush2.bf16.msra.mxu0 %v12951
    %13201 = vmatprep.subr.bf16.mxu0 %v12948
    %13202 = vmatpush2.bf16.msra.mxu0 %v12947
    %13203 = vmatprep.mubr.bf16.mxu0 %v12400
    %13204 = vmatmul.mubr.bf16.gmra.mxu0 %v12399
    %v13205 = vpop.f32.mrf.mxu0
    %v13206 = vadd.f32 0.0, %v13205
    %v13207 = vpop.f32.mrf.mxu0
    %v13208 = vadd.f32 0.0, %v13207
    %v13209 = vpop.f32.mrf.mxu0
    %v13210 = vadd.f32 0.0, %v13209
    %v13211 = vpop.f32.mrf.mxu0
    %v13212 = vadd.f32 0.0, %v13211
    %13213 = vdwg.mxu0
    %13214 = vmatprep.subr.bf16.mxu0 %v13008
    %13215 = vmatpush1.bf16.msra.mxu0 %v13007
    %13216 = vmatprep.subr.bf16.mxu0 %v13004
    %13217 = vmatpush1.bf16.msra.mxu0 %v13003
    %13218 = vmatprep.subr.bf16.mxu0 %v13000
    %13219 = vmatpush1.bf16.msra.mxu0 %v12999
    %13220 = vmatprep.subr.bf16.mxu0 %v12996
    %13221 = vmatpush1.bf16.msra.mxu0 %v12995
    %13222 = vmatprep.subr.bf16.mxu0 %v12992
    %13223 = vmatpush1.bf16.msra.mxu0 %v12991
    %13224 = vmatprep.subr.bf16.mxu0 %v12988
    %13225 = vmatpush1.bf16.msra.mxu0 %v12987
    %13226 = vmatprep.subr.bf16.mxu0 %v12984
    %13227 = vmatpush1.bf16.msra.mxu0 %v12983
    %13228 = vmatprep.subr.bf16.mxu0 %v12980
    %13229 = vmatpush1.bf16.msra.mxu0 %v12979
    %13230 = vmatprep.subr.bf16.mxu0 %v13040
    %13231 = vmatpush2.bf16.msra.mxu0 %v13039
    %13232 = vmatprep.subr.bf16.mxu0 %v13036
    %13233 = vmatpush2.bf16.msra.mxu0 %v13035
    %13234 = vmatprep.subr.bf16.mxu0 %v13032
    %13235 = vmatpush2.bf16.msra.mxu0 %v13031
    %13236 = vmatprep.subr.bf16.mxu0 %v13028
    %13237 = vmatpush2.bf16.msra.mxu0 %v13027
    %13238 = vmatprep.subr.bf16.mxu0 %v13024
    %13239 = vmatpush2.bf16.msra.mxu0 %v13023
    %13240 = vmatprep.subr.bf16.mxu0 %v13020
    %13241 = vmatpush2.bf16.msra.mxu0 %v13019
    %13242 = vmatprep.subr.bf16.mxu0 %v13016
    %13243 = vmatpush2.bf16.msra.mxu0 %v13015
    %13244 = vmatprep.subr.bf16.mxu0 %v13012
    %13245 = vmatpush2.bf16.msra.mxu0 %v13011
    %13246 = vmatprep.mubr.bf16.mxu0 %v12402
    %13247 = vmatmul.mubr.bf16.gmra.mxu0 %v12401
    %v13248 = vpop.f32.mrf.mxu0
    %v13249 = vadd.f32 %v13206, %v13248
    %v13250 = vpop.f32.mrf.mxu0
    %v13251 = vadd.f32 %v13208, %v13250
    %v13252 = vpop.f32.mrf.mxu0
    %v13253 = vadd.f32 %v13210, %v13252
    %v13254 = vpop.f32.mrf.mxu0
    %v13255 = vadd.f32 %v13212, %v13254
    %13256 = vdwg.mxu0
    %13257 = vmatprep.subr.bf16.mxu0 %v12946
    %13258 = vmatpush1.bf16.msra.mxu0 %v12945
    %13259 = vmatprep.subr.bf16.mxu0 %v12942
    %13260 = vmatpush1.bf16.msra.mxu0 %v12941
    %13261 = vmatprep.subr.bf16.mxu0 %v12938
    %13262 = vmatpush1.bf16.msra.mxu0 %v12937
    %13263 = vmatprep.subr.bf16.mxu0 %v12934
    %13264 = vmatpush1.bf16.msra.mxu0 %v12933
    %13265 = vmatprep.subr.bf16.mxu0 %v12930
    %13266 = vmatpush1.bf16.msra.mxu0 %v12929
    %13267 = vmatprep.subr.bf16.mxu0 %v12926
    %13268 = vmatpush1.bf16.msra.mxu0 %v12925
    %13269 = vmatprep.subr.bf16.mxu0 %v12922
    %13270 = vmatpush1.bf16.msra.mxu0 %v12921
    %13271 = vmatprep.subr.bf16.mxu0 %v12918
    %13272 = vmatpush1.bf16.msra.mxu0 %v12917
    %13273 = vmatprep.subr.bf16.mxu0 %v12978
    %13274 = vmatpush2.bf16.msra.mxu0 %v12977
    %13275 = vmatprep.subr.bf16.mxu0 %v12974
    %13276 = vmatpush2.bf16.msra.mxu0 %v12973
    %13277 = vmatprep.subr.bf16.mxu0 %v12970
    %13278 = vmatpush2.bf16.msra.mxu0 %v12969
    %13279 = vmatprep.subr.bf16.mxu0 %v12966
    %13280 = vmatpush2.bf16.msra.mxu0 %v12965
    %13281 = vmatprep.subr.bf16.mxu0 %v12962
    %13282 = vmatpush2.bf16.msra.mxu0 %v12961
    %13283 = vmatprep.subr.bf16.mxu0 %v12958
    %13284 = vmatpush2.bf16.msra.mxu0 %v12957
    %13285 = vmatprep.subr.bf16.mxu0 %v12954
    %13286 = vmatpush2.bf16.msra.mxu0 %v12953
    %13287 = vmatprep.subr.bf16.mxu0 %v12950
    %13288 = vmatpush2.bf16.msra.mxu0 %v12949
    %13289 = vmatprep.mubr.bf16.mxu0 %v12400
    %13290 = vmatmul.mubr.bf16.gmra.mxu0 %v12399
    %v13291 = vpop.f32.mrf.mxu0
    %v13292 = vadd.f32 0.0, %v13291
    %v13293 = vpop.f32.mrf.mxu0
    %v13294 = vadd.f32 0.0, %v13293
    %v13295 = vpop.f32.mrf.mxu0
    %v13296 = vadd.f32 0.0, %v13295
    %v13297 = vpop.f32.mrf.mxu0
    %v13298 = vadd.f32 0.0, %v13297
    %13299 = vdwg.mxu0
    %13300 = vmatprep.subr.bf16.mxu0 %v13010
    %13301 = vmatpush1.bf16.msra.mxu0 %v13009
    %13302 = vmatprep.subr.bf16.mxu0 %v13006
    %13303 = vmatpush1.bf16.msra.mxu0 %v13005
    %13304 = vmatprep.subr.bf16.mxu0 %v13002
    %13305 = vmatpush1.bf16.msra.mxu0 %v13001
    %13306 = vmatprep.subr.bf16.mxu0 %v12998
    %13307 = vmatpush1.bf16.msra.mxu0 %v12997
    %13308 = vmatprep.subr.bf16.mxu0 %v12994
    %13309 = vmatpush1.bf16.msra.mxu0 %v12993
    %13310 = vmatprep.subr.bf16.mxu0 %v12990
    %13311 = vmatpush1.bf16.msra.mxu0 %v12989
    %13312 = vmatprep.subr.bf16.mxu0 %v12986
    %13313 = vmatpush1.bf16.msra.mxu0 %v12985
    %13314 = vmatprep.subr.bf16.mxu0 %v12982
    %13315 = vmatpush1.bf16.msra.mxu0 %v12981
    %13316 = vmatprep.subr.bf16.mxu0 %v13042
    %13317 = vmatpush2.bf16.msra.mxu0 %v13041
    %13318 = vmatprep.subr.bf16.mxu0 %v13038
    %13319 = vmatpush2.bf16.msra.mxu0 %v13037
    %13320 = vmatprep.subr.bf16.mxu0 %v13034
    %13321 = vmatpush2.bf16.msra.mxu0 %v13033
    %13322 = vmatprep.subr.bf16.mxu0 %v13030
    %13323 = vmatpush2.bf16.msra.mxu0 %v13029
    %13324 = vmatprep.subr.bf16.mxu0 %v13026
    %13325 = vmatpush2.bf16.msra.mxu0 %v13025
    %13326 = vmatprep.subr.bf16.mxu0 %v13022
    %13327 = vmatpush2.bf16.msra.mxu0 %v13021
    %13328 = vmatprep.subr.bf16.mxu0 %v13018
    %13329 = vmatpush2.bf16.msra.mxu0 %v13017
    %13330 = vmatprep.subr.bf16.mxu0 %v13014
    %13331 = vmatpush2.bf16.msra.mxu0 %v13013
    %13332 = vmatprep.mubr.bf16.mxu0 %v12402
    %13333 = vmatmul.mubr.bf16.gmra.mxu0 %v12401
    %v13334 = vpop.f32.mrf.mxu0
    %v13335 = vadd.f32 %v13292, %v13334
    %v13336 = vpop.f32.mrf.mxu0
    %v13337 = vadd.f32 %v13294, %v13336
    %v13338 = vpop.f32.mrf.mxu0
    %v13339 = vadd.f32 %v13296, %v13338
    %v13340 = vpop.f32.mrf.mxu0
    %v13341 = vadd.f32 %v13298, %v13340
    %13342 = vdwg.mxu0
    %v13471 = vunpack.c.l.b16 %v12271
    %v13472 = vunpack.c.h.b16 %v12271
    %v13473 = vunpack.c.l.b16 %v12272
    %v13474 = vunpack.c.h.b16 %v12272
    %v13475 = vunpack.c.l.b16 %v12273
    %v13476 = vunpack.c.h.b16 %v12273
    %v13477 = vunpack.c.l.b16 %v12274
    %v13478 = vunpack.c.h.b16 %v12274
    %v13479 = vunpack.c.l.b16 %v12275
    %v13480 = vunpack.c.h.b16 %v12275
    %v13481 = vunpack.c.l.b16 %v12276
    %v13482 = vunpack.c.h.b16 %v12276
    %v13483 = vunpack.c.l.b16 %v12277
    %v13484 = vunpack.c.h.b16 %v12277
    %v13485 = vunpack.c.l.b16 %v12278
    %v13486 = vunpack.c.h.b16 %v12278
    %v13487 = vunpack.c.l.b16 %v12279
    %v13488 = vunpack.c.h.b16 %v12279
    %v13489 = vunpack.c.l.b16 %v12280
    %v13490 = vunpack.c.h.b16 %v12280
    %v13491 = vunpack.c.l.b16 %v12281
    %v13492 = vunpack.c.h.b16 %v12281
    %v13493 = vunpack.c.l.b16 %v12282
    %v13494 = vunpack.c.h.b16 %v12282
    %v13495 = vunpack.c.l.b16 %v12283
    %v13496 = vunpack.c.h.b16 %v12283
    %v13497 = vunpack.c.l.b16 %v12284
    %v13498 = vunpack.c.h.b16 %v12284
    %v13499 = vunpack.c.l.b16 %v12285
    %v13500 = vunpack.c.h.b16 %v12285
    %v13501 = vunpack.c.l.b16 %v12286
    %v13502 = vunpack.c.h.b16 %v12286
    %v13503 = vunpack.c.l.b16 %v12287
    %v13504 = vunpack.c.h.b16 %v12287
    %v13505 = vunpack.c.l.b16 %v12288
    %v13506 = vunpack.c.h.b16 %v12288
    %v13507 = vunpack.c.l.b16 %v12289
    %v13508 = vunpack.c.h.b16 %v12289
    %v13509 = vunpack.c.l.b16 %v12290
    %v13510 = vunpack.c.h.b16 %v12290
    %v13511 = vunpack.c.l.b16 %v12291
    %v13512 = vunpack.c.h.b16 %v12291
    %v13513 = vunpack.c.l.b16 %v12292
    %v13514 = vunpack.c.h.b16 %v12292
    %v13515 = vunpack.c.l.b16 %v12293
    %v13516 = vunpack.c.h.b16 %v12293
    %v13517 = vunpack.c.l.b16 %v12294
    %v13518 = vunpack.c.h.b16 %v12294
    %v13519 = vunpack.c.l.b16 %v12295
    %v13520 = vunpack.c.h.b16 %v12295
    %v13521 = vunpack.c.l.b16 %v12296
    %v13522 = vunpack.c.h.b16 %v12296
    %v13523 = vunpack.c.l.b16 %v12297
    %v13524 = vunpack.c.h.b16 %v12297
    %v13525 = vunpack.c.l.b16 %v12298
    %v13526 = vunpack.c.h.b16 %v12298
    %v13527 = vunpack.c.l.b16 %v12299
    %v13528 = vunpack.c.h.b16 %v12299
    %v13529 = vunpack.c.l.b16 %v12300
    %v13530 = vunpack.c.h.b16 %v12300
    %v13531 = vunpack.c.l.b16 %v12301
    %v13532 = vunpack.c.h.b16 %v12301
    %v13533 = vunpack.c.l.b16 %v12302
    %v13534 = vunpack.c.h.b16 %v12302
    %v13535 = vunpack.c.l.b16 %v12303
    %v13536 = vunpack.c.h.b16 %v12303
    %v13537 = vunpack.c.l.b16 %v12304
    %v13538 = vunpack.c.h.b16 %v12304
    %v13539 = vunpack.c.l.b16 %v12305
    %v13540 = vunpack.c.h.b16 %v12305
    %v13541 = vunpack.c.l.b16 %v12306
    %v13542 = vunpack.c.h.b16 %v12306
    %v13543 = vunpack.c.l.b16 %v12307
    %v13544 = vunpack.c.h.b16 %v12307
    %v13545 = vunpack.c.l.b16 %v12308
    %v13546 = vunpack.c.h.b16 %v12308
    %v13547 = vunpack.c.l.b16 %v12309
    %v13548 = vunpack.c.h.b16 %v12309
    %v13549 = vunpack.c.l.b16 %v12310
    %v13550 = vunpack.c.h.b16 %v12310
    %v13551 = vunpack.c.l.b16 %v12311
    %v13552 = vunpack.c.h.b16 %v12311
    %v13553 = vunpack.c.l.b16 %v12312
    %v13554 = vunpack.c.h.b16 %v12312
    %v13555 = vunpack.c.l.b16 %v12313
    %v13556 = vunpack.c.h.b16 %v12313
    %v13557 = vunpack.c.l.b16 %v12314
    %v13558 = vunpack.c.h.b16 %v12314
    %v13559 = vunpack.c.l.b16 %v12315
    %v13560 = vunpack.c.h.b16 %v12315
    %v13561 = vunpack.c.l.b16 %v12316
    %v13562 = vunpack.c.h.b16 %v12316
    %v13563 = vunpack.c.l.b16 %v12317
    %v13564 = vunpack.c.h.b16 %v12317
    %v13565 = vunpack.c.l.b16 %v12318
    %v13566 = vunpack.c.h.b16 %v12318
    %v13567 = vunpack.c.l.b16 %v12319
    %v13568 = vunpack.c.h.b16 %v12319
    %v13569 = vunpack.c.l.b16 %v12320
    %v13570 = vunpack.c.h.b16 %v12320
    %v13571 = vunpack.c.l.b16 %v12321
    %v13572 = vunpack.c.h.b16 %v12321
    %v13573 = vunpack.c.l.b16 %v12322
    %v13574 = vunpack.c.h.b16 %v12322
    %v13575 = vunpack.c.l.b16 %v12323
    %v13576 = vunpack.c.h.b16 %v12323
    %v13577 = vunpack.c.l.b16 %v12324
    %v13578 = vunpack.c.h.b16 %v12324
    %v13579 = vunpack.c.l.b16 %v12325
    %v13580 = vunpack.c.h.b16 %v12325
    %v13581 = vunpack.c.l.b16 %v12326
    %v13582 = vunpack.c.h.b16 %v12326
    %v13583 = vunpack.c.l.b16 %v12327
    %v13584 = vunpack.c.h.b16 %v12327
    %v13585 = vunpack.c.l.b16 %v12328
    %v13586 = vunpack.c.h.b16 %v12328
    %v13587 = vunpack.c.l.b16 %v12329
    %v13588 = vunpack.c.h.b16 %v12329
    %v13589 = vunpack.c.l.b16 %v12330
    %v13590 = vunpack.c.h.b16 %v12330
    %v13591 = vunpack.c.l.b16 %v12331
    %v13592 = vunpack.c.h.b16 %v12331
    %v13593 = vunpack.c.l.b16 %v12332
    %v13594 = vunpack.c.h.b16 %v12332
    %v13595 = vunpack.c.l.b16 %v12333
    %v13596 = vunpack.c.h.b16 %v12333
    %v13597 = vunpack.c.l.b16 %v12334
    %v13598 = vunpack.c.h.b16 %v12334
    %v13599 = vunpack.c.l.b16 %v12335
    %v13600 = vunpack.c.h.b16 %v12335
    %v13601 = vunpack.c.l.b16 %v12336
    %v13602 = vunpack.c.h.b16 %v12336
    %v13603 = vunpack.c.l.b16 %v12337
    %v13604 = vunpack.c.h.b16 %v12337
    %v13605 = vunpack.c.l.b16 %v12338
    %v13606 = vunpack.c.h.b16 %v12338
    %v13607 = vunpack.c.l.b16 %v12339
    %v13608 = vunpack.c.h.b16 %v12339
    %v13609 = vunpack.c.l.b16 %v12340
    %v13610 = vunpack.c.h.b16 %v12340
    %v13611 = vunpack.c.l.b16 %v12341
    %v13612 = vunpack.c.h.b16 %v12341
    %v13613 = vunpack.c.l.b16 %v12342
    %v13614 = vunpack.c.h.b16 %v12342
    %v13615 = vunpack.c.l.b16 %v12343
    %v13616 = vunpack.c.h.b16 %v12343
    %v13617 = vunpack.c.l.b16 %v12344
    %v13618 = vunpack.c.h.b16 %v12344
    %v13619 = vunpack.c.l.b16 %v12345
    %v13620 = vunpack.c.h.b16 %v12345
    %v13621 = vunpack.c.l.b16 %v12346
    %v13622 = vunpack.c.h.b16 %v12346
    %v13623 = vunpack.c.l.b16 %v12347
    %v13624 = vunpack.c.h.b16 %v12347
    %v13625 = vunpack.c.l.b16 %v12348
    %v13626 = vunpack.c.h.b16 %v12348
    %v13627 = vunpack.c.l.b16 %v12349
    %v13628 = vunpack.c.h.b16 %v12349
    %v13629 = vunpack.c.l.b16 %v12350
    %v13630 = vunpack.c.h.b16 %v12350
    %v13631 = vunpack.c.l.b16 %v12351
    %v13632 = vunpack.c.h.b16 %v12351
    %v13633 = vunpack.c.l.b16 %v12352
    %v13634 = vunpack.c.h.b16 %v12352
    %v13635 = vunpack.c.l.b16 %v12353
    %v13636 = vunpack.c.h.b16 %v12353
    %v13637 = vunpack.c.l.b16 %v12354
    %v13638 = vunpack.c.h.b16 %v12354
    %v13639 = vunpack.c.l.b16 %v12355
    %v13640 = vunpack.c.h.b16 %v12355
    %v13641 = vunpack.c.l.b16 %v12356
    %v13642 = vunpack.c.h.b16 %v12356
    %v13643 = vunpack.c.l.b16 %v12357
    %v13644 = vunpack.c.h.b16 %v12357
    %v13645 = vunpack.c.l.b16 %v12358
    %v13646 = vunpack.c.h.b16 %v12358
    %v13647 = vunpack.c.l.b16 %v12359
    %v13648 = vunpack.c.h.b16 %v12359
    %v13649 = vunpack.c.l.b16 %v12360
    %v13650 = vunpack.c.h.b16 %v12360
    %v13651 = vunpack.c.l.b16 %v12361
    %v13652 = vunpack.c.h.b16 %v12361
    %v13653 = vunpack.c.l.b16 %v12362
    %v13654 = vunpack.c.h.b16 %v12362
    %v13655 = vunpack.c.l.b16 %v12363
    %v13656 = vunpack.c.h.b16 %v12363
    %v13657 = vunpack.c.l.b16 %v12364
    %v13658 = vunpack.c.h.b16 %v12364
    %v13659 = vunpack.c.l.b16 %v12365
    %v13660 = vunpack.c.h.b16 %v12365
    %v13661 = vunpack.c.l.b16 %v12366
    %v13662 = vunpack.c.h.b16 %v12366
    %v13663 = vunpack.c.l.b16 %v12367
    %v13664 = vunpack.c.h.b16 %v12367
    %v13665 = vunpack.c.l.b16 %v12368
    %v13666 = vunpack.c.h.b16 %v12368
    %v13667 = vunpack.c.l.b16 %v12369
    %v13668 = vunpack.c.h.b16 %v12369
    %v13669 = vunpack.c.l.b16 %v12370
    %v13670 = vunpack.c.h.b16 %v12370
    %v13671 = vunpack.c.l.b16 %v12371
    %v13672 = vunpack.c.h.b16 %v12371
    %v13673 = vunpack.c.l.b16 %v12372
    %v13674 = vunpack.c.h.b16 %v12372
    %v13675 = vunpack.c.l.b16 %v12373
    %v13676 = vunpack.c.h.b16 %v12373
    %v13677 = vunpack.c.l.b16 %v12374
    %v13678 = vunpack.c.h.b16 %v12374
    %v13679 = vunpack.c.l.b16 %v12375
    %v13680 = vunpack.c.h.b16 %v12375
    %v13681 = vunpack.c.l.b16 %v12376
    %v13682 = vunpack.c.h.b16 %v12376
    %v13683 = vunpack.c.l.b16 %v12377
    %v13684 = vunpack.c.h.b16 %v12377
    %v13685 = vunpack.c.l.b16 %v12378
    %v13686 = vunpack.c.h.b16 %v12378
    %v13687 = vunpack.c.l.b16 %v12379
    %v13688 = vunpack.c.h.b16 %v12379
    %v13689 = vunpack.c.l.b16 %v12380
    %v13690 = vunpack.c.h.b16 %v12380
    %v13691 = vunpack.c.l.b16 %v12381
    %v13692 = vunpack.c.h.b16 %v12381
    %v13693 = vunpack.c.l.b16 %v12382
    %v13694 = vunpack.c.h.b16 %v12382
    %v13695 = vunpack.c.l.b16 %v12383
    %v13696 = vunpack.c.h.b16 %v12383
    %v13697 = vunpack.c.l.b16 %v12384
    %v13698 = vunpack.c.h.b16 %v12384
    %v13699 = vunpack.c.l.b16 %v12385
    %v13700 = vunpack.c.h.b16 %v12385
    %v13701 = vunpack.c.l.b16 %v12386
    %v13702 = vunpack.c.h.b16 %v12386
    %v13703 = vunpack.c.l.b16 %v12387
    %v13704 = vunpack.c.h.b16 %v12387
    %v13705 = vunpack.c.l.b16 %v12388
    %v13706 = vunpack.c.h.b16 %v12388
    %v13707 = vunpack.c.l.b16 %v12389
    %v13708 = vunpack.c.h.b16 %v12389
    %v13709 = vunpack.c.l.b16 %v12390
    %v13710 = vunpack.c.h.b16 %v12390
    %v13711 = vunpack.c.l.b16 %v12391
    %v13712 = vunpack.c.h.b16 %v12391
    %v13713 = vunpack.c.l.b16 %v12392
    %v13714 = vunpack.c.h.b16 %v12392
    %v13715 = vunpack.c.l.b16 %v12393
    %v13716 = vunpack.c.h.b16 %v12393
    %v13717 = vunpack.c.l.b16 %v12394
    %v13718 = vunpack.c.h.b16 %v12394
    %v13719 = vunpack.c.l.b16 %v12395
    %v13720 = vunpack.c.h.b16 %v12395
    %v13721 = vunpack.c.l.b16 %v12396
    %v13722 = vunpack.c.h.b16 %v12396
    %v13723 = vunpack.c.l.b16 %v12397
    %v13724 = vunpack.c.h.b16 %v12397
    %v13725 = vunpack.c.l.b16 %v12398
    %v13726 = vunpack.c.h.b16 %v12398
    %v13727 = vpack.c.b16 %v13475, %v13471
    %v13728 = vpack.c.b16 %v13476, %v13472
    %v13729 = vpack.c.b16 %v13477, %v13473
    %v13730 = vpack.c.b16 %v13478, %v13474
    %v13731 = vpack.c.b16 %v13483, %v13479
    %v13732 = vpack.c.b16 %v13484, %v13480
    %v13733 = vpack.c.b16 %v13485, %v13481
    %v13734 = vpack.c.b16 %v13486, %v13482
    %v13735 = vpack.c.b16 %v13491, %v13487
    %v13736 = vpack.c.b16 %v13492, %v13488
    %v13737 = vpack.c.b16 %v13493, %v13489
    %v13738 = vpack.c.b16 %v13494, %v13490
    %v13739 = vpack.c.b16 %v13499, %v13495
    %v13740 = vpack.c.b16 %v13500, %v13496
    %v13741 = vpack.c.b16 %v13501, %v13497
    %v13742 = vpack.c.b16 %v13502, %v13498
    %v13743 = vpack.c.b16 %v13507, %v13503
    %v13744 = vpack.c.b16 %v13508, %v13504
    %v13745 = vpack.c.b16 %v13509, %v13505
    %v13746 = vpack.c.b16 %v13510, %v13506
    %v13747 = vpack.c.b16 %v13515, %v13511
    %v13748 = vpack.c.b16 %v13516, %v13512
    %v13749 = vpack.c.b16 %v13517, %v13513
    %v13750 = vpack.c.b16 %v13518, %v13514
    %v13751 = vpack.c.b16 %v13523, %v13519
    %v13752 = vpack.c.b16 %v13524, %v13520
    %v13753 = vpack.c.b16 %v13525, %v13521
    %v13754 = vpack.c.b16 %v13526, %v13522
    %v13755 = vpack.c.b16 %v13531, %v13527
    %v13756 = vpack.c.b16 %v13532, %v13528
    %v13757 = vpack.c.b16 %v13533, %v13529
    %v13758 = vpack.c.b16 %v13534, %v13530
    %v13759 = vpack.c.b16 %v13539, %v13535
    %v13760 = vpack.c.b16 %v13540, %v13536
    %v13761 = vpack.c.b16 %v13541, %v13537
    %v13762 = vpack.c.b16 %v13542, %v13538
    %v13763 = vpack.c.b16 %v13547, %v13543
    %v13764 = vpack.c.b16 %v13548, %v13544
    %v13765 = vpack.c.b16 %v13549, %v13545
    %v13766 = vpack.c.b16 %v13550, %v13546
    %v13767 = vpack.c.b16 %v13555, %v13551
    %v13768 = vpack.c.b16 %v13556, %v13552
    %v13769 = vpack.c.b16 %v13557, %v13553
    %v13770 = vpack.c.b16 %v13558, %v13554
    %v13771 = vpack.c.b16 %v13563, %v13559
    %v13772 = vpack.c.b16 %v13564, %v13560
    %v13773 = vpack.c.b16 %v13565, %v13561
    %v13774 = vpack.c.b16 %v13566, %v13562
    %v13775 = vpack.c.b16 %v13571, %v13567
    %v13776 = vpack.c.b16 %v13572, %v13568
    %v13777 = vpack.c.b16 %v13573, %v13569
    %v13778 = vpack.c.b16 %v13574, %v13570
    %v13779 = vpack.c.b16 %v13579, %v13575
    %v13780 = vpack.c.b16 %v13580, %v13576
    %v13781 = vpack.c.b16 %v13581, %v13577
    %v13782 = vpack.c.b16 %v13582, %v13578
    %v13783 = vpack.c.b16 %v13587, %v13583
    %v13784 = vpack.c.b16 %v13588, %v13584
    %v13785 = vpack.c.b16 %v13589, %v13585
    %v13786 = vpack.c.b16 %v13590, %v13586
    %v13787 = vpack.c.b16 %v13595, %v13591
    %v13788 = vpack.c.b16 %v13596, %v13592
    %v13789 = vpack.c.b16 %v13597, %v13593
    %v13790 = vpack.c.b16 %v13598, %v13594
    %v13791 = vpack.c.b16 %v13603, %v13599
    %v13792 = vpack.c.b16 %v13604, %v13600
    %v13793 = vpack.c.b16 %v13605, %v13601
    %v13794 = vpack.c.b16 %v13606, %v13602
    %v13795 = vpack.c.b16 %v13611, %v13607
    %v13796 = vpack.c.b16 %v13612, %v13608
    %v13797 = vpack.c.b16 %v13613, %v13609
    %v13798 = vpack.c.b16 %v13614, %v13610
    %v13799 = vpack.c.b16 %v13619, %v13615
    %v13800 = vpack.c.b16 %v13620, %v13616
    %v13801 = vpack.c.b16 %v13621, %v13617
    %v13802 = vpack.c.b16 %v13622, %v13618
    %v13803 = vpack.c.b16 %v13627, %v13623
    %v13804 = vpack.c.b16 %v13628, %v13624
    %v13805 = vpack.c.b16 %v13629, %v13625
    %v13806 = vpack.c.b16 %v13630, %v13626
    %v13807 = vpack.c.b16 %v13635, %v13631
    %v13808 = vpack.c.b16 %v13636, %v13632
    %v13809 = vpack.c.b16 %v13637, %v13633
    %v13810 = vpack.c.b16 %v13638, %v13634
    %v13811 = vpack.c.b16 %v13643, %v13639
    %v13812 = vpack.c.b16 %v13644, %v13640
    %v13813 = vpack.c.b16 %v13645, %v13641
    %v13814 = vpack.c.b16 %v13646, %v13642
    %v13815 = vpack.c.b16 %v13651, %v13647
    %v13816 = vpack.c.b16 %v13652, %v13648
    %v13817 = vpack.c.b16 %v13653, %v13649
    %v13818 = vpack.c.b16 %v13654, %v13650
    %v13819 = vpack.c.b16 %v13659, %v13655
    %v13820 = vpack.c.b16 %v13660, %v13656
    %v13821 = vpack.c.b16 %v13661, %v13657
    %v13822 = vpack.c.b16 %v13662, %v13658
    %v13823 = vpack.c.b16 %v13667, %v13663
    %v13824 = vpack.c.b16 %v13668, %v13664
    %v13825 = vpack.c.b16 %v13669, %v13665
    %v13826 = vpack.c.b16 %v13670, %v13666
    %v13827 = vpack.c.b16 %v13675, %v13671
    %v13828 = vpack.c.b16 %v13676, %v13672
    %v13829 = vpack.c.b16 %v13677, %v13673
    %v13830 = vpack.c.b16 %v13678, %v13674
    %v13831 = vpack.c.b16 %v13683, %v13679
    %v13832 = vpack.c.b16 %v13684, %v13680
    %v13833 = vpack.c.b16 %v13685, %v13681
    %v13834 = vpack.c.b16 %v13686, %v13682
    %v13835 = vpack.c.b16 %v13691, %v13687
    %v13836 = vpack.c.b16 %v13692, %v13688
    %v13837 = vpack.c.b16 %v13693, %v13689
    %v13838 = vpack.c.b16 %v13694, %v13690
    %v13839 = vpack.c.b16 %v13699, %v13695
    %v13840 = vpack.c.b16 %v13700, %v13696
    %v13841 = vpack.c.b16 %v13701, %v13697
    %v13842 = vpack.c.b16 %v13702, %v13698
    %v13843 = vpack.c.b16 %v13707, %v13703
    %v13844 = vpack.c.b16 %v13708, %v13704
    %v13845 = vpack.c.b16 %v13709, %v13705
    %v13846 = vpack.c.b16 %v13710, %v13706
    %v13847 = vpack.c.b16 %v13715, %v13711
    %v13848 = vpack.c.b16 %v13716, %v13712
    %v13849 = vpack.c.b16 %v13717, %v13713
    %v13850 = vpack.c.b16 %v13718, %v13714
    %v13851 = vpack.c.b16 %v13723, %v13719
    %v13852 = vpack.c.b16 %v13724, %v13720
    %v13853 = vpack.c.b16 %v13725, %v13721
    %v13854 = vpack.c.b16 %v13726, %v13722
    %13983 = vmatprep.subr.bf16.mxu0 %v13756
    %13984 = vmatpush1.bf16.msra.mxu0 %v13755
    %13985 = vmatprep.subr.bf16.mxu0 %v13752
    %13986 = vmatpush1.bf16.msra.mxu0 %v13751
    %13987 = vmatprep.subr.bf16.mxu0 %v13748
    %13988 = vmatpush1.bf16.msra.mxu0 %v13747
    %13989 = vmatprep.subr.bf16.mxu0 %v13744
    %13990 = vmatpush1.bf16.msra.mxu0 %v13743
    %13991 = vmatprep.subr.bf16.mxu0 %v13740
    %13992 = vmatpush1.bf16.msra.mxu0 %v13739
    %13993 = vmatprep.subr.bf16.mxu0 %v13736
    %13994 = vmatpush1.bf16.msra.mxu0 %v13735
    %13995 = vmatprep.subr.bf16.mxu0 %v13732
    %13996 = vmatpush1.bf16.msra.mxu0 %v13731
    %13997 = vmatprep.subr.bf16.mxu0 %v13728
    %13998 = vmatpush1.bf16.msra.mxu0 %v13727
    %13999 = vmatprep.subr.bf16.mxu0 %v13788
    %14000 = vmatpush2.bf16.msra.mxu0 %v13787
    %14001 = vmatprep.subr.bf16.mxu0 %v13784
    %14002 = vmatpush2.bf16.msra.mxu0 %v13783
    %14003 = vmatprep.subr.bf16.mxu0 %v13780
    %14004 = vmatpush2.bf16.msra.mxu0 %v13779
    %14005 = vmatprep.subr.bf16.mxu0 %v13776
    %14006 = vmatpush2.bf16.msra.mxu0 %v13775
    %14007 = vmatprep.subr.bf16.mxu0 %v13772
    %14008 = vmatpush2.bf16.msra.mxu0 %v13771
    %14009 = vmatprep.subr.bf16.mxu0 %v13768
    %14010 = vmatpush2.bf16.msra.mxu0 %v13767
    %14011 = vmatprep.subr.bf16.mxu0 %v13764
    %14012 = vmatpush2.bf16.msra.mxu0 %v13763
    %14013 = vmatprep.subr.bf16.mxu0 %v13760
    %14014 = vmatpush2.bf16.msra.mxu0 %v13759
    %14015 = vmatprep.mubr.bf16.mxu0 %v12268
    %14016 = vmatmul.mubr.bf16.gmra.mxu0 %v12267
    %v14017 = vpop.f32.mrf.mxu0
    %v14018 = vadd.f32 %v13249, %v14017
    %v14019 = vpop.f32.mrf.mxu0
    %v14020 = vadd.f32 %v13251, %v14019
    %v14021 = vpop.f32.mrf.mxu0
    %v14022 = vadd.f32 %v13253, %v14021
    %v14023 = vpop.f32.mrf.mxu0
    %v14024 = vadd.f32 %v13255, %v14023
    %14025 = vdwg.mxu0
    %14026 = vmatprep.subr.bf16.mxu0 %v13820
    %14027 = vmatpush1.bf16.msra.mxu0 %v13819
    %14028 = vmatprep.subr.bf16.mxu0 %v13816
    %14029 = vmatpush1.bf16.msra.mxu0 %v13815
    %14030 = vmatprep.subr.bf16.mxu0 %v13812
    %14031 = vmatpush1.bf16.msra.mxu0 %v13811
    %14032 = vmatprep.subr.bf16.mxu0 %v13808
    %14033 = vmatpush1.bf16.msra.mxu0 %v13807
    %14034 = vmatprep.subr.bf16.mxu0 %v13804
    %14035 = vmatpush1.bf16.msra.mxu0 %v13803
    %14036 = vmatprep.subr.bf16.mxu0 %v13800
    %14037 = vmatpush1.bf16.msra.mxu0 %v13799
    %14038 = vmatprep.subr.bf16.mxu0 %v13796
    %14039 = vmatpush1.bf16.msra.mxu0 %v13795
    %14040 = vmatprep.subr.bf16.mxu0 %v13792
    %14041 = vmatpush1.bf16.msra.mxu0 %v13791
    %14042 = vmatprep.subr.bf16.mxu0 %v13852
    %14043 = vmatpush2.bf16.msra.mxu0 %v13851
    %14044 = vmatprep.subr.bf16.mxu0 %v13848
    %14045 = vmatpush2.bf16.msra.mxu0 %v13847
    %14046 = vmatprep.subr.bf16.mxu0 %v13844
    %14047 = vmatpush2.bf16.msra.mxu0 %v13843
    %14048 = vmatprep.subr.bf16.mxu0 %v13840
    %14049 = vmatpush2.bf16.msra.mxu0 %v13839
    %14050 = vmatprep.subr.bf16.mxu0 %v13836
    %14051 = vmatpush2.bf16.msra.mxu0 %v13835
    %14052 = vmatprep.subr.bf16.mxu0 %v13832
    %14053 = vmatpush2.bf16.msra.mxu0 %v13831
    %14054 = vmatprep.subr.bf16.mxu0 %v13828
    %14055 = vmatpush2.bf16.msra.mxu0 %v13827
    %14056 = vmatprep.subr.bf16.mxu0 %v13824
    %14057 = vmatpush2.bf16.msra.mxu0 %v13823
    %14058 = vmatprep.mubr.bf16.mxu0 %v12270
    %14059 = vmatmul.mubr.bf16.gmra.mxu0 %v12269
    %v14060 = vpop.f32.mrf.mxu0
    %v14061 = vadd.f32 %v14018, %v14060
    %v14062 = vpop.f32.mrf.mxu0
    %v14063 = vadd.f32 %v14020, %v14062
    %v14064 = vpop.f32.mrf.mxu0
    %v14065 = vadd.f32 %v14022, %v14064
    %v14066 = vpop.f32.mrf.mxu0
    %v14067 = vadd.f32 %v14024, %v14066
    %14068 = vdwg.mxu0
    %14069 = vmatprep.subr.bf16.mxu0 %v13758
    %14070 = vmatpush1.bf16.msra.mxu0 %v13757
    %14071 = vmatprep.subr.bf16.mxu0 %v13754
    %14072 = vmatpush1.bf16.msra.mxu0 %v13753
    %14073 = vmatprep.subr.bf16.mxu0 %v13750
    %14074 = vmatpush1.bf16.msra.mxu0 %v13749
    %14075 = vmatprep.subr.bf16.mxu0 %v13746
    %14076 = vmatpush1.bf16.msra.mxu0 %v13745
    %14077 = vmatprep.subr.bf16.mxu0 %v13742
    %14078 = vmatpush1.bf16.msra.mxu0 %v13741
    %14079 = vmatprep.subr.bf16.mxu0 %v13738
    %14080 = vmatpush1.bf16.msra.mxu0 %v13737
    %14081 = vmatprep.subr.bf16.mxu0 %v13734
    %14082 = vmatpush1.bf16.msra.mxu0 %v13733
    %14083 = vmatprep.subr.bf16.mxu0 %v13730
    %14084 = vmatpush1.bf16.msra.mxu0 %v13729
    %14085 = vmatprep.subr.bf16.mxu0 %v13790
    %14086 = vmatpush2.bf16.msra.mxu0 %v13789
    %14087 = vmatprep.subr.bf16.mxu0 %v13786
    %14088 = vmatpush2.bf16.msra.mxu0 %v13785
    %14089 = vmatprep.subr.bf16.mxu0 %v13782
    %14090 = vmatpush2.bf16.msra.mxu0 %v13781
    %14091 = vmatprep.subr.bf16.mxu0 %v13778
    %14092 = vmatpush2.bf16.msra.mxu0 %v13777
    %14093 = vmatprep.subr.bf16.mxu0 %v13774
    %14094 = vmatpush2.bf16.msra.mxu0 %v13773
    %14095 = vmatprep.subr.bf16.mxu0 %v13770
    %14096 = vmatpush2.bf16.msra.mxu0 %v13769
    %14097 = vmatprep.subr.bf16.mxu0 %v13766
    %14098 = vmatpush2.bf16.msra.mxu0 %v13765
    %14099 = vmatprep.subr.bf16.mxu0 %v13762
    %14100 = vmatpush2.bf16.msra.mxu0 %v13761
    %14101 = vmatprep.mubr.bf16.mxu0 %v12268
    %14102 = vmatmul.mubr.bf16.gmra.mxu0 %v12267
    %v14103 = vpop.f32.mrf.mxu0
    %v14104 = vadd.f32 %v13335, %v14103
    %v14105 = vpop.f32.mrf.mxu0
    %v14106 = vadd.f32 %v13337, %v14105
    %v14107 = vpop.f32.mrf.mxu0
    %v14108 = vadd.f32 %v13339, %v14107
    %v14109 = vpop.f32.mrf.mxu0
    %v14110 = vadd.f32 %v13341, %v14109
    %14111 = vdwg.mxu0
    %14112 = vmatprep.subr.bf16.mxu0 %v13822
    %14113 = vmatpush1.bf16.msra.mxu0 %v13821
    %14114 = vmatprep.subr.bf16.mxu0 %v13818
    %14115 = vmatpush1.bf16.msra.mxu0 %v13817
    %14116 = vmatprep.subr.bf16.mxu0 %v13814
    %14117 = vmatpush1.bf16.msra.mxu0 %v13813
    %14118 = vmatprep.subr.bf16.mxu0 %v13810
    %14119 = vmatpush1.bf16.msra.mxu0 %v13809
    %14120 = vmatprep.subr.bf16.mxu0 %v13806
    %14121 = vmatpush1.bf16.msra.mxu0 %v13805
    %14122 = vmatprep.subr.bf16.mxu0 %v13802
    %14123 = vmatpush1.bf16.msra.mxu0 %v13801
    %14124 = vmatprep.subr.bf16.mxu0 %v13798
    %14125 = vmatpush1.bf16.msra.mxu0 %v13797
    %14126 = vmatprep.subr.bf16.mxu0 %v13794
    %14127 = vmatpush1.bf16.msra.mxu0 %v13793
    %14128 = vmatprep.subr.bf16.mxu0 %v13854
    %14129 = vmatpush2.bf16.msra.mxu0 %v13853
    %14130 = vmatprep.subr.bf16.mxu0 %v13850
    %14131 = vmatpush2.bf16.msra.mxu0 %v13849
    %14132 = vmatprep.subr.bf16.mxu0 %v13846
    %14133 = vmatpush2.bf16.msra.mxu0 %v13845
    %14134 = vmatprep.subr.bf16.mxu0 %v13842
    %14135 = vmatpush2.bf16.msra.mxu0 %v13841
    %14136 = vmatprep.subr.bf16.mxu0 %v13838
    %14137 = vmatpush2.bf16.msra.mxu0 %v13837
    %14138 = vmatprep.subr.bf16.mxu0 %v13834
    %14139 = vmatpush2.bf16.msra.mxu0 %v13833
    %14140 = vmatprep.subr.bf16.mxu0 %v13830
    %14141 = vmatpush2.bf16.msra.mxu0 %v13829
    %14142 = vmatprep.subr.bf16.mxu0 %v13826
    %14143 = vmatpush2.bf16.msra.mxu0 %v13825
    %14144 = vmatprep.mubr.bf16.mxu0 %v12270
    %14145 = vmatmul.mubr.bf16.gmra.mxu0 %v12269
    %v14146 = vpop.f32.mrf.mxu0
    %v14147 = vadd.f32 %v14104, %v14146
    %v14148 = vpop.f32.mrf.mxu0
    %v14149 = vadd.f32 %v14106, %v14148
    %v14150 = vpop.f32.mrf.mxu0
    %v14151 = vadd.f32 %v14108, %v14150
    %v14152 = vpop.f32.mrf.mxu0
    %v14153 = vadd.f32 %v14110, %v14152
    %14154 = vdwg.mxu0
    %v14155 = vld [vmem:[#allocation25] sm:$0xf]
    %v14157 = vlaneseq
    %v14158 = vshrl.u32 %v14157, 7
    %v14159 = vsub.s32 0, %v14158
    %v14160 = vrot.slane %v14155, %v14159
    %v14161 = vlaneseq
    %v14162 = vshrl.u32 %v14161, 7
    %v14163 = vsub.s32 1, %v14162
    %v14164 = vrot.slane %v14155, %v14163
    %v14165 = vlaneseq
    %v14166 = vshrl.u32 %v14165, 7
    %v14167 = vsub.s32 2, %v14166
    %v14168 = vrot.slane %v14155, %v14167
    %v14169 = vlaneseq
    %v14170 = vshrl.u32 %v14169, 7
    %v14171 = vsub.s32 3, %v14170
    %v14172 = vrot.slane %v14155, %v14171
    %v14177 = vadd.f32 %v14061, %v14160
    %v14178 = vadd.f32 %v14063, %v14164
    %v14179 = vadd.f32 %v14147, %v14168
    %v14180 = vadd.f32 %v14149, %v14172
    %v14181 = vadd.f32 %v14065, %v14160
    %v14182 = vadd.f32 %v14067, %v14164
    %v14183 = vadd.f32 %v14151, %v14168
    %v14184 = vadd.f32 %v14153, %v14172
    %v14185 = vsub.f32 %v14177, %v335
    %v14186 = vsub.f32 %v14178, %v336
    %v14187 = vsub.f32 %v14179, %v337
    %v14188 = vsub.f32 %v14180, %v338
    %v14189 = vsub.f32 %v14181, %v339
    %v14190 = vsub.f32 %v14182, %v340
    %v14191 = vsub.f32 %v14183, %v341
    %v14192 = vsub.f32 %v14184, %v342
    %v14193 = vmul.f32 %v14185, %v14185
    %v14194 = vmul.f32 %v14186, %v14186
    %v14195 = vmul.f32 %v14187, %v14187
    %v14196 = vmul.f32 %v14188, %v14188
    %v14197 = vmul.f32 %v14189, %v14189
    %v14198 = vmul.f32 %v14190, %v14190
    %v14199 = vmul.f32 %v14191, %v14191
    %v14200 = vmul.f32 %v14192, %v14192
    %v14201 = vadd.f32 %v14193, %v14194
    %v14202 = vadd.f32 %v14201, %v14195
    %v14203 = vadd.f32 %v14202, %v14196
    %v14204 = vadd.f32 %v14203, %v14197
    %v14205 = vadd.f32 %v14204, %v14198
    %v14206 = vadd.f32 %v14205, %v14199
    %v14207 = vadd.f32 %v14206, %v14200
    %14208 = vadd.xlane.f32.xlu0 %v14207
    %v14209 = vpop.xlane.xlu0 %14208
    %v14210 = vrot.slane %v14209, 4
    %v14211 = vadd.f32 %v14209, %v14210
    %v14212 = vrot.slane %v14211, 2
    %v14213 = vadd.f32 %v14211, %v14212
    %v14214 = vrot.slane %v14213, 1
    %v14215 = vadd.f32 %v14213, %v14214
    %s14216 = vtos %v14215
    %s14217 = smul.f32 %s14216, 0.00012207031
    %v14218 = vstv %s14217
    %v14219 = vadd.f32 %v14218, 0.0
    %vm14220 = vcmask 0
    %14221 = vst.msk [vmem:[#allocation26] sm:$0x1] %vm14220, %v14219
    // Predicated region
    $region142: #{diffuser_forward.3} parent=1 // pred_check
      _
    $region143: #{diffuser_forward.3} parent=1 // pred_check_branch
      %14223 = sbr.rel (0) target = $region145
    $region144: #{diffuser_forward.3} parent=1 // pred_region
      %s14225 = ssub.s32 16, 16
      %14226 = vsyncadd [#allocation4], %s14225
      %s14228 = sshll.u32 [#allocation26], 4
      %s14229 = int_to_ptr.vmem [resolvable:$true] %s14228
      %14231 = dma.vmem_to_hbm [thread:$0]  %s14229, 16, %s20, [#allocation4]
    $region145: #{diffuser_forward.3} parent=1 // pred_fallthru
      _
    // Predicated region
    $region146: #{diffuser_forward.3} parent=1 // pred_check
      _
    $region147: #{diffuser_forward.3} parent=1 // pred_check_branch
      %14233 = sbr.rel (0) target = $region149
    $region148: #{diffuser_forward.3} parent=1 // pred_region
      %14234 = dma.done [#allocation4], 16
    $region149: #{diffuser_forward.3} parent=1 // pred_fallthru
      _
    %14235 = vsyncpa [#allocation3], 1
    %14236 = vsyncpa [#allocation6], 1
    %14237 = vsyncpa [#allocation9], 1
    %14238 = vsyncpa [#allocation12], 1
    %14239 = vsyncpa [#allocation15], 1
    %14240 = vsyncpa [#allocation18], 1
    %14241 = vsyncpa [#allocation21], 1
    %14242 = vsyncpa [#allocation24], 1
    %14243 = vsyncpa [#allocation4], 1

</llo_original>
